<compile_context>
chip_gen: v7x
topology: tpu7x:2x2x1
jax: 0.10.0
libtpu: 0.0.40
codegen_flags: <defaults>
</compile_context>

<pallas_src>
import functools

import jax
import jax.numpy as jnp
from jax.experimental import pallas as pl
from jax.experimental.pallas import tpu as pltpu


def _f32(x):
    return x if x.dtype == jnp.float32 else x.astype(jnp.float32)


def _make_kernel(neg_rounds, halo_rows, tile_n):
    def kernel(bias_ref, h_ref, w_ref, c_ref, halo_ref, out_ref):
        b = bias_ref[0]
        # MXU: hW = h_pl @ W, f32 accumulation.  Computed once per tile, reused by
        # every round (live vector data stays at TILE_N * H).
        hW = jnp.dot(h_ref[...], w_ref[...], preferred_element_type=jnp.float32)  # (T, H) f32
        c_tile = _f32(c_ref[...])                                                 # (T, H) f32

        # Round 0: identity pairing.
        out_ref[0, :] = jnp.sum(hW * c_tile, axis=-1) + b

        if neg_rounds > 0:
            # Prepend the halo rows once; every round is then a static sublane shift.
            c_ext = jnp.concatenate([_f32(halo_ref[0]), c_tile], axis=0)          # (HALO+T, H)
            for r in range(1, neg_rounds + 1):
                c_var = c_ext[halo_rows - r: halo_rows - r + tile_n, :]           # (T, H)
                out_ref[r, :] = jnp.sum(hW * c_var, axis=-1) + b

    return kernel


def discriminator_forward(c, h_pl, weight, bias, negsamp_round, *,
                          tile_n=256, compute_dtype=None):
    """c, h_pl: (N, n_h).  weight: (n_h, n_h).  bias: (1,).  Returns ((R*N), 1) f32."""
    N, H = c.shape
    assert h_pl.shape == (N, H) and weight.shape == (H, H)
    assert N >= 2, "PyTorch slicing c_mi[-2:-1] requires N >= 2"
    NEG = int(negsamp_round)
    R = NEG + 1
    HALO = max(NEG, 1)

    # Optional bf16 cast of the heavy streams (v6e/v7x); accumulation stays f32.
    if compute_dtype is not None:
        c = c.astype(compute_dtype)
        h_pl = h_pl.astype(compute_dtype)
        weight = weight.astype(compute_dtype)
    bias = bias.astype(jnp.float32)

    # Pad N up to a multiple of the (lane-dense) tile.
    num_tiles = -(-N // tile_n)
    N_pad = num_tiles * tile_n
    pad = N_pad - N
    c_p = jnp.pad(c, ((0, pad), (0, 0)))
    h_p = jnp.pad(h_pl, ((0, pad), (0, 0)))

    # Tiny per-tile halo: halo[t, k] = c[(t*tile_n - HALO + k) mod (N-1)]
    # (the NEG rows "before" each tile under the negative-sample row map).
    if NEG > 0:
        t_base = (jnp.arange(num_tiles, dtype=jnp.int32) * tile_n)[:, None]
        k = jnp.arange(HALO, dtype=jnp.int32)[None, :]
        src = jnp.mod(t_base - HALO + k, N - 1)
        halo = jnp.take(c, src, axis=0)                         # (num_tiles, HALO, H)
    else:
        halo = jnp.zeros((num_tiles, HALO, H), c_p.dtype)

    itemsize = jnp.dtype(c_p.dtype).itemsize
    block_bytes = (2 * tile_n * H + H * H + HALO * H) * itemsize + R * tile_n * 4
    vmem_limit = int(min(64 << 20, max(8 << 20, 4 * block_bytes + (2 << 20))))

    cost = pl.CostEstimate(
        flops=2 * N_pad * H * H + 2 * R * N_pad * H,
        transcendentals=0,
        bytes_accessed=(2 * N_pad * H + H * H + num_tiles * HALO * H) * itemsize
                       + R * N_pad * 4,
    )

    kernel = _make_kernel(NEG, HALO, tile_n)

    out = pl.pallas_call(
        kernel,
        out_shape=jax.ShapeDtypeStruct((R, N_pad), jnp.float32),
        grid=(num_tiles,),
        in_specs=[
            pl.BlockSpec(memory_space=pltpu.MemorySpace.SMEM),        # bias scalar
            pl.BlockSpec((tile_n, H), lambda t: (t, 0)),              # h_pl tile
            pl.BlockSpec((H, H), lambda t: (0, 0)),                   # W (resident)
            pl.BlockSpec((tile_n, H), lambda t: (t, 0)),              # c tile (once!)
            pl.BlockSpec((1, HALO, H), lambda t: (t, 0, 0)),          # per-tile halo
        ],
        out_specs=pl.BlockSpec((R, tile_n), lambda t: (0, t)),        # lane-dense scores
        compiler_params=pltpu.CompilerParams(
            dimension_semantics=("parallel",),
            vmem_limit_bytes=vmem_limit,
        ),
        cost_estimate=cost,
    )(bias, h_p, weight, c_p, halo)

    # PyTorch cat(scs) is round-major: (R, N) -> (R*N, 1).
    return out[:, :N].reshape(R * N, 1)


def _reference_forward(c, h_pl, weight, bias, negsamp_round):
    """Pure-JAX reference mirroring the PyTorch module exactly."""
    scs = []
    score = jnp.einsum("ni,ij,nj->n", h_pl, weight, c) + bias[0]
    scs.append(score[:, None])
    c_mi = c
    for _ in range(negsamp_round):
        c_mi = jnp.concatenate([c_mi[-2:-1, :], c_mi[:-1, :]], axis=0)
        score = jnp.einsum("ni,ij,nj->n", h_pl, weight, c_mi) + bias[0]
        scs.append(score[:, None])
    return jnp.concatenate(scs, axis=0)


if __name__ == "__main__":
    key = jax.random.PRNGKey(0)
    n_h = 32
    N = 8
    negsamp_round = 2

    k_w, k_c, k_h, k_c2, k_h2 = jax.random.split(key, 5)

    # xavier_uniform_ on the (1, n_h, n_h) bilinear weight, zero bias.
    bound = (6.0 / (n_h * n_h + n_h)) ** 0.5
    weight = jax.random.uniform(k_w, (n_h, n_h), jnp.float32, -bound, bound)
    bias = jnp.zeros((1,), jnp.float32)

    c = jax.random.normal(k_c, (N, n_h), jnp.float32)
    h_pl = jax.random.normal(k_h, (N, n_h), jnp.float32)

    # --- small shape, single tile ---
    logits = discriminator_forward(c, h_pl, weight, bias, negsamp_round)
    jax.block_until_ready(logits)
    ref = _reference_forward(c, h_pl, weight, bias, negsamp_round)
    assert logits.shape == ((negsamp_round + 1) * N, 1), logits.shape
    assert jnp.allclose(logits, ref, atol=1e-4, rtol=1e-4), "mismatch vs reference (small)"

    # --- multi-tile path (exercises halo across tile boundaries + padding trim) ---
    N2, neg2 = 300, 3
    c2 = jax.random.normal(k_c2, (N2, n_h), jnp.float32)
    h2 = jax.random.normal(k_h2, (N2, n_h), jnp.float32)
    logits2 = discriminator_forward(c2, h2, weight, bias, neg2, tile_n=128)
    jax.block_until_ready(logits2)
    ref2 = _reference_forward(c2, h2, weight, bias, neg2)
    assert jnp.allclose(logits2, ref2, atol=1e-4, rtol=1e-4), "mismatch vs reference (tiled)"

    # --- bf16 heavy-stream path (v6e/v7x); compare vs reference on bf16-rounded inputs ---
    logits_bf16 = discriminator_forward(c2, h2, weight, bias, neg2,
                                        tile_n=128, compute_dtype=jnp.bfloat16)
    jax.block_until_ready(logits_bf16)
    ref_bf16 = _reference_forward(_f32(c2.astype(jnp.bfloat16)),
                                  _f32(h2.astype(jnp.bfloat16)),
                                  _f32(weight.astype(jnp.bfloat16)),
                                  bias, neg2)
    assert jnp.allclose(logits_bf16, ref_bf16, atol=2e-3, rtol=2e-3), "mismatch (bf16 path)"

    print("KERNEL_OK")
</pallas_src>

<mosaic_0001>
module attributes {stable_mosaic.version = 11 : i64} {
  func.func @kernel(%arg0: i32, %arg1: memref<1xf32, #tpu.memory_space<smem>>, %arg2: memref<256x32xf32, #tpu.memory_space<vmem>>, %arg3: memref<32x32xf32, #tpu.memory_space<vmem>>, %arg4: memref<256x32xf32, #tpu.memory_space<vmem>>, %arg5: memref<1x2x32xf32, #tpu.memory_space<vmem>>, %arg6: memref<3x256xf32, #tpu.memory_space<vmem>>) attributes {dimension_semantics = [#tpu.dimension_semantics<parallel>], iteration_bounds = array<i64: 1>, scalar_prefetch = 0 : i64, scratch_operands = 0 : i64, tpu.core_type = #tpu.core_type<tc>, window_params = [{transform_indices = @transform_0, window_bounds = array<i64: 1>}, {transform_indices = @transform_1, window_bounds = array<i64: 256, 32>}, {pipeline_mode = #tpu.pipeline_mode<synchronous>, transform_indices = @transform_2, window_bounds = array<i64: 32, 32>}, {transform_indices = @transform_3, window_bounds = array<i64: 256, 32>}, {transform_indices = @transform_4, window_bounds = array<i64: 1, 2, 32>}, {transform_indices = @transform_5, window_bounds = array<i64: 3, 256>}]} {
    %c0 = arith.constant 0 : index
    %0 = memref.load %arg1[%c0] : memref<1xf32, #tpu.memory_space<smem>>
    %c0_0 = arith.constant 0 : index
    %c0_1 = arith.constant 0 : index
    %1 = vector.load %arg2[%c0_0, %c0_1] : memref<256x32xf32, #tpu.memory_space<vmem>>, vector<256x32xf32>
    %c0_2 = arith.constant 0 : index
    %c0_3 = arith.constant 0 : index
    %2 = vector.load %arg3[%c0_2, %c0_3] : memref<32x32xf32, #tpu.memory_space<vmem>>, vector<32x32xf32>
    %cst = arith.constant dense<0.000000e+00> : vector<256x32xf32>
    %3 = tpu.matmul %1, %2, %cst {dimension_numbers = #tpu.dot_dimension_numbers<[1], [0], [0], [1], [0, 0, 1, 1], [], []>} : vector<256x32xf32>, vector<32x32xf32>, vector<256x32xf32> -> vector<256x32xf32>
    %c0_4 = arith.constant 0 : index
    %c0_5 = arith.constant 0 : index
    %4 = vector.load %arg4[%c0_4, %c0_5] : memref<256x32xf32, #tpu.memory_space<vmem>>, vector<256x32xf32>
    %5 = arith.mulf %3, %4 : vector<256x32xf32>
    %cst_6 = arith.constant dense<0.000000e+00> : vector<256xf32>
    %6 = vector.multi_reduction <add>, %5, %cst_6 [1] : vector<256x32xf32> to vector<256xf32>
    %7 = vector.broadcast %0 : f32 to vector<256xf32>
    %8 = arith.addf %6, %7 : vector<256xf32>
    %c0_7 = arith.constant 0 : index
    %c0_8 = arith.constant 0 : index
    %9 = vector.load %arg6[%c0_7, %c0_8] : memref<3x256xf32, #tpu.memory_space<vmem>>, vector<1x256xf32>
    %10 = vector.shape_cast %9 : vector<1x256xf32> to vector<256xf32>
    %11 = vector.shape_cast %8 : vector<256xf32> to vector<1x256xf32>
    tpu.vector_store %arg6[%c0_7, %c0_8], %11 {strides = array<i32>} : memref<3x256xf32, #tpu.memory_space<vmem>>, vector<1x256xf32>,
    %c0_9 = arith.constant 0 : index
    %c0_10 = arith.constant 0 : index
    %c0_11 = arith.constant 0 : index
    %12 = vector.load %arg5[%c0_9, %c0_10, %c0_11] : memref<1x2x32xf32, #tpu.memory_space<vmem>>, vector<1x2x32xf32>
    %13 = vector.shape_cast %12 : vector<1x2x32xf32> to vector<2x32xf32>
    %14 = tpu.concatenate %13, %4 in 0 : vector<2x32xf32>, vector<256x32xf32> -> vector<258x32xf32>
    %15 = vector.extract_strided_slice %14 {offsets = [1, 0], sizes = [256, 32], strides = [1, 1]} : vector<258x32xf32> to vector<256x32xf32>
    %16 = arith.mulf %3, %15 : vector<256x32xf32>
    %cst_12 = arith.constant dense<0.000000e+00> : vector<256xf32>
    %17 = vector.multi_reduction <add>, %16, %cst_12 [1] : vector<256x32xf32> to vector<256xf32>
    %18 = vector.broadcast %0 : f32 to vector<256xf32>
    %19 = arith.addf %17, %18 : vector<256xf32>
    %c1 = arith.constant 1 : index
    %c0_13 = arith.constant 0 : index
    %20 = vector.load %arg6[%c1, %c0_13] : memref<3x256xf32, #tpu.memory_space<vmem>>, vector<1x256xf32>
    %21 = vector.shape_cast %20 : vector<1x256xf32> to vector<256xf32>
    %22 = vector.shape_cast %19 : vector<256xf32> to vector<1x256xf32>
    tpu.vector_store %arg6[%c1, %c0_13], %22 {strides = array<i32>} : memref<3x256xf32, #tpu.memory_space<vmem>>, vector<1x256xf32>,
    %23 = vector.extract_strided_slice %14 {offsets = [0, 0], sizes = [256, 32], strides = [1, 1]} : vector<258x32xf32> to vector<256x32xf32>
    %24 = arith.mulf %3, %23 : vector<256x32xf32>
    %cst_14 = arith.constant dense<0.000000e+00> : vector<256xf32>
    %25 = vector.multi_reduction <add>, %24, %cst_14 [1] : vector<256x32xf32> to vector<256xf32>
    %26 = vector.broadcast %0 : f32 to vector<256xf32>
    %27 = arith.addf %25, %26 : vector<256xf32>
    %c2 = arith.constant 2 : index
    %c0_15 = arith.constant 0 : index
    %28 = vector.load %arg6[%c2, %c0_15] : memref<3x256xf32, #tpu.memory_space<vmem>>, vector<1x256xf32>
    %29 = vector.shape_cast %28 : vector<1x256xf32> to vector<256xf32>
    %30 = vector.shape_cast %27 : vector<256xf32> to vector<1x256xf32>
    tpu.vector_store %arg6[%c2, %c0_15], %30 {strides = array<i32>} : memref<3x256xf32, #tpu.memory_space<vmem>>, vector<1x256xf32>,
    return
  }
  func.func @transform_0(%arg0: i32) -> i32 {
    %c0_i32 = arith.constant 0 : i32
    %c0_i32_0 = arith.constant 0 : i32
    return %c0_i32 : i32
  }
  func.func @transform_1(%arg0: i32) -> (i32, i32) {
    %c0_i32 = arith.constant 0 : i32
    %c0_i32_0 = arith.constant 0 : i32
    return %arg0, %c0_i32 : i32, i32
  }
  func.func @transform_2(%arg0: i32) -> (i32, i32) {
    %c0_i32 = arith.constant 0 : i32
    %c0_i32_0 = arith.constant 0 : i32
    %c0_i32_1 = arith.constant 0 : i32
    return %c0_i32, %c0_i32_0 : i32, i32
  }
  func.func @transform_3(%arg0: i32) -> (i32, i32) {
    %c0_i32 = arith.constant 0 : i32
    %c0_i32_0 = arith.constant 0 : i32
    return %arg0, %c0_i32 : i32, i32
  }
  func.func @transform_4(%arg0: i32) -> (i32, i32, i32) {
    %c0_i32 = arith.constant 0 : i32
    %c0_i32_0 = arith.constant 0 : i32
    %c0_i32_1 = arith.constant 0 : i32
    return %arg0, %c0_i32, %c0_i32_0 : i32, i32, i32
  }
  func.func @transform_5(%arg0: i32) -> (i32, i32) {
    %c0_i32 = arith.constant 0 : i32
    %c0_i32_0 = arith.constant 0 : i32
    return %c0_i32, %arg0 : i32, i32
  }
}

</mosaic_0001>

<llo_original>
// kernel: tpu_custom_call.1
$region0: #{tpu_custom_call.1}
  #allocation0 [shape = 'u32[]', space=smem, size = 0x4, offset = 0x4, fixed_abs, tag = 'smem constant byte address 0x4 - core index']
  #allocation1 [shape = 'u32[144,128]{1,0:T(1,128)}', space=vmem, size = 0x12000, scoped, tag = 'internal scratch']
  #allocation2 [shape = 'f32[1]{0:T(128)S(6)}', space=smem, size = 0x200, scoped, tag = 'scoped memory for tpu_custom_call.1']
  %s0 = inlined_call_operand.<no memory space> [shape: f32[1], index: 0, kind: input, shape index: {}]
  %s1 = inlined_call_operand.vmem [shape: f32[256,32], index: 1, kind: input, shape index: {}]
  %s2 = inlined_call_operand.vmem [shape: f32[32,32], index: 2, kind: input, shape index: {}]
  %s3 = inlined_call_operand.vmem [shape: f32[256,32], index: 3, kind: input, shape index: {}]
  %s4 = inlined_call_operand.vmem [shape: f32[1,2,32], index: 4, kind: input, shape index: {}]
  %s5 = inlined_call_operand.hbm [shape: f32[3,256], index: 5, kind: output, shape index: {}]
  %s6 = sld [smem:[#allocation0]]
  $region30: #{tpu_custom_call.1} parent=0
    _
  %s8 = ssub.s32 1, %s6
  %s9 = scalar_select 0, %s8, %s6
  %10 = sst [smem:[#allocation2]] %s0
  $region1: #{tpu_custom_call.1} parent=0
    #allocation3 [shape = 'u8[4096]{0}', space=vmem, size = 0x1000, scoped, tag = 'output window, operand 0, single buffered']
    #allocation4 [shape = 's32[1]{0}', space=sflag, size = 0x4, scoped, tag = 'scoped memory for tpu_custom_call.1']
    %11 = vsyncpa [#allocation4], 0
    // Predicated region
    $region2: #{tpu_custom_call.1} parent=1 // pred_check
      _
    $region3: #{tpu_custom_call.1} parent=1 // pred_check_branch
      %13 = sbr.rel (0) target = $region5
    $region4: #{tpu_custom_call.1} parent=1 // pred_region
      _
    $region5: #{tpu_custom_call.1} parent=1 // pred_fallthru
      _
    // Predicated region
    $region6: #{tpu_custom_call.1} parent=1 // pred_check
      _
    $region7: #{tpu_custom_call.1} parent=1 // pred_check_branch
      %15 = sbr.rel (0) target = $region9
    $region8: #{tpu_custom_call.1} parent=1 // pred_region
      _
    $region9: #{tpu_custom_call.1} parent=1 // pred_fallthru
      _
    // Predicated region
    $region10: #{tpu_custom_call.1} parent=1 // pred_check
      _
    $region11: #{tpu_custom_call.1} parent=1 // pred_check_branch
      %17 = sbr.rel (0) target = $region13
    $region12: #{tpu_custom_call.1} parent=1 // pred_region
      _
    $region13: #{tpu_custom_call.1} parent=1 // pred_fallthru
      _
    // Predicated region
    $region14: #{tpu_custom_call.1} parent=1 // pred_check
      _
    $region15: #{tpu_custom_call.1} parent=1 // pred_check_branch
      %19 = sbr.rel (0) target = $region17
    $region16: #{tpu_custom_call.1} parent=1 // pred_region
      _
    $region17: #{tpu_custom_call.1} parent=1 // pred_fallthru
      _
    // Predicated region
    $region18: #{tpu_custom_call.1} parent=1 // pred_check
      _
    $region19: #{tpu_custom_call.1} parent=1 // pred_check_branch
      %21 = sbr.rel (0) target = $region21
    $region20: #{tpu_custom_call.1} parent=1 // pred_region
      _
    $region21: #{tpu_custom_call.1} parent=1 // pred_fallthru
      _
    %s22 = sld [smem:[#allocation2]]
    %v23 = vld [vmem:[%s1] sm:$0xff]
    %v24 = vld [vmem:[%s1 + $0x8] sm:$0xff]
    %v25 = vld [vmem:[%s1 + $0x10] sm:$0xff]
    %v26 = vld [vmem:[%s1 + $0x18] sm:$0xff]
    %v27 = vld [vmem:[%s1 + $0x20] sm:$0xff]
    %v28 = vld [vmem:[%s1 + $0x28] sm:$0xff]
    %v29 = vld [vmem:[%s1 + $0x30] sm:$0xff]
    %v30 = vld [vmem:[%s1 + $0x38] sm:$0xff]
    %v31 = vld [vmem:[%s1 + $0x40] sm:$0xff]
    %v32 = vld [vmem:[%s1 + $0x48] sm:$0xff]
    %v33 = vld [vmem:[%s1 + $0x50] sm:$0xff]
    %v34 = vld [vmem:[%s1 + $0x58] sm:$0xff]
    %v35 = vld [vmem:[%s1 + $0x60] sm:$0xff]
    %v36 = vld [vmem:[%s1 + $0x68] sm:$0xff]
    %v37 = vld [vmem:[%s1 + $0x70] sm:$0xff]
    %v38 = vld [vmem:[%s1 + $0x78] sm:$0xff]
    %v39 = vld [vmem:[%s1 + $0x80] sm:$0xff]
    %v40 = vld [vmem:[%s1 + $0x88] sm:$0xff]
    %v41 = vld [vmem:[%s1 + $0x90] sm:$0xff]
    %v42 = vld [vmem:[%s1 + $0x98] sm:$0xff]
    %v43 = vld [vmem:[%s1 + $0xa0] sm:$0xff]
    %v44 = vld [vmem:[%s1 + $0xa8] sm:$0xff]
    %v45 = vld [vmem:[%s1 + $0xb0] sm:$0xff]
    %v46 = vld [vmem:[%s1 + $0xb8] sm:$0xff]
    %v47 = vld [vmem:[%s1 + $0xc0] sm:$0xff]
    %v48 = vld [vmem:[%s1 + $0xc8] sm:$0xff]
    %v49 = vld [vmem:[%s1 + $0xd0] sm:$0xff]
    %v50 = vld [vmem:[%s1 + $0xd8] sm:$0xff]
    %v51 = vld [vmem:[%s1 + $0xe0] sm:$0xff]
    %v52 = vld [vmem:[%s1 + $0xe8] sm:$0xff]
    %v53 = vld [vmem:[%s1 + $0xf0] sm:$0xff]
    %v54 = vld [vmem:[%s1 + $0xf8] sm:$0xff]
    %v55 = vld [vmem:[%s2] sm:$0xff]
    %v56 = vld [vmem:[%s2 + $0x8] sm:$0xff]
    %v57 = vld [vmem:[%s2 + $0x10] sm:$0xff]
    %v58 = vld [vmem:[%s2 + $0x18] sm:$0xff]
    %vm59 = vcmask 261120
    %v61 = vsel %vm59, %v23, 0
    %v64 = vsel %vm59, %v24, 0
    %v67 = vsel %vm59, %v25, 0
    %v70 = vsel %vm59, %v26, 0
    %v73 = vsel %vm59, %v27, 0
    %v76 = vsel %vm59, %v28, 0
    %v79 = vsel %vm59, %v29, 0
    %v82 = vsel %vm59, %v30, 0
    %v85 = vsel %vm59, %v31, 0
    %v88 = vsel %vm59, %v32, 0
    %v91 = vsel %vm59, %v33, 0
    %v94 = vsel %vm59, %v34, 0
    %v97 = vsel %vm59, %v35, 0
    %v100 = vsel %vm59, %v36, 0
    %v103 = vsel %vm59, %v37, 0
    %v106 = vsel %vm59, %v38, 0
    %v109 = vsel %vm59, %v39, 0
    %v112 = vsel %vm59, %v40, 0
    %v115 = vsel %vm59, %v41, 0
    %v118 = vsel %vm59, %v42, 0
    %v121 = vsel %vm59, %v43, 0
    %v124 = vsel %vm59, %v44, 0
    %v127 = vsel %vm59, %v45, 0
    %v130 = vsel %vm59, %v46, 0
    %v133 = vsel %vm59, %v47, 0
    %v136 = vsel %vm59, %v48, 0
    %v139 = vsel %vm59, %v49, 0
    %v142 = vsel %vm59, %v50, 0
    %v145 = vsel %vm59, %v51, 0
    %v148 = vsel %vm59, %v52, 0
    %v151 = vsel %vm59, %v53, 0
    %v154 = vsel %vm59, %v54, 0
    %156 = vmatprep.subr.mxu0 0.0
    %157 = vmatpush1.msra.mxu0 %v55
    %158 = vmatprep.subr.mxu0 0.0
    %159 = vmatpush1.msra.mxu0 %v56
    %160 = vmatprep.subr.mxu0 0.0
    %161 = vmatpush1.msra.mxu0 %v57
    %162 = vmatprep.subr.mxu0 0.0
    %163 = vmatpush1.msra.mxu0 %v58
    %164 = vmatprep.subr.mxu0 0.0
    %165 = vmatpush1.msra.mxu0 0.0
    %166 = vmatprep.subr.mxu0 0.0
    %167 = vmatpush1.msra.mxu0 0.0
    %168 = vmatprep.subr.mxu0 0.0
    %169 = vmatpush1.msra.mxu0 0.0
    %170 = vmatprep.subr.mxu0 0.0
    %171 = vmatpush1.msra.mxu0 0.0
    %172 = vmatprep.subr.mxu0 0.0
    %173 = vmatpush1.msra.mxu0 0.0
    %174 = vmatprep.subr.mxu0 0.0
    %175 = vmatpush1.msra.mxu0 0.0
    %176 = vmatprep.subr.mxu0 0.0
    %177 = vmatpush1.msra.mxu0 0.0
    %178 = vmatprep.subr.mxu0 0.0
    %179 = vmatpush1.msra.mxu0 0.0
    %180 = vmatprep.subr.mxu0 0.0
    %181 = vmatpush1.msra.mxu0 0.0
    %182 = vmatprep.subr.mxu0 0.0
    %183 = vmatpush1.msra.mxu0 0.0
    %184 = vmatprep.subr.mxu0 0.0
    %185 = vmatpush1.msra.mxu0 0.0
    %186 = vmatprep.subr.mxu0 0.0
    %187 = vmatpush1.msra.mxu0 0.0
    %188 = vmatprep.subr.mxu0 0.0
    %189 = vmatpush1.msra.mxu0 0.0
    %190 = vmatprep.subr.mxu0 0.0
    %191 = vmatpush1.msra.mxu0 0.0
    %192 = vmatprep.subr.mxu0 0.0
    %193 = vmatpush1.msra.mxu0 0.0
    %194 = vmatprep.subr.mxu0 0.0
    %195 = vmatpush1.msra.mxu0 0.0
    %196 = vmatprep.subr.mxu0 0.0
    %197 = vmatpush1.msra.mxu0 0.0
    %198 = vmatprep.subr.mxu0 0.0
    %199 = vmatpush1.msra.mxu0 0.0
    %200 = vmatprep.subr.mxu0 0.0
    %201 = vmatpush1.msra.mxu0 0.0
    %202 = vmatprep.subr.mxu0 0.0
    %203 = vmatpush1.msra.mxu0 0.0
    %204 = vmatprep.subr.mxu0 0.0
    %205 = vmatpush1.msra.mxu0 0.0
    %206 = vmatprep.subr.mxu0 0.0
    %207 = vmatpush1.msra.mxu0 0.0
    %208 = vmatprep.subr.mxu0 0.0
    %209 = vmatpush1.msra.mxu0 0.0
    %210 = vmatprep.subr.mxu0 0.0
    %211 = vmatpush1.msra.mxu0 0.0
    %212 = vmatprep.subr.mxu0 0.0
    %213 = vmatpush1.msra.mxu0 0.0
    %214 = vmatprep.subr.mxu0 0.0
    %215 = vmatpush1.msra.mxu0 0.0
    %216 = vmatprep.subr.mxu0 0.0
    %217 = vmatpush1.msra.mxu0 0.0
    %218 = vmatprep.subr.mxu0 0.0
    %219 = vmatpush1.msra.mxu0 0.0
    %220 = vmatprep.mubr.f32.mxu0 0.0
    %221 = vmatmul.mubr.f32.gmra.mrb[0].mxu0 %v61
    %v222 = vpop.f32.mrb[0].mxu0
    %v223 = vadd.f32 0.0, %v222
    %v224 = vpop.f32.mrb[0].mxu0
    %225 = vmatprep.mubr.f32.mxu0 0.0
    %226 = vmatmul.mubr.f32.gmra.mrb[0].mxu0 %v64
    %v227 = vpop.f32.mrb[0].mxu0
    %v228 = vadd.f32 0.0, %v227
    %v229 = vpop.f32.mrb[0].mxu0
    %230 = vmatprep.mubr.f32.mxu0 0.0
    %231 = vmatmul.mubr.f32.gmra.mrb[0].mxu0 %v67
    %v232 = vpop.f32.mrb[0].mxu0
    %v233 = vadd.f32 0.0, %v232
    %v234 = vpop.f32.mrb[0].mxu0
    %235 = vmatprep.mubr.f32.mxu0 0.0
    %236 = vmatmul.mubr.f32.gmra.mrb[0].mxu0 %v70
    %v237 = vpop.f32.mrb[0].mxu0
    %v238 = vadd.f32 0.0, %v237
    %v239 = vpop.f32.mrb[0].mxu0
    %240 = vmatprep.mubr.f32.mxu0 0.0
    %241 = vmatmul.mubr.f32.gmra.mrb[0].mxu0 %v73
    %v242 = vpop.f32.mrb[0].mxu0
    %v243 = vadd.f32 0.0, %v242
    %v244 = vpop.f32.mrb[0].mxu0
    %245 = vmatprep.mubr.f32.mxu0 0.0
    %246 = vmatmul.mubr.f32.gmra.mrb[0].mxu0 %v76
    %v247 = vpop.f32.mrb[0].mxu0
    %v248 = vadd.f32 0.0, %v247
    %v249 = vpop.f32.mrb[0].mxu0
    %250 = vmatprep.mubr.f32.mxu0 0.0
    %251 = vmatmul.mubr.f32.gmra.mrb[0].mxu0 %v79
    %v252 = vpop.f32.mrb[0].mxu0
    %v253 = vadd.f32 0.0, %v252
    %v254 = vpop.f32.mrb[0].mxu0
    %255 = vmatprep.mubr.f32.mxu0 0.0
    %256 = vmatmul.mubr.f32.gmra.mrb[0].mxu0 %v82
    %v257 = vpop.f32.mrb[0].mxu0
    %v258 = vadd.f32 0.0, %v257
    %v259 = vpop.f32.mrb[0].mxu0
    %260 = vmatprep.mubr.f32.mxu0 0.0
    %261 = vmatmul.mubr.f32.gmra.mrb[0].mxu0 %v85
    %v262 = vpop.f32.mrb[0].mxu0
    %v263 = vadd.f32 0.0, %v262
    %v264 = vpop.f32.mrb[0].mxu0
    %265 = vmatprep.mubr.f32.mxu0 0.0
    %266 = vmatmul.mubr.f32.gmra.mrb[0].mxu0 %v88
    %v267 = vpop.f32.mrb[0].mxu0
    %v268 = vadd.f32 0.0, %v267
    %v269 = vpop.f32.mrb[0].mxu0
    %270 = vmatprep.mubr.f32.mxu0 0.0
    %271 = vmatmul.mubr.f32.gmra.mrb[0].mxu0 %v91
    %v272 = vpop.f32.mrb[0].mxu0
    %v273 = vadd.f32 0.0, %v272
    %v274 = vpop.f32.mrb[0].mxu0
    %275 = vmatprep.mubr.f32.mxu0 0.0
    %276 = vmatmul.mubr.f32.gmra.mrb[0].mxu0 %v94
    %v277 = vpop.f32.mrb[0].mxu0
    %v278 = vadd.f32 0.0, %v277
    %v279 = vpop.f32.mrb[0].mxu0
    %280 = vmatprep.mubr.f32.mxu0 0.0
    %281 = vmatmul.mubr.f32.gmra.mrb[0].mxu0 %v97
    %v282 = vpop.f32.mrb[0].mxu0
    %v283 = vadd.f32 0.0, %v282
    %v284 = vpop.f32.mrb[0].mxu0
    %285 = vmatprep.mubr.f32.mxu0 0.0
    %286 = vmatmul.mubr.f32.gmra.mrb[0].mxu0 %v100
    %v287 = vpop.f32.mrb[0].mxu0
    %v288 = vadd.f32 0.0, %v287
    %v289 = vpop.f32.mrb[0].mxu0
    %290 = vmatprep.mubr.f32.mxu0 0.0
    %291 = vmatmul.mubr.f32.gmra.mrb[0].mxu0 %v103
    %v292 = vpop.f32.mrb[0].mxu0
    %v293 = vadd.f32 0.0, %v292
    %v294 = vpop.f32.mrb[0].mxu0
    %295 = vmatprep.mubr.f32.mxu0 0.0
    %296 = vmatmul.mubr.f32.gmra.mrb[0].mxu0 %v106
    %v297 = vpop.f32.mrb[0].mxu0
    %v298 = vadd.f32 0.0, %v297
    %v299 = vpop.f32.mrb[0].mxu0
    %300 = vmatprep.mubr.f32.mxu0 0.0
    %301 = vmatmul.mubr.f32.gmra.mrb[0].mxu0 %v109
    %v302 = vpop.f32.mrb[0].mxu0
    %v303 = vadd.f32 0.0, %v302
    %v304 = vpop.f32.mrb[0].mxu0
    %305 = vmatprep.mubr.f32.mxu0 0.0
    %306 = vmatmul.mubr.f32.gmra.mrb[0].mxu0 %v112
    %v307 = vpop.f32.mrb[0].mxu0
    %v308 = vadd.f32 0.0, %v307
    %v309 = vpop.f32.mrb[0].mxu0
    %310 = vmatprep.mubr.f32.mxu0 0.0
    %311 = vmatmul.mubr.f32.gmra.mrb[0].mxu0 %v115
    %v312 = vpop.f32.mrb[0].mxu0
    %v313 = vadd.f32 0.0, %v312
    %v314 = vpop.f32.mrb[0].mxu0
    %315 = vmatprep.mubr.f32.mxu0 0.0
    %316 = vmatmul.mubr.f32.gmra.mrb[0].mxu0 %v118
    %v317 = vpop.f32.mrb[0].mxu0
    %v318 = vadd.f32 0.0, %v317
    %v319 = vpop.f32.mrb[0].mxu0
    %320 = vmatprep.mubr.f32.mxu0 0.0
    %321 = vmatmul.mubr.f32.gmra.mrb[0].mxu0 %v121
    %v322 = vpop.f32.mrb[0].mxu0
    %v323 = vadd.f32 0.0, %v322
    %v324 = vpop.f32.mrb[0].mxu0
    %325 = vmatprep.mubr.f32.mxu0 0.0
    %326 = vmatmul.mubr.f32.gmra.mrb[0].mxu0 %v124
    %v327 = vpop.f32.mrb[0].mxu0
    %v328 = vadd.f32 0.0, %v327
    %v329 = vpop.f32.mrb[0].mxu0
    %330 = vmatprep.mubr.f32.mxu0 0.0
    %331 = vmatmul.mubr.f32.gmra.mrb[0].mxu0 %v127
    %v332 = vpop.f32.mrb[0].mxu0
    %v333 = vadd.f32 0.0, %v332
    %v334 = vpop.f32.mrb[0].mxu0
    %335 = vmatprep.mubr.f32.mxu0 0.0
    %336 = vmatmul.mubr.f32.gmra.mrb[0].mxu0 %v130
    %v337 = vpop.f32.mrb[0].mxu0
    %v338 = vadd.f32 0.0, %v337
    %v339 = vpop.f32.mrb[0].mxu0
    %340 = vmatprep.mubr.f32.mxu0 0.0
    %341 = vmatmul.mubr.f32.gmra.mrb[0].mxu0 %v133
    %v342 = vpop.f32.mrb[0].mxu0
    %v343 = vadd.f32 0.0, %v342
    %v344 = vpop.f32.mrb[0].mxu0
    %345 = vmatprep.mubr.f32.mxu0 0.0
    %346 = vmatmul.mubr.f32.gmra.mrb[0].mxu0 %v136
    %v347 = vpop.f32.mrb[0].mxu0
    %v348 = vadd.f32 0.0, %v347
    %v349 = vpop.f32.mrb[0].mxu0
    %350 = vmatprep.mubr.f32.mxu0 0.0
    %351 = vmatmul.mubr.f32.gmra.mrb[0].mxu0 %v139
    %v352 = vpop.f32.mrb[0].mxu0
    %v353 = vadd.f32 0.0, %v352
    %v354 = vpop.f32.mrb[0].mxu0
    %355 = vmatprep.mubr.f32.mxu0 0.0
    %356 = vmatmul.mubr.f32.gmra.mrb[0].mxu0 %v142
    %v357 = vpop.f32.mrb[0].mxu0
    %v358 = vadd.f32 0.0, %v357
    %v359 = vpop.f32.mrb[0].mxu0
    %360 = vmatprep.mubr.f32.mxu0 0.0
    %361 = vmatmul.mubr.f32.gmra.mrb[0].mxu0 %v145
    %v362 = vpop.f32.mrb[0].mxu0
    %v363 = vadd.f32 0.0, %v362
    %v364 = vpop.f32.mrb[0].mxu0
    %365 = vmatprep.mubr.f32.mxu0 0.0
    %366 = vmatmul.mubr.f32.gmra.mrb[0].mxu0 %v148
    %v367 = vpop.f32.mrb[0].mxu0
    %v368 = vadd.f32 0.0, %v367
    %v369 = vpop.f32.mrb[0].mxu0
    %370 = vmatprep.mubr.f32.mxu0 0.0
    %371 = vmatmul.mubr.f32.gmra.mrb[0].mxu0 %v151
    %v372 = vpop.f32.mrb[0].mxu0
    %v373 = vadd.f32 0.0, %v372
    %v374 = vpop.f32.mrb[0].mxu0
    %375 = vmatprep.mubr.f32.mxu0 0.0
    %376 = vmatmul.mubr.f32.gmra.mrb[0].mxu0 %v154
    %v377 = vpop.f32.mrb[0].mxu0
    %v378 = vadd.f32 0.0, %v377
    %v379 = vpop.f32.mrb[0].mxu0
    %380 = vdwg.mxu0
    %v381 = vld [vmem:[%s3] sm:$0xff]
    %v382 = vld [vmem:[%s3 + $0x8] sm:$0xff]
    %v383 = vld [vmem:[%s3 + $0x10] sm:$0xff]
    %v384 = vld [vmem:[%s3 + $0x18] sm:$0xff]
    %v385 = vld [vmem:[%s3 + $0x20] sm:$0xff]
    %v386 = vld [vmem:[%s3 + $0x28] sm:$0xff]
    %v387 = vld [vmem:[%s3 + $0x30] sm:$0xff]
    %v388 = vld [vmem:[%s3 + $0x38] sm:$0xff]
    %v389 = vld [vmem:[%s3 + $0x40] sm:$0xff]
    %v390 = vld [vmem:[%s3 + $0x48] sm:$0xff]
    %v391 = vld [vmem:[%s3 + $0x50] sm:$0xff]
    %v392 = vld [vmem:[%s3 + $0x58] sm:$0xff]
    %v393 = vld [vmem:[%s3 + $0x60] sm:$0xff]
    %v394 = vld [vmem:[%s3 + $0x68] sm:$0xff]
    %v395 = vld [vmem:[%s3 + $0x70] sm:$0xff]
    %v396 = vld [vmem:[%s3 + $0x78] sm:$0xff]
    %v397 = vld [vmem:[%s3 + $0x80] sm:$0xff]
    %v398 = vld [vmem:[%s3 + $0x88] sm:$0xff]
    %v399 = vld [vmem:[%s3 + $0x90] sm:$0xff]
    %v400 = vld [vmem:[%s3 + $0x98] sm:$0xff]
    %v401 = vld [vmem:[%s3 + $0xa0] sm:$0xff]
    %v402 = vld [vmem:[%s3 + $0xa8] sm:$0xff]
    %v403 = vld [vmem:[%s3 + $0xb0] sm:$0xff]
    %v404 = vld [vmem:[%s3 + $0xb8] sm:$0xff]
    %v405 = vld [vmem:[%s3 + $0xc0] sm:$0xff]
    %v406 = vld [vmem:[%s3 + $0xc8] sm:$0xff]
    %v407 = vld [vmem:[%s3 + $0xd0] sm:$0xff]
    %v408 = vld [vmem:[%s3 + $0xd8] sm:$0xff]
    %v409 = vld [vmem:[%s3 + $0xe0] sm:$0xff]
    %v410 = vld [vmem:[%s3 + $0xe8] sm:$0xff]
    %v411 = vld [vmem:[%s3 + $0xf0] sm:$0xff]
    %v412 = vld [vmem:[%s3 + $0xf8] sm:$0xff]
    %v413 = vmul.f32 %v223, %v381
    %v414 = vmul.f32 %v228, %v382
    %v415 = vmul.f32 %v233, %v383
    %v416 = vmul.f32 %v238, %v384
    %v417 = vmul.f32 %v243, %v385
    %v418 = vmul.f32 %v248, %v386
    %v419 = vmul.f32 %v253, %v387
    %v420 = vmul.f32 %v258, %v388
    %v421 = vmul.f32 %v263, %v389
    %v422 = vmul.f32 %v268, %v390
    %v423 = vmul.f32 %v273, %v391
    %v424 = vmul.f32 %v278, %v392
    %v425 = vmul.f32 %v283, %v393
    %v426 = vmul.f32 %v288, %v394
    %v427 = vmul.f32 %v293, %v395
    %v428 = vmul.f32 %v298, %v396
    %v429 = vmul.f32 %v303, %v397
    %v430 = vmul.f32 %v308, %v398
    %v431 = vmul.f32 %v313, %v399
    %v432 = vmul.f32 %v318, %v400
    %v433 = vmul.f32 %v323, %v401
    %v434 = vmul.f32 %v328, %v402
    %v435 = vmul.f32 %v333, %v403
    %v436 = vmul.f32 %v338, %v404
    %v437 = vmul.f32 %v343, %v405
    %v438 = vmul.f32 %v348, %v406
    %v439 = vmul.f32 %v353, %v407
    %v440 = vmul.f32 %v358, %v408
    %v441 = vmul.f32 %v363, %v409
    %v442 = vmul.f32 %v368, %v410
    %v443 = vmul.f32 %v373, %v411
    %v444 = vmul.f32 %v378, %v412
    %v445 = vsel %vm59, %v413, 0.0
    %446 = vadd.xlane.f32.xlu0 %v445
    %v447 = vpop.xlane.xlu0 %446
    %v448 = vsel %vm59, %v414, 0.0
    %449 = vadd.xlane.f32.xlu0 %v448
    %v450 = vpop.xlane.xlu0 %449
    %v451 = vsel %vm59, %v415, 0.0
    %452 = vadd.xlane.f32.xlu0 %v451
    %v453 = vpop.xlane.xlu0 %452
    %v454 = vsel %vm59, %v416, 0.0
    %455 = vadd.xlane.f32.xlu0 %v454
    %v456 = vpop.xlane.xlu0 %455
    %v457 = vsel %vm59, %v417, 0.0
    %458 = vadd.xlane.f32.xlu0 %v457
    %v459 = vpop.xlane.xlu0 %458
    %v460 = vsel %vm59, %v418, 0.0
    %461 = vadd.xlane.f32.xlu0 %v460
    %v462 = vpop.xlane.xlu0 %461
    %v463 = vsel %vm59, %v419, 0.0
    %464 = vadd.xlane.f32.xlu0 %v463
    %v465 = vpop.xlane.xlu0 %464
    %v466 = vsel %vm59, %v420, 0.0
    %467 = vadd.xlane.f32.xlu0 %v466
    %v468 = vpop.xlane.xlu0 %467
    %v469 = vsel %vm59, %v421, 0.0
    %470 = vadd.xlane.f32.xlu0 %v469
    %v471 = vpop.xlane.xlu0 %470
    %v472 = vsel %vm59, %v422, 0.0
    %473 = vadd.xlane.f32.xlu0 %v472
    %v474 = vpop.xlane.xlu0 %473
    %v475 = vsel %vm59, %v423, 0.0
    %476 = vadd.xlane.f32.xlu0 %v475
    %v477 = vpop.xlane.xlu0 %476
    %v478 = vsel %vm59, %v424, 0.0
    %479 = vadd.xlane.f32.xlu0 %v478
    %v480 = vpop.xlane.xlu0 %479
    %v481 = vsel %vm59, %v425, 0.0
    %482 = vadd.xlane.f32.xlu0 %v481
    %v483 = vpop.xlane.xlu0 %482
    %v484 = vsel %vm59, %v426, 0.0
    %485 = vadd.xlane.f32.xlu0 %v484
    %v486 = vpop.xlane.xlu0 %485
    %v487 = vsel %vm59, %v427, 0.0
    %488 = vadd.xlane.f32.xlu0 %v487
    %v489 = vpop.xlane.xlu0 %488
    %v490 = vsel %vm59, %v428, 0.0
    %491 = vadd.xlane.f32.xlu0 %v490
    %v492 = vpop.xlane.xlu0 %491
    %v493 = vsel %vm59, %v429, 0.0
    %494 = vadd.xlane.f32.xlu0 %v493
    %v495 = vpop.xlane.xlu0 %494
    %v496 = vsel %vm59, %v430, 0.0
    %497 = vadd.xlane.f32.xlu0 %v496
    %v498 = vpop.xlane.xlu0 %497
    %v499 = vsel %vm59, %v431, 0.0
    %500 = vadd.xlane.f32.xlu0 %v499
    %v501 = vpop.xlane.xlu0 %500
    %v502 = vsel %vm59, %v432, 0.0
    %503 = vadd.xlane.f32.xlu0 %v502
    %v504 = vpop.xlane.xlu0 %503
    %v505 = vsel %vm59, %v433, 0.0
    %506 = vadd.xlane.f32.xlu0 %v505
    %v507 = vpop.xlane.xlu0 %506
    %v508 = vsel %vm59, %v434, 0.0
    %509 = vadd.xlane.f32.xlu0 %v508
    %v510 = vpop.xlane.xlu0 %509
    %v511 = vsel %vm59, %v435, 0.0
    %512 = vadd.xlane.f32.xlu0 %v511
    %v513 = vpop.xlane.xlu0 %512
    %v514 = vsel %vm59, %v436, 0.0
    %515 = vadd.xlane.f32.xlu0 %v514
    %v516 = vpop.xlane.xlu0 %515
    %v517 = vsel %vm59, %v437, 0.0
    %518 = vadd.xlane.f32.xlu0 %v517
    %v519 = vpop.xlane.xlu0 %518
    %v520 = vsel %vm59, %v438, 0.0
    %521 = vadd.xlane.f32.xlu0 %v520
    %v522 = vpop.xlane.xlu0 %521
    %v523 = vsel %vm59, %v439, 0.0
    %524 = vadd.xlane.f32.xlu0 %v523
    %v525 = vpop.xlane.xlu0 %524
    %v526 = vsel %vm59, %v440, 0.0
    %527 = vadd.xlane.f32.xlu0 %v526
    %v528 = vpop.xlane.xlu0 %527
    %v529 = vsel %vm59, %v441, 0.0
    %530 = vadd.xlane.f32.xlu0 %v529
    %v531 = vpop.xlane.xlu0 %530
    %v532 = vsel %vm59, %v442, 0.0
    %533 = vadd.xlane.f32.xlu0 %v532
    %v534 = vpop.xlane.xlu0 %533
    %v535 = vsel %vm59, %v443, 0.0
    %536 = vadd.xlane.f32.xlu0 %v535
    %v537 = vpop.xlane.xlu0 %536
    %v538 = vsel %vm59, %v444, 0.0
    %539 = vadd.xlane.f32.xlu0 %v538
    %v540 = vpop.xlane.xlu0 %539
    %v541 = vstv %s22
    %v542 = vadd.f32 %v447, %v541
    %v543 = vadd.f32 %v450, %v541
    %v544 = vadd.f32 %v453, %v541
    %v545 = vadd.f32 %v456, %v541
    %v546 = vadd.f32 %v459, %v541
    %v547 = vadd.f32 %v462, %v541
    %v548 = vadd.f32 %v465, %v541
    %v549 = vadd.f32 %v468, %v541
    %v550 = vadd.f32 %v471, %v541
    %v551 = vadd.f32 %v474, %v541
    %v552 = vadd.f32 %v477, %v541
    %v553 = vadd.f32 %v480, %v541
    %v554 = vadd.f32 %v483, %v541
    %v555 = vadd.f32 %v486, %v541
    %v556 = vadd.f32 %v489, %v541
    %v557 = vadd.f32 %v492, %v541
    %v558 = vadd.f32 %v495, %v541
    %v559 = vadd.f32 %v498, %v541
    %v560 = vadd.f32 %v501, %v541
    %v561 = vadd.f32 %v504, %v541
    %v562 = vadd.f32 %v507, %v541
    %v563 = vadd.f32 %v510, %v541
    %v564 = vadd.f32 %v513, %v541
    %v565 = vadd.f32 %v516, %v541
    %v566 = vadd.f32 %v519, %v541
    %v567 = vadd.f32 %v522, %v541
    %v568 = vadd.f32 %v525, %v541
    %v569 = vadd.f32 %v528, %v541
    %v570 = vadd.f32 %v531, %v541
    %v571 = vadd.f32 %v534, %v541
    %v572 = vadd.f32 %v537, %v541
    %v573 = vadd.f32 %v540, %v541
    %v606 = vlaneseq
    %v607 = vshrl.u32 %v606, 7
    %v608 = vsub.s32 0, %v607
    %v609 = vrot.slane %v542, %v608
    %v610 = vlaneseq
    %v611 = vshrl.u32 %v610, 7
    %v612 = vsub.s32 1, %v611
    %v613 = vrot.slane %v542, %v612
    %v614 = vlaneseq
    %v615 = vshrl.u32 %v614, 7
    %v616 = vsub.s32 2, %v615
    %v617 = vrot.slane %v542, %v616
    %v618 = vlaneseq
    %v619 = vshrl.u32 %v618, 7
    %v620 = vsub.s32 3, %v619
    %v621 = vrot.slane %v542, %v620
    %v622 = vlaneseq
    %v623 = vshrl.u32 %v622, 7
    %v624 = vsub.s32 4, %v623
    %v625 = vrot.slane %v542, %v624
    %v626 = vlaneseq
    %v627 = vshrl.u32 %v626, 7
    %v628 = vsub.s32 5, %v627
    %v629 = vrot.slane %v542, %v628
    %v630 = vlaneseq
    %v631 = vshrl.u32 %v630, 7
    %v632 = vsub.s32 6, %v631
    %v633 = vrot.slane %v542, %v632
    %v634 = vlaneseq
    %v635 = vshrl.u32 %v634, 7
    %v636 = vsub.s32 7, %v635
    %v637 = vrot.slane %v542, %v636
    %v638 = vlaneseq
    %v639 = vshrl.u32 %v638, 7
    %v640 = vsub.s32 0, %v639
    %v641 = vrot.slane %v543, %v640
    %v642 = vlaneseq
    %v643 = vshrl.u32 %v642, 7
    %v644 = vsub.s32 1, %v643
    %v645 = vrot.slane %v543, %v644
    %v646 = vlaneseq
    %v647 = vshrl.u32 %v646, 7
    %v648 = vsub.s32 2, %v647
    %v649 = vrot.slane %v543, %v648
    %v650 = vlaneseq
    %v651 = vshrl.u32 %v650, 7
    %v652 = vsub.s32 3, %v651
    %v653 = vrot.slane %v543, %v652
    %v654 = vlaneseq
    %v655 = vshrl.u32 %v654, 7
    %v656 = vsub.s32 4, %v655
    %v657 = vrot.slane %v543, %v656
    %v658 = vlaneseq
    %v659 = vshrl.u32 %v658, 7
    %v660 = vsub.s32 5, %v659
    %v661 = vrot.slane %v543, %v660
    %v662 = vlaneseq
    %v663 = vshrl.u32 %v662, 7
    %v664 = vsub.s32 6, %v663
    %v665 = vrot.slane %v543, %v664
    %v666 = vlaneseq
    %v667 = vshrl.u32 %v666, 7
    %v668 = vsub.s32 7, %v667
    %v669 = vrot.slane %v543, %v668
    %v670 = vlaneseq
    %v671 = vshrl.u32 %v670, 7
    %v672 = vsub.s32 0, %v671
    %v673 = vrot.slane %v544, %v672
    %v674 = vlaneseq
    %v675 = vshrl.u32 %v674, 7
    %v676 = vsub.s32 1, %v675
    %v677 = vrot.slane %v544, %v676
    %v678 = vlaneseq
    %v679 = vshrl.u32 %v678, 7
    %v680 = vsub.s32 2, %v679
    %v681 = vrot.slane %v544, %v680
    %v682 = vlaneseq
    %v683 = vshrl.u32 %v682, 7
    %v684 = vsub.s32 3, %v683
    %v685 = vrot.slane %v544, %v684
    %v686 = vlaneseq
    %v687 = vshrl.u32 %v686, 7
    %v688 = vsub.s32 4, %v687
    %v689 = vrot.slane %v544, %v688
    %v690 = vlaneseq
    %v691 = vshrl.u32 %v690, 7
    %v692 = vsub.s32 5, %v691
    %v693 = vrot.slane %v544, %v692
    %v694 = vlaneseq
    %v695 = vshrl.u32 %v694, 7
    %v696 = vsub.s32 6, %v695
    %v697 = vrot.slane %v544, %v696
    %v698 = vlaneseq
    %v699 = vshrl.u32 %v698, 7
    %v700 = vsub.s32 7, %v699
    %v701 = vrot.slane %v544, %v700
    %v702 = vlaneseq
    %v703 = vshrl.u32 %v702, 7
    %v704 = vsub.s32 0, %v703
    %v705 = vrot.slane %v545, %v704
    %v706 = vlaneseq
    %v707 = vshrl.u32 %v706, 7
    %v708 = vsub.s32 1, %v707
    %v709 = vrot.slane %v545, %v708
    %v710 = vlaneseq
    %v711 = vshrl.u32 %v710, 7
    %v712 = vsub.s32 2, %v711
    %v713 = vrot.slane %v545, %v712
    %v714 = vlaneseq
    %v715 = vshrl.u32 %v714, 7
    %v716 = vsub.s32 3, %v715
    %v717 = vrot.slane %v545, %v716
    %v718 = vlaneseq
    %v719 = vshrl.u32 %v718, 7
    %v720 = vsub.s32 4, %v719
    %v721 = vrot.slane %v545, %v720
    %v722 = vlaneseq
    %v723 = vshrl.u32 %v722, 7
    %v724 = vsub.s32 5, %v723
    %v725 = vrot.slane %v545, %v724
    %v726 = vlaneseq
    %v727 = vshrl.u32 %v726, 7
    %v728 = vsub.s32 6, %v727
    %v729 = vrot.slane %v545, %v728
    %v730 = vlaneseq
    %v731 = vshrl.u32 %v730, 7
    %v732 = vsub.s32 7, %v731
    %v733 = vrot.slane %v545, %v732
    %v734 = vlaneseq
    %v735 = vshrl.u32 %v734, 7
    %v736 = vsub.s32 0, %v735
    %v737 = vrot.slane %v546, %v736
    %v738 = vlaneseq
    %v739 = vshrl.u32 %v738, 7
    %v740 = vsub.s32 1, %v739
    %v741 = vrot.slane %v546, %v740
    %v742 = vlaneseq
    %v743 = vshrl.u32 %v742, 7
    %v744 = vsub.s32 2, %v743
    %v745 = vrot.slane %v546, %v744
    %v746 = vlaneseq
    %v747 = vshrl.u32 %v746, 7
    %v748 = vsub.s32 3, %v747
    %v749 = vrot.slane %v546, %v748
    %v750 = vlaneseq
    %v751 = vshrl.u32 %v750, 7
    %v752 = vsub.s32 4, %v751
    %v753 = vrot.slane %v546, %v752
    %v754 = vlaneseq
    %v755 = vshrl.u32 %v754, 7
    %v756 = vsub.s32 5, %v755
    %v757 = vrot.slane %v546, %v756
    %v758 = vlaneseq
    %v759 = vshrl.u32 %v758, 7
    %v760 = vsub.s32 6, %v759
    %v761 = vrot.slane %v546, %v760
    %v762 = vlaneseq
    %v763 = vshrl.u32 %v762, 7
    %v764 = vsub.s32 7, %v763
    %v765 = vrot.slane %v546, %v764
    %v766 = vlaneseq
    %v767 = vshrl.u32 %v766, 7
    %v768 = vsub.s32 0, %v767
    %v769 = vrot.slane %v547, %v768
    %v770 = vlaneseq
    %v771 = vshrl.u32 %v770, 7
    %v772 = vsub.s32 1, %v771
    %v773 = vrot.slane %v547, %v772
    %v774 = vlaneseq
    %v775 = vshrl.u32 %v774, 7
    %v776 = vsub.s32 2, %v775
    %v777 = vrot.slane %v547, %v776
    %v778 = vlaneseq
    %v779 = vshrl.u32 %v778, 7
    %v780 = vsub.s32 3, %v779
    %v781 = vrot.slane %v547, %v780
    %v782 = vlaneseq
    %v783 = vshrl.u32 %v782, 7
    %v784 = vsub.s32 4, %v783
    %v785 = vrot.slane %v547, %v784
    %v786 = vlaneseq
    %v787 = vshrl.u32 %v786, 7
    %v788 = vsub.s32 5, %v787
    %v789 = vrot.slane %v547, %v788
    %v790 = vlaneseq
    %v791 = vshrl.u32 %v790, 7
    %v792 = vsub.s32 6, %v791
    %v793 = vrot.slane %v547, %v792
    %v794 = vlaneseq
    %v795 = vshrl.u32 %v794, 7
    %v796 = vsub.s32 7, %v795
    %v797 = vrot.slane %v547, %v796
    %v798 = vlaneseq
    %v799 = vshrl.u32 %v798, 7
    %v800 = vsub.s32 0, %v799
    %v801 = vrot.slane %v548, %v800
    %v802 = vlaneseq
    %v803 = vshrl.u32 %v802, 7
    %v804 = vsub.s32 1, %v803
    %v805 = vrot.slane %v548, %v804
    %v806 = vlaneseq
    %v807 = vshrl.u32 %v806, 7
    %v808 = vsub.s32 2, %v807
    %v809 = vrot.slane %v548, %v808
    %v810 = vlaneseq
    %v811 = vshrl.u32 %v810, 7
    %v812 = vsub.s32 3, %v811
    %v813 = vrot.slane %v548, %v812
    %v814 = vlaneseq
    %v815 = vshrl.u32 %v814, 7
    %v816 = vsub.s32 4, %v815
    %v817 = vrot.slane %v548, %v816
    %v818 = vlaneseq
    %v819 = vshrl.u32 %v818, 7
    %v820 = vsub.s32 5, %v819
    %v821 = vrot.slane %v548, %v820
    %v822 = vlaneseq
    %v823 = vshrl.u32 %v822, 7
    %v824 = vsub.s32 6, %v823
    %v825 = vrot.slane %v548, %v824
    %v826 = vlaneseq
    %v827 = vshrl.u32 %v826, 7
    %v828 = vsub.s32 7, %v827
    %v829 = vrot.slane %v548, %v828
    %v830 = vlaneseq
    %v831 = vshrl.u32 %v830, 7
    %v832 = vsub.s32 0, %v831
    %v833 = vrot.slane %v549, %v832
    %v834 = vlaneseq
    %v835 = vshrl.u32 %v834, 7
    %v836 = vsub.s32 1, %v835
    %v837 = vrot.slane %v549, %v836
    %v838 = vlaneseq
    %v839 = vshrl.u32 %v838, 7
    %v840 = vsub.s32 2, %v839
    %v841 = vrot.slane %v549, %v840
    %v842 = vlaneseq
    %v843 = vshrl.u32 %v842, 7
    %v844 = vsub.s32 3, %v843
    %v845 = vrot.slane %v549, %v844
    %v846 = vlaneseq
    %v847 = vshrl.u32 %v846, 7
    %v848 = vsub.s32 4, %v847
    %v849 = vrot.slane %v549, %v848
    %v850 = vlaneseq
    %v851 = vshrl.u32 %v850, 7
    %v852 = vsub.s32 5, %v851
    %v853 = vrot.slane %v549, %v852
    %v854 = vlaneseq
    %v855 = vshrl.u32 %v854, 7
    %v856 = vsub.s32 6, %v855
    %v857 = vrot.slane %v549, %v856
    %v858 = vlaneseq
    %v859 = vshrl.u32 %v858, 7
    %v860 = vsub.s32 7, %v859
    %v861 = vrot.slane %v549, %v860
    %v862 = vlaneseq
    %v863 = vshrl.u32 %v862, 7
    %v864 = vsub.s32 0, %v863
    %v865 = vrot.slane %v550, %v864
    %v866 = vlaneseq
    %v867 = vshrl.u32 %v866, 7
    %v868 = vsub.s32 1, %v867
    %v869 = vrot.slane %v550, %v868
    %v870 = vlaneseq
    %v871 = vshrl.u32 %v870, 7
    %v872 = vsub.s32 2, %v871
    %v873 = vrot.slane %v550, %v872
    %v874 = vlaneseq
    %v875 = vshrl.u32 %v874, 7
    %v876 = vsub.s32 3, %v875
    %v877 = vrot.slane %v550, %v876
    %v878 = vlaneseq
    %v879 = vshrl.u32 %v878, 7
    %v880 = vsub.s32 4, %v879
    %v881 = vrot.slane %v550, %v880
    %v882 = vlaneseq
    %v883 = vshrl.u32 %v882, 7
    %v884 = vsub.s32 5, %v883
    %v885 = vrot.slane %v550, %v884
    %v886 = vlaneseq
    %v887 = vshrl.u32 %v886, 7
    %v888 = vsub.s32 6, %v887
    %v889 = vrot.slane %v550, %v888
    %v890 = vlaneseq
    %v891 = vshrl.u32 %v890, 7
    %v892 = vsub.s32 7, %v891
    %v893 = vrot.slane %v550, %v892
    %v894 = vlaneseq
    %v895 = vshrl.u32 %v894, 7
    %v896 = vsub.s32 0, %v895
    %v897 = vrot.slane %v551, %v896
    %v898 = vlaneseq
    %v899 = vshrl.u32 %v898, 7
    %v900 = vsub.s32 1, %v899
    %v901 = vrot.slane %v551, %v900
    %v902 = vlaneseq
    %v903 = vshrl.u32 %v902, 7
    %v904 = vsub.s32 2, %v903
    %v905 = vrot.slane %v551, %v904
    %v906 = vlaneseq
    %v907 = vshrl.u32 %v906, 7
    %v908 = vsub.s32 3, %v907
    %v909 = vrot.slane %v551, %v908
    %v910 = vlaneseq
    %v911 = vshrl.u32 %v910, 7
    %v912 = vsub.s32 4, %v911
    %v913 = vrot.slane %v551, %v912
    %v914 = vlaneseq
    %v915 = vshrl.u32 %v914, 7
    %v916 = vsub.s32 5, %v915
    %v917 = vrot.slane %v551, %v916
    %v918 = vlaneseq
    %v919 = vshrl.u32 %v918, 7
    %v920 = vsub.s32 6, %v919
    %v921 = vrot.slane %v551, %v920
    %v922 = vlaneseq
    %v923 = vshrl.u32 %v922, 7
    %v924 = vsub.s32 7, %v923
    %v925 = vrot.slane %v551, %v924
    %v926 = vlaneseq
    %v927 = vshrl.u32 %v926, 7
    %v928 = vsub.s32 0, %v927
    %v929 = vrot.slane %v552, %v928
    %v930 = vlaneseq
    %v931 = vshrl.u32 %v930, 7
    %v932 = vsub.s32 1, %v931
    %v933 = vrot.slane %v552, %v932
    %v934 = vlaneseq
    %v935 = vshrl.u32 %v934, 7
    %v936 = vsub.s32 2, %v935
    %v937 = vrot.slane %v552, %v936
    %v938 = vlaneseq
    %v939 = vshrl.u32 %v938, 7
    %v940 = vsub.s32 3, %v939
    %v941 = vrot.slane %v552, %v940
    %v942 = vlaneseq
    %v943 = vshrl.u32 %v942, 7
    %v944 = vsub.s32 4, %v943
    %v945 = vrot.slane %v552, %v944
    %v946 = vlaneseq
    %v947 = vshrl.u32 %v946, 7
    %v948 = vsub.s32 5, %v947
    %v949 = vrot.slane %v552, %v948
    %v950 = vlaneseq
    %v951 = vshrl.u32 %v950, 7
    %v952 = vsub.s32 6, %v951
    %v953 = vrot.slane %v552, %v952
    %v954 = vlaneseq
    %v955 = vshrl.u32 %v954, 7
    %v956 = vsub.s32 7, %v955
    %v957 = vrot.slane %v552, %v956
    %v958 = vlaneseq
    %v959 = vshrl.u32 %v958, 7
    %v960 = vsub.s32 0, %v959
    %v961 = vrot.slane %v553, %v960
    %v962 = vlaneseq
    %v963 = vshrl.u32 %v962, 7
    %v964 = vsub.s32 1, %v963
    %v965 = vrot.slane %v553, %v964
    %v966 = vlaneseq
    %v967 = vshrl.u32 %v966, 7
    %v968 = vsub.s32 2, %v967
    %v969 = vrot.slane %v553, %v968
    %v970 = vlaneseq
    %v971 = vshrl.u32 %v970, 7
    %v972 = vsub.s32 3, %v971
    %v973 = vrot.slane %v553, %v972
    %v974 = vlaneseq
    %v975 = vshrl.u32 %v974, 7
    %v976 = vsub.s32 4, %v975
    %v977 = vrot.slane %v553, %v976
    %v978 = vlaneseq
    %v979 = vshrl.u32 %v978, 7
    %v980 = vsub.s32 5, %v979
    %v981 = vrot.slane %v553, %v980
    %v982 = vlaneseq
    %v983 = vshrl.u32 %v982, 7
    %v984 = vsub.s32 6, %v983
    %v985 = vrot.slane %v553, %v984
    %v986 = vlaneseq
    %v987 = vshrl.u32 %v986, 7
    %v988 = vsub.s32 7, %v987
    %v989 = vrot.slane %v553, %v988
    %v990 = vlaneseq
    %v991 = vshrl.u32 %v990, 7
    %v992 = vsub.s32 0, %v991
    %v993 = vrot.slane %v554, %v992
    %v994 = vlaneseq
    %v995 = vshrl.u32 %v994, 7
    %v996 = vsub.s32 1, %v995
    %v997 = vrot.slane %v554, %v996
    %v998 = vlaneseq
    %v999 = vshrl.u32 %v998, 7
    %v1000 = vsub.s32 2, %v999
    %v1001 = vrot.slane %v554, %v1000
    %v1002 = vlaneseq
    %v1003 = vshrl.u32 %v1002, 7
    %v1004 = vsub.s32 3, %v1003
    %v1005 = vrot.slane %v554, %v1004
    %v1006 = vlaneseq
    %v1007 = vshrl.u32 %v1006, 7
    %v1008 = vsub.s32 4, %v1007
    %v1009 = vrot.slane %v554, %v1008
    %v1010 = vlaneseq
    %v1011 = vshrl.u32 %v1010, 7
    %v1012 = vsub.s32 5, %v1011
    %v1013 = vrot.slane %v554, %v1012
    %v1014 = vlaneseq
    %v1015 = vshrl.u32 %v1014, 7
    %v1016 = vsub.s32 6, %v1015
    %v1017 = vrot.slane %v554, %v1016
    %v1018 = vlaneseq
    %v1019 = vshrl.u32 %v1018, 7
    %v1020 = vsub.s32 7, %v1019
    %v1021 = vrot.slane %v554, %v1020
    %v1022 = vlaneseq
    %v1023 = vshrl.u32 %v1022, 7
    %v1024 = vsub.s32 0, %v1023
    %v1025 = vrot.slane %v555, %v1024
    %v1026 = vlaneseq
    %v1027 = vshrl.u32 %v1026, 7
    %v1028 = vsub.s32 1, %v1027
    %v1029 = vrot.slane %v555, %v1028
    %v1030 = vlaneseq
    %v1031 = vshrl.u32 %v1030, 7
    %v1032 = vsub.s32 2, %v1031
    %v1033 = vrot.slane %v555, %v1032
    %v1034 = vlaneseq
    %v1035 = vshrl.u32 %v1034, 7
    %v1036 = vsub.s32 3, %v1035
    %v1037 = vrot.slane %v555, %v1036
    %v1038 = vlaneseq
    %v1039 = vshrl.u32 %v1038, 7
    %v1040 = vsub.s32 4, %v1039
    %v1041 = vrot.slane %v555, %v1040
    %v1042 = vlaneseq
    %v1043 = vshrl.u32 %v1042, 7
    %v1044 = vsub.s32 5, %v1043
    %v1045 = vrot.slane %v555, %v1044
    %v1046 = vlaneseq
    %v1047 = vshrl.u32 %v1046, 7
    %v1048 = vsub.s32 6, %v1047
    %v1049 = vrot.slane %v555, %v1048
    %v1050 = vlaneseq
    %v1051 = vshrl.u32 %v1050, 7
    %v1052 = vsub.s32 7, %v1051
    %v1053 = vrot.slane %v555, %v1052
    %v1054 = vlaneseq
    %v1055 = vshrl.u32 %v1054, 7
    %v1056 = vsub.s32 0, %v1055
    %v1057 = vrot.slane %v556, %v1056
    %v1058 = vlaneseq
    %v1059 = vshrl.u32 %v1058, 7
    %v1060 = vsub.s32 1, %v1059
    %v1061 = vrot.slane %v556, %v1060
    %v1062 = vlaneseq
    %v1063 = vshrl.u32 %v1062, 7
    %v1064 = vsub.s32 2, %v1063
    %v1065 = vrot.slane %v556, %v1064
    %v1066 = vlaneseq
    %v1067 = vshrl.u32 %v1066, 7
    %v1068 = vsub.s32 3, %v1067
    %v1069 = vrot.slane %v556, %v1068
    %v1070 = vlaneseq
    %v1071 = vshrl.u32 %v1070, 7
    %v1072 = vsub.s32 4, %v1071
    %v1073 = vrot.slane %v556, %v1072
    %v1074 = vlaneseq
    %v1075 = vshrl.u32 %v1074, 7
    %v1076 = vsub.s32 5, %v1075
    %v1077 = vrot.slane %v556, %v1076
    %v1078 = vlaneseq
    %v1079 = vshrl.u32 %v1078, 7
    %v1080 = vsub.s32 6, %v1079
    %v1081 = vrot.slane %v556, %v1080
    %v1082 = vlaneseq
    %v1083 = vshrl.u32 %v1082, 7
    %v1084 = vsub.s32 7, %v1083
    %v1085 = vrot.slane %v556, %v1084
    %v1086 = vlaneseq
    %v1087 = vshrl.u32 %v1086, 7
    %v1088 = vsub.s32 0, %v1087
    %v1089 = vrot.slane %v557, %v1088
    %v1090 = vlaneseq
    %v1091 = vshrl.u32 %v1090, 7
    %v1092 = vsub.s32 1, %v1091
    %v1093 = vrot.slane %v557, %v1092
    %v1094 = vlaneseq
    %v1095 = vshrl.u32 %v1094, 7
    %v1096 = vsub.s32 2, %v1095
    %v1097 = vrot.slane %v557, %v1096
    %v1098 = vlaneseq
    %v1099 = vshrl.u32 %v1098, 7
    %v1100 = vsub.s32 3, %v1099
    %v1101 = vrot.slane %v557, %v1100
    %v1102 = vlaneseq
    %v1103 = vshrl.u32 %v1102, 7
    %v1104 = vsub.s32 4, %v1103
    %v1105 = vrot.slane %v557, %v1104
    %v1106 = vlaneseq
    %v1107 = vshrl.u32 %v1106, 7
    %v1108 = vsub.s32 5, %v1107
    %v1109 = vrot.slane %v557, %v1108
    %v1110 = vlaneseq
    %v1111 = vshrl.u32 %v1110, 7
    %v1112 = vsub.s32 6, %v1111
    %v1113 = vrot.slane %v557, %v1112
    %v1114 = vlaneseq
    %v1115 = vshrl.u32 %v1114, 7
    %v1116 = vsub.s32 7, %v1115
    %v1117 = vrot.slane %v557, %v1116
    %v1118 = vlaneseq
    %v1119 = vshrl.u32 %v1118, 7
    %v1120 = vsub.s32 0, %v1119
    %v1121 = vrot.slane %v558, %v1120
    %v1122 = vlaneseq
    %v1123 = vshrl.u32 %v1122, 7
    %v1124 = vsub.s32 1, %v1123
    %v1125 = vrot.slane %v558, %v1124
    %v1126 = vlaneseq
    %v1127 = vshrl.u32 %v1126, 7
    %v1128 = vsub.s32 2, %v1127
    %v1129 = vrot.slane %v558, %v1128
    %v1130 = vlaneseq
    %v1131 = vshrl.u32 %v1130, 7
    %v1132 = vsub.s32 3, %v1131
    %v1133 = vrot.slane %v558, %v1132
    %v1134 = vlaneseq
    %v1135 = vshrl.u32 %v1134, 7
    %v1136 = vsub.s32 4, %v1135
    %v1137 = vrot.slane %v558, %v1136
    %v1138 = vlaneseq
    %v1139 = vshrl.u32 %v1138, 7
    %v1140 = vsub.s32 5, %v1139
    %v1141 = vrot.slane %v558, %v1140
    %v1142 = vlaneseq
    %v1143 = vshrl.u32 %v1142, 7
    %v1144 = vsub.s32 6, %v1143
    %v1145 = vrot.slane %v558, %v1144
    %v1146 = vlaneseq
    %v1147 = vshrl.u32 %v1146, 7
    %v1148 = vsub.s32 7, %v1147
    %v1149 = vrot.slane %v558, %v1148
    %v1150 = vlaneseq
    %v1151 = vshrl.u32 %v1150, 7
    %v1152 = vsub.s32 0, %v1151
    %v1153 = vrot.slane %v559, %v1152
    %v1154 = vlaneseq
    %v1155 = vshrl.u32 %v1154, 7
    %v1156 = vsub.s32 1, %v1155
    %v1157 = vrot.slane %v559, %v1156
    %v1158 = vlaneseq
    %v1159 = vshrl.u32 %v1158, 7
    %v1160 = vsub.s32 2, %v1159
    %v1161 = vrot.slane %v559, %v1160
    %v1162 = vlaneseq
    %v1163 = vshrl.u32 %v1162, 7
    %v1164 = vsub.s32 3, %v1163
    %v1165 = vrot.slane %v559, %v1164
    %v1166 = vlaneseq
    %v1167 = vshrl.u32 %v1166, 7
    %v1168 = vsub.s32 4, %v1167
    %v1169 = vrot.slane %v559, %v1168
    %v1170 = vlaneseq
    %v1171 = vshrl.u32 %v1170, 7
    %v1172 = vsub.s32 5, %v1171
    %v1173 = vrot.slane %v559, %v1172
    %v1174 = vlaneseq
    %v1175 = vshrl.u32 %v1174, 7
    %v1176 = vsub.s32 6, %v1175
    %v1177 = vrot.slane %v559, %v1176
    %v1178 = vlaneseq
    %v1179 = vshrl.u32 %v1178, 7
    %v1180 = vsub.s32 7, %v1179
    %v1181 = vrot.slane %v559, %v1180
    %v1182 = vlaneseq
    %v1183 = vshrl.u32 %v1182, 7
    %v1184 = vsub.s32 0, %v1183
    %v1185 = vrot.slane %v560, %v1184
    %v1186 = vlaneseq
    %v1187 = vshrl.u32 %v1186, 7
    %v1188 = vsub.s32 1, %v1187
    %v1189 = vrot.slane %v560, %v1188
    %v1190 = vlaneseq
    %v1191 = vshrl.u32 %v1190, 7
    %v1192 = vsub.s32 2, %v1191
    %v1193 = vrot.slane %v560, %v1192
    %v1194 = vlaneseq
    %v1195 = vshrl.u32 %v1194, 7
    %v1196 = vsub.s32 3, %v1195
    %v1197 = vrot.slane %v560, %v1196
    %v1198 = vlaneseq
    %v1199 = vshrl.u32 %v1198, 7
    %v1200 = vsub.s32 4, %v1199
    %v1201 = vrot.slane %v560, %v1200
    %v1202 = vlaneseq
    %v1203 = vshrl.u32 %v1202, 7
    %v1204 = vsub.s32 5, %v1203
    %v1205 = vrot.slane %v560, %v1204
    %v1206 = vlaneseq
    %v1207 = vshrl.u32 %v1206, 7
    %v1208 = vsub.s32 6, %v1207
    %v1209 = vrot.slane %v560, %v1208
    %v1210 = vlaneseq
    %v1211 = vshrl.u32 %v1210, 7
    %v1212 = vsub.s32 7, %v1211
    %v1213 = vrot.slane %v560, %v1212
    %v1214 = vlaneseq
    %v1215 = vshrl.u32 %v1214, 7
    %v1216 = vsub.s32 0, %v1215
    %v1217 = vrot.slane %v561, %v1216
    %v1218 = vlaneseq
    %v1219 = vshrl.u32 %v1218, 7
    %v1220 = vsub.s32 1, %v1219
    %v1221 = vrot.slane %v561, %v1220
    %v1222 = vlaneseq
    %v1223 = vshrl.u32 %v1222, 7
    %v1224 = vsub.s32 2, %v1223
    %v1225 = vrot.slane %v561, %v1224
    %v1226 = vlaneseq
    %v1227 = vshrl.u32 %v1226, 7
    %v1228 = vsub.s32 3, %v1227
    %v1229 = vrot.slane %v561, %v1228
    %v1230 = vlaneseq
    %v1231 = vshrl.u32 %v1230, 7
    %v1232 = vsub.s32 4, %v1231
    %v1233 = vrot.slane %v561, %v1232
    %v1234 = vlaneseq
    %v1235 = vshrl.u32 %v1234, 7
    %v1236 = vsub.s32 5, %v1235
    %v1237 = vrot.slane %v561, %v1236
    %v1238 = vlaneseq
    %v1239 = vshrl.u32 %v1238, 7
    %v1240 = vsub.s32 6, %v1239
    %v1241 = vrot.slane %v561, %v1240
    %v1242 = vlaneseq
    %v1243 = vshrl.u32 %v1242, 7
    %v1244 = vsub.s32 7, %v1243
    %v1245 = vrot.slane %v561, %v1244
    %v1246 = vlaneseq
    %v1247 = vshrl.u32 %v1246, 7
    %v1248 = vsub.s32 0, %v1247
    %v1249 = vrot.slane %v562, %v1248
    %v1250 = vlaneseq
    %v1251 = vshrl.u32 %v1250, 7
    %v1252 = vsub.s32 1, %v1251
    %v1253 = vrot.slane %v562, %v1252
    %v1254 = vlaneseq
    %v1255 = vshrl.u32 %v1254, 7
    %v1256 = vsub.s32 2, %v1255
    %v1257 = vrot.slane %v562, %v1256
    %v1258 = vlaneseq
    %v1259 = vshrl.u32 %v1258, 7
    %v1260 = vsub.s32 3, %v1259
    %v1261 = vrot.slane %v562, %v1260
    %v1262 = vlaneseq
    %v1263 = vshrl.u32 %v1262, 7
    %v1264 = vsub.s32 4, %v1263
    %v1265 = vrot.slane %v562, %v1264
    %v1266 = vlaneseq
    %v1267 = vshrl.u32 %v1266, 7
    %v1268 = vsub.s32 5, %v1267
    %v1269 = vrot.slane %v562, %v1268
    %v1270 = vlaneseq
    %v1271 = vshrl.u32 %v1270, 7
    %v1272 = vsub.s32 6, %v1271
    %v1273 = vrot.slane %v562, %v1272
    %v1274 = vlaneseq
    %v1275 = vshrl.u32 %v1274, 7
    %v1276 = vsub.s32 7, %v1275
    %v1277 = vrot.slane %v562, %v1276
    %v1278 = vlaneseq
    %v1279 = vshrl.u32 %v1278, 7
    %v1280 = vsub.s32 0, %v1279
    %v1281 = vrot.slane %v563, %v1280
    %v1282 = vlaneseq
    %v1283 = vshrl.u32 %v1282, 7
    %v1284 = vsub.s32 1, %v1283
    %v1285 = vrot.slane %v563, %v1284
    %v1286 = vlaneseq
    %v1287 = vshrl.u32 %v1286, 7
    %v1288 = vsub.s32 2, %v1287
    %v1289 = vrot.slane %v563, %v1288
    %v1290 = vlaneseq
    %v1291 = vshrl.u32 %v1290, 7
    %v1292 = vsub.s32 3, %v1291
    %v1293 = vrot.slane %v563, %v1292
    %v1294 = vlaneseq
    %v1295 = vshrl.u32 %v1294, 7
    %v1296 = vsub.s32 4, %v1295
    %v1297 = vrot.slane %v563, %v1296
    %v1298 = vlaneseq
    %v1299 = vshrl.u32 %v1298, 7
    %v1300 = vsub.s32 5, %v1299
    %v1301 = vrot.slane %v563, %v1300
    %v1302 = vlaneseq
    %v1303 = vshrl.u32 %v1302, 7
    %v1304 = vsub.s32 6, %v1303
    %v1305 = vrot.slane %v563, %v1304
    %v1306 = vlaneseq
    %v1307 = vshrl.u32 %v1306, 7
    %v1308 = vsub.s32 7, %v1307
    %v1309 = vrot.slane %v563, %v1308
    %v1310 = vlaneseq
    %v1311 = vshrl.u32 %v1310, 7
    %v1312 = vsub.s32 0, %v1311
    %v1313 = vrot.slane %v564, %v1312
    %v1314 = vlaneseq
    %v1315 = vshrl.u32 %v1314, 7
    %v1316 = vsub.s32 1, %v1315
    %v1317 = vrot.slane %v564, %v1316
    %v1318 = vlaneseq
    %v1319 = vshrl.u32 %v1318, 7
    %v1320 = vsub.s32 2, %v1319
    %v1321 = vrot.slane %v564, %v1320
    %v1322 = vlaneseq
    %v1323 = vshrl.u32 %v1322, 7
    %v1324 = vsub.s32 3, %v1323
    %v1325 = vrot.slane %v564, %v1324
    %v1326 = vlaneseq
    %v1327 = vshrl.u32 %v1326, 7
    %v1328 = vsub.s32 4, %v1327
    %v1329 = vrot.slane %v564, %v1328
    %v1330 = vlaneseq
    %v1331 = vshrl.u32 %v1330, 7
    %v1332 = vsub.s32 5, %v1331
    %v1333 = vrot.slane %v564, %v1332
    %v1334 = vlaneseq
    %v1335 = vshrl.u32 %v1334, 7
    %v1336 = vsub.s32 6, %v1335
    %v1337 = vrot.slane %v564, %v1336
    %v1338 = vlaneseq
    %v1339 = vshrl.u32 %v1338, 7
    %v1340 = vsub.s32 7, %v1339
    %v1341 = vrot.slane %v564, %v1340
    %v1342 = vlaneseq
    %v1343 = vshrl.u32 %v1342, 7
    %v1344 = vsub.s32 0, %v1343
    %v1345 = vrot.slane %v565, %v1344
    %v1346 = vlaneseq
    %v1347 = vshrl.u32 %v1346, 7
    %v1348 = vsub.s32 1, %v1347
    %v1349 = vrot.slane %v565, %v1348
    %v1350 = vlaneseq
    %v1351 = vshrl.u32 %v1350, 7
    %v1352 = vsub.s32 2, %v1351
    %v1353 = vrot.slane %v565, %v1352
    %v1354 = vlaneseq
    %v1355 = vshrl.u32 %v1354, 7
    %v1356 = vsub.s32 3, %v1355
    %v1357 = vrot.slane %v565, %v1356
    %v1358 = vlaneseq
    %v1359 = vshrl.u32 %v1358, 7
    %v1360 = vsub.s32 4, %v1359
    %v1361 = vrot.slane %v565, %v1360
    %v1362 = vlaneseq
    %v1363 = vshrl.u32 %v1362, 7
    %v1364 = vsub.s32 5, %v1363
    %v1365 = vrot.slane %v565, %v1364
    %v1366 = vlaneseq
    %v1367 = vshrl.u32 %v1366, 7
    %v1368 = vsub.s32 6, %v1367
    %v1369 = vrot.slane %v565, %v1368
    %v1370 = vlaneseq
    %v1371 = vshrl.u32 %v1370, 7
    %v1372 = vsub.s32 7, %v1371
    %v1373 = vrot.slane %v565, %v1372
    %v1374 = vlaneseq
    %v1375 = vshrl.u32 %v1374, 7
    %v1376 = vsub.s32 0, %v1375
    %v1377 = vrot.slane %v566, %v1376
    %v1378 = vlaneseq
    %v1379 = vshrl.u32 %v1378, 7
    %v1380 = vsub.s32 1, %v1379
    %v1381 = vrot.slane %v566, %v1380
    %v1382 = vlaneseq
    %v1383 = vshrl.u32 %v1382, 7
    %v1384 = vsub.s32 2, %v1383
    %v1385 = vrot.slane %v566, %v1384
    %v1386 = vlaneseq
    %v1387 = vshrl.u32 %v1386, 7
    %v1388 = vsub.s32 3, %v1387
    %v1389 = vrot.slane %v566, %v1388
    %v1390 = vlaneseq
    %v1391 = vshrl.u32 %v1390, 7
    %v1392 = vsub.s32 4, %v1391
    %v1393 = vrot.slane %v566, %v1392
    %v1394 = vlaneseq
    %v1395 = vshrl.u32 %v1394, 7
    %v1396 = vsub.s32 5, %v1395
    %v1397 = vrot.slane %v566, %v1396
    %v1398 = vlaneseq
    %v1399 = vshrl.u32 %v1398, 7
    %v1400 = vsub.s32 6, %v1399
    %v1401 = vrot.slane %v566, %v1400
    %v1402 = vlaneseq
    %v1403 = vshrl.u32 %v1402, 7
    %v1404 = vsub.s32 7, %v1403
    %v1405 = vrot.slane %v566, %v1404
    %v1406 = vlaneseq
    %v1407 = vshrl.u32 %v1406, 7
    %v1408 = vsub.s32 0, %v1407
    %v1409 = vrot.slane %v567, %v1408
    %v1410 = vlaneseq
    %v1411 = vshrl.u32 %v1410, 7
    %v1412 = vsub.s32 1, %v1411
    %v1413 = vrot.slane %v567, %v1412
    %v1414 = vlaneseq
    %v1415 = vshrl.u32 %v1414, 7
    %v1416 = vsub.s32 2, %v1415
    %v1417 = vrot.slane %v567, %v1416
    %v1418 = vlaneseq
    %v1419 = vshrl.u32 %v1418, 7
    %v1420 = vsub.s32 3, %v1419
    %v1421 = vrot.slane %v567, %v1420
    %v1422 = vlaneseq
    %v1423 = vshrl.u32 %v1422, 7
    %v1424 = vsub.s32 4, %v1423
    %v1425 = vrot.slane %v567, %v1424
    %v1426 = vlaneseq
    %v1427 = vshrl.u32 %v1426, 7
    %v1428 = vsub.s32 5, %v1427
    %v1429 = vrot.slane %v567, %v1428
    %v1430 = vlaneseq
    %v1431 = vshrl.u32 %v1430, 7
    %v1432 = vsub.s32 6, %v1431
    %v1433 = vrot.slane %v567, %v1432
    %v1434 = vlaneseq
    %v1435 = vshrl.u32 %v1434, 7
    %v1436 = vsub.s32 7, %v1435
    %v1437 = vrot.slane %v567, %v1436
    %v1438 = vlaneseq
    %v1439 = vshrl.u32 %v1438, 7
    %v1440 = vsub.s32 0, %v1439
    %v1441 = vrot.slane %v568, %v1440
    %v1442 = vlaneseq
    %v1443 = vshrl.u32 %v1442, 7
    %v1444 = vsub.s32 1, %v1443
    %v1445 = vrot.slane %v568, %v1444
    %v1446 = vlaneseq
    %v1447 = vshrl.u32 %v1446, 7
    %v1448 = vsub.s32 2, %v1447
    %v1449 = vrot.slane %v568, %v1448
    %v1450 = vlaneseq
    %v1451 = vshrl.u32 %v1450, 7
    %v1452 = vsub.s32 3, %v1451
    %v1453 = vrot.slane %v568, %v1452
    %v1454 = vlaneseq
    %v1455 = vshrl.u32 %v1454, 7
    %v1456 = vsub.s32 4, %v1455
    %v1457 = vrot.slane %v568, %v1456
    %v1458 = vlaneseq
    %v1459 = vshrl.u32 %v1458, 7
    %v1460 = vsub.s32 5, %v1459
    %v1461 = vrot.slane %v568, %v1460
    %v1462 = vlaneseq
    %v1463 = vshrl.u32 %v1462, 7
    %v1464 = vsub.s32 6, %v1463
    %v1465 = vrot.slane %v568, %v1464
    %v1466 = vlaneseq
    %v1467 = vshrl.u32 %v1466, 7
    %v1468 = vsub.s32 7, %v1467
    %v1469 = vrot.slane %v568, %v1468
    %v1470 = vlaneseq
    %v1471 = vshrl.u32 %v1470, 7
    %v1472 = vsub.s32 0, %v1471
    %v1473 = vrot.slane %v569, %v1472
    %v1474 = vlaneseq
    %v1475 = vshrl.u32 %v1474, 7
    %v1476 = vsub.s32 1, %v1475
    %v1477 = vrot.slane %v569, %v1476
    %v1478 = vlaneseq
    %v1479 = vshrl.u32 %v1478, 7
    %v1480 = vsub.s32 2, %v1479
    %v1481 = vrot.slane %v569, %v1480
    %v1482 = vlaneseq
    %v1483 = vshrl.u32 %v1482, 7
    %v1484 = vsub.s32 3, %v1483
    %v1485 = vrot.slane %v569, %v1484
    %v1486 = vlaneseq
    %v1487 = vshrl.u32 %v1486, 7
    %v1488 = vsub.s32 4, %v1487
    %v1489 = vrot.slane %v569, %v1488
    %v1490 = vlaneseq
    %v1491 = vshrl.u32 %v1490, 7
    %v1492 = vsub.s32 5, %v1491
    %v1493 = vrot.slane %v569, %v1492
    %v1494 = vlaneseq
    %v1495 = vshrl.u32 %v1494, 7
    %v1496 = vsub.s32 6, %v1495
    %v1497 = vrot.slane %v569, %v1496
    %v1498 = vlaneseq
    %v1499 = vshrl.u32 %v1498, 7
    %v1500 = vsub.s32 7, %v1499
    %v1501 = vrot.slane %v569, %v1500
    %v1502 = vlaneseq
    %v1503 = vshrl.u32 %v1502, 7
    %v1504 = vsub.s32 0, %v1503
    %v1505 = vrot.slane %v570, %v1504
    %v1506 = vlaneseq
    %v1507 = vshrl.u32 %v1506, 7
    %v1508 = vsub.s32 1, %v1507
    %v1509 = vrot.slane %v570, %v1508
    %v1510 = vlaneseq
    %v1511 = vshrl.u32 %v1510, 7
    %v1512 = vsub.s32 2, %v1511
    %v1513 = vrot.slane %v570, %v1512
    %v1514 = vlaneseq
    %v1515 = vshrl.u32 %v1514, 7
    %v1516 = vsub.s32 3, %v1515
    %v1517 = vrot.slane %v570, %v1516
    %v1518 = vlaneseq
    %v1519 = vshrl.u32 %v1518, 7
    %v1520 = vsub.s32 4, %v1519
    %v1521 = vrot.slane %v570, %v1520
    %v1522 = vlaneseq
    %v1523 = vshrl.u32 %v1522, 7
    %v1524 = vsub.s32 5, %v1523
    %v1525 = vrot.slane %v570, %v1524
    %v1526 = vlaneseq
    %v1527 = vshrl.u32 %v1526, 7
    %v1528 = vsub.s32 6, %v1527
    %v1529 = vrot.slane %v570, %v1528
    %v1530 = vlaneseq
    %v1531 = vshrl.u32 %v1530, 7
    %v1532 = vsub.s32 7, %v1531
    %v1533 = vrot.slane %v570, %v1532
    %v1534 = vlaneseq
    %v1535 = vshrl.u32 %v1534, 7
    %v1536 = vsub.s32 0, %v1535
    %v1537 = vrot.slane %v571, %v1536
    %v1538 = vlaneseq
    %v1539 = vshrl.u32 %v1538, 7
    %v1540 = vsub.s32 1, %v1539
    %v1541 = vrot.slane %v571, %v1540
    %v1542 = vlaneseq
    %v1543 = vshrl.u32 %v1542, 7
    %v1544 = vsub.s32 2, %v1543
    %v1545 = vrot.slane %v571, %v1544
    %v1546 = vlaneseq
    %v1547 = vshrl.u32 %v1546, 7
    %v1548 = vsub.s32 3, %v1547
    %v1549 = vrot.slane %v571, %v1548
    %v1550 = vlaneseq
    %v1551 = vshrl.u32 %v1550, 7
    %v1552 = vsub.s32 4, %v1551
    %v1553 = vrot.slane %v571, %v1552
    %v1554 = vlaneseq
    %v1555 = vshrl.u32 %v1554, 7
    %v1556 = vsub.s32 5, %v1555
    %v1557 = vrot.slane %v571, %v1556
    %v1558 = vlaneseq
    %v1559 = vshrl.u32 %v1558, 7
    %v1560 = vsub.s32 6, %v1559
    %v1561 = vrot.slane %v571, %v1560
    %v1562 = vlaneseq
    %v1563 = vshrl.u32 %v1562, 7
    %v1564 = vsub.s32 7, %v1563
    %v1565 = vrot.slane %v571, %v1564
    %v1566 = vlaneseq
    %v1567 = vshrl.u32 %v1566, 7
    %v1568 = vsub.s32 0, %v1567
    %v1569 = vrot.slane %v572, %v1568
    %v1570 = vlaneseq
    %v1571 = vshrl.u32 %v1570, 7
    %v1572 = vsub.s32 1, %v1571
    %v1573 = vrot.slane %v572, %v1572
    %v1574 = vlaneseq
    %v1575 = vshrl.u32 %v1574, 7
    %v1576 = vsub.s32 2, %v1575
    %v1577 = vrot.slane %v572, %v1576
    %v1578 = vlaneseq
    %v1579 = vshrl.u32 %v1578, 7
    %v1580 = vsub.s32 3, %v1579
    %v1581 = vrot.slane %v572, %v1580
    %v1582 = vlaneseq
    %v1583 = vshrl.u32 %v1582, 7
    %v1584 = vsub.s32 4, %v1583
    %v1585 = vrot.slane %v572, %v1584
    %v1586 = vlaneseq
    %v1587 = vshrl.u32 %v1586, 7
    %v1588 = vsub.s32 5, %v1587
    %v1589 = vrot.slane %v572, %v1588
    %v1590 = vlaneseq
    %v1591 = vshrl.u32 %v1590, 7
    %v1592 = vsub.s32 6, %v1591
    %v1593 = vrot.slane %v572, %v1592
    %v1594 = vlaneseq
    %v1595 = vshrl.u32 %v1594, 7
    %v1596 = vsub.s32 7, %v1595
    %v1597 = vrot.slane %v572, %v1596
    %v1598 = vlaneseq
    %v1599 = vshrl.u32 %v1598, 7
    %v1600 = vsub.s32 0, %v1599
    %v1601 = vrot.slane %v573, %v1600
    %v1602 = vlaneseq
    %v1603 = vshrl.u32 %v1602, 7
    %v1604 = vsub.s32 1, %v1603
    %v1605 = vrot.slane %v573, %v1604
    %v1606 = vlaneseq
    %v1607 = vshrl.u32 %v1606, 7
    %v1608 = vsub.s32 2, %v1607
    %v1609 = vrot.slane %v573, %v1608
    %v1610 = vlaneseq
    %v1611 = vshrl.u32 %v1610, 7
    %v1612 = vsub.s32 3, %v1611
    %v1613 = vrot.slane %v573, %v1612
    %v1614 = vlaneseq
    %v1615 = vshrl.u32 %v1614, 7
    %v1616 = vsub.s32 4, %v1615
    %v1617 = vrot.slane %v573, %v1616
    %v1618 = vlaneseq
    %v1619 = vshrl.u32 %v1618, 7
    %v1620 = vsub.s32 5, %v1619
    %v1621 = vrot.slane %v573, %v1620
    %v1622 = vlaneseq
    %v1623 = vshrl.u32 %v1622, 7
    %v1624 = vsub.s32 6, %v1623
    %v1625 = vrot.slane %v573, %v1624
    %v1626 = vlaneseq
    %v1627 = vshrl.u32 %v1626, 7
    %v1628 = vsub.s32 7, %v1627
    %v1629 = vrot.slane %v573, %v1628
    %v1630 = vcombine.low %v609, %v613
    %v1631 = vcombine.low %v617, %v621
    %v1632 = vcombine.low %v625, %v629
    %v1633 = vcombine.low %v633, %v637
    %v1635 = vunpack.c.l.s4 1966171168
    %v1636 = vunpack.c.0.s8 %v1635
    %v1637 = vlaneseq
    %v1638 = vshrl.u32 %v1637, 7
    %v1639 = vsub.s32 %v1636, %v1638
    %v1640 = vrot.slane %v1630, %v1639
    %v1642 = vunpack.c.l.s4 1966171168
    %v1643 = vunpack.c.0.s8 %v1642
    %v1644 = vlaneseq
    %v1645 = vshrl.u32 %v1644, 7
    %v1646 = vsub.s32 %v1643, %v1645
    %v1647 = vrot.slane %v1631, %v1646
    %v1649 = vunpack.c.l.s4 1966171168
    %v1650 = vunpack.c.0.s8 %v1649
    %v1651 = vlaneseq
    %v1652 = vshrl.u32 %v1651, 7
    %v1653 = vsub.s32 %v1650, %v1652
    %v1654 = vrot.slane %v1632, %v1653
    %v1656 = vunpack.c.l.s4 1966171168
    %v1657 = vunpack.c.0.s8 %v1656
    %v1658 = vlaneseq
    %v1659 = vshrl.u32 %v1658, 7
    %v1660 = vsub.s32 %v1657, %v1659
    %v1661 = vrot.slane %v1633, %v1660
    %v1662 = vcombine.low %v1640, %v1647
    %v1663 = vcombine.low %v1654, %v1661
    %v1665 = vunpack.c.l.s4 1966171168
    %v1666 = vunpack.c.0.s8 %v1665
    %v1667 = vlaneseq
    %v1668 = vshrl.u32 %v1667, 7
    %v1669 = vsub.s32 %v1666, %v1668
    %v1670 = vrot.slane %v1662, %v1669
    %v1672 = vunpack.c.l.s4 1966171168
    %v1673 = vunpack.c.0.s8 %v1672
    %v1674 = vlaneseq
    %v1675 = vshrl.u32 %v1674, 7
    %v1676 = vsub.s32 %v1673, %v1675
    %v1677 = vrot.slane %v1663, %v1676
    %v1678 = vcombine.low %v1670, %v1677
    %v1679 = vcombine.low %v641, %v645
    %v1680 = vcombine.low %v649, %v653
    %v1681 = vcombine.low %v657, %v661
    %v1682 = vcombine.low %v665, %v669
    %v1684 = vunpack.c.l.s4 1966171168
    %v1685 = vunpack.c.0.s8 %v1684
    %v1686 = vlaneseq
    %v1687 = vshrl.u32 %v1686, 7
    %v1688 = vsub.s32 %v1685, %v1687
    %v1689 = vrot.slane %v1679, %v1688
    %v1691 = vunpack.c.l.s4 1966171168
    %v1692 = vunpack.c.0.s8 %v1691
    %v1693 = vlaneseq
    %v1694 = vshrl.u32 %v1693, 7
    %v1695 = vsub.s32 %v1692, %v1694
    %v1696 = vrot.slane %v1680, %v1695
    %v1698 = vunpack.c.l.s4 1966171168
    %v1699 = vunpack.c.0.s8 %v1698
    %v1700 = vlaneseq
    %v1701 = vshrl.u32 %v1700, 7
    %v1702 = vsub.s32 %v1699, %v1701
    %v1703 = vrot.slane %v1681, %v1702
    %v1705 = vunpack.c.l.s4 1966171168
    %v1706 = vunpack.c.0.s8 %v1705
    %v1707 = vlaneseq
    %v1708 = vshrl.u32 %v1707, 7
    %v1709 = vsub.s32 %v1706, %v1708
    %v1710 = vrot.slane %v1682, %v1709
    %v1711 = vcombine.low %v1689, %v1696
    %v1712 = vcombine.low %v1703, %v1710
    %v1714 = vunpack.c.l.s4 1966171168
    %v1715 = vunpack.c.0.s8 %v1714
    %v1716 = vlaneseq
    %v1717 = vshrl.u32 %v1716, 7
    %v1718 = vsub.s32 %v1715, %v1717
    %v1719 = vrot.slane %v1711, %v1718
    %v1721 = vunpack.c.l.s4 1966171168
    %v1722 = vunpack.c.0.s8 %v1721
    %v1723 = vlaneseq
    %v1724 = vshrl.u32 %v1723, 7
    %v1725 = vsub.s32 %v1722, %v1724
    %v1726 = vrot.slane %v1712, %v1725
    %v1727 = vcombine.low %v1719, %v1726
    %v1728 = vcombine.low %v673, %v677
    %v1729 = vcombine.low %v681, %v685
    %v1730 = vcombine.low %v689, %v693
    %v1731 = vcombine.low %v697, %v701
    %v1733 = vunpack.c.l.s4 1966171168
    %v1734 = vunpack.c.0.s8 %v1733
    %v1735 = vlaneseq
    %v1736 = vshrl.u32 %v1735, 7
    %v1737 = vsub.s32 %v1734, %v1736
    %v1738 = vrot.slane %v1728, %v1737
    %v1740 = vunpack.c.l.s4 1966171168
    %v1741 = vunpack.c.0.s8 %v1740
    %v1742 = vlaneseq
    %v1743 = vshrl.u32 %v1742, 7
    %v1744 = vsub.s32 %v1741, %v1743
    %v1745 = vrot.slane %v1729, %v1744
    %v1747 = vunpack.c.l.s4 1966171168
    %v1748 = vunpack.c.0.s8 %v1747
    %v1749 = vlaneseq
    %v1750 = vshrl.u32 %v1749, 7
    %v1751 = vsub.s32 %v1748, %v1750
    %v1752 = vrot.slane %v1730, %v1751
    %v1754 = vunpack.c.l.s4 1966171168
    %v1755 = vunpack.c.0.s8 %v1754
    %v1756 = vlaneseq
    %v1757 = vshrl.u32 %v1756, 7
    %v1758 = vsub.s32 %v1755, %v1757
    %v1759 = vrot.slane %v1731, %v1758
    %v1760 = vcombine.low %v1738, %v1745
    %v1761 = vcombine.low %v1752, %v1759
    %v1763 = vunpack.c.l.s4 1966171168
    %v1764 = vunpack.c.0.s8 %v1763
    %v1765 = vlaneseq
    %v1766 = vshrl.u32 %v1765, 7
    %v1767 = vsub.s32 %v1764, %v1766
    %v1768 = vrot.slane %v1760, %v1767
    %v1770 = vunpack.c.l.s4 1966171168
    %v1771 = vunpack.c.0.s8 %v1770
    %v1772 = vlaneseq
    %v1773 = vshrl.u32 %v1772, 7
    %v1774 = vsub.s32 %v1771, %v1773
    %v1775 = vrot.slane %v1761, %v1774
    %v1776 = vcombine.low %v1768, %v1775
    %v1777 = vcombine.low %v705, %v709
    %v1778 = vcombine.low %v713, %v717
    %v1779 = vcombine.low %v721, %v725
    %v1780 = vcombine.low %v729, %v733
    %v1782 = vunpack.c.l.s4 1966171168
    %v1783 = vunpack.c.0.s8 %v1782
    %v1784 = vlaneseq
    %v1785 = vshrl.u32 %v1784, 7
    %v1786 = vsub.s32 %v1783, %v1785
    %v1787 = vrot.slane %v1777, %v1786
    %v1789 = vunpack.c.l.s4 1966171168
    %v1790 = vunpack.c.0.s8 %v1789
    %v1791 = vlaneseq
    %v1792 = vshrl.u32 %v1791, 7
    %v1793 = vsub.s32 %v1790, %v1792
    %v1794 = vrot.slane %v1778, %v1793
    %v1796 = vunpack.c.l.s4 1966171168
    %v1797 = vunpack.c.0.s8 %v1796
    %v1798 = vlaneseq
    %v1799 = vshrl.u32 %v1798, 7
    %v1800 = vsub.s32 %v1797, %v1799
    %v1801 = vrot.slane %v1779, %v1800
    %v1803 = vunpack.c.l.s4 1966171168
    %v1804 = vunpack.c.0.s8 %v1803
    %v1805 = vlaneseq
    %v1806 = vshrl.u32 %v1805, 7
    %v1807 = vsub.s32 %v1804, %v1806
    %v1808 = vrot.slane %v1780, %v1807
    %v1809 = vcombine.low %v1787, %v1794
    %v1810 = vcombine.low %v1801, %v1808
    %v1812 = vunpack.c.l.s4 1966171168
    %v1813 = vunpack.c.0.s8 %v1812
    %v1814 = vlaneseq
    %v1815 = vshrl.u32 %v1814, 7
    %v1816 = vsub.s32 %v1813, %v1815
    %v1817 = vrot.slane %v1809, %v1816
    %v1819 = vunpack.c.l.s4 1966171168
    %v1820 = vunpack.c.0.s8 %v1819
    %v1821 = vlaneseq
    %v1822 = vshrl.u32 %v1821, 7
    %v1823 = vsub.s32 %v1820, %v1822
    %v1824 = vrot.slane %v1810, %v1823
    %v1825 = vcombine.low %v1817, %v1824
    %v1826 = vcombine.low %v737, %v741
    %v1827 = vcombine.low %v745, %v749
    %v1828 = vcombine.low %v753, %v757
    %v1829 = vcombine.low %v761, %v765
    %v1831 = vunpack.c.l.s4 1966171168
    %v1832 = vunpack.c.0.s8 %v1831
    %v1833 = vlaneseq
    %v1834 = vshrl.u32 %v1833, 7
    %v1835 = vsub.s32 %v1832, %v1834
    %v1836 = vrot.slane %v1826, %v1835
    %v1838 = vunpack.c.l.s4 1966171168
    %v1839 = vunpack.c.0.s8 %v1838
    %v1840 = vlaneseq
    %v1841 = vshrl.u32 %v1840, 7
    %v1842 = vsub.s32 %v1839, %v1841
    %v1843 = vrot.slane %v1827, %v1842
    %v1845 = vunpack.c.l.s4 1966171168
    %v1846 = vunpack.c.0.s8 %v1845
    %v1847 = vlaneseq
    %v1848 = vshrl.u32 %v1847, 7
    %v1849 = vsub.s32 %v1846, %v1848
    %v1850 = vrot.slane %v1828, %v1849
    %v1852 = vunpack.c.l.s4 1966171168
    %v1853 = vunpack.c.0.s8 %v1852
    %v1854 = vlaneseq
    %v1855 = vshrl.u32 %v1854, 7
    %v1856 = vsub.s32 %v1853, %v1855
    %v1857 = vrot.slane %v1829, %v1856
    %v1858 = vcombine.low %v1836, %v1843
    %v1859 = vcombine.low %v1850, %v1857
    %v1861 = vunpack.c.l.s4 1966171168
    %v1862 = vunpack.c.0.s8 %v1861
    %v1863 = vlaneseq
    %v1864 = vshrl.u32 %v1863, 7
    %v1865 = vsub.s32 %v1862, %v1864
    %v1866 = vrot.slane %v1858, %v1865
    %v1868 = vunpack.c.l.s4 1966171168
    %v1869 = vunpack.c.0.s8 %v1868
    %v1870 = vlaneseq
    %v1871 = vshrl.u32 %v1870, 7
    %v1872 = vsub.s32 %v1869, %v1871
    %v1873 = vrot.slane %v1859, %v1872
    %v1874 = vcombine.low %v1866, %v1873
    %v1875 = vcombine.low %v769, %v773
    %v1876 = vcombine.low %v777, %v781
    %v1877 = vcombine.low %v785, %v789
    %v1878 = vcombine.low %v793, %v797
    %v1880 = vunpack.c.l.s4 1966171168
    %v1881 = vunpack.c.0.s8 %v1880
    %v1882 = vlaneseq
    %v1883 = vshrl.u32 %v1882, 7
    %v1884 = vsub.s32 %v1881, %v1883
    %v1885 = vrot.slane %v1875, %v1884
    %v1887 = vunpack.c.l.s4 1966171168
    %v1888 = vunpack.c.0.s8 %v1887
    %v1889 = vlaneseq
    %v1890 = vshrl.u32 %v1889, 7
    %v1891 = vsub.s32 %v1888, %v1890
    %v1892 = vrot.slane %v1876, %v1891
    %v1894 = vunpack.c.l.s4 1966171168
    %v1895 = vunpack.c.0.s8 %v1894
    %v1896 = vlaneseq
    %v1897 = vshrl.u32 %v1896, 7
    %v1898 = vsub.s32 %v1895, %v1897
    %v1899 = vrot.slane %v1877, %v1898
    %v1901 = vunpack.c.l.s4 1966171168
    %v1902 = vunpack.c.0.s8 %v1901
    %v1903 = vlaneseq
    %v1904 = vshrl.u32 %v1903, 7
    %v1905 = vsub.s32 %v1902, %v1904
    %v1906 = vrot.slane %v1878, %v1905
    %v1907 = vcombine.low %v1885, %v1892
    %v1908 = vcombine.low %v1899, %v1906
    %v1910 = vunpack.c.l.s4 1966171168
    %v1911 = vunpack.c.0.s8 %v1910
    %v1912 = vlaneseq
    %v1913 = vshrl.u32 %v1912, 7
    %v1914 = vsub.s32 %v1911, %v1913
    %v1915 = vrot.slane %v1907, %v1914
    %v1917 = vunpack.c.l.s4 1966171168
    %v1918 = vunpack.c.0.s8 %v1917
    %v1919 = vlaneseq
    %v1920 = vshrl.u32 %v1919, 7
    %v1921 = vsub.s32 %v1918, %v1920
    %v1922 = vrot.slane %v1908, %v1921
    %v1923 = vcombine.low %v1915, %v1922
    %v1924 = vcombine.low %v801, %v805
    %v1925 = vcombine.low %v809, %v813
    %v1926 = vcombine.low %v817, %v821
    %v1927 = vcombine.low %v825, %v829
    %v1929 = vunpack.c.l.s4 1966171168
    %v1930 = vunpack.c.0.s8 %v1929
    %v1931 = vlaneseq
    %v1932 = vshrl.u32 %v1931, 7
    %v1933 = vsub.s32 %v1930, %v1932
    %v1934 = vrot.slane %v1924, %v1933
    %v1936 = vunpack.c.l.s4 1966171168
    %v1937 = vunpack.c.0.s8 %v1936
    %v1938 = vlaneseq
    %v1939 = vshrl.u32 %v1938, 7
    %v1940 = vsub.s32 %v1937, %v1939
    %v1941 = vrot.slane %v1925, %v1940
    %v1943 = vunpack.c.l.s4 1966171168
    %v1944 = vunpack.c.0.s8 %v1943
    %v1945 = vlaneseq
    %v1946 = vshrl.u32 %v1945, 7
    %v1947 = vsub.s32 %v1944, %v1946
    %v1948 = vrot.slane %v1926, %v1947
    %v1950 = vunpack.c.l.s4 1966171168
    %v1951 = vunpack.c.0.s8 %v1950
    %v1952 = vlaneseq
    %v1953 = vshrl.u32 %v1952, 7
    %v1954 = vsub.s32 %v1951, %v1953
    %v1955 = vrot.slane %v1927, %v1954
    %v1956 = vcombine.low %v1934, %v1941
    %v1957 = vcombine.low %v1948, %v1955
    %v1959 = vunpack.c.l.s4 1966171168
    %v1960 = vunpack.c.0.s8 %v1959
    %v1961 = vlaneseq
    %v1962 = vshrl.u32 %v1961, 7
    %v1963 = vsub.s32 %v1960, %v1962
    %v1964 = vrot.slane %v1956, %v1963
    %v1966 = vunpack.c.l.s4 1966171168
    %v1967 = vunpack.c.0.s8 %v1966
    %v1968 = vlaneseq
    %v1969 = vshrl.u32 %v1968, 7
    %v1970 = vsub.s32 %v1967, %v1969
    %v1971 = vrot.slane %v1957, %v1970
    %v1972 = vcombine.low %v1964, %v1971
    %v1973 = vcombine.low %v833, %v837
    %v1974 = vcombine.low %v841, %v845
    %v1975 = vcombine.low %v849, %v853
    %v1976 = vcombine.low %v857, %v861
    %v1978 = vunpack.c.l.s4 1966171168
    %v1979 = vunpack.c.0.s8 %v1978
    %v1980 = vlaneseq
    %v1981 = vshrl.u32 %v1980, 7
    %v1982 = vsub.s32 %v1979, %v1981
    %v1983 = vrot.slane %v1973, %v1982
    %v1985 = vunpack.c.l.s4 1966171168
    %v1986 = vunpack.c.0.s8 %v1985
    %v1987 = vlaneseq
    %v1988 = vshrl.u32 %v1987, 7
    %v1989 = vsub.s32 %v1986, %v1988
    %v1990 = vrot.slane %v1974, %v1989
    %v1992 = vunpack.c.l.s4 1966171168
    %v1993 = vunpack.c.0.s8 %v1992
    %v1994 = vlaneseq
    %v1995 = vshrl.u32 %v1994, 7
    %v1996 = vsub.s32 %v1993, %v1995
    %v1997 = vrot.slane %v1975, %v1996
    %v1999 = vunpack.c.l.s4 1966171168
    %v2000 = vunpack.c.0.s8 %v1999
    %v2001 = vlaneseq
    %v2002 = vshrl.u32 %v2001, 7
    %v2003 = vsub.s32 %v2000, %v2002
    %v2004 = vrot.slane %v1976, %v2003
    %v2005 = vcombine.low %v1983, %v1990
    %v2006 = vcombine.low %v1997, %v2004
    %v2008 = vunpack.c.l.s4 1966171168
    %v2009 = vunpack.c.0.s8 %v2008
    %v2010 = vlaneseq
    %v2011 = vshrl.u32 %v2010, 7
    %v2012 = vsub.s32 %v2009, %v2011
    %v2013 = vrot.slane %v2005, %v2012
    %v2015 = vunpack.c.l.s4 1966171168
    %v2016 = vunpack.c.0.s8 %v2015
    %v2017 = vlaneseq
    %v2018 = vshrl.u32 %v2017, 7
    %v2019 = vsub.s32 %v2016, %v2018
    %v2020 = vrot.slane %v2006, %v2019
    %v2021 = vcombine.low %v2013, %v2020
    %v2022 = vcombine.low %v865, %v869
    %v2023 = vcombine.low %v873, %v877
    %v2024 = vcombine.low %v881, %v885
    %v2025 = vcombine.low %v889, %v893
    %v2027 = vunpack.c.l.s4 1966171168
    %v2028 = vunpack.c.0.s8 %v2027
    %v2029 = vlaneseq
    %v2030 = vshrl.u32 %v2029, 7
    %v2031 = vsub.s32 %v2028, %v2030
    %v2032 = vrot.slane %v2022, %v2031
    %v2034 = vunpack.c.l.s4 1966171168
    %v2035 = vunpack.c.0.s8 %v2034
    %v2036 = vlaneseq
    %v2037 = vshrl.u32 %v2036, 7
    %v2038 = vsub.s32 %v2035, %v2037
    %v2039 = vrot.slane %v2023, %v2038
    %v2041 = vunpack.c.l.s4 1966171168
    %v2042 = vunpack.c.0.s8 %v2041
    %v2043 = vlaneseq
    %v2044 = vshrl.u32 %v2043, 7
    %v2045 = vsub.s32 %v2042, %v2044
    %v2046 = vrot.slane %v2024, %v2045
    %v2048 = vunpack.c.l.s4 1966171168
    %v2049 = vunpack.c.0.s8 %v2048
    %v2050 = vlaneseq
    %v2051 = vshrl.u32 %v2050, 7
    %v2052 = vsub.s32 %v2049, %v2051
    %v2053 = vrot.slane %v2025, %v2052
    %v2054 = vcombine.low %v2032, %v2039
    %v2055 = vcombine.low %v2046, %v2053
    %v2057 = vunpack.c.l.s4 1966171168
    %v2058 = vunpack.c.0.s8 %v2057
    %v2059 = vlaneseq
    %v2060 = vshrl.u32 %v2059, 7
    %v2061 = vsub.s32 %v2058, %v2060
    %v2062 = vrot.slane %v2054, %v2061
    %v2064 = vunpack.c.l.s4 1966171168
    %v2065 = vunpack.c.0.s8 %v2064
    %v2066 = vlaneseq
    %v2067 = vshrl.u32 %v2066, 7
    %v2068 = vsub.s32 %v2065, %v2067
    %v2069 = vrot.slane %v2055, %v2068
    %v2070 = vcombine.low %v2062, %v2069
    %v2071 = vcombine.low %v897, %v901
    %v2072 = vcombine.low %v905, %v909
    %v2073 = vcombine.low %v913, %v917
    %v2074 = vcombine.low %v921, %v925
    %v2076 = vunpack.c.l.s4 1966171168
    %v2077 = vunpack.c.0.s8 %v2076
    %v2078 = vlaneseq
    %v2079 = vshrl.u32 %v2078, 7
    %v2080 = vsub.s32 %v2077, %v2079
    %v2081 = vrot.slane %v2071, %v2080
    %v2083 = vunpack.c.l.s4 1966171168
    %v2084 = vunpack.c.0.s8 %v2083
    %v2085 = vlaneseq
    %v2086 = vshrl.u32 %v2085, 7
    %v2087 = vsub.s32 %v2084, %v2086
    %v2088 = vrot.slane %v2072, %v2087
    %v2090 = vunpack.c.l.s4 1966171168
    %v2091 = vunpack.c.0.s8 %v2090
    %v2092 = vlaneseq
    %v2093 = vshrl.u32 %v2092, 7
    %v2094 = vsub.s32 %v2091, %v2093
    %v2095 = vrot.slane %v2073, %v2094
    %v2097 = vunpack.c.l.s4 1966171168
    %v2098 = vunpack.c.0.s8 %v2097
    %v2099 = vlaneseq
    %v2100 = vshrl.u32 %v2099, 7
    %v2101 = vsub.s32 %v2098, %v2100
    %v2102 = vrot.slane %v2074, %v2101
    %v2103 = vcombine.low %v2081, %v2088
    %v2104 = vcombine.low %v2095, %v2102
    %v2106 = vunpack.c.l.s4 1966171168
    %v2107 = vunpack.c.0.s8 %v2106
    %v2108 = vlaneseq
    %v2109 = vshrl.u32 %v2108, 7
    %v2110 = vsub.s32 %v2107, %v2109
    %v2111 = vrot.slane %v2103, %v2110
    %v2113 = vunpack.c.l.s4 1966171168
    %v2114 = vunpack.c.0.s8 %v2113
    %v2115 = vlaneseq
    %v2116 = vshrl.u32 %v2115, 7
    %v2117 = vsub.s32 %v2114, %v2116
    %v2118 = vrot.slane %v2104, %v2117
    %v2119 = vcombine.low %v2111, %v2118
    %v2120 = vcombine.low %v929, %v933
    %v2121 = vcombine.low %v937, %v941
    %v2122 = vcombine.low %v945, %v949
    %v2123 = vcombine.low %v953, %v957
    %v2125 = vunpack.c.l.s4 1966171168
    %v2126 = vunpack.c.0.s8 %v2125
    %v2127 = vlaneseq
    %v2128 = vshrl.u32 %v2127, 7
    %v2129 = vsub.s32 %v2126, %v2128
    %v2130 = vrot.slane %v2120, %v2129
    %v2132 = vunpack.c.l.s4 1966171168
    %v2133 = vunpack.c.0.s8 %v2132
    %v2134 = vlaneseq
    %v2135 = vshrl.u32 %v2134, 7
    %v2136 = vsub.s32 %v2133, %v2135
    %v2137 = vrot.slane %v2121, %v2136
    %v2139 = vunpack.c.l.s4 1966171168
    %v2140 = vunpack.c.0.s8 %v2139
    %v2141 = vlaneseq
    %v2142 = vshrl.u32 %v2141, 7
    %v2143 = vsub.s32 %v2140, %v2142
    %v2144 = vrot.slane %v2122, %v2143
    %v2146 = vunpack.c.l.s4 1966171168
    %v2147 = vunpack.c.0.s8 %v2146
    %v2148 = vlaneseq
    %v2149 = vshrl.u32 %v2148, 7
    %v2150 = vsub.s32 %v2147, %v2149
    %v2151 = vrot.slane %v2123, %v2150
    %v2152 = vcombine.low %v2130, %v2137
    %v2153 = vcombine.low %v2144, %v2151
    %v2155 = vunpack.c.l.s4 1966171168
    %v2156 = vunpack.c.0.s8 %v2155
    %v2157 = vlaneseq
    %v2158 = vshrl.u32 %v2157, 7
    %v2159 = vsub.s32 %v2156, %v2158
    %v2160 = vrot.slane %v2152, %v2159
    %v2162 = vunpack.c.l.s4 1966171168
    %v2163 = vunpack.c.0.s8 %v2162
    %v2164 = vlaneseq
    %v2165 = vshrl.u32 %v2164, 7
    %v2166 = vsub.s32 %v2163, %v2165
    %v2167 = vrot.slane %v2153, %v2166
    %v2168 = vcombine.low %v2160, %v2167
    %v2169 = vcombine.low %v961, %v965
    %v2170 = vcombine.low %v969, %v973
    %v2171 = vcombine.low %v977, %v981
    %v2172 = vcombine.low %v985, %v989
    %v2174 = vunpack.c.l.s4 1966171168
    %v2175 = vunpack.c.0.s8 %v2174
    %v2176 = vlaneseq
    %v2177 = vshrl.u32 %v2176, 7
    %v2178 = vsub.s32 %v2175, %v2177
    %v2179 = vrot.slane %v2169, %v2178
    %v2181 = vunpack.c.l.s4 1966171168
    %v2182 = vunpack.c.0.s8 %v2181
    %v2183 = vlaneseq
    %v2184 = vshrl.u32 %v2183, 7
    %v2185 = vsub.s32 %v2182, %v2184
    %v2186 = vrot.slane %v2170, %v2185
    %v2188 = vunpack.c.l.s4 1966171168
    %v2189 = vunpack.c.0.s8 %v2188
    %v2190 = vlaneseq
    %v2191 = vshrl.u32 %v2190, 7
    %v2192 = vsub.s32 %v2189, %v2191
    %v2193 = vrot.slane %v2171, %v2192
    %v2195 = vunpack.c.l.s4 1966171168
    %v2196 = vunpack.c.0.s8 %v2195
    %v2197 = vlaneseq
    %v2198 = vshrl.u32 %v2197, 7
    %v2199 = vsub.s32 %v2196, %v2198
    %v2200 = vrot.slane %v2172, %v2199
    %v2201 = vcombine.low %v2179, %v2186
    %v2202 = vcombine.low %v2193, %v2200
    %v2204 = vunpack.c.l.s4 1966171168
    %v2205 = vunpack.c.0.s8 %v2204
    %v2206 = vlaneseq
    %v2207 = vshrl.u32 %v2206, 7
    %v2208 = vsub.s32 %v2205, %v2207
    %v2209 = vrot.slane %v2201, %v2208
    %v2211 = vunpack.c.l.s4 1966171168
    %v2212 = vunpack.c.0.s8 %v2211
    %v2213 = vlaneseq
    %v2214 = vshrl.u32 %v2213, 7
    %v2215 = vsub.s32 %v2212, %v2214
    %v2216 = vrot.slane %v2202, %v2215
    %v2217 = vcombine.low %v2209, %v2216
    %v2218 = vcombine.low %v993, %v997
    %v2219 = vcombine.low %v1001, %v1005
    %v2220 = vcombine.low %v1009, %v1013
    %v2221 = vcombine.low %v1017, %v1021
    %v2223 = vunpack.c.l.s4 1966171168
    %v2224 = vunpack.c.0.s8 %v2223
    %v2225 = vlaneseq
    %v2226 = vshrl.u32 %v2225, 7
    %v2227 = vsub.s32 %v2224, %v2226
    %v2228 = vrot.slane %v2218, %v2227
    %v2230 = vunpack.c.l.s4 1966171168
    %v2231 = vunpack.c.0.s8 %v2230
    %v2232 = vlaneseq
    %v2233 = vshrl.u32 %v2232, 7
    %v2234 = vsub.s32 %v2231, %v2233
    %v2235 = vrot.slane %v2219, %v2234
    %v2237 = vunpack.c.l.s4 1966171168
    %v2238 = vunpack.c.0.s8 %v2237
    %v2239 = vlaneseq
    %v2240 = vshrl.u32 %v2239, 7
    %v2241 = vsub.s32 %v2238, %v2240
    %v2242 = vrot.slane %v2220, %v2241
    %v2244 = vunpack.c.l.s4 1966171168
    %v2245 = vunpack.c.0.s8 %v2244
    %v2246 = vlaneseq
    %v2247 = vshrl.u32 %v2246, 7
    %v2248 = vsub.s32 %v2245, %v2247
    %v2249 = vrot.slane %v2221, %v2248
    %v2250 = vcombine.low %v2228, %v2235
    %v2251 = vcombine.low %v2242, %v2249
    %v2253 = vunpack.c.l.s4 1966171168
    %v2254 = vunpack.c.0.s8 %v2253
    %v2255 = vlaneseq
    %v2256 = vshrl.u32 %v2255, 7
    %v2257 = vsub.s32 %v2254, %v2256
    %v2258 = vrot.slane %v2250, %v2257
    %v2260 = vunpack.c.l.s4 1966171168
    %v2261 = vunpack.c.0.s8 %v2260
    %v2262 = vlaneseq
    %v2263 = vshrl.u32 %v2262, 7
    %v2264 = vsub.s32 %v2261, %v2263
    %v2265 = vrot.slane %v2251, %v2264
    %v2266 = vcombine.low %v2258, %v2265
    %v2267 = vcombine.low %v1025, %v1029
    %v2268 = vcombine.low %v1033, %v1037
    %v2269 = vcombine.low %v1041, %v1045
    %v2270 = vcombine.low %v1049, %v1053
    %v2272 = vunpack.c.l.s4 1966171168
    %v2273 = vunpack.c.0.s8 %v2272
    %v2274 = vlaneseq
    %v2275 = vshrl.u32 %v2274, 7
    %v2276 = vsub.s32 %v2273, %v2275
    %v2277 = vrot.slane %v2267, %v2276
    %v2279 = vunpack.c.l.s4 1966171168
    %v2280 = vunpack.c.0.s8 %v2279
    %v2281 = vlaneseq
    %v2282 = vshrl.u32 %v2281, 7
    %v2283 = vsub.s32 %v2280, %v2282
    %v2284 = vrot.slane %v2268, %v2283
    %v2286 = vunpack.c.l.s4 1966171168
    %v2287 = vunpack.c.0.s8 %v2286
    %v2288 = vlaneseq
    %v2289 = vshrl.u32 %v2288, 7
    %v2290 = vsub.s32 %v2287, %v2289
    %v2291 = vrot.slane %v2269, %v2290
    %v2293 = vunpack.c.l.s4 1966171168
    %v2294 = vunpack.c.0.s8 %v2293
    %v2295 = vlaneseq
    %v2296 = vshrl.u32 %v2295, 7
    %v2297 = vsub.s32 %v2294, %v2296
    %v2298 = vrot.slane %v2270, %v2297
    %v2299 = vcombine.low %v2277, %v2284
    %v2300 = vcombine.low %v2291, %v2298
    %v2302 = vunpack.c.l.s4 1966171168
    %v2303 = vunpack.c.0.s8 %v2302
    %v2304 = vlaneseq
    %v2305 = vshrl.u32 %v2304, 7
    %v2306 = vsub.s32 %v2303, %v2305
    %v2307 = vrot.slane %v2299, %v2306
    %v2309 = vunpack.c.l.s4 1966171168
    %v2310 = vunpack.c.0.s8 %v2309
    %v2311 = vlaneseq
    %v2312 = vshrl.u32 %v2311, 7
    %v2313 = vsub.s32 %v2310, %v2312
    %v2314 = vrot.slane %v2300, %v2313
    %v2315 = vcombine.low %v2307, %v2314
    %v2316 = vcombine.low %v1057, %v1061
    %v2317 = vcombine.low %v1065, %v1069
    %v2318 = vcombine.low %v1073, %v1077
    %v2319 = vcombine.low %v1081, %v1085
    %v2321 = vunpack.c.l.s4 1966171168
    %v2322 = vunpack.c.0.s8 %v2321
    %v2323 = vlaneseq
    %v2324 = vshrl.u32 %v2323, 7
    %v2325 = vsub.s32 %v2322, %v2324
    %v2326 = vrot.slane %v2316, %v2325
    %v2328 = vunpack.c.l.s4 1966171168
    %v2329 = vunpack.c.0.s8 %v2328
    %v2330 = vlaneseq
    %v2331 = vshrl.u32 %v2330, 7
    %v2332 = vsub.s32 %v2329, %v2331
    %v2333 = vrot.slane %v2317, %v2332
    %v2335 = vunpack.c.l.s4 1966171168
    %v2336 = vunpack.c.0.s8 %v2335
    %v2337 = vlaneseq
    %v2338 = vshrl.u32 %v2337, 7
    %v2339 = vsub.s32 %v2336, %v2338
    %v2340 = vrot.slane %v2318, %v2339
    %v2342 = vunpack.c.l.s4 1966171168
    %v2343 = vunpack.c.0.s8 %v2342
    %v2344 = vlaneseq
    %v2345 = vshrl.u32 %v2344, 7
    %v2346 = vsub.s32 %v2343, %v2345
    %v2347 = vrot.slane %v2319, %v2346
    %v2348 = vcombine.low %v2326, %v2333
    %v2349 = vcombine.low %v2340, %v2347
    %v2351 = vunpack.c.l.s4 1966171168
    %v2352 = vunpack.c.0.s8 %v2351
    %v2353 = vlaneseq
    %v2354 = vshrl.u32 %v2353, 7
    %v2355 = vsub.s32 %v2352, %v2354
    %v2356 = vrot.slane %v2348, %v2355
    %v2358 = vunpack.c.l.s4 1966171168
    %v2359 = vunpack.c.0.s8 %v2358
    %v2360 = vlaneseq
    %v2361 = vshrl.u32 %v2360, 7
    %v2362 = vsub.s32 %v2359, %v2361
    %v2363 = vrot.slane %v2349, %v2362
    %v2364 = vcombine.low %v2356, %v2363
    %v2365 = vcombine.low %v1089, %v1093
    %v2366 = vcombine.low %v1097, %v1101
    %v2367 = vcombine.low %v1105, %v1109
    %v2368 = vcombine.low %v1113, %v1117
    %v2370 = vunpack.c.l.s4 1966171168
    %v2371 = vunpack.c.0.s8 %v2370
    %v2372 = vlaneseq
    %v2373 = vshrl.u32 %v2372, 7
    %v2374 = vsub.s32 %v2371, %v2373
    %v2375 = vrot.slane %v2365, %v2374
    %v2377 = vunpack.c.l.s4 1966171168
    %v2378 = vunpack.c.0.s8 %v2377
    %v2379 = vlaneseq
    %v2380 = vshrl.u32 %v2379, 7
    %v2381 = vsub.s32 %v2378, %v2380
    %v2382 = vrot.slane %v2366, %v2381
    %v2384 = vunpack.c.l.s4 1966171168
    %v2385 = vunpack.c.0.s8 %v2384
    %v2386 = vlaneseq
    %v2387 = vshrl.u32 %v2386, 7
    %v2388 = vsub.s32 %v2385, %v2387
    %v2389 = vrot.slane %v2367, %v2388
    %v2391 = vunpack.c.l.s4 1966171168
    %v2392 = vunpack.c.0.s8 %v2391
    %v2393 = vlaneseq
    %v2394 = vshrl.u32 %v2393, 7
    %v2395 = vsub.s32 %v2392, %v2394
    %v2396 = vrot.slane %v2368, %v2395
    %v2397 = vcombine.low %v2375, %v2382
    %v2398 = vcombine.low %v2389, %v2396
    %v2400 = vunpack.c.l.s4 1966171168
    %v2401 = vunpack.c.0.s8 %v2400
    %v2402 = vlaneseq
    %v2403 = vshrl.u32 %v2402, 7
    %v2404 = vsub.s32 %v2401, %v2403
    %v2405 = vrot.slane %v2397, %v2404
    %v2407 = vunpack.c.l.s4 1966171168
    %v2408 = vunpack.c.0.s8 %v2407
    %v2409 = vlaneseq
    %v2410 = vshrl.u32 %v2409, 7
    %v2411 = vsub.s32 %v2408, %v2410
    %v2412 = vrot.slane %v2398, %v2411
    %v2413 = vcombine.low %v2405, %v2412
    %v2414 = vcombine.low %v1121, %v1125
    %v2415 = vcombine.low %v1129, %v1133
    %v2416 = vcombine.low %v1137, %v1141
    %v2417 = vcombine.low %v1145, %v1149
    %v2419 = vunpack.c.l.s4 1966171168
    %v2420 = vunpack.c.0.s8 %v2419
    %v2421 = vlaneseq
    %v2422 = vshrl.u32 %v2421, 7
    %v2423 = vsub.s32 %v2420, %v2422
    %v2424 = vrot.slane %v2414, %v2423
    %v2426 = vunpack.c.l.s4 1966171168
    %v2427 = vunpack.c.0.s8 %v2426
    %v2428 = vlaneseq
    %v2429 = vshrl.u32 %v2428, 7
    %v2430 = vsub.s32 %v2427, %v2429
    %v2431 = vrot.slane %v2415, %v2430
    %v2433 = vunpack.c.l.s4 1966171168
    %v2434 = vunpack.c.0.s8 %v2433
    %v2435 = vlaneseq
    %v2436 = vshrl.u32 %v2435, 7
    %v2437 = vsub.s32 %v2434, %v2436
    %v2438 = vrot.slane %v2416, %v2437
    %v2440 = vunpack.c.l.s4 1966171168
    %v2441 = vunpack.c.0.s8 %v2440
    %v2442 = vlaneseq
    %v2443 = vshrl.u32 %v2442, 7
    %v2444 = vsub.s32 %v2441, %v2443
    %v2445 = vrot.slane %v2417, %v2444
    %v2446 = vcombine.low %v2424, %v2431
    %v2447 = vcombine.low %v2438, %v2445
    %v2449 = vunpack.c.l.s4 1966171168
    %v2450 = vunpack.c.0.s8 %v2449
    %v2451 = vlaneseq
    %v2452 = vshrl.u32 %v2451, 7
    %v2453 = vsub.s32 %v2450, %v2452
    %v2454 = vrot.slane %v2446, %v2453
    %v2456 = vunpack.c.l.s4 1966171168
    %v2457 = vunpack.c.0.s8 %v2456
    %v2458 = vlaneseq
    %v2459 = vshrl.u32 %v2458, 7
    %v2460 = vsub.s32 %v2457, %v2459
    %v2461 = vrot.slane %v2447, %v2460
    %v2462 = vcombine.low %v2454, %v2461
    %v2463 = vcombine.low %v1153, %v1157
    %v2464 = vcombine.low %v1161, %v1165
    %v2465 = vcombine.low %v1169, %v1173
    %v2466 = vcombine.low %v1177, %v1181
    %v2468 = vunpack.c.l.s4 1966171168
    %v2469 = vunpack.c.0.s8 %v2468
    %v2470 = vlaneseq
    %v2471 = vshrl.u32 %v2470, 7
    %v2472 = vsub.s32 %v2469, %v2471
    %v2473 = vrot.slane %v2463, %v2472
    %v2475 = vunpack.c.l.s4 1966171168
    %v2476 = vunpack.c.0.s8 %v2475
    %v2477 = vlaneseq
    %v2478 = vshrl.u32 %v2477, 7
    %v2479 = vsub.s32 %v2476, %v2478
    %v2480 = vrot.slane %v2464, %v2479
    %v2482 = vunpack.c.l.s4 1966171168
    %v2483 = vunpack.c.0.s8 %v2482
    %v2484 = vlaneseq
    %v2485 = vshrl.u32 %v2484, 7
    %v2486 = vsub.s32 %v2483, %v2485
    %v2487 = vrot.slane %v2465, %v2486
    %v2489 = vunpack.c.l.s4 1966171168
    %v2490 = vunpack.c.0.s8 %v2489
    %v2491 = vlaneseq
    %v2492 = vshrl.u32 %v2491, 7
    %v2493 = vsub.s32 %v2490, %v2492
    %v2494 = vrot.slane %v2466, %v2493
    %v2495 = vcombine.low %v2473, %v2480
    %v2496 = vcombine.low %v2487, %v2494
    %v2498 = vunpack.c.l.s4 1966171168
    %v2499 = vunpack.c.0.s8 %v2498
    %v2500 = vlaneseq
    %v2501 = vshrl.u32 %v2500, 7
    %v2502 = vsub.s32 %v2499, %v2501
    %v2503 = vrot.slane %v2495, %v2502
    %v2505 = vunpack.c.l.s4 1966171168
    %v2506 = vunpack.c.0.s8 %v2505
    %v2507 = vlaneseq
    %v2508 = vshrl.u32 %v2507, 7
    %v2509 = vsub.s32 %v2506, %v2508
    %v2510 = vrot.slane %v2496, %v2509
    %v2511 = vcombine.low %v2503, %v2510
    %v2512 = vcombine.low %v1185, %v1189
    %v2513 = vcombine.low %v1193, %v1197
    %v2514 = vcombine.low %v1201, %v1205
    %v2515 = vcombine.low %v1209, %v1213
    %v2517 = vunpack.c.l.s4 1966171168
    %v2518 = vunpack.c.0.s8 %v2517
    %v2519 = vlaneseq
    %v2520 = vshrl.u32 %v2519, 7
    %v2521 = vsub.s32 %v2518, %v2520
    %v2522 = vrot.slane %v2512, %v2521
    %v2524 = vunpack.c.l.s4 1966171168
    %v2525 = vunpack.c.0.s8 %v2524
    %v2526 = vlaneseq
    %v2527 = vshrl.u32 %v2526, 7
    %v2528 = vsub.s32 %v2525, %v2527
    %v2529 = vrot.slane %v2513, %v2528
    %v2531 = vunpack.c.l.s4 1966171168
    %v2532 = vunpack.c.0.s8 %v2531
    %v2533 = vlaneseq
    %v2534 = vshrl.u32 %v2533, 7
    %v2535 = vsub.s32 %v2532, %v2534
    %v2536 = vrot.slane %v2514, %v2535
    %v2538 = vunpack.c.l.s4 1966171168
    %v2539 = vunpack.c.0.s8 %v2538
    %v2540 = vlaneseq
    %v2541 = vshrl.u32 %v2540, 7
    %v2542 = vsub.s32 %v2539, %v2541
    %v2543 = vrot.slane %v2515, %v2542
    %v2544 = vcombine.low %v2522, %v2529
    %v2545 = vcombine.low %v2536, %v2543
    %v2547 = vunpack.c.l.s4 1966171168
    %v2548 = vunpack.c.0.s8 %v2547
    %v2549 = vlaneseq
    %v2550 = vshrl.u32 %v2549, 7
    %v2551 = vsub.s32 %v2548, %v2550
    %v2552 = vrot.slane %v2544, %v2551
    %v2554 = vunpack.c.l.s4 1966171168
    %v2555 = vunpack.c.0.s8 %v2554
    %v2556 = vlaneseq
    %v2557 = vshrl.u32 %v2556, 7
    %v2558 = vsub.s32 %v2555, %v2557
    %v2559 = vrot.slane %v2545, %v2558
    %v2560 = vcombine.low %v2552, %v2559
    %v2561 = vcombine.low %v1217, %v1221
    %v2562 = vcombine.low %v1225, %v1229
    %v2563 = vcombine.low %v1233, %v1237
    %v2564 = vcombine.low %v1241, %v1245
    %v2566 = vunpack.c.l.s4 1966171168
    %v2567 = vunpack.c.0.s8 %v2566
    %v2568 = vlaneseq
    %v2569 = vshrl.u32 %v2568, 7
    %v2570 = vsub.s32 %v2567, %v2569
    %v2571 = vrot.slane %v2561, %v2570
    %v2573 = vunpack.c.l.s4 1966171168
    %v2574 = vunpack.c.0.s8 %v2573
    %v2575 = vlaneseq
    %v2576 = vshrl.u32 %v2575, 7
    %v2577 = vsub.s32 %v2574, %v2576
    %v2578 = vrot.slane %v2562, %v2577
    %v2580 = vunpack.c.l.s4 1966171168
    %v2581 = vunpack.c.0.s8 %v2580
    %v2582 = vlaneseq
    %v2583 = vshrl.u32 %v2582, 7
    %v2584 = vsub.s32 %v2581, %v2583
    %v2585 = vrot.slane %v2563, %v2584
    %v2587 = vunpack.c.l.s4 1966171168
    %v2588 = vunpack.c.0.s8 %v2587
    %v2589 = vlaneseq
    %v2590 = vshrl.u32 %v2589, 7
    %v2591 = vsub.s32 %v2588, %v2590
    %v2592 = vrot.slane %v2564, %v2591
    %v2593 = vcombine.low %v2571, %v2578
    %v2594 = vcombine.low %v2585, %v2592
    %v2596 = vunpack.c.l.s4 1966171168
    %v2597 = vunpack.c.0.s8 %v2596
    %v2598 = vlaneseq
    %v2599 = vshrl.u32 %v2598, 7
    %v2600 = vsub.s32 %v2597, %v2599
    %v2601 = vrot.slane %v2593, %v2600
    %v2603 = vunpack.c.l.s4 1966171168
    %v2604 = vunpack.c.0.s8 %v2603
    %v2605 = vlaneseq
    %v2606 = vshrl.u32 %v2605, 7
    %v2607 = vsub.s32 %v2604, %v2606
    %v2608 = vrot.slane %v2594, %v2607
    %v2609 = vcombine.low %v2601, %v2608
    %v2610 = vcombine.low %v1249, %v1253
    %v2611 = vcombine.low %v1257, %v1261
    %v2612 = vcombine.low %v1265, %v1269
    %v2613 = vcombine.low %v1273, %v1277
    %v2615 = vunpack.c.l.s4 1966171168
    %v2616 = vunpack.c.0.s8 %v2615
    %v2617 = vlaneseq
    %v2618 = vshrl.u32 %v2617, 7
    %v2619 = vsub.s32 %v2616, %v2618
    %v2620 = vrot.slane %v2610, %v2619
    %v2622 = vunpack.c.l.s4 1966171168
    %v2623 = vunpack.c.0.s8 %v2622
    %v2624 = vlaneseq
    %v2625 = vshrl.u32 %v2624, 7
    %v2626 = vsub.s32 %v2623, %v2625
    %v2627 = vrot.slane %v2611, %v2626
    %v2629 = vunpack.c.l.s4 1966171168
    %v2630 = vunpack.c.0.s8 %v2629
    %v2631 = vlaneseq
    %v2632 = vshrl.u32 %v2631, 7
    %v2633 = vsub.s32 %v2630, %v2632
    %v2634 = vrot.slane %v2612, %v2633
    %v2636 = vunpack.c.l.s4 1966171168
    %v2637 = vunpack.c.0.s8 %v2636
    %v2638 = vlaneseq
    %v2639 = vshrl.u32 %v2638, 7
    %v2640 = vsub.s32 %v2637, %v2639
    %v2641 = vrot.slane %v2613, %v2640
    %v2642 = vcombine.low %v2620, %v2627
    %v2643 = vcombine.low %v2634, %v2641
    %v2645 = vunpack.c.l.s4 1966171168
    %v2646 = vunpack.c.0.s8 %v2645
    %v2647 = vlaneseq
    %v2648 = vshrl.u32 %v2647, 7
    %v2649 = vsub.s32 %v2646, %v2648
    %v2650 = vrot.slane %v2642, %v2649
    %v2652 = vunpack.c.l.s4 1966171168
    %v2653 = vunpack.c.0.s8 %v2652
    %v2654 = vlaneseq
    %v2655 = vshrl.u32 %v2654, 7
    %v2656 = vsub.s32 %v2653, %v2655
    %v2657 = vrot.slane %v2643, %v2656
    %v2658 = vcombine.low %v2650, %v2657
    %v2659 = vcombine.low %v1281, %v1285
    %v2660 = vcombine.low %v1289, %v1293
    %v2661 = vcombine.low %v1297, %v1301
    %v2662 = vcombine.low %v1305, %v1309
    %v2664 = vunpack.c.l.s4 1966171168
    %v2665 = vunpack.c.0.s8 %v2664
    %v2666 = vlaneseq
    %v2667 = vshrl.u32 %v2666, 7
    %v2668 = vsub.s32 %v2665, %v2667
    %v2669 = vrot.slane %v2659, %v2668
    %v2671 = vunpack.c.l.s4 1966171168
    %v2672 = vunpack.c.0.s8 %v2671
    %v2673 = vlaneseq
    %v2674 = vshrl.u32 %v2673, 7
    %v2675 = vsub.s32 %v2672, %v2674
    %v2676 = vrot.slane %v2660, %v2675
    %v2678 = vunpack.c.l.s4 1966171168
    %v2679 = vunpack.c.0.s8 %v2678
    %v2680 = vlaneseq
    %v2681 = vshrl.u32 %v2680, 7
    %v2682 = vsub.s32 %v2679, %v2681
    %v2683 = vrot.slane %v2661, %v2682
    %v2685 = vunpack.c.l.s4 1966171168
    %v2686 = vunpack.c.0.s8 %v2685
    %v2687 = vlaneseq
    %v2688 = vshrl.u32 %v2687, 7
    %v2689 = vsub.s32 %v2686, %v2688
    %v2690 = vrot.slane %v2662, %v2689
    %v2691 = vcombine.low %v2669, %v2676
    %v2692 = vcombine.low %v2683, %v2690
    %v2694 = vunpack.c.l.s4 1966171168
    %v2695 = vunpack.c.0.s8 %v2694
    %v2696 = vlaneseq
    %v2697 = vshrl.u32 %v2696, 7
    %v2698 = vsub.s32 %v2695, %v2697
    %v2699 = vrot.slane %v2691, %v2698
    %v2701 = vunpack.c.l.s4 1966171168
    %v2702 = vunpack.c.0.s8 %v2701
    %v2703 = vlaneseq
    %v2704 = vshrl.u32 %v2703, 7
    %v2705 = vsub.s32 %v2702, %v2704
    %v2706 = vrot.slane %v2692, %v2705
    %v2707 = vcombine.low %v2699, %v2706
    %v2708 = vcombine.low %v1313, %v1317
    %v2709 = vcombine.low %v1321, %v1325
    %v2710 = vcombine.low %v1329, %v1333
    %v2711 = vcombine.low %v1337, %v1341
    %v2713 = vunpack.c.l.s4 1966171168
    %v2714 = vunpack.c.0.s8 %v2713
    %v2715 = vlaneseq
    %v2716 = vshrl.u32 %v2715, 7
    %v2717 = vsub.s32 %v2714, %v2716
    %v2718 = vrot.slane %v2708, %v2717
    %v2720 = vunpack.c.l.s4 1966171168
    %v2721 = vunpack.c.0.s8 %v2720
    %v2722 = vlaneseq
    %v2723 = vshrl.u32 %v2722, 7
    %v2724 = vsub.s32 %v2721, %v2723
    %v2725 = vrot.slane %v2709, %v2724
    %v2727 = vunpack.c.l.s4 1966171168
    %v2728 = vunpack.c.0.s8 %v2727
    %v2729 = vlaneseq
    %v2730 = vshrl.u32 %v2729, 7
    %v2731 = vsub.s32 %v2728, %v2730
    %v2732 = vrot.slane %v2710, %v2731
    %v2734 = vunpack.c.l.s4 1966171168
    %v2735 = vunpack.c.0.s8 %v2734
    %v2736 = vlaneseq
    %v2737 = vshrl.u32 %v2736, 7
    %v2738 = vsub.s32 %v2735, %v2737
    %v2739 = vrot.slane %v2711, %v2738
    %v2740 = vcombine.low %v2718, %v2725
    %v2741 = vcombine.low %v2732, %v2739
    %v2743 = vunpack.c.l.s4 1966171168
    %v2744 = vunpack.c.0.s8 %v2743
    %v2745 = vlaneseq
    %v2746 = vshrl.u32 %v2745, 7
    %v2747 = vsub.s32 %v2744, %v2746
    %v2748 = vrot.slane %v2740, %v2747
    %v2750 = vunpack.c.l.s4 1966171168
    %v2751 = vunpack.c.0.s8 %v2750
    %v2752 = vlaneseq
    %v2753 = vshrl.u32 %v2752, 7
    %v2754 = vsub.s32 %v2751, %v2753
    %v2755 = vrot.slane %v2741, %v2754
    %v2756 = vcombine.low %v2748, %v2755
    %v2757 = vcombine.low %v1345, %v1349
    %v2758 = vcombine.low %v1353, %v1357
    %v2759 = vcombine.low %v1361, %v1365
    %v2760 = vcombine.low %v1369, %v1373
    %v2762 = vunpack.c.l.s4 1966171168
    %v2763 = vunpack.c.0.s8 %v2762
    %v2764 = vlaneseq
    %v2765 = vshrl.u32 %v2764, 7
    %v2766 = vsub.s32 %v2763, %v2765
    %v2767 = vrot.slane %v2757, %v2766
    %v2769 = vunpack.c.l.s4 1966171168
    %v2770 = vunpack.c.0.s8 %v2769
    %v2771 = vlaneseq
    %v2772 = vshrl.u32 %v2771, 7
    %v2773 = vsub.s32 %v2770, %v2772
    %v2774 = vrot.slane %v2758, %v2773
    %v2776 = vunpack.c.l.s4 1966171168
    %v2777 = vunpack.c.0.s8 %v2776
    %v2778 = vlaneseq
    %v2779 = vshrl.u32 %v2778, 7
    %v2780 = vsub.s32 %v2777, %v2779
    %v2781 = vrot.slane %v2759, %v2780
    %v2783 = vunpack.c.l.s4 1966171168
    %v2784 = vunpack.c.0.s8 %v2783
    %v2785 = vlaneseq
    %v2786 = vshrl.u32 %v2785, 7
    %v2787 = vsub.s32 %v2784, %v2786
    %v2788 = vrot.slane %v2760, %v2787
    %v2789 = vcombine.low %v2767, %v2774
    %v2790 = vcombine.low %v2781, %v2788
    %v2792 = vunpack.c.l.s4 1966171168
    %v2793 = vunpack.c.0.s8 %v2792
    %v2794 = vlaneseq
    %v2795 = vshrl.u32 %v2794, 7
    %v2796 = vsub.s32 %v2793, %v2795
    %v2797 = vrot.slane %v2789, %v2796
    %v2799 = vunpack.c.l.s4 1966171168
    %v2800 = vunpack.c.0.s8 %v2799
    %v2801 = vlaneseq
    %v2802 = vshrl.u32 %v2801, 7
    %v2803 = vsub.s32 %v2800, %v2802
    %v2804 = vrot.slane %v2790, %v2803
    %v2805 = vcombine.low %v2797, %v2804
    %v2806 = vcombine.low %v1377, %v1381
    %v2807 = vcombine.low %v1385, %v1389
    %v2808 = vcombine.low %v1393, %v1397
    %v2809 = vcombine.low %v1401, %v1405
    %v2811 = vunpack.c.l.s4 1966171168
    %v2812 = vunpack.c.0.s8 %v2811
    %v2813 = vlaneseq
    %v2814 = vshrl.u32 %v2813, 7
    %v2815 = vsub.s32 %v2812, %v2814
    %v2816 = vrot.slane %v2806, %v2815
    %v2818 = vunpack.c.l.s4 1966171168
    %v2819 = vunpack.c.0.s8 %v2818
    %v2820 = vlaneseq
    %v2821 = vshrl.u32 %v2820, 7
    %v2822 = vsub.s32 %v2819, %v2821
    %v2823 = vrot.slane %v2807, %v2822
    %v2825 = vunpack.c.l.s4 1966171168
    %v2826 = vunpack.c.0.s8 %v2825
    %v2827 = vlaneseq
    %v2828 = vshrl.u32 %v2827, 7
    %v2829 = vsub.s32 %v2826, %v2828
    %v2830 = vrot.slane %v2808, %v2829
    %v2832 = vunpack.c.l.s4 1966171168
    %v2833 = vunpack.c.0.s8 %v2832
    %v2834 = vlaneseq
    %v2835 = vshrl.u32 %v2834, 7
    %v2836 = vsub.s32 %v2833, %v2835
    %v2837 = vrot.slane %v2809, %v2836
    %v2838 = vcombine.low %v2816, %v2823
    %v2839 = vcombine.low %v2830, %v2837
    %v2841 = vunpack.c.l.s4 1966171168
    %v2842 = vunpack.c.0.s8 %v2841
    %v2843 = vlaneseq
    %v2844 = vshrl.u32 %v2843, 7
    %v2845 = vsub.s32 %v2842, %v2844
    %v2846 = vrot.slane %v2838, %v2845
    %v2848 = vunpack.c.l.s4 1966171168
    %v2849 = vunpack.c.0.s8 %v2848
    %v2850 = vlaneseq
    %v2851 = vshrl.u32 %v2850, 7
    %v2852 = vsub.s32 %v2849, %v2851
    %v2853 = vrot.slane %v2839, %v2852
    %v2854 = vcombine.low %v2846, %v2853
    %v2855 = vcombine.low %v1409, %v1413
    %v2856 = vcombine.low %v1417, %v1421
    %v2857 = vcombine.low %v1425, %v1429
    %v2858 = vcombine.low %v1433, %v1437
    %v2860 = vunpack.c.l.s4 1966171168
    %v2861 = vunpack.c.0.s8 %v2860
    %v2862 = vlaneseq
    %v2863 = vshrl.u32 %v2862, 7
    %v2864 = vsub.s32 %v2861, %v2863
    %v2865 = vrot.slane %v2855, %v2864
    %v2867 = vunpack.c.l.s4 1966171168
    %v2868 = vunpack.c.0.s8 %v2867
    %v2869 = vlaneseq
    %v2870 = vshrl.u32 %v2869, 7
    %v2871 = vsub.s32 %v2868, %v2870
    %v2872 = vrot.slane %v2856, %v2871
    %v2874 = vunpack.c.l.s4 1966171168
    %v2875 = vunpack.c.0.s8 %v2874
    %v2876 = vlaneseq
    %v2877 = vshrl.u32 %v2876, 7
    %v2878 = vsub.s32 %v2875, %v2877
    %v2879 = vrot.slane %v2857, %v2878
    %v2881 = vunpack.c.l.s4 1966171168
    %v2882 = vunpack.c.0.s8 %v2881
    %v2883 = vlaneseq
    %v2884 = vshrl.u32 %v2883, 7
    %v2885 = vsub.s32 %v2882, %v2884
    %v2886 = vrot.slane %v2858, %v2885
    %v2887 = vcombine.low %v2865, %v2872
    %v2888 = vcombine.low %v2879, %v2886
    %v2890 = vunpack.c.l.s4 1966171168
    %v2891 = vunpack.c.0.s8 %v2890
    %v2892 = vlaneseq
    %v2893 = vshrl.u32 %v2892, 7
    %v2894 = vsub.s32 %v2891, %v2893
    %v2895 = vrot.slane %v2887, %v2894
    %v2897 = vunpack.c.l.s4 1966171168
    %v2898 = vunpack.c.0.s8 %v2897
    %v2899 = vlaneseq
    %v2900 = vshrl.u32 %v2899, 7
    %v2901 = vsub.s32 %v2898, %v2900
    %v2902 = vrot.slane %v2888, %v2901
    %v2903 = vcombine.low %v2895, %v2902
    %v2904 = vcombine.low %v1441, %v1445
    %v2905 = vcombine.low %v1449, %v1453
    %v2906 = vcombine.low %v1457, %v1461
    %v2907 = vcombine.low %v1465, %v1469
    %v2909 = vunpack.c.l.s4 1966171168
    %v2910 = vunpack.c.0.s8 %v2909
    %v2911 = vlaneseq
    %v2912 = vshrl.u32 %v2911, 7
    %v2913 = vsub.s32 %v2910, %v2912
    %v2914 = vrot.slane %v2904, %v2913
    %v2916 = vunpack.c.l.s4 1966171168
    %v2917 = vunpack.c.0.s8 %v2916
    %v2918 = vlaneseq
    %v2919 = vshrl.u32 %v2918, 7
    %v2920 = vsub.s32 %v2917, %v2919
    %v2921 = vrot.slane %v2905, %v2920
    %v2923 = vunpack.c.l.s4 1966171168
    %v2924 = vunpack.c.0.s8 %v2923
    %v2925 = vlaneseq
    %v2926 = vshrl.u32 %v2925, 7
    %v2927 = vsub.s32 %v2924, %v2926
    %v2928 = vrot.slane %v2906, %v2927
    %v2930 = vunpack.c.l.s4 1966171168
    %v2931 = vunpack.c.0.s8 %v2930
    %v2932 = vlaneseq
    %v2933 = vshrl.u32 %v2932, 7
    %v2934 = vsub.s32 %v2931, %v2933
    %v2935 = vrot.slane %v2907, %v2934
    %v2936 = vcombine.low %v2914, %v2921
    %v2937 = vcombine.low %v2928, %v2935
    %v2939 = vunpack.c.l.s4 1966171168
    %v2940 = vunpack.c.0.s8 %v2939
    %v2941 = vlaneseq
    %v2942 = vshrl.u32 %v2941, 7
    %v2943 = vsub.s32 %v2940, %v2942
    %v2944 = vrot.slane %v2936, %v2943
    %v2946 = vunpack.c.l.s4 1966171168
    %v2947 = vunpack.c.0.s8 %v2946
    %v2948 = vlaneseq
    %v2949 = vshrl.u32 %v2948, 7
    %v2950 = vsub.s32 %v2947, %v2949
    %v2951 = vrot.slane %v2937, %v2950
    %v2952 = vcombine.low %v2944, %v2951
    %v2953 = vcombine.low %v1473, %v1477
    %v2954 = vcombine.low %v1481, %v1485
    %v2955 = vcombine.low %v1489, %v1493
    %v2956 = vcombine.low %v1497, %v1501
    %v2958 = vunpack.c.l.s4 1966171168
    %v2959 = vunpack.c.0.s8 %v2958
    %v2960 = vlaneseq
    %v2961 = vshrl.u32 %v2960, 7
    %v2962 = vsub.s32 %v2959, %v2961
    %v2963 = vrot.slane %v2953, %v2962
    %v2965 = vunpack.c.l.s4 1966171168
    %v2966 = vunpack.c.0.s8 %v2965
    %v2967 = vlaneseq
    %v2968 = vshrl.u32 %v2967, 7
    %v2969 = vsub.s32 %v2966, %v2968
    %v2970 = vrot.slane %v2954, %v2969
    %v2972 = vunpack.c.l.s4 1966171168
    %v2973 = vunpack.c.0.s8 %v2972
    %v2974 = vlaneseq
    %v2975 = vshrl.u32 %v2974, 7
    %v2976 = vsub.s32 %v2973, %v2975
    %v2977 = vrot.slane %v2955, %v2976
    %v2979 = vunpack.c.l.s4 1966171168
    %v2980 = vunpack.c.0.s8 %v2979
    %v2981 = vlaneseq
    %v2982 = vshrl.u32 %v2981, 7
    %v2983 = vsub.s32 %v2980, %v2982
    %v2984 = vrot.slane %v2956, %v2983
    %v2985 = vcombine.low %v2963, %v2970
    %v2986 = vcombine.low %v2977, %v2984
    %v2988 = vunpack.c.l.s4 1966171168
    %v2989 = vunpack.c.0.s8 %v2988
    %v2990 = vlaneseq
    %v2991 = vshrl.u32 %v2990, 7
    %v2992 = vsub.s32 %v2989, %v2991
    %v2993 = vrot.slane %v2985, %v2992
    %v2995 = vunpack.c.l.s4 1966171168
    %v2996 = vunpack.c.0.s8 %v2995
    %v2997 = vlaneseq
    %v2998 = vshrl.u32 %v2997, 7
    %v2999 = vsub.s32 %v2996, %v2998
    %v3000 = vrot.slane %v2986, %v2999
    %v3001 = vcombine.low %v2993, %v3000
    %v3002 = vcombine.low %v1505, %v1509
    %v3003 = vcombine.low %v1513, %v1517
    %v3004 = vcombine.low %v1521, %v1525
    %v3005 = vcombine.low %v1529, %v1533
    %v3007 = vunpack.c.l.s4 1966171168
    %v3008 = vunpack.c.0.s8 %v3007
    %v3009 = vlaneseq
    %v3010 = vshrl.u32 %v3009, 7
    %v3011 = vsub.s32 %v3008, %v3010
    %v3012 = vrot.slane %v3002, %v3011
    %v3014 = vunpack.c.l.s4 1966171168
    %v3015 = vunpack.c.0.s8 %v3014
    %v3016 = vlaneseq
    %v3017 = vshrl.u32 %v3016, 7
    %v3018 = vsub.s32 %v3015, %v3017
    %v3019 = vrot.slane %v3003, %v3018
    %v3021 = vunpack.c.l.s4 1966171168
    %v3022 = vunpack.c.0.s8 %v3021
    %v3023 = vlaneseq
    %v3024 = vshrl.u32 %v3023, 7
    %v3025 = vsub.s32 %v3022, %v3024
    %v3026 = vrot.slane %v3004, %v3025
    %v3028 = vunpack.c.l.s4 1966171168
    %v3029 = vunpack.c.0.s8 %v3028
    %v3030 = vlaneseq
    %v3031 = vshrl.u32 %v3030, 7
    %v3032 = vsub.s32 %v3029, %v3031
    %v3033 = vrot.slane %v3005, %v3032
    %v3034 = vcombine.low %v3012, %v3019
    %v3035 = vcombine.low %v3026, %v3033
    %v3037 = vunpack.c.l.s4 1966171168
    %v3038 = vunpack.c.0.s8 %v3037
    %v3039 = vlaneseq
    %v3040 = vshrl.u32 %v3039, 7
    %v3041 = vsub.s32 %v3038, %v3040
    %v3042 = vrot.slane %v3034, %v3041
    %v3044 = vunpack.c.l.s4 1966171168
    %v3045 = vunpack.c.0.s8 %v3044
    %v3046 = vlaneseq
    %v3047 = vshrl.u32 %v3046, 7
    %v3048 = vsub.s32 %v3045, %v3047
    %v3049 = vrot.slane %v3035, %v3048
    %v3050 = vcombine.low %v3042, %v3049
    %v3051 = vcombine.low %v1537, %v1541
    %v3052 = vcombine.low %v1545, %v1549
    %v3053 = vcombine.low %v1553, %v1557
    %v3054 = vcombine.low %v1561, %v1565
    %v3056 = vunpack.c.l.s4 1966171168
    %v3057 = vunpack.c.0.s8 %v3056
    %v3058 = vlaneseq
    %v3059 = vshrl.u32 %v3058, 7
    %v3060 = vsub.s32 %v3057, %v3059
    %v3061 = vrot.slane %v3051, %v3060
    %v3063 = vunpack.c.l.s4 1966171168
    %v3064 = vunpack.c.0.s8 %v3063
    %v3065 = vlaneseq
    %v3066 = vshrl.u32 %v3065, 7
    %v3067 = vsub.s32 %v3064, %v3066
    %v3068 = vrot.slane %v3052, %v3067
    %v3070 = vunpack.c.l.s4 1966171168
    %v3071 = vunpack.c.0.s8 %v3070
    %v3072 = vlaneseq
    %v3073 = vshrl.u32 %v3072, 7
    %v3074 = vsub.s32 %v3071, %v3073
    %v3075 = vrot.slane %v3053, %v3074
    %v3077 = vunpack.c.l.s4 1966171168
    %v3078 = vunpack.c.0.s8 %v3077
    %v3079 = vlaneseq
    %v3080 = vshrl.u32 %v3079, 7
    %v3081 = vsub.s32 %v3078, %v3080
    %v3082 = vrot.slane %v3054, %v3081
    %v3083 = vcombine.low %v3061, %v3068
    %v3084 = vcombine.low %v3075, %v3082
    %v3086 = vunpack.c.l.s4 1966171168
    %v3087 = vunpack.c.0.s8 %v3086
    %v3088 = vlaneseq
    %v3089 = vshrl.u32 %v3088, 7
    %v3090 = vsub.s32 %v3087, %v3089
    %v3091 = vrot.slane %v3083, %v3090
    %v3093 = vunpack.c.l.s4 1966171168
    %v3094 = vunpack.c.0.s8 %v3093
    %v3095 = vlaneseq
    %v3096 = vshrl.u32 %v3095, 7
    %v3097 = vsub.s32 %v3094, %v3096
    %v3098 = vrot.slane %v3084, %v3097
    %v3099 = vcombine.low %v3091, %v3098
    %v3100 = vcombine.low %v1569, %v1573
    %v3101 = vcombine.low %v1577, %v1581
    %v3102 = vcombine.low %v1585, %v1589
    %v3103 = vcombine.low %v1593, %v1597
    %v3105 = vunpack.c.l.s4 1966171168
    %v3106 = vunpack.c.0.s8 %v3105
    %v3107 = vlaneseq
    %v3108 = vshrl.u32 %v3107, 7
    %v3109 = vsub.s32 %v3106, %v3108
    %v3110 = vrot.slane %v3100, %v3109
    %v3112 = vunpack.c.l.s4 1966171168
    %v3113 = vunpack.c.0.s8 %v3112
    %v3114 = vlaneseq
    %v3115 = vshrl.u32 %v3114, 7
    %v3116 = vsub.s32 %v3113, %v3115
    %v3117 = vrot.slane %v3101, %v3116
    %v3119 = vunpack.c.l.s4 1966171168
    %v3120 = vunpack.c.0.s8 %v3119
    %v3121 = vlaneseq
    %v3122 = vshrl.u32 %v3121, 7
    %v3123 = vsub.s32 %v3120, %v3122
    %v3124 = vrot.slane %v3102, %v3123
    %v3126 = vunpack.c.l.s4 1966171168
    %v3127 = vunpack.c.0.s8 %v3126
    %v3128 = vlaneseq
    %v3129 = vshrl.u32 %v3128, 7
    %v3130 = vsub.s32 %v3127, %v3129
    %v3131 = vrot.slane %v3103, %v3130
    %v3132 = vcombine.low %v3110, %v3117
    %v3133 = vcombine.low %v3124, %v3131
    %v3135 = vunpack.c.l.s4 1966171168
    %v3136 = vunpack.c.0.s8 %v3135
    %v3137 = vlaneseq
    %v3138 = vshrl.u32 %v3137, 7
    %v3139 = vsub.s32 %v3136, %v3138
    %v3140 = vrot.slane %v3132, %v3139
    %v3142 = vunpack.c.l.s4 1966171168
    %v3143 = vunpack.c.0.s8 %v3142
    %v3144 = vlaneseq
    %v3145 = vshrl.u32 %v3144, 7
    %v3146 = vsub.s32 %v3143, %v3145
    %v3147 = vrot.slane %v3133, %v3146
    %v3148 = vcombine.low %v3140, %v3147
    %v3149 = vcombine.low %v1601, %v1605
    %v3150 = vcombine.low %v1609, %v1613
    %v3151 = vcombine.low %v1617, %v1621
    %v3152 = vcombine.low %v1625, %v1629
    %v3154 = vunpack.c.l.s4 1966171168
    %v3155 = vunpack.c.0.s8 %v3154
    %v3156 = vlaneseq
    %v3157 = vshrl.u32 %v3156, 7
    %v3158 = vsub.s32 %v3155, %v3157
    %v3159 = vrot.slane %v3149, %v3158
    %v3161 = vunpack.c.l.s4 1966171168
    %v3162 = vunpack.c.0.s8 %v3161
    %v3163 = vlaneseq
    %v3164 = vshrl.u32 %v3163, 7
    %v3165 = vsub.s32 %v3162, %v3164
    %v3166 = vrot.slane %v3150, %v3165
    %v3168 = vunpack.c.l.s4 1966171168
    %v3169 = vunpack.c.0.s8 %v3168
    %v3170 = vlaneseq
    %v3171 = vshrl.u32 %v3170, 7
    %v3172 = vsub.s32 %v3169, %v3171
    %v3173 = vrot.slane %v3151, %v3172
    %v3175 = vunpack.c.l.s4 1966171168
    %v3176 = vunpack.c.0.s8 %v3175
    %v3177 = vlaneseq
    %v3178 = vshrl.u32 %v3177, 7
    %v3179 = vsub.s32 %v3176, %v3178
    %v3180 = vrot.slane %v3152, %v3179
    %v3181 = vcombine.low %v3159, %v3166
    %v3182 = vcombine.low %v3173, %v3180
    %v3184 = vunpack.c.l.s4 1966171168
    %v3185 = vunpack.c.0.s8 %v3184
    %v3186 = vlaneseq
    %v3187 = vshrl.u32 %v3186, 7
    %v3188 = vsub.s32 %v3185, %v3187
    %v3189 = vrot.slane %v3181, %v3188
    %v3191 = vunpack.c.l.s4 1966171168
    %v3192 = vunpack.c.0.s8 %v3191
    %v3193 = vlaneseq
    %v3194 = vshrl.u32 %v3193, 7
    %v3195 = vsub.s32 %v3192, %v3194
    %v3196 = vrot.slane %v3182, %v3195
    %v3197 = vcombine.low %v3189, %v3196
    %3198 = vset.pattern.permute.xlu0 0
    %3199 = vperm.xlu0 %3198, %v1678
    %v3200 = vpop.permute.xlu0 %3199
    %3201 = vset.pattern.permute.xlu0 0
    %3202 = vperm.xlu0 %3201, %v1727
    %v3203 = vpop.permute.xlu0 %3202
    %3204 = vset.pattern.permute.xlu0 0
    %3205 = vperm.xlu0 %3204, %v1776
    %v3206 = vpop.permute.xlu0 %3205
    %3207 = vset.pattern.permute.xlu0 0
    %3208 = vperm.xlu0 %3207, %v1825
    %v3209 = vpop.permute.xlu0 %3208
    %3210 = vset.pattern.permute.xlu0 0
    %3211 = vperm.xlu0 %3210, %v1874
    %v3212 = vpop.permute.xlu0 %3211
    %3213 = vset.pattern.permute.xlu0 0
    %3214 = vperm.xlu0 %3213, %v1923
    %v3215 = vpop.permute.xlu0 %3214
    %3216 = vset.pattern.permute.xlu0 0
    %3217 = vperm.xlu0 %3216, %v1972
    %v3218 = vpop.permute.xlu0 %3217
    %3219 = vset.pattern.permute.xlu0 0
    %3220 = vperm.xlu0 %3219, %v2021
    %v3221 = vpop.permute.xlu0 %3220
    %3222 = vset.pattern.permute.xlu0 0
    %3223 = vperm.xlu0 %3222, %v2070
    %v3224 = vpop.permute.xlu0 %3223
    %3225 = vset.pattern.permute.xlu0 0
    %3226 = vperm.xlu0 %3225, %v2119
    %v3227 = vpop.permute.xlu0 %3226
    %3228 = vset.pattern.permute.xlu0 0
    %3229 = vperm.xlu0 %3228, %v2168
    %v3230 = vpop.permute.xlu0 %3229
    %3231 = vset.pattern.permute.xlu0 0
    %3232 = vperm.xlu0 %3231, %v2217
    %v3233 = vpop.permute.xlu0 %3232
    %3234 = vset.pattern.permute.xlu0 0
    %3235 = vperm.xlu0 %3234, %v2266
    %v3236 = vpop.permute.xlu0 %3235
    %3237 = vset.pattern.permute.xlu0 0
    %3238 = vperm.xlu0 %3237, %v2315
    %v3239 = vpop.permute.xlu0 %3238
    %3240 = vset.pattern.permute.xlu0 0
    %3241 = vperm.xlu0 %3240, %v2364
    %v3242 = vpop.permute.xlu0 %3241
    %3243 = vset.pattern.permute.xlu0 0
    %3244 = vperm.xlu0 %3243, %v2413
    %v3245 = vpop.permute.xlu0 %3244
    %3246 = vset.pattern.permute.xlu0 0
    %3247 = vperm.xlu0 %3246, %v2462
    %v3248 = vpop.permute.xlu0 %3247
    %3249 = vset.pattern.permute.xlu0 0
    %3250 = vperm.xlu0 %3249, %v2511
    %v3251 = vpop.permute.xlu0 %3250
    %3252 = vset.pattern.permute.xlu0 0
    %3253 = vperm.xlu0 %3252, %v2560
    %v3254 = vpop.permute.xlu0 %3253
    %3255 = vset.pattern.permute.xlu0 0
    %3256 = vperm.xlu0 %3255, %v2609
    %v3257 = vpop.permute.xlu0 %3256
    %3258 = vset.pattern.permute.xlu0 0
    %3259 = vperm.xlu0 %3258, %v2658
    %v3260 = vpop.permute.xlu0 %3259
    %3261 = vset.pattern.permute.xlu0 0
    %3262 = vperm.xlu0 %3261, %v2707
    %v3263 = vpop.permute.xlu0 %3262
    %3264 = vset.pattern.permute.xlu0 0
    %3265 = vperm.xlu0 %3264, %v2756
    %v3266 = vpop.permute.xlu0 %3265
    %3267 = vset.pattern.permute.xlu0 0
    %3268 = vperm.xlu0 %3267, %v2805
    %v3269 = vpop.permute.xlu0 %3268
    %3270 = vset.pattern.permute.xlu0 0
    %3271 = vperm.xlu0 %3270, %v2854
    %v3272 = vpop.permute.xlu0 %3271
    %3273 = vset.pattern.permute.xlu0 0
    %3274 = vperm.xlu0 %3273, %v2903
    %v3275 = vpop.permute.xlu0 %3274
    %3276 = vset.pattern.permute.xlu0 0
    %3277 = vperm.xlu0 %3276, %v2952
    %v3278 = vpop.permute.xlu0 %3277
    %3279 = vset.pattern.permute.xlu0 0
    %3280 = vperm.xlu0 %3279, %v3001
    %v3281 = vpop.permute.xlu0 %3280
    %3282 = vset.pattern.permute.xlu0 0
    %3283 = vperm.xlu0 %3282, %v3050
    %v3284 = vpop.permute.xlu0 %3283
    %3285 = vset.pattern.permute.xlu0 0
    %3286 = vperm.xlu0 %3285, %v3099
    %v3287 = vpop.permute.xlu0 %3286
    %3288 = vset.pattern.permute.xlu0 0
    %3289 = vperm.xlu0 %3288, %v3148
    %v3290 = vpop.permute.xlu0 %3289
    %3291 = vset.pattern.permute.xlu0 0
    %3292 = vperm.xlu0 %3291, %v3197
    %v3293 = vpop.permute.xlu0 %3292
    %v3294 = vlaneseq
    %v3295 = vand.u32 %v3294, 127
    %v3296 = vlaneseq
    %v3297 = vshrl.u32 %v3296, 7
    %v3298 = vsub.s32 %v3295, %v3297
    %v3299 = vrot.slane %v3200, %v3298
    %v3300 = vadd.s32 %v3295, 4294967288
    %v3301 = vlaneseq
    %v3302 = vshrl.u32 %v3301, 7
    %v3303 = vsub.s32 %v3300, %v3302
    %v3304 = vrot.slane %v3203, %v3303
    %vm3305 = vcmask 130112
    %v3306 = vsel %vm3305, %v3304, %v3299
    %v3307 = vadd.s32 %v3295, 4294967280
    %v3308 = vlaneseq
    %v3309 = vshrl.u32 %v3308, 7
    %v3310 = vsub.s32 %v3307, %v3309
    %v3311 = vrot.slane %v3206, %v3310
    %vm3312 = vcmask 195712
    %v3313 = vsel %vm3312, %v3311, %v3306
    %v3314 = vadd.s32 %v3295, 4294967272
    %v3315 = vlaneseq
    %v3316 = vshrl.u32 %v3315, 7
    %v3317 = vsub.s32 %v3314, %v3316
    %v3318 = vrot.slane %v3209, %v3317
    %vm3319 = vcmask 261312
    %v3320 = vsel %vm3319, %v3318, %v3313
    %v3321 = vadd.s32 %v3295, 4294967264
    %v3322 = vlaneseq
    %v3323 = vshrl.u32 %v3322, 7
    %v3324 = vsub.s32 %v3321, %v3323
    %v3325 = vrot.slane %v3212, %v3324
    %vm3326 = vcmask 326912
    %v3327 = vsel %vm3326, %v3325, %v3320
    %v3328 = vadd.s32 %v3295, 4294967256
    %v3329 = vlaneseq
    %v3330 = vshrl.u32 %v3329, 7
    %v3331 = vsub.s32 %v3328, %v3330
    %v3332 = vrot.slane %v3215, %v3331
    %vm3333 = vcmask 392512
    %v3334 = vsel %vm3333, %v3332, %v3327
    %v3335 = vadd.s32 %v3295, 4294967248
    %v3336 = vlaneseq
    %v3337 = vshrl.u32 %v3336, 7
    %v3338 = vsub.s32 %v3335, %v3337
    %v3339 = vrot.slane %v3218, %v3338
    %vm3340 = vcmask 458112
    %v3341 = vsel %vm3340, %v3339, %v3334
    %v3342 = vadd.s32 %v3295, 4294967240
    %v3343 = vlaneseq
    %v3344 = vshrl.u32 %v3343, 7
    %v3345 = vsub.s32 %v3342, %v3344
    %v3346 = vrot.slane %v3221, %v3345
    %vm3347 = vcmask 523712
    %v3348 = vsel %vm3347, %v3346, %v3341
    %v3349 = vadd.s32 %v3295, 4294967232
    %v3350 = vlaneseq
    %v3351 = vshrl.u32 %v3350, 7
    %v3352 = vsub.s32 %v3349, %v3351
    %v3353 = vrot.slane %v3224, %v3352
    %vm3354 = vcmask 589312
    %v3355 = vsel %vm3354, %v3353, %v3348
    %v3356 = vadd.s32 %v3295, 4294967224
    %v3357 = vlaneseq
    %v3358 = vshrl.u32 %v3357, 7
    %v3359 = vsub.s32 %v3356, %v3358
    %v3360 = vrot.slane %v3227, %v3359
    %vm3361 = vcmask 654912
    %v3362 = vsel %vm3361, %v3360, %v3355
    %v3363 = vadd.s32 %v3295, 4294967216
    %v3364 = vlaneseq
    %v3365 = vshrl.u32 %v3364, 7
    %v3366 = vsub.s32 %v3363, %v3365
    %v3367 = vrot.slane %v3230, %v3366
    %vm3368 = vcmask 720512
    %v3369 = vsel %vm3368, %v3367, %v3362
    %v3370 = vadd.s32 %v3295, 4294967208
    %v3371 = vlaneseq
    %v3372 = vshrl.u32 %v3371, 7
    %v3373 = vsub.s32 %v3370, %v3372
    %v3374 = vrot.slane %v3233, %v3373
    %vm3375 = vcmask 786112
    %v3376 = vsel %vm3375, %v3374, %v3369
    %v3377 = vadd.s32 %v3295, 4294967200
    %v3378 = vlaneseq
    %v3379 = vshrl.u32 %v3378, 7
    %v3380 = vsub.s32 %v3377, %v3379
    %v3381 = vrot.slane %v3236, %v3380
    %vm3382 = vcmask 851712
    %v3383 = vsel %vm3382, %v3381, %v3376
    %v3384 = vadd.s32 %v3295, 4294967192
    %v3385 = vlaneseq
    %v3386 = vshrl.u32 %v3385, 7
    %v3387 = vsub.s32 %v3384, %v3386
    %v3388 = vrot.slane %v3239, %v3387
    %vm3389 = vcmask 917312
    %v3390 = vsel %vm3389, %v3388, %v3383
    %v3391 = vadd.s32 %v3295, 4294967184
    %v3392 = vlaneseq
    %v3393 = vshrl.u32 %v3392, 7
    %v3394 = vsub.s32 %v3391, %v3393
    %v3395 = vrot.slane %v3242, %v3394
    %vm3396 = vcmask 982912
    %v3397 = vsel %vm3396, %v3395, %v3390
    %v3398 = vadd.s32 %v3295, 4294967176
    %v3399 = vlaneseq
    %v3400 = vshrl.u32 %v3399, 7
    %v3401 = vsub.s32 %v3398, %v3400
    %v3402 = vrot.slane %v3245, %v3401
    %vm3403 = vcmask 1048512
    %v3404 = vsel %vm3403, %v3402, %v3397
    %v3405 = vlaneseq
    %v3406 = vshrl.u32 %v3405, 7
    %v3407 = vsub.s32 %v3295, %v3406
    %v3408 = vrot.slane %v3248, %v3407
    %v3409 = vlaneseq
    %v3410 = vshrl.u32 %v3409, 7
    %v3411 = vsub.s32 %v3300, %v3410
    %v3412 = vrot.slane %v3251, %v3411
    %v3413 = vsel %vm3305, %v3412, %v3408
    %v3414 = vlaneseq
    %v3415 = vshrl.u32 %v3414, 7
    %v3416 = vsub.s32 %v3307, %v3415
    %v3417 = vrot.slane %v3254, %v3416
    %v3418 = vsel %vm3312, %v3417, %v3413
    %v3419 = vlaneseq
    %v3420 = vshrl.u32 %v3419, 7
    %v3421 = vsub.s32 %v3314, %v3420
    %v3422 = vrot.slane %v3257, %v3421
    %v3423 = vsel %vm3319, %v3422, %v3418
    %v3424 = vlaneseq
    %v3425 = vshrl.u32 %v3424, 7
    %v3426 = vsub.s32 %v3321, %v3425
    %v3427 = vrot.slane %v3260, %v3426
    %v3428 = vsel %vm3326, %v3427, %v3423
    %v3429 = vlaneseq
    %v3430 = vshrl.u32 %v3429, 7
    %v3431 = vsub.s32 %v3328, %v3430
    %v3432 = vrot.slane %v3263, %v3431
    %v3433 = vsel %vm3333, %v3432, %v3428
    %v3434 = vlaneseq
    %v3435 = vshrl.u32 %v3434, 7
    %v3436 = vsub.s32 %v3335, %v3435
    %v3437 = vrot.slane %v3266, %v3436
    %v3438 = vsel %vm3340, %v3437, %v3433
    %v3439 = vlaneseq
    %v3440 = vshrl.u32 %v3439, 7
    %v3441 = vsub.s32 %v3342, %v3440
    %v3442 = vrot.slane %v3269, %v3441
    %v3443 = vsel %vm3347, %v3442, %v3438
    %v3444 = vlaneseq
    %v3445 = vshrl.u32 %v3444, 7
    %v3446 = vsub.s32 %v3349, %v3445
    %v3447 = vrot.slane %v3272, %v3446
    %v3448 = vsel %vm3354, %v3447, %v3443
    %v3449 = vlaneseq
    %v3450 = vshrl.u32 %v3449, 7
    %v3451 = vsub.s32 %v3356, %v3450
    %v3452 = vrot.slane %v3275, %v3451
    %v3453 = vsel %vm3361, %v3452, %v3448
    %v3454 = vlaneseq
    %v3455 = vshrl.u32 %v3454, 7
    %v3456 = vsub.s32 %v3363, %v3455
    %v3457 = vrot.slane %v3278, %v3456
    %v3458 = vsel %vm3368, %v3457, %v3453
    %v3459 = vlaneseq
    %v3460 = vshrl.u32 %v3459, 7
    %v3461 = vsub.s32 %v3370, %v3460
    %v3462 = vrot.slane %v3281, %v3461
    %v3463 = vsel %vm3375, %v3462, %v3458
    %v3464 = vlaneseq
    %v3465 = vshrl.u32 %v3464, 7
    %v3466 = vsub.s32 %v3377, %v3465
    %v3467 = vrot.slane %v3284, %v3466
    %v3468 = vsel %vm3382, %v3467, %v3463
    %v3469 = vlaneseq
    %v3470 = vshrl.u32 %v3469, 7
    %v3471 = vsub.s32 %v3384, %v3470
    %v3472 = vrot.slane %v3287, %v3471
    %v3473 = vsel %vm3389, %v3472, %v3468
    %v3474 = vlaneseq
    %v3475 = vshrl.u32 %v3474, 7
    %v3476 = vsub.s32 %v3391, %v3475
    %v3477 = vrot.slane %v3290, %v3476
    %v3478 = vsel %vm3396, %v3477, %v3473
    %v3479 = vlaneseq
    %v3480 = vshrl.u32 %v3479, 7
    %v3481 = vsub.s32 %v3398, %v3480
    %v3482 = vrot.slane %v3293, %v3481
    %v3483 = vsel %vm3403, %v3482, %v3478
    %v3484 = vcombine.low %v3404, %v3483
    %v3486 = vunpack.c.l.s4 1966171168
    %v3487 = vunpack.c.0.s8 %v3486
    %v3488 = vlaneseq
    %v3489 = vshrl.u32 %v3488, 7
    %v3490 = vsub.s32 %v3487, %v3489
    %v3491 = vrot.slane %v3484, %v3490
    %v3493 = vunpack.c.l.s4 1966171168
    %v3494 = vunpack.c.0.s8 %v3493
    %v3495 = vlaneseq
    %v3496 = vshrl.u32 %v3495, 7
    %v3497 = vsub.s32 %v3494, %v3496
    %v3498 = vrot.slane %v3491, %v3497
    %v3500 = vlaneseq
    %vm3501 = vcmp.ge.s32.totalorder %v3500, 0
    %vm3502 = vcmp.lt.s32.totalorder %v3500, 256
    %vm3503 = vmand %vm3501, %vm3502
    %3504 = vst.msk [vmem:[#allocation3] ss:$4 sm:$0x3] %vm3503, %v3498
    %v3505 = vld [vmem:[%s4] sm:$0x3]
    %vm3538 = vcmask 1041408
    %v3539 = vrot.slane %v381, 6
    %v3540 = vrot.slane %v382, 6
    %v3541 = vsel %vm3538, %v3539, %v3540
    %v3542 = vrot.slane %v383, 6
    %v3543 = vsel %vm3538, %v3540, %v3542
    %v3544 = vrot.slane %v384, 6
    %v3545 = vsel %vm3538, %v3542, %v3544
    %v3546 = vrot.slane %v385, 6
    %v3547 = vsel %vm3538, %v3544, %v3546
    %v3548 = vrot.slane %v386, 6
    %v3549 = vsel %vm3538, %v3546, %v3548
    %v3550 = vrot.slane %v387, 6
    %v3551 = vsel %vm3538, %v3548, %v3550
    %v3552 = vrot.slane %v388, 6
    %v3553 = vsel %vm3538, %v3550, %v3552
    %v3554 = vrot.slane %v389, 6
    %v3555 = vsel %vm3538, %v3552, %v3554
    %v3556 = vrot.slane %v390, 6
    %v3557 = vsel %vm3538, %v3554, %v3556
    %v3558 = vrot.slane %v391, 6
    %v3559 = vsel %vm3538, %v3556, %v3558
    %v3560 = vrot.slane %v392, 6
    %v3561 = vsel %vm3538, %v3558, %v3560
    %v3562 = vrot.slane %v393, 6
    %v3563 = vsel %vm3538, %v3560, %v3562
    %v3564 = vrot.slane %v394, 6
    %v3565 = vsel %vm3538, %v3562, %v3564
    %v3566 = vrot.slane %v395, 6
    %v3567 = vsel %vm3538, %v3564, %v3566
    %v3568 = vrot.slane %v396, 6
    %v3569 = vsel %vm3538, %v3566, %v3568
    %v3570 = vrot.slane %v397, 6
    %v3571 = vsel %vm3538, %v3568, %v3570
    %v3572 = vrot.slane %v398, 6
    %v3573 = vsel %vm3538, %v3570, %v3572
    %v3574 = vrot.slane %v399, 6
    %v3575 = vsel %vm3538, %v3572, %v3574
    %v3576 = vrot.slane %v400, 6
    %v3577 = vsel %vm3538, %v3574, %v3576
    %v3578 = vrot.slane %v401, 6
    %v3579 = vsel %vm3538, %v3576, %v3578
    %v3580 = vrot.slane %v402, 6
    %v3581 = vsel %vm3538, %v3578, %v3580
    %v3582 = vrot.slane %v403, 6
    %v3583 = vsel %vm3538, %v3580, %v3582
    %v3584 = vrot.slane %v404, 6
    %v3585 = vsel %vm3538, %v3582, %v3584
    %v3586 = vrot.slane %v405, 6
    %v3587 = vsel %vm3538, %v3584, %v3586
    %v3588 = vrot.slane %v406, 6
    %v3589 = vsel %vm3538, %v3586, %v3588
    %v3590 = vrot.slane %v407, 6
    %v3591 = vsel %vm3538, %v3588, %v3590
    %v3592 = vrot.slane %v408, 6
    %v3593 = vsel %vm3538, %v3590, %v3592
    %v3594 = vrot.slane %v409, 6
    %v3595 = vsel %vm3538, %v3592, %v3594
    %v3596 = vrot.slane %v410, 6
    %v3597 = vsel %vm3538, %v3594, %v3596
    %v3598 = vrot.slane %v411, 6
    %v3599 = vsel %vm3538, %v3596, %v3598
    %v3600 = vrot.slane %v412, 6
    %v3601 = vsel %vm3538, %v3598, %v3600
    %v3634 = vsel %vm3538, %v3505, %v3539
    %vm3636 = vcmask 1046528
    %v3637 = vrot.slane %v3634, 1
    %v3638 = vrot.slane %v3541, 1
    %v3639 = vsel %vm3636, %v3637, %v3638
    %v3640 = vrot.slane %v3543, 1
    %v3641 = vsel %vm3636, %v3638, %v3640
    %v3642 = vrot.slane %v3545, 1
    %v3643 = vsel %vm3636, %v3640, %v3642
    %v3644 = vrot.slane %v3547, 1
    %v3645 = vsel %vm3636, %v3642, %v3644
    %v3646 = vrot.slane %v3549, 1
    %v3647 = vsel %vm3636, %v3644, %v3646
    %v3648 = vrot.slane %v3551, 1
    %v3649 = vsel %vm3636, %v3646, %v3648
    %v3650 = vrot.slane %v3553, 1
    %v3651 = vsel %vm3636, %v3648, %v3650
    %v3652 = vrot.slane %v3555, 1
    %v3653 = vsel %vm3636, %v3650, %v3652
    %v3654 = vrot.slane %v3557, 1
    %v3655 = vsel %vm3636, %v3652, %v3654
    %v3656 = vrot.slane %v3559, 1
    %v3657 = vsel %vm3636, %v3654, %v3656
    %v3658 = vrot.slane %v3561, 1
    %v3659 = vsel %vm3636, %v3656, %v3658
    %v3660 = vrot.slane %v3563, 1
    %v3661 = vsel %vm3636, %v3658, %v3660
    %v3662 = vrot.slane %v3565, 1
    %v3663 = vsel %vm3636, %v3660, %v3662
    %v3664 = vrot.slane %v3567, 1
    %v3665 = vsel %vm3636, %v3662, %v3664
    %v3666 = vrot.slane %v3569, 1
    %v3667 = vsel %vm3636, %v3664, %v3666
    %v3668 = vrot.slane %v3571, 1
    %v3669 = vsel %vm3636, %v3666, %v3668
    %v3670 = vrot.slane %v3573, 1
    %v3671 = vsel %vm3636, %v3668, %v3670
    %v3672 = vrot.slane %v3575, 1
    %v3673 = vsel %vm3636, %v3670, %v3672
    %v3674 = vrot.slane %v3577, 1
    %v3675 = vsel %vm3636, %v3672, %v3674
    %v3676 = vrot.slane %v3579, 1
    %v3677 = vsel %vm3636, %v3674, %v3676
    %v3678 = vrot.slane %v3581, 1
    %v3679 = vsel %vm3636, %v3676, %v3678
    %v3680 = vrot.slane %v3583, 1
    %v3681 = vsel %vm3636, %v3678, %v3680
    %v3682 = vrot.slane %v3585, 1
    %v3683 = vsel %vm3636, %v3680, %v3682
    %v3684 = vrot.slane %v3587, 1
    %v3685 = vsel %vm3636, %v3682, %v3684
    %v3686 = vrot.slane %v3589, 1
    %v3687 = vsel %vm3636, %v3684, %v3686
    %v3688 = vrot.slane %v3591, 1
    %v3689 = vsel %vm3636, %v3686, %v3688
    %v3690 = vrot.slane %v3593, 1
    %v3691 = vsel %vm3636, %v3688, %v3690
    %v3692 = vrot.slane %v3595, 1
    %v3693 = vsel %vm3636, %v3690, %v3692
    %v3694 = vrot.slane %v3597, 1
    %v3695 = vsel %vm3636, %v3692, %v3694
    %v3696 = vrot.slane %v3599, 1
    %v3697 = vsel %vm3636, %v3694, %v3696
    %v3698 = vrot.slane %v3601, 1
    %v3699 = vsel %vm3636, %v3696, %v3698
    %v3700 = vrot.slane %v3600, 1
    %v3701 = vsel %vm3636, %v3698, %v3700
    %v3734 = vmul.f32 %v223, %v3639
    %v3735 = vmul.f32 %v228, %v3641
    %v3736 = vmul.f32 %v233, %v3643
    %v3737 = vmul.f32 %v238, %v3645
    %v3738 = vmul.f32 %v243, %v3647
    %v3739 = vmul.f32 %v248, %v3649
    %v3740 = vmul.f32 %v253, %v3651
    %v3741 = vmul.f32 %v258, %v3653
    %v3742 = vmul.f32 %v263, %v3655
    %v3743 = vmul.f32 %v268, %v3657
    %v3744 = vmul.f32 %v273, %v3659
    %v3745 = vmul.f32 %v278, %v3661
    %v3746 = vmul.f32 %v283, %v3663
    %v3747 = vmul.f32 %v288, %v3665
    %v3748 = vmul.f32 %v293, %v3667
    %v3749 = vmul.f32 %v298, %v3669
    %v3750 = vmul.f32 %v303, %v3671
    %v3751 = vmul.f32 %v308, %v3673
    %v3752 = vmul.f32 %v313, %v3675
    %v3753 = vmul.f32 %v318, %v3677
    %v3754 = vmul.f32 %v323, %v3679
    %v3755 = vmul.f32 %v328, %v3681
    %v3756 = vmul.f32 %v333, %v3683
    %v3757 = vmul.f32 %v338, %v3685
    %v3758 = vmul.f32 %v343, %v3687
    %v3759 = vmul.f32 %v348, %v3689
    %v3760 = vmul.f32 %v353, %v3691
    %v3761 = vmul.f32 %v358, %v3693
    %v3762 = vmul.f32 %v363, %v3695
    %v3763 = vmul.f32 %v368, %v3697
    %v3764 = vmul.f32 %v373, %v3699
    %v3765 = vmul.f32 %v378, %v3701
    %v3766 = vsel %vm59, %v3734, 0.0
    %3767 = vadd.xlane.f32.xlu0 %v3766
    %v3768 = vpop.xlane.xlu0 %3767
    %v3769 = vsel %vm59, %v3735, 0.0
    %3770 = vadd.xlane.f32.xlu0 %v3769
    %v3771 = vpop.xlane.xlu0 %3770
    %v3772 = vsel %vm59, %v3736, 0.0
    %3773 = vadd.xlane.f32.xlu0 %v3772
    %v3774 = vpop.xlane.xlu0 %3773
    %v3775 = vsel %vm59, %v3737, 0.0
    %3776 = vadd.xlane.f32.xlu0 %v3775
    %v3777 = vpop.xlane.xlu0 %3776
    %v3778 = vsel %vm59, %v3738, 0.0
    %3779 = vadd.xlane.f32.xlu0 %v3778
    %v3780 = vpop.xlane.xlu0 %3779
    %v3781 = vsel %vm59, %v3739, 0.0
    %3782 = vadd.xlane.f32.xlu0 %v3781
    %v3783 = vpop.xlane.xlu0 %3782
    %v3784 = vsel %vm59, %v3740, 0.0
    %3785 = vadd.xlane.f32.xlu0 %v3784
    %v3786 = vpop.xlane.xlu0 %3785
    %v3787 = vsel %vm59, %v3741, 0.0
    %3788 = vadd.xlane.f32.xlu0 %v3787
    %v3789 = vpop.xlane.xlu0 %3788
    %v3790 = vsel %vm59, %v3742, 0.0
    %3791 = vadd.xlane.f32.xlu0 %v3790
    %v3792 = vpop.xlane.xlu0 %3791
    %v3793 = vsel %vm59, %v3743, 0.0
    %3794 = vadd.xlane.f32.xlu0 %v3793
    %v3795 = vpop.xlane.xlu0 %3794
    %v3796 = vsel %vm59, %v3744, 0.0
    %3797 = vadd.xlane.f32.xlu0 %v3796
    %v3798 = vpop.xlane.xlu0 %3797
    %v3799 = vsel %vm59, %v3745, 0.0
    %3800 = vadd.xlane.f32.xlu0 %v3799
    %v3801 = vpop.xlane.xlu0 %3800
    %v3802 = vsel %vm59, %v3746, 0.0
    %3803 = vadd.xlane.f32.xlu0 %v3802
    %v3804 = vpop.xlane.xlu0 %3803
    %v3805 = vsel %vm59, %v3747, 0.0
    %3806 = vadd.xlane.f32.xlu0 %v3805
    %v3807 = vpop.xlane.xlu0 %3806
    %v3808 = vsel %vm59, %v3748, 0.0
    %3809 = vadd.xlane.f32.xlu0 %v3808
    %v3810 = vpop.xlane.xlu0 %3809
    %v3811 = vsel %vm59, %v3749, 0.0
    %3812 = vadd.xlane.f32.xlu0 %v3811
    %v3813 = vpop.xlane.xlu0 %3812
    %v3814 = vsel %vm59, %v3750, 0.0
    %3815 = vadd.xlane.f32.xlu0 %v3814
    %v3816 = vpop.xlane.xlu0 %3815
    %v3817 = vsel %vm59, %v3751, 0.0
    %3818 = vadd.xlane.f32.xlu0 %v3817
    %v3819 = vpop.xlane.xlu0 %3818
    %v3820 = vsel %vm59, %v3752, 0.0
    %3821 = vadd.xlane.f32.xlu0 %v3820
    %v3822 = vpop.xlane.xlu0 %3821
    %v3823 = vsel %vm59, %v3753, 0.0
    %3824 = vadd.xlane.f32.xlu0 %v3823
    %v3825 = vpop.xlane.xlu0 %3824
    %v3826 = vsel %vm59, %v3754, 0.0
    %3827 = vadd.xlane.f32.xlu0 %v3826
    %v3828 = vpop.xlane.xlu0 %3827
    %v3829 = vsel %vm59, %v3755, 0.0
    %3830 = vadd.xlane.f32.xlu0 %v3829
    %v3831 = vpop.xlane.xlu0 %3830
    %v3832 = vsel %vm59, %v3756, 0.0
    %3833 = vadd.xlane.f32.xlu0 %v3832
    %v3834 = vpop.xlane.xlu0 %3833
    %v3835 = vsel %vm59, %v3757, 0.0
    %3836 = vadd.xlane.f32.xlu0 %v3835
    %v3837 = vpop.xlane.xlu0 %3836
    %v3838 = vsel %vm59, %v3758, 0.0
    %3839 = vadd.xlane.f32.xlu0 %v3838
    %v3840 = vpop.xlane.xlu0 %3839
    %v3841 = vsel %vm59, %v3759, 0.0
    %3842 = vadd.xlane.f32.xlu0 %v3841
    %v3843 = vpop.xlane.xlu0 %3842
    %v3844 = vsel %vm59, %v3760, 0.0
    %3845 = vadd.xlane.f32.xlu0 %v3844
    %v3846 = vpop.xlane.xlu0 %3845
    %v3847 = vsel %vm59, %v3761, 0.0
    %3848 = vadd.xlane.f32.xlu0 %v3847
    %v3849 = vpop.xlane.xlu0 %3848
    %v3850 = vsel %vm59, %v3762, 0.0
    %3851 = vadd.xlane.f32.xlu0 %v3850
    %v3852 = vpop.xlane.xlu0 %3851
    %v3853 = vsel %vm59, %v3763, 0.0
    %3854 = vadd.xlane.f32.xlu0 %v3853
    %v3855 = vpop.xlane.xlu0 %3854
    %v3856 = vsel %vm59, %v3764, 0.0
    %3857 = vadd.xlane.f32.xlu0 %v3856
    %v3858 = vpop.xlane.xlu0 %3857
    %v3859 = vsel %vm59, %v3765, 0.0
    %3860 = vadd.xlane.f32.xlu0 %v3859
    %v3861 = vpop.xlane.xlu0 %3860
    %v3862 = vadd.f32 %v3768, %v541
    %v3863 = vadd.f32 %v3771, %v541
    %v3864 = vadd.f32 %v3774, %v541
    %v3865 = vadd.f32 %v3777, %v541
    %v3866 = vadd.f32 %v3780, %v541
    %v3867 = vadd.f32 %v3783, %v541
    %v3868 = vadd.f32 %v3786, %v541
    %v3869 = vadd.f32 %v3789, %v541
    %v3870 = vadd.f32 %v3792, %v541
    %v3871 = vadd.f32 %v3795, %v541
    %v3872 = vadd.f32 %v3798, %v541
    %v3873 = vadd.f32 %v3801, %v541
    %v3874 = vadd.f32 %v3804, %v541
    %v3875 = vadd.f32 %v3807, %v541
    %v3876 = vadd.f32 %v3810, %v541
    %v3877 = vadd.f32 %v3813, %v541
    %v3878 = vadd.f32 %v3816, %v541
    %v3879 = vadd.f32 %v3819, %v541
    %v3880 = vadd.f32 %v3822, %v541
    %v3881 = vadd.f32 %v3825, %v541
    %v3882 = vadd.f32 %v3828, %v541
    %v3883 = vadd.f32 %v3831, %v541
    %v3884 = vadd.f32 %v3834, %v541
    %v3885 = vadd.f32 %v3837, %v541
    %v3886 = vadd.f32 %v3840, %v541
    %v3887 = vadd.f32 %v3843, %v541
    %v3888 = vadd.f32 %v3846, %v541
    %v3889 = vadd.f32 %v3849, %v541
    %v3890 = vadd.f32 %v3852, %v541
    %v3891 = vadd.f32 %v3855, %v541
    %v3892 = vadd.f32 %v3858, %v541
    %v3893 = vadd.f32 %v3861, %v541
    %v3926 = vlaneseq
    %v3927 = vshrl.u32 %v3926, 7
    %v3928 = vsub.s32 0, %v3927
    %v3929 = vrot.slane %v3862, %v3928
    %v3930 = vlaneseq
    %v3931 = vshrl.u32 %v3930, 7
    %v3932 = vsub.s32 1, %v3931
    %v3933 = vrot.slane %v3862, %v3932
    %v3934 = vlaneseq
    %v3935 = vshrl.u32 %v3934, 7
    %v3936 = vsub.s32 2, %v3935
    %v3937 = vrot.slane %v3862, %v3936
    %v3938 = vlaneseq
    %v3939 = vshrl.u32 %v3938, 7
    %v3940 = vsub.s32 3, %v3939
    %v3941 = vrot.slane %v3862, %v3940
    %v3942 = vlaneseq
    %v3943 = vshrl.u32 %v3942, 7
    %v3944 = vsub.s32 4, %v3943
    %v3945 = vrot.slane %v3862, %v3944
    %v3946 = vlaneseq
    %v3947 = vshrl.u32 %v3946, 7
    %v3948 = vsub.s32 5, %v3947
    %v3949 = vrot.slane %v3862, %v3948
    %v3950 = vlaneseq
    %v3951 = vshrl.u32 %v3950, 7
    %v3952 = vsub.s32 6, %v3951
    %v3953 = vrot.slane %v3862, %v3952
    %v3954 = vlaneseq
    %v3955 = vshrl.u32 %v3954, 7
    %v3956 = vsub.s32 7, %v3955
    %v3957 = vrot.slane %v3862, %v3956
    %v3958 = vlaneseq
    %v3959 = vshrl.u32 %v3958, 7
    %v3960 = vsub.s32 0, %v3959
    %v3961 = vrot.slane %v3863, %v3960
    %v3962 = vlaneseq
    %v3963 = vshrl.u32 %v3962, 7
    %v3964 = vsub.s32 1, %v3963
    %v3965 = vrot.slane %v3863, %v3964
    %v3966 = vlaneseq
    %v3967 = vshrl.u32 %v3966, 7
    %v3968 = vsub.s32 2, %v3967
    %v3969 = vrot.slane %v3863, %v3968
    %v3970 = vlaneseq
    %v3971 = vshrl.u32 %v3970, 7
    %v3972 = vsub.s32 3, %v3971
    %v3973 = vrot.slane %v3863, %v3972
    %v3974 = vlaneseq
    %v3975 = vshrl.u32 %v3974, 7
    %v3976 = vsub.s32 4, %v3975
    %v3977 = vrot.slane %v3863, %v3976
    %v3978 = vlaneseq
    %v3979 = vshrl.u32 %v3978, 7
    %v3980 = vsub.s32 5, %v3979
    %v3981 = vrot.slane %v3863, %v3980
    %v3982 = vlaneseq
    %v3983 = vshrl.u32 %v3982, 7
    %v3984 = vsub.s32 6, %v3983
    %v3985 = vrot.slane %v3863, %v3984
    %v3986 = vlaneseq
    %v3987 = vshrl.u32 %v3986, 7
    %v3988 = vsub.s32 7, %v3987
    %v3989 = vrot.slane %v3863, %v3988
    %v3990 = vlaneseq
    %v3991 = vshrl.u32 %v3990, 7
    %v3992 = vsub.s32 0, %v3991
    %v3993 = vrot.slane %v3864, %v3992
    %v3994 = vlaneseq
    %v3995 = vshrl.u32 %v3994, 7
    %v3996 = vsub.s32 1, %v3995
    %v3997 = vrot.slane %v3864, %v3996
    %v3998 = vlaneseq
    %v3999 = vshrl.u32 %v3998, 7
    %v4000 = vsub.s32 2, %v3999
    %v4001 = vrot.slane %v3864, %v4000
    %v4002 = vlaneseq
    %v4003 = vshrl.u32 %v4002, 7
    %v4004 = vsub.s32 3, %v4003
    %v4005 = vrot.slane %v3864, %v4004
    %v4006 = vlaneseq
    %v4007 = vshrl.u32 %v4006, 7
    %v4008 = vsub.s32 4, %v4007
    %v4009 = vrot.slane %v3864, %v4008
    %v4010 = vlaneseq
    %v4011 = vshrl.u32 %v4010, 7
    %v4012 = vsub.s32 5, %v4011
    %v4013 = vrot.slane %v3864, %v4012
    %v4014 = vlaneseq
    %v4015 = vshrl.u32 %v4014, 7
    %v4016 = vsub.s32 6, %v4015
    %v4017 = vrot.slane %v3864, %v4016
    %v4018 = vlaneseq
    %v4019 = vshrl.u32 %v4018, 7
    %v4020 = vsub.s32 7, %v4019
    %v4021 = vrot.slane %v3864, %v4020
    %v4022 = vlaneseq
    %v4023 = vshrl.u32 %v4022, 7
    %v4024 = vsub.s32 0, %v4023
    %v4025 = vrot.slane %v3865, %v4024
    %v4026 = vlaneseq
    %v4027 = vshrl.u32 %v4026, 7
    %v4028 = vsub.s32 1, %v4027
    %v4029 = vrot.slane %v3865, %v4028
    %v4030 = vlaneseq
    %v4031 = vshrl.u32 %v4030, 7
    %v4032 = vsub.s32 2, %v4031
    %v4033 = vrot.slane %v3865, %v4032
    %v4034 = vlaneseq
    %v4035 = vshrl.u32 %v4034, 7
    %v4036 = vsub.s32 3, %v4035
    %v4037 = vrot.slane %v3865, %v4036
    %v4038 = vlaneseq
    %v4039 = vshrl.u32 %v4038, 7
    %v4040 = vsub.s32 4, %v4039
    %v4041 = vrot.slane %v3865, %v4040
    %v4042 = vlaneseq
    %v4043 = vshrl.u32 %v4042, 7
    %v4044 = vsub.s32 5, %v4043
    %v4045 = vrot.slane %v3865, %v4044
    %v4046 = vlaneseq
    %v4047 = vshrl.u32 %v4046, 7
    %v4048 = vsub.s32 6, %v4047
    %v4049 = vrot.slane %v3865, %v4048
    %v4050 = vlaneseq
    %v4051 = vshrl.u32 %v4050, 7
    %v4052 = vsub.s32 7, %v4051
    %v4053 = vrot.slane %v3865, %v4052
    %v4054 = vlaneseq
    %v4055 = vshrl.u32 %v4054, 7
    %v4056 = vsub.s32 0, %v4055
    %v4057 = vrot.slane %v3866, %v4056
    %v4058 = vlaneseq
    %v4059 = vshrl.u32 %v4058, 7
    %v4060 = vsub.s32 1, %v4059
    %v4061 = vrot.slane %v3866, %v4060
    %v4062 = vlaneseq
    %v4063 = vshrl.u32 %v4062, 7
    %v4064 = vsub.s32 2, %v4063
    %v4065 = vrot.slane %v3866, %v4064
    %v4066 = vlaneseq
    %v4067 = vshrl.u32 %v4066, 7
    %v4068 = vsub.s32 3, %v4067
    %v4069 = vrot.slane %v3866, %v4068
    %v4070 = vlaneseq
    %v4071 = vshrl.u32 %v4070, 7
    %v4072 = vsub.s32 4, %v4071
    %v4073 = vrot.slane %v3866, %v4072
    %v4074 = vlaneseq
    %v4075 = vshrl.u32 %v4074, 7
    %v4076 = vsub.s32 5, %v4075
    %v4077 = vrot.slane %v3866, %v4076
    %v4078 = vlaneseq
    %v4079 = vshrl.u32 %v4078, 7
    %v4080 = vsub.s32 6, %v4079
    %v4081 = vrot.slane %v3866, %v4080
    %v4082 = vlaneseq
    %v4083 = vshrl.u32 %v4082, 7
    %v4084 = vsub.s32 7, %v4083
    %v4085 = vrot.slane %v3866, %v4084
    %v4086 = vlaneseq
    %v4087 = vshrl.u32 %v4086, 7
    %v4088 = vsub.s32 0, %v4087
    %v4089 = vrot.slane %v3867, %v4088
    %v4090 = vlaneseq
    %v4091 = vshrl.u32 %v4090, 7
    %v4092 = vsub.s32 1, %v4091
    %v4093 = vrot.slane %v3867, %v4092
    %v4094 = vlaneseq
    %v4095 = vshrl.u32 %v4094, 7
    %v4096 = vsub.s32 2, %v4095
    %v4097 = vrot.slane %v3867, %v4096
    %v4098 = vlaneseq
    %v4099 = vshrl.u32 %v4098, 7
    %v4100 = vsub.s32 3, %v4099
    %v4101 = vrot.slane %v3867, %v4100
    %v4102 = vlaneseq
    %v4103 = vshrl.u32 %v4102, 7
    %v4104 = vsub.s32 4, %v4103
    %v4105 = vrot.slane %v3867, %v4104
    %v4106 = vlaneseq
    %v4107 = vshrl.u32 %v4106, 7
    %v4108 = vsub.s32 5, %v4107
    %v4109 = vrot.slane %v3867, %v4108
    %v4110 = vlaneseq
    %v4111 = vshrl.u32 %v4110, 7
    %v4112 = vsub.s32 6, %v4111
    %v4113 = vrot.slane %v3867, %v4112
    %v4114 = vlaneseq
    %v4115 = vshrl.u32 %v4114, 7
    %v4116 = vsub.s32 7, %v4115
    %v4117 = vrot.slane %v3867, %v4116
    %v4118 = vlaneseq
    %v4119 = vshrl.u32 %v4118, 7
    %v4120 = vsub.s32 0, %v4119
    %v4121 = vrot.slane %v3868, %v4120
    %v4122 = vlaneseq
    %v4123 = vshrl.u32 %v4122, 7
    %v4124 = vsub.s32 1, %v4123
    %v4125 = vrot.slane %v3868, %v4124
    %v4126 = vlaneseq
    %v4127 = vshrl.u32 %v4126, 7
    %v4128 = vsub.s32 2, %v4127
    %v4129 = vrot.slane %v3868, %v4128
    %v4130 = vlaneseq
    %v4131 = vshrl.u32 %v4130, 7
    %v4132 = vsub.s32 3, %v4131
    %v4133 = vrot.slane %v3868, %v4132
    %v4134 = vlaneseq
    %v4135 = vshrl.u32 %v4134, 7
    %v4136 = vsub.s32 4, %v4135
    %v4137 = vrot.slane %v3868, %v4136
    %v4138 = vlaneseq
    %v4139 = vshrl.u32 %v4138, 7
    %v4140 = vsub.s32 5, %v4139
    %v4141 = vrot.slane %v3868, %v4140
    %v4142 = vlaneseq
    %v4143 = vshrl.u32 %v4142, 7
    %v4144 = vsub.s32 6, %v4143
    %v4145 = vrot.slane %v3868, %v4144
    %v4146 = vlaneseq
    %v4147 = vshrl.u32 %v4146, 7
    %v4148 = vsub.s32 7, %v4147
    %v4149 = vrot.slane %v3868, %v4148
    %v4150 = vlaneseq
    %v4151 = vshrl.u32 %v4150, 7
    %v4152 = vsub.s32 0, %v4151
    %v4153 = vrot.slane %v3869, %v4152
    %v4154 = vlaneseq
    %v4155 = vshrl.u32 %v4154, 7
    %v4156 = vsub.s32 1, %v4155
    %v4157 = vrot.slane %v3869, %v4156
    %v4158 = vlaneseq
    %v4159 = vshrl.u32 %v4158, 7
    %v4160 = vsub.s32 2, %v4159
    %v4161 = vrot.slane %v3869, %v4160
    %v4162 = vlaneseq
    %v4163 = vshrl.u32 %v4162, 7
    %v4164 = vsub.s32 3, %v4163
    %v4165 = vrot.slane %v3869, %v4164
    %v4166 = vlaneseq
    %v4167 = vshrl.u32 %v4166, 7
    %v4168 = vsub.s32 4, %v4167
    %v4169 = vrot.slane %v3869, %v4168
    %v4170 = vlaneseq
    %v4171 = vshrl.u32 %v4170, 7
    %v4172 = vsub.s32 5, %v4171
    %v4173 = vrot.slane %v3869, %v4172
    %v4174 = vlaneseq
    %v4175 = vshrl.u32 %v4174, 7
    %v4176 = vsub.s32 6, %v4175
    %v4177 = vrot.slane %v3869, %v4176
    %v4178 = vlaneseq
    %v4179 = vshrl.u32 %v4178, 7
    %v4180 = vsub.s32 7, %v4179
    %v4181 = vrot.slane %v3869, %v4180
    %v4182 = vlaneseq
    %v4183 = vshrl.u32 %v4182, 7
    %v4184 = vsub.s32 0, %v4183
    %v4185 = vrot.slane %v3870, %v4184
    %v4186 = vlaneseq
    %v4187 = vshrl.u32 %v4186, 7
    %v4188 = vsub.s32 1, %v4187
    %v4189 = vrot.slane %v3870, %v4188
    %v4190 = vlaneseq
    %v4191 = vshrl.u32 %v4190, 7
    %v4192 = vsub.s32 2, %v4191
    %v4193 = vrot.slane %v3870, %v4192
    %v4194 = vlaneseq
    %v4195 = vshrl.u32 %v4194, 7
    %v4196 = vsub.s32 3, %v4195
    %v4197 = vrot.slane %v3870, %v4196
    %v4198 = vlaneseq
    %v4199 = vshrl.u32 %v4198, 7
    %v4200 = vsub.s32 4, %v4199
    %v4201 = vrot.slane %v3870, %v4200
    %v4202 = vlaneseq
    %v4203 = vshrl.u32 %v4202, 7
    %v4204 = vsub.s32 5, %v4203
    %v4205 = vrot.slane %v3870, %v4204
    %v4206 = vlaneseq
    %v4207 = vshrl.u32 %v4206, 7
    %v4208 = vsub.s32 6, %v4207
    %v4209 = vrot.slane %v3870, %v4208
    %v4210 = vlaneseq
    %v4211 = vshrl.u32 %v4210, 7
    %v4212 = vsub.s32 7, %v4211
    %v4213 = vrot.slane %v3870, %v4212
    %v4214 = vlaneseq
    %v4215 = vshrl.u32 %v4214, 7
    %v4216 = vsub.s32 0, %v4215
    %v4217 = vrot.slane %v3871, %v4216
    %v4218 = vlaneseq
    %v4219 = vshrl.u32 %v4218, 7
    %v4220 = vsub.s32 1, %v4219
    %v4221 = vrot.slane %v3871, %v4220
    %v4222 = vlaneseq
    %v4223 = vshrl.u32 %v4222, 7
    %v4224 = vsub.s32 2, %v4223
    %v4225 = vrot.slane %v3871, %v4224
    %v4226 = vlaneseq
    %v4227 = vshrl.u32 %v4226, 7
    %v4228 = vsub.s32 3, %v4227
    %v4229 = vrot.slane %v3871, %v4228
    %v4230 = vlaneseq
    %v4231 = vshrl.u32 %v4230, 7
    %v4232 = vsub.s32 4, %v4231
    %v4233 = vrot.slane %v3871, %v4232
    %v4234 = vlaneseq
    %v4235 = vshrl.u32 %v4234, 7
    %v4236 = vsub.s32 5, %v4235
    %v4237 = vrot.slane %v3871, %v4236
    %v4238 = vlaneseq
    %v4239 = vshrl.u32 %v4238, 7
    %v4240 = vsub.s32 6, %v4239
    %v4241 = vrot.slane %v3871, %v4240
    %v4242 = vlaneseq
    %v4243 = vshrl.u32 %v4242, 7
    %v4244 = vsub.s32 7, %v4243
    %v4245 = vrot.slane %v3871, %v4244
    %v4246 = vlaneseq
    %v4247 = vshrl.u32 %v4246, 7
    %v4248 = vsub.s32 0, %v4247
    %v4249 = vrot.slane %v3872, %v4248
    %v4250 = vlaneseq
    %v4251 = vshrl.u32 %v4250, 7
    %v4252 = vsub.s32 1, %v4251
    %v4253 = vrot.slane %v3872, %v4252
    %v4254 = vlaneseq
    %v4255 = vshrl.u32 %v4254, 7
    %v4256 = vsub.s32 2, %v4255
    %v4257 = vrot.slane %v3872, %v4256
    %v4258 = vlaneseq
    %v4259 = vshrl.u32 %v4258, 7
    %v4260 = vsub.s32 3, %v4259
    %v4261 = vrot.slane %v3872, %v4260
    %v4262 = vlaneseq
    %v4263 = vshrl.u32 %v4262, 7
    %v4264 = vsub.s32 4, %v4263
    %v4265 = vrot.slane %v3872, %v4264
    %v4266 = vlaneseq
    %v4267 = vshrl.u32 %v4266, 7
    %v4268 = vsub.s32 5, %v4267
    %v4269 = vrot.slane %v3872, %v4268
    %v4270 = vlaneseq
    %v4271 = vshrl.u32 %v4270, 7
    %v4272 = vsub.s32 6, %v4271
    %v4273 = vrot.slane %v3872, %v4272
    %v4274 = vlaneseq
    %v4275 = vshrl.u32 %v4274, 7
    %v4276 = vsub.s32 7, %v4275
    %v4277 = vrot.slane %v3872, %v4276
    %v4278 = vlaneseq
    %v4279 = vshrl.u32 %v4278, 7
    %v4280 = vsub.s32 0, %v4279
    %v4281 = vrot.slane %v3873, %v4280
    %v4282 = vlaneseq
    %v4283 = vshrl.u32 %v4282, 7
    %v4284 = vsub.s32 1, %v4283
    %v4285 = vrot.slane %v3873, %v4284
    %v4286 = vlaneseq
    %v4287 = vshrl.u32 %v4286, 7
    %v4288 = vsub.s32 2, %v4287
    %v4289 = vrot.slane %v3873, %v4288
    %v4290 = vlaneseq
    %v4291 = vshrl.u32 %v4290, 7
    %v4292 = vsub.s32 3, %v4291
    %v4293 = vrot.slane %v3873, %v4292
    %v4294 = vlaneseq
    %v4295 = vshrl.u32 %v4294, 7
    %v4296 = vsub.s32 4, %v4295
    %v4297 = vrot.slane %v3873, %v4296
    %v4298 = vlaneseq
    %v4299 = vshrl.u32 %v4298, 7
    %v4300 = vsub.s32 5, %v4299
    %v4301 = vrot.slane %v3873, %v4300
    %v4302 = vlaneseq
    %v4303 = vshrl.u32 %v4302, 7
    %v4304 = vsub.s32 6, %v4303
    %v4305 = vrot.slane %v3873, %v4304
    %v4306 = vlaneseq
    %v4307 = vshrl.u32 %v4306, 7
    %v4308 = vsub.s32 7, %v4307
    %v4309 = vrot.slane %v3873, %v4308
    %v4310 = vlaneseq
    %v4311 = vshrl.u32 %v4310, 7
    %v4312 = vsub.s32 0, %v4311
    %v4313 = vrot.slane %v3874, %v4312
    %v4314 = vlaneseq
    %v4315 = vshrl.u32 %v4314, 7
    %v4316 = vsub.s32 1, %v4315
    %v4317 = vrot.slane %v3874, %v4316
    %v4318 = vlaneseq
    %v4319 = vshrl.u32 %v4318, 7
    %v4320 = vsub.s32 2, %v4319
    %v4321 = vrot.slane %v3874, %v4320
    %v4322 = vlaneseq
    %v4323 = vshrl.u32 %v4322, 7
    %v4324 = vsub.s32 3, %v4323
    %v4325 = vrot.slane %v3874, %v4324
    %v4326 = vlaneseq
    %v4327 = vshrl.u32 %v4326, 7
    %v4328 = vsub.s32 4, %v4327
    %v4329 = vrot.slane %v3874, %v4328
    %v4330 = vlaneseq
    %v4331 = vshrl.u32 %v4330, 7
    %v4332 = vsub.s32 5, %v4331
    %v4333 = vrot.slane %v3874, %v4332
    %v4334 = vlaneseq
    %v4335 = vshrl.u32 %v4334, 7
    %v4336 = vsub.s32 6, %v4335
    %v4337 = vrot.slane %v3874, %v4336
    %v4338 = vlaneseq
    %v4339 = vshrl.u32 %v4338, 7
    %v4340 = vsub.s32 7, %v4339
    %v4341 = vrot.slane %v3874, %v4340
    %v4342 = vlaneseq
    %v4343 = vshrl.u32 %v4342, 7
    %v4344 = vsub.s32 0, %v4343
    %v4345 = vrot.slane %v3875, %v4344
    %v4346 = vlaneseq
    %v4347 = vshrl.u32 %v4346, 7
    %v4348 = vsub.s32 1, %v4347
    %v4349 = vrot.slane %v3875, %v4348
    %v4350 = vlaneseq
    %v4351 = vshrl.u32 %v4350, 7
    %v4352 = vsub.s32 2, %v4351
    %v4353 = vrot.slane %v3875, %v4352
    %v4354 = vlaneseq
    %v4355 = vshrl.u32 %v4354, 7
    %v4356 = vsub.s32 3, %v4355
    %v4357 = vrot.slane %v3875, %v4356
    %v4358 = vlaneseq
    %v4359 = vshrl.u32 %v4358, 7
    %v4360 = vsub.s32 4, %v4359
    %v4361 = vrot.slane %v3875, %v4360
    %v4362 = vlaneseq
    %v4363 = vshrl.u32 %v4362, 7
    %v4364 = vsub.s32 5, %v4363
    %v4365 = vrot.slane %v3875, %v4364
    %v4366 = vlaneseq
    %v4367 = vshrl.u32 %v4366, 7
    %v4368 = vsub.s32 6, %v4367
    %v4369 = vrot.slane %v3875, %v4368
    %v4370 = vlaneseq
    %v4371 = vshrl.u32 %v4370, 7
    %v4372 = vsub.s32 7, %v4371
    %v4373 = vrot.slane %v3875, %v4372
    %v4374 = vlaneseq
    %v4375 = vshrl.u32 %v4374, 7
    %v4376 = vsub.s32 0, %v4375
    %v4377 = vrot.slane %v3876, %v4376
    %v4378 = vlaneseq
    %v4379 = vshrl.u32 %v4378, 7
    %v4380 = vsub.s32 1, %v4379
    %v4381 = vrot.slane %v3876, %v4380
    %v4382 = vlaneseq
    %v4383 = vshrl.u32 %v4382, 7
    %v4384 = vsub.s32 2, %v4383
    %v4385 = vrot.slane %v3876, %v4384
    %v4386 = vlaneseq
    %v4387 = vshrl.u32 %v4386, 7
    %v4388 = vsub.s32 3, %v4387
    %v4389 = vrot.slane %v3876, %v4388
    %v4390 = vlaneseq
    %v4391 = vshrl.u32 %v4390, 7
    %v4392 = vsub.s32 4, %v4391
    %v4393 = vrot.slane %v3876, %v4392
    %v4394 = vlaneseq
    %v4395 = vshrl.u32 %v4394, 7
    %v4396 = vsub.s32 5, %v4395
    %v4397 = vrot.slane %v3876, %v4396
    %v4398 = vlaneseq
    %v4399 = vshrl.u32 %v4398, 7
    %v4400 = vsub.s32 6, %v4399
    %v4401 = vrot.slane %v3876, %v4400
    %v4402 = vlaneseq
    %v4403 = vshrl.u32 %v4402, 7
    %v4404 = vsub.s32 7, %v4403
    %v4405 = vrot.slane %v3876, %v4404
    %v4406 = vlaneseq
    %v4407 = vshrl.u32 %v4406, 7
    %v4408 = vsub.s32 0, %v4407
    %v4409 = vrot.slane %v3877, %v4408
    %v4410 = vlaneseq
    %v4411 = vshrl.u32 %v4410, 7
    %v4412 = vsub.s32 1, %v4411
    %v4413 = vrot.slane %v3877, %v4412
    %v4414 = vlaneseq
    %v4415 = vshrl.u32 %v4414, 7
    %v4416 = vsub.s32 2, %v4415
    %v4417 = vrot.slane %v3877, %v4416
    %v4418 = vlaneseq
    %v4419 = vshrl.u32 %v4418, 7
    %v4420 = vsub.s32 3, %v4419
    %v4421 = vrot.slane %v3877, %v4420
    %v4422 = vlaneseq
    %v4423 = vshrl.u32 %v4422, 7
    %v4424 = vsub.s32 4, %v4423
    %v4425 = vrot.slane %v3877, %v4424
    %v4426 = vlaneseq
    %v4427 = vshrl.u32 %v4426, 7
    %v4428 = vsub.s32 5, %v4427
    %v4429 = vrot.slane %v3877, %v4428
    %v4430 = vlaneseq
    %v4431 = vshrl.u32 %v4430, 7
    %v4432 = vsub.s32 6, %v4431
    %v4433 = vrot.slane %v3877, %v4432
    %v4434 = vlaneseq
    %v4435 = vshrl.u32 %v4434, 7
    %v4436 = vsub.s32 7, %v4435
    %v4437 = vrot.slane %v3877, %v4436
    %v4438 = vlaneseq
    %v4439 = vshrl.u32 %v4438, 7
    %v4440 = vsub.s32 0, %v4439
    %v4441 = vrot.slane %v3878, %v4440
    %v4442 = vlaneseq
    %v4443 = vshrl.u32 %v4442, 7
    %v4444 = vsub.s32 1, %v4443
    %v4445 = vrot.slane %v3878, %v4444
    %v4446 = vlaneseq
    %v4447 = vshrl.u32 %v4446, 7
    %v4448 = vsub.s32 2, %v4447
    %v4449 = vrot.slane %v3878, %v4448
    %v4450 = vlaneseq
    %v4451 = vshrl.u32 %v4450, 7
    %v4452 = vsub.s32 3, %v4451
    %v4453 = vrot.slane %v3878, %v4452
    %v4454 = vlaneseq
    %v4455 = vshrl.u32 %v4454, 7
    %v4456 = vsub.s32 4, %v4455
    %v4457 = vrot.slane %v3878, %v4456
    %v4458 = vlaneseq
    %v4459 = vshrl.u32 %v4458, 7
    %v4460 = vsub.s32 5, %v4459
    %v4461 = vrot.slane %v3878, %v4460
    %v4462 = vlaneseq
    %v4463 = vshrl.u32 %v4462, 7
    %v4464 = vsub.s32 6, %v4463
    %v4465 = vrot.slane %v3878, %v4464
    %v4466 = vlaneseq
    %v4467 = vshrl.u32 %v4466, 7
    %v4468 = vsub.s32 7, %v4467
    %v4469 = vrot.slane %v3878, %v4468
    %v4470 = vlaneseq
    %v4471 = vshrl.u32 %v4470, 7
    %v4472 = vsub.s32 0, %v4471
    %v4473 = vrot.slane %v3879, %v4472
    %v4474 = vlaneseq
    %v4475 = vshrl.u32 %v4474, 7
    %v4476 = vsub.s32 1, %v4475
    %v4477 = vrot.slane %v3879, %v4476
    %v4478 = vlaneseq
    %v4479 = vshrl.u32 %v4478, 7
    %v4480 = vsub.s32 2, %v4479
    %v4481 = vrot.slane %v3879, %v4480
    %v4482 = vlaneseq
    %v4483 = vshrl.u32 %v4482, 7
    %v4484 = vsub.s32 3, %v4483
    %v4485 = vrot.slane %v3879, %v4484
    %v4486 = vlaneseq
    %v4487 = vshrl.u32 %v4486, 7
    %v4488 = vsub.s32 4, %v4487
    %v4489 = vrot.slane %v3879, %v4488
    %v4490 = vlaneseq
    %v4491 = vshrl.u32 %v4490, 7
    %v4492 = vsub.s32 5, %v4491
    %v4493 = vrot.slane %v3879, %v4492
    %v4494 = vlaneseq
    %v4495 = vshrl.u32 %v4494, 7
    %v4496 = vsub.s32 6, %v4495
    %v4497 = vrot.slane %v3879, %v4496
    %v4498 = vlaneseq
    %v4499 = vshrl.u32 %v4498, 7
    %v4500 = vsub.s32 7, %v4499
    %v4501 = vrot.slane %v3879, %v4500
    %v4502 = vlaneseq
    %v4503 = vshrl.u32 %v4502, 7
    %v4504 = vsub.s32 0, %v4503
    %v4505 = vrot.slane %v3880, %v4504
    %v4506 = vlaneseq
    %v4507 = vshrl.u32 %v4506, 7
    %v4508 = vsub.s32 1, %v4507
    %v4509 = vrot.slane %v3880, %v4508
    %v4510 = vlaneseq
    %v4511 = vshrl.u32 %v4510, 7
    %v4512 = vsub.s32 2, %v4511
    %v4513 = vrot.slane %v3880, %v4512
    %v4514 = vlaneseq
    %v4515 = vshrl.u32 %v4514, 7
    %v4516 = vsub.s32 3, %v4515
    %v4517 = vrot.slane %v3880, %v4516
    %v4518 = vlaneseq
    %v4519 = vshrl.u32 %v4518, 7
    %v4520 = vsub.s32 4, %v4519
    %v4521 = vrot.slane %v3880, %v4520
    %v4522 = vlaneseq
    %v4523 = vshrl.u32 %v4522, 7
    %v4524 = vsub.s32 5, %v4523
    %v4525 = vrot.slane %v3880, %v4524
    %v4526 = vlaneseq
    %v4527 = vshrl.u32 %v4526, 7
    %v4528 = vsub.s32 6, %v4527
    %v4529 = vrot.slane %v3880, %v4528
    %v4530 = vlaneseq
    %v4531 = vshrl.u32 %v4530, 7
    %v4532 = vsub.s32 7, %v4531
    %v4533 = vrot.slane %v3880, %v4532
    %v4534 = vlaneseq
    %v4535 = vshrl.u32 %v4534, 7
    %v4536 = vsub.s32 0, %v4535
    %v4537 = vrot.slane %v3881, %v4536
    %v4538 = vlaneseq
    %v4539 = vshrl.u32 %v4538, 7
    %v4540 = vsub.s32 1, %v4539
    %v4541 = vrot.slane %v3881, %v4540
    %v4542 = vlaneseq
    %v4543 = vshrl.u32 %v4542, 7
    %v4544 = vsub.s32 2, %v4543
    %v4545 = vrot.slane %v3881, %v4544
    %v4546 = vlaneseq
    %v4547 = vshrl.u32 %v4546, 7
    %v4548 = vsub.s32 3, %v4547
    %v4549 = vrot.slane %v3881, %v4548
    %v4550 = vlaneseq
    %v4551 = vshrl.u32 %v4550, 7
    %v4552 = vsub.s32 4, %v4551
    %v4553 = vrot.slane %v3881, %v4552
    %v4554 = vlaneseq
    %v4555 = vshrl.u32 %v4554, 7
    %v4556 = vsub.s32 5, %v4555
    %v4557 = vrot.slane %v3881, %v4556
    %v4558 = vlaneseq
    %v4559 = vshrl.u32 %v4558, 7
    %v4560 = vsub.s32 6, %v4559
    %v4561 = vrot.slane %v3881, %v4560
    %v4562 = vlaneseq
    %v4563 = vshrl.u32 %v4562, 7
    %v4564 = vsub.s32 7, %v4563
    %v4565 = vrot.slane %v3881, %v4564
    %v4566 = vlaneseq
    %v4567 = vshrl.u32 %v4566, 7
    %v4568 = vsub.s32 0, %v4567
    %v4569 = vrot.slane %v3882, %v4568
    %v4570 = vlaneseq
    %v4571 = vshrl.u32 %v4570, 7
    %v4572 = vsub.s32 1, %v4571
    %v4573 = vrot.slane %v3882, %v4572
    %v4574 = vlaneseq
    %v4575 = vshrl.u32 %v4574, 7
    %v4576 = vsub.s32 2, %v4575
    %v4577 = vrot.slane %v3882, %v4576
    %v4578 = vlaneseq
    %v4579 = vshrl.u32 %v4578, 7
    %v4580 = vsub.s32 3, %v4579
    %v4581 = vrot.slane %v3882, %v4580
    %v4582 = vlaneseq
    %v4583 = vshrl.u32 %v4582, 7
    %v4584 = vsub.s32 4, %v4583
    %v4585 = vrot.slane %v3882, %v4584
    %v4586 = vlaneseq
    %v4587 = vshrl.u32 %v4586, 7
    %v4588 = vsub.s32 5, %v4587
    %v4589 = vrot.slane %v3882, %v4588
    %v4590 = vlaneseq
    %v4591 = vshrl.u32 %v4590, 7
    %v4592 = vsub.s32 6, %v4591
    %v4593 = vrot.slane %v3882, %v4592
    %v4594 = vlaneseq
    %v4595 = vshrl.u32 %v4594, 7
    %v4596 = vsub.s32 7, %v4595
    %v4597 = vrot.slane %v3882, %v4596
    %v4598 = vlaneseq
    %v4599 = vshrl.u32 %v4598, 7
    %v4600 = vsub.s32 0, %v4599
    %v4601 = vrot.slane %v3883, %v4600
    %v4602 = vlaneseq
    %v4603 = vshrl.u32 %v4602, 7
    %v4604 = vsub.s32 1, %v4603
    %v4605 = vrot.slane %v3883, %v4604
    %v4606 = vlaneseq
    %v4607 = vshrl.u32 %v4606, 7
    %v4608 = vsub.s32 2, %v4607
    %v4609 = vrot.slane %v3883, %v4608
    %v4610 = vlaneseq
    %v4611 = vshrl.u32 %v4610, 7
    %v4612 = vsub.s32 3, %v4611
    %v4613 = vrot.slane %v3883, %v4612
    %v4614 = vlaneseq
    %v4615 = vshrl.u32 %v4614, 7
    %v4616 = vsub.s32 4, %v4615
    %v4617 = vrot.slane %v3883, %v4616
    %v4618 = vlaneseq
    %v4619 = vshrl.u32 %v4618, 7
    %v4620 = vsub.s32 5, %v4619
    %v4621 = vrot.slane %v3883, %v4620
    %v4622 = vlaneseq
    %v4623 = vshrl.u32 %v4622, 7
    %v4624 = vsub.s32 6, %v4623
    %v4625 = vrot.slane %v3883, %v4624
    %v4626 = vlaneseq
    %v4627 = vshrl.u32 %v4626, 7
    %v4628 = vsub.s32 7, %v4627
    %v4629 = vrot.slane %v3883, %v4628
    %v4630 = vlaneseq
    %v4631 = vshrl.u32 %v4630, 7
    %v4632 = vsub.s32 0, %v4631
    %v4633 = vrot.slane %v3884, %v4632
    %v4634 = vlaneseq
    %v4635 = vshrl.u32 %v4634, 7
    %v4636 = vsub.s32 1, %v4635
    %v4637 = vrot.slane %v3884, %v4636
    %v4638 = vlaneseq
    %v4639 = vshrl.u32 %v4638, 7
    %v4640 = vsub.s32 2, %v4639
    %v4641 = vrot.slane %v3884, %v4640
    %v4642 = vlaneseq
    %v4643 = vshrl.u32 %v4642, 7
    %v4644 = vsub.s32 3, %v4643
    %v4645 = vrot.slane %v3884, %v4644
    %v4646 = vlaneseq
    %v4647 = vshrl.u32 %v4646, 7
    %v4648 = vsub.s32 4, %v4647
    %v4649 = vrot.slane %v3884, %v4648
    %v4650 = vlaneseq
    %v4651 = vshrl.u32 %v4650, 7
    %v4652 = vsub.s32 5, %v4651
    %v4653 = vrot.slane %v3884, %v4652
    %v4654 = vlaneseq
    %v4655 = vshrl.u32 %v4654, 7
    %v4656 = vsub.s32 6, %v4655
    %v4657 = vrot.slane %v3884, %v4656
    %v4658 = vlaneseq
    %v4659 = vshrl.u32 %v4658, 7
    %v4660 = vsub.s32 7, %v4659
    %v4661 = vrot.slane %v3884, %v4660
    %v4662 = vlaneseq
    %v4663 = vshrl.u32 %v4662, 7
    %v4664 = vsub.s32 0, %v4663
    %v4665 = vrot.slane %v3885, %v4664
    %v4666 = vlaneseq
    %v4667 = vshrl.u32 %v4666, 7
    %v4668 = vsub.s32 1, %v4667
    %v4669 = vrot.slane %v3885, %v4668
    %v4670 = vlaneseq
    %v4671 = vshrl.u32 %v4670, 7
    %v4672 = vsub.s32 2, %v4671
    %v4673 = vrot.slane %v3885, %v4672
    %v4674 = vlaneseq
    %v4675 = vshrl.u32 %v4674, 7
    %v4676 = vsub.s32 3, %v4675
    %v4677 = vrot.slane %v3885, %v4676
    %v4678 = vlaneseq
    %v4679 = vshrl.u32 %v4678, 7
    %v4680 = vsub.s32 4, %v4679
    %v4681 = vrot.slane %v3885, %v4680
    %v4682 = vlaneseq
    %v4683 = vshrl.u32 %v4682, 7
    %v4684 = vsub.s32 5, %v4683
    %v4685 = vrot.slane %v3885, %v4684
    %v4686 = vlaneseq
    %v4687 = vshrl.u32 %v4686, 7
    %v4688 = vsub.s32 6, %v4687
    %v4689 = vrot.slane %v3885, %v4688
    %v4690 = vlaneseq
    %v4691 = vshrl.u32 %v4690, 7
    %v4692 = vsub.s32 7, %v4691
    %v4693 = vrot.slane %v3885, %v4692
    %v4694 = vlaneseq
    %v4695 = vshrl.u32 %v4694, 7
    %v4696 = vsub.s32 0, %v4695
    %v4697 = vrot.slane %v3886, %v4696
    %v4698 = vlaneseq
    %v4699 = vshrl.u32 %v4698, 7
    %v4700 = vsub.s32 1, %v4699
    %v4701 = vrot.slane %v3886, %v4700
    %v4702 = vlaneseq
    %v4703 = vshrl.u32 %v4702, 7
    %v4704 = vsub.s32 2, %v4703
    %v4705 = vrot.slane %v3886, %v4704
    %v4706 = vlaneseq
    %v4707 = vshrl.u32 %v4706, 7
    %v4708 = vsub.s32 3, %v4707
    %v4709 = vrot.slane %v3886, %v4708
    %v4710 = vlaneseq
    %v4711 = vshrl.u32 %v4710, 7
    %v4712 = vsub.s32 4, %v4711
    %v4713 = vrot.slane %v3886, %v4712
    %v4714 = vlaneseq
    %v4715 = vshrl.u32 %v4714, 7
    %v4716 = vsub.s32 5, %v4715
    %v4717 = vrot.slane %v3886, %v4716
    %v4718 = vlaneseq
    %v4719 = vshrl.u32 %v4718, 7
    %v4720 = vsub.s32 6, %v4719
    %v4721 = vrot.slane %v3886, %v4720
    %v4722 = vlaneseq
    %v4723 = vshrl.u32 %v4722, 7
    %v4724 = vsub.s32 7, %v4723
    %v4725 = vrot.slane %v3886, %v4724
    %v4726 = vlaneseq
    %v4727 = vshrl.u32 %v4726, 7
    %v4728 = vsub.s32 0, %v4727
    %v4729 = vrot.slane %v3887, %v4728
    %v4730 = vlaneseq
    %v4731 = vshrl.u32 %v4730, 7
    %v4732 = vsub.s32 1, %v4731
    %v4733 = vrot.slane %v3887, %v4732
    %v4734 = vlaneseq
    %v4735 = vshrl.u32 %v4734, 7
    %v4736 = vsub.s32 2, %v4735
    %v4737 = vrot.slane %v3887, %v4736
    %v4738 = vlaneseq
    %v4739 = vshrl.u32 %v4738, 7
    %v4740 = vsub.s32 3, %v4739
    %v4741 = vrot.slane %v3887, %v4740
    %v4742 = vlaneseq
    %v4743 = vshrl.u32 %v4742, 7
    %v4744 = vsub.s32 4, %v4743
    %v4745 = vrot.slane %v3887, %v4744
    %v4746 = vlaneseq
    %v4747 = vshrl.u32 %v4746, 7
    %v4748 = vsub.s32 5, %v4747
    %v4749 = vrot.slane %v3887, %v4748
    %v4750 = vlaneseq
    %v4751 = vshrl.u32 %v4750, 7
    %v4752 = vsub.s32 6, %v4751
    %v4753 = vrot.slane %v3887, %v4752
    %v4754 = vlaneseq
    %v4755 = vshrl.u32 %v4754, 7
    %v4756 = vsub.s32 7, %v4755
    %v4757 = vrot.slane %v3887, %v4756
    %v4758 = vlaneseq
    %v4759 = vshrl.u32 %v4758, 7
    %v4760 = vsub.s32 0, %v4759
    %v4761 = vrot.slane %v3888, %v4760
    %v4762 = vlaneseq
    %v4763 = vshrl.u32 %v4762, 7
    %v4764 = vsub.s32 1, %v4763
    %v4765 = vrot.slane %v3888, %v4764
    %v4766 = vlaneseq
    %v4767 = vshrl.u32 %v4766, 7
    %v4768 = vsub.s32 2, %v4767
    %v4769 = vrot.slane %v3888, %v4768
    %v4770 = vlaneseq
    %v4771 = vshrl.u32 %v4770, 7
    %v4772 = vsub.s32 3, %v4771
    %v4773 = vrot.slane %v3888, %v4772
    %v4774 = vlaneseq
    %v4775 = vshrl.u32 %v4774, 7
    %v4776 = vsub.s32 4, %v4775
    %v4777 = vrot.slane %v3888, %v4776
    %v4778 = vlaneseq
    %v4779 = vshrl.u32 %v4778, 7
    %v4780 = vsub.s32 5, %v4779
    %v4781 = vrot.slane %v3888, %v4780
    %v4782 = vlaneseq
    %v4783 = vshrl.u32 %v4782, 7
    %v4784 = vsub.s32 6, %v4783
    %v4785 = vrot.slane %v3888, %v4784
    %v4786 = vlaneseq
    %v4787 = vshrl.u32 %v4786, 7
    %v4788 = vsub.s32 7, %v4787
    %v4789 = vrot.slane %v3888, %v4788
    %v4790 = vlaneseq
    %v4791 = vshrl.u32 %v4790, 7
    %v4792 = vsub.s32 0, %v4791
    %v4793 = vrot.slane %v3889, %v4792
    %v4794 = vlaneseq
    %v4795 = vshrl.u32 %v4794, 7
    %v4796 = vsub.s32 1, %v4795
    %v4797 = vrot.slane %v3889, %v4796
    %v4798 = vlaneseq
    %v4799 = vshrl.u32 %v4798, 7
    %v4800 = vsub.s32 2, %v4799
    %v4801 = vrot.slane %v3889, %v4800
    %v4802 = vlaneseq
    %v4803 = vshrl.u32 %v4802, 7
    %v4804 = vsub.s32 3, %v4803
    %v4805 = vrot.slane %v3889, %v4804
    %v4806 = vlaneseq
    %v4807 = vshrl.u32 %v4806, 7
    %v4808 = vsub.s32 4, %v4807
    %v4809 = vrot.slane %v3889, %v4808
    %v4810 = vlaneseq
    %v4811 = vshrl.u32 %v4810, 7
    %v4812 = vsub.s32 5, %v4811
    %v4813 = vrot.slane %v3889, %v4812
    %v4814 = vlaneseq
    %v4815 = vshrl.u32 %v4814, 7
    %v4816 = vsub.s32 6, %v4815
    %v4817 = vrot.slane %v3889, %v4816
    %v4818 = vlaneseq
    %v4819 = vshrl.u32 %v4818, 7
    %v4820 = vsub.s32 7, %v4819
    %v4821 = vrot.slane %v3889, %v4820
    %v4822 = vlaneseq
    %v4823 = vshrl.u32 %v4822, 7
    %v4824 = vsub.s32 0, %v4823
    %v4825 = vrot.slane %v3890, %v4824
    %v4826 = vlaneseq
    %v4827 = vshrl.u32 %v4826, 7
    %v4828 = vsub.s32 1, %v4827
    %v4829 = vrot.slane %v3890, %v4828
    %v4830 = vlaneseq
    %v4831 = vshrl.u32 %v4830, 7
    %v4832 = vsub.s32 2, %v4831
    %v4833 = vrot.slane %v3890, %v4832
    %v4834 = vlaneseq
    %v4835 = vshrl.u32 %v4834, 7
    %v4836 = vsub.s32 3, %v4835
    %v4837 = vrot.slane %v3890, %v4836
    %v4838 = vlaneseq
    %v4839 = vshrl.u32 %v4838, 7
    %v4840 = vsub.s32 4, %v4839
    %v4841 = vrot.slane %v3890, %v4840
    %v4842 = vlaneseq
    %v4843 = vshrl.u32 %v4842, 7
    %v4844 = vsub.s32 5, %v4843
    %v4845 = vrot.slane %v3890, %v4844
    %v4846 = vlaneseq
    %v4847 = vshrl.u32 %v4846, 7
    %v4848 = vsub.s32 6, %v4847
    %v4849 = vrot.slane %v3890, %v4848
    %v4850 = vlaneseq
    %v4851 = vshrl.u32 %v4850, 7
    %v4852 = vsub.s32 7, %v4851
    %v4853 = vrot.slane %v3890, %v4852
    %v4854 = vlaneseq
    %v4855 = vshrl.u32 %v4854, 7
    %v4856 = vsub.s32 0, %v4855
    %v4857 = vrot.slane %v3891, %v4856
    %v4858 = vlaneseq
    %v4859 = vshrl.u32 %v4858, 7
    %v4860 = vsub.s32 1, %v4859
    %v4861 = vrot.slane %v3891, %v4860
    %v4862 = vlaneseq
    %v4863 = vshrl.u32 %v4862, 7
    %v4864 = vsub.s32 2, %v4863
    %v4865 = vrot.slane %v3891, %v4864
    %v4866 = vlaneseq
    %v4867 = vshrl.u32 %v4866, 7
    %v4868 = vsub.s32 3, %v4867
    %v4869 = vrot.slane %v3891, %v4868
    %v4870 = vlaneseq
    %v4871 = vshrl.u32 %v4870, 7
    %v4872 = vsub.s32 4, %v4871
    %v4873 = vrot.slane %v3891, %v4872
    %v4874 = vlaneseq
    %v4875 = vshrl.u32 %v4874, 7
    %v4876 = vsub.s32 5, %v4875
    %v4877 = vrot.slane %v3891, %v4876
    %v4878 = vlaneseq
    %v4879 = vshrl.u32 %v4878, 7
    %v4880 = vsub.s32 6, %v4879
    %v4881 = vrot.slane %v3891, %v4880
    %v4882 = vlaneseq
    %v4883 = vshrl.u32 %v4882, 7
    %v4884 = vsub.s32 7, %v4883
    %v4885 = vrot.slane %v3891, %v4884
    %v4886 = vlaneseq
    %v4887 = vshrl.u32 %v4886, 7
    %v4888 = vsub.s32 0, %v4887
    %v4889 = vrot.slane %v3892, %v4888
    %v4890 = vlaneseq
    %v4891 = vshrl.u32 %v4890, 7
    %v4892 = vsub.s32 1, %v4891
    %v4893 = vrot.slane %v3892, %v4892
    %v4894 = vlaneseq
    %v4895 = vshrl.u32 %v4894, 7
    %v4896 = vsub.s32 2, %v4895
    %v4897 = vrot.slane %v3892, %v4896
    %v4898 = vlaneseq
    %v4899 = vshrl.u32 %v4898, 7
    %v4900 = vsub.s32 3, %v4899
    %v4901 = vrot.slane %v3892, %v4900
    %v4902 = vlaneseq
    %v4903 = vshrl.u32 %v4902, 7
    %v4904 = vsub.s32 4, %v4903
    %v4905 = vrot.slane %v3892, %v4904
    %v4906 = vlaneseq
    %v4907 = vshrl.u32 %v4906, 7
    %v4908 = vsub.s32 5, %v4907
    %v4909 = vrot.slane %v3892, %v4908
    %v4910 = vlaneseq
    %v4911 = vshrl.u32 %v4910, 7
    %v4912 = vsub.s32 6, %v4911
    %v4913 = vrot.slane %v3892, %v4912
    %v4914 = vlaneseq
    %v4915 = vshrl.u32 %v4914, 7
    %v4916 = vsub.s32 7, %v4915
    %v4917 = vrot.slane %v3892, %v4916
    %v4918 = vlaneseq
    %v4919 = vshrl.u32 %v4918, 7
    %v4920 = vsub.s32 0, %v4919
    %v4921 = vrot.slane %v3893, %v4920
    %v4922 = vlaneseq
    %v4923 = vshrl.u32 %v4922, 7
    %v4924 = vsub.s32 1, %v4923
    %v4925 = vrot.slane %v3893, %v4924
    %v4926 = vlaneseq
    %v4927 = vshrl.u32 %v4926, 7
    %v4928 = vsub.s32 2, %v4927
    %v4929 = vrot.slane %v3893, %v4928
    %v4930 = vlaneseq
    %v4931 = vshrl.u32 %v4930, 7
    %v4932 = vsub.s32 3, %v4931
    %v4933 = vrot.slane %v3893, %v4932
    %v4934 = vlaneseq
    %v4935 = vshrl.u32 %v4934, 7
    %v4936 = vsub.s32 4, %v4935
    %v4937 = vrot.slane %v3893, %v4936
    %v4938 = vlaneseq
    %v4939 = vshrl.u32 %v4938, 7
    %v4940 = vsub.s32 5, %v4939
    %v4941 = vrot.slane %v3893, %v4940
    %v4942 = vlaneseq
    %v4943 = vshrl.u32 %v4942, 7
    %v4944 = vsub.s32 6, %v4943
    %v4945 = vrot.slane %v3893, %v4944
    %v4946 = vlaneseq
    %v4947 = vshrl.u32 %v4946, 7
    %v4948 = vsub.s32 7, %v4947
    %v4949 = vrot.slane %v3893, %v4948
    %v4950 = vcombine.low %v3929, %v3933
    %v4951 = vcombine.low %v3937, %v3941
    %v4952 = vcombine.low %v3945, %v3949
    %v4953 = vcombine.low %v3953, %v3957
    %v4955 = vunpack.c.l.s4 1966171168
    %v4956 = vunpack.c.0.s8 %v4955
    %v4957 = vlaneseq
    %v4958 = vshrl.u32 %v4957, 7
    %v4959 = vsub.s32 %v4956, %v4958
    %v4960 = vrot.slane %v4950, %v4959
    %v4962 = vunpack.c.l.s4 1966171168
    %v4963 = vunpack.c.0.s8 %v4962
    %v4964 = vlaneseq
    %v4965 = vshrl.u32 %v4964, 7
    %v4966 = vsub.s32 %v4963, %v4965
    %v4967 = vrot.slane %v4951, %v4966
    %v4969 = vunpack.c.l.s4 1966171168
    %v4970 = vunpack.c.0.s8 %v4969
    %v4971 = vlaneseq
    %v4972 = vshrl.u32 %v4971, 7
    %v4973 = vsub.s32 %v4970, %v4972
    %v4974 = vrot.slane %v4952, %v4973
    %v4976 = vunpack.c.l.s4 1966171168
    %v4977 = vunpack.c.0.s8 %v4976
    %v4978 = vlaneseq
    %v4979 = vshrl.u32 %v4978, 7
    %v4980 = vsub.s32 %v4977, %v4979
    %v4981 = vrot.slane %v4953, %v4980
    %v4982 = vcombine.low %v4960, %v4967
    %v4983 = vcombine.low %v4974, %v4981
    %v4985 = vunpack.c.l.s4 1966171168
    %v4986 = vunpack.c.0.s8 %v4985
    %v4987 = vlaneseq
    %v4988 = vshrl.u32 %v4987, 7
    %v4989 = vsub.s32 %v4986, %v4988
    %v4990 = vrot.slane %v4982, %v4989
    %v4992 = vunpack.c.l.s4 1966171168
    %v4993 = vunpack.c.0.s8 %v4992
    %v4994 = vlaneseq
    %v4995 = vshrl.u32 %v4994, 7
    %v4996 = vsub.s32 %v4993, %v4995
    %v4997 = vrot.slane %v4983, %v4996
    %v4998 = vcombine.low %v4990, %v4997
    %v4999 = vcombine.low %v3961, %v3965
    %v5000 = vcombine.low %v3969, %v3973
    %v5001 = vcombine.low %v3977, %v3981
    %v5002 = vcombine.low %v3985, %v3989
    %v5004 = vunpack.c.l.s4 1966171168
    %v5005 = vunpack.c.0.s8 %v5004
    %v5006 = vlaneseq
    %v5007 = vshrl.u32 %v5006, 7
    %v5008 = vsub.s32 %v5005, %v5007
    %v5009 = vrot.slane %v4999, %v5008
    %v5011 = vunpack.c.l.s4 1966171168
    %v5012 = vunpack.c.0.s8 %v5011
    %v5013 = vlaneseq
    %v5014 = vshrl.u32 %v5013, 7
    %v5015 = vsub.s32 %v5012, %v5014
    %v5016 = vrot.slane %v5000, %v5015
    %v5018 = vunpack.c.l.s4 1966171168
    %v5019 = vunpack.c.0.s8 %v5018
    %v5020 = vlaneseq
    %v5021 = vshrl.u32 %v5020, 7
    %v5022 = vsub.s32 %v5019, %v5021
    %v5023 = vrot.slane %v5001, %v5022
    %v5025 = vunpack.c.l.s4 1966171168
    %v5026 = vunpack.c.0.s8 %v5025
    %v5027 = vlaneseq
    %v5028 = vshrl.u32 %v5027, 7
    %v5029 = vsub.s32 %v5026, %v5028
    %v5030 = vrot.slane %v5002, %v5029
    %v5031 = vcombine.low %v5009, %v5016
    %v5032 = vcombine.low %v5023, %v5030
    %v5034 = vunpack.c.l.s4 1966171168
    %v5035 = vunpack.c.0.s8 %v5034
    %v5036 = vlaneseq
    %v5037 = vshrl.u32 %v5036, 7
    %v5038 = vsub.s32 %v5035, %v5037
    %v5039 = vrot.slane %v5031, %v5038
    %v5041 = vunpack.c.l.s4 1966171168
    %v5042 = vunpack.c.0.s8 %v5041
    %v5043 = vlaneseq
    %v5044 = vshrl.u32 %v5043, 7
    %v5045 = vsub.s32 %v5042, %v5044
    %v5046 = vrot.slane %v5032, %v5045
    %v5047 = vcombine.low %v5039, %v5046
    %v5048 = vcombine.low %v3993, %v3997
    %v5049 = vcombine.low %v4001, %v4005
    %v5050 = vcombine.low %v4009, %v4013
    %v5051 = vcombine.low %v4017, %v4021
    %v5053 = vunpack.c.l.s4 1966171168
    %v5054 = vunpack.c.0.s8 %v5053
    %v5055 = vlaneseq
    %v5056 = vshrl.u32 %v5055, 7
    %v5057 = vsub.s32 %v5054, %v5056
    %v5058 = vrot.slane %v5048, %v5057
    %v5060 = vunpack.c.l.s4 1966171168
    %v5061 = vunpack.c.0.s8 %v5060
    %v5062 = vlaneseq
    %v5063 = vshrl.u32 %v5062, 7
    %v5064 = vsub.s32 %v5061, %v5063
    %v5065 = vrot.slane %v5049, %v5064
    %v5067 = vunpack.c.l.s4 1966171168
    %v5068 = vunpack.c.0.s8 %v5067
    %v5069 = vlaneseq
    %v5070 = vshrl.u32 %v5069, 7
    %v5071 = vsub.s32 %v5068, %v5070
    %v5072 = vrot.slane %v5050, %v5071
    %v5074 = vunpack.c.l.s4 1966171168
    %v5075 = vunpack.c.0.s8 %v5074
    %v5076 = vlaneseq
    %v5077 = vshrl.u32 %v5076, 7
    %v5078 = vsub.s32 %v5075, %v5077
    %v5079 = vrot.slane %v5051, %v5078
    %v5080 = vcombine.low %v5058, %v5065
    %v5081 = vcombine.low %v5072, %v5079
    %v5083 = vunpack.c.l.s4 1966171168
    %v5084 = vunpack.c.0.s8 %v5083
    %v5085 = vlaneseq
    %v5086 = vshrl.u32 %v5085, 7
    %v5087 = vsub.s32 %v5084, %v5086
    %v5088 = vrot.slane %v5080, %v5087
    %v5090 = vunpack.c.l.s4 1966171168
    %v5091 = vunpack.c.0.s8 %v5090
    %v5092 = vlaneseq
    %v5093 = vshrl.u32 %v5092, 7
    %v5094 = vsub.s32 %v5091, %v5093
    %v5095 = vrot.slane %v5081, %v5094
    %v5096 = vcombine.low %v5088, %v5095
    %v5097 = vcombine.low %v4025, %v4029
    %v5098 = vcombine.low %v4033, %v4037
    %v5099 = vcombine.low %v4041, %v4045
    %v5100 = vcombine.low %v4049, %v4053
    %v5102 = vunpack.c.l.s4 1966171168
    %v5103 = vunpack.c.0.s8 %v5102
    %v5104 = vlaneseq
    %v5105 = vshrl.u32 %v5104, 7
    %v5106 = vsub.s32 %v5103, %v5105
    %v5107 = vrot.slane %v5097, %v5106
    %v5109 = vunpack.c.l.s4 1966171168
    %v5110 = vunpack.c.0.s8 %v5109
    %v5111 = vlaneseq
    %v5112 = vshrl.u32 %v5111, 7
    %v5113 = vsub.s32 %v5110, %v5112
    %v5114 = vrot.slane %v5098, %v5113
    %v5116 = vunpack.c.l.s4 1966171168
    %v5117 = vunpack.c.0.s8 %v5116
    %v5118 = vlaneseq
    %v5119 = vshrl.u32 %v5118, 7
    %v5120 = vsub.s32 %v5117, %v5119
    %v5121 = vrot.slane %v5099, %v5120
    %v5123 = vunpack.c.l.s4 1966171168
    %v5124 = vunpack.c.0.s8 %v5123
    %v5125 = vlaneseq
    %v5126 = vshrl.u32 %v5125, 7
    %v5127 = vsub.s32 %v5124, %v5126
    %v5128 = vrot.slane %v5100, %v5127
    %v5129 = vcombine.low %v5107, %v5114
    %v5130 = vcombine.low %v5121, %v5128
    %v5132 = vunpack.c.l.s4 1966171168
    %v5133 = vunpack.c.0.s8 %v5132
    %v5134 = vlaneseq
    %v5135 = vshrl.u32 %v5134, 7
    %v5136 = vsub.s32 %v5133, %v5135
    %v5137 = vrot.slane %v5129, %v5136
    %v5139 = vunpack.c.l.s4 1966171168
    %v5140 = vunpack.c.0.s8 %v5139
    %v5141 = vlaneseq
    %v5142 = vshrl.u32 %v5141, 7
    %v5143 = vsub.s32 %v5140, %v5142
    %v5144 = vrot.slane %v5130, %v5143
    %v5145 = vcombine.low %v5137, %v5144
    %v5146 = vcombine.low %v4057, %v4061
    %v5147 = vcombine.low %v4065, %v4069
    %v5148 = vcombine.low %v4073, %v4077
    %v5149 = vcombine.low %v4081, %v4085
    %v5151 = vunpack.c.l.s4 1966171168
    %v5152 = vunpack.c.0.s8 %v5151
    %v5153 = vlaneseq
    %v5154 = vshrl.u32 %v5153, 7
    %v5155 = vsub.s32 %v5152, %v5154
    %v5156 = vrot.slane %v5146, %v5155
    %v5158 = vunpack.c.l.s4 1966171168
    %v5159 = vunpack.c.0.s8 %v5158
    %v5160 = vlaneseq
    %v5161 = vshrl.u32 %v5160, 7
    %v5162 = vsub.s32 %v5159, %v5161
    %v5163 = vrot.slane %v5147, %v5162
    %v5165 = vunpack.c.l.s4 1966171168
    %v5166 = vunpack.c.0.s8 %v5165
    %v5167 = vlaneseq
    %v5168 = vshrl.u32 %v5167, 7
    %v5169 = vsub.s32 %v5166, %v5168
    %v5170 = vrot.slane %v5148, %v5169
    %v5172 = vunpack.c.l.s4 1966171168
    %v5173 = vunpack.c.0.s8 %v5172
    %v5174 = vlaneseq
    %v5175 = vshrl.u32 %v5174, 7
    %v5176 = vsub.s32 %v5173, %v5175
    %v5177 = vrot.slane %v5149, %v5176
    %v5178 = vcombine.low %v5156, %v5163
    %v5179 = vcombine.low %v5170, %v5177
    %v5181 = vunpack.c.l.s4 1966171168
    %v5182 = vunpack.c.0.s8 %v5181
    %v5183 = vlaneseq
    %v5184 = vshrl.u32 %v5183, 7
    %v5185 = vsub.s32 %v5182, %v5184
    %v5186 = vrot.slane %v5178, %v5185
    %v5188 = vunpack.c.l.s4 1966171168
    %v5189 = vunpack.c.0.s8 %v5188
    %v5190 = vlaneseq
    %v5191 = vshrl.u32 %v5190, 7
    %v5192 = vsub.s32 %v5189, %v5191
    %v5193 = vrot.slane %v5179, %v5192
    %v5194 = vcombine.low %v5186, %v5193
    %v5195 = vcombine.low %v4089, %v4093
    %v5196 = vcombine.low %v4097, %v4101
    %v5197 = vcombine.low %v4105, %v4109
    %v5198 = vcombine.low %v4113, %v4117
    %v5200 = vunpack.c.l.s4 1966171168
    %v5201 = vunpack.c.0.s8 %v5200
    %v5202 = vlaneseq
    %v5203 = vshrl.u32 %v5202, 7
    %v5204 = vsub.s32 %v5201, %v5203
    %v5205 = vrot.slane %v5195, %v5204
    %v5207 = vunpack.c.l.s4 1966171168
    %v5208 = vunpack.c.0.s8 %v5207
    %v5209 = vlaneseq
    %v5210 = vshrl.u32 %v5209, 7
    %v5211 = vsub.s32 %v5208, %v5210
    %v5212 = vrot.slane %v5196, %v5211
    %v5214 = vunpack.c.l.s4 1966171168
    %v5215 = vunpack.c.0.s8 %v5214
    %v5216 = vlaneseq
    %v5217 = vshrl.u32 %v5216, 7
    %v5218 = vsub.s32 %v5215, %v5217
    %v5219 = vrot.slane %v5197, %v5218
    %v5221 = vunpack.c.l.s4 1966171168
    %v5222 = vunpack.c.0.s8 %v5221
    %v5223 = vlaneseq
    %v5224 = vshrl.u32 %v5223, 7
    %v5225 = vsub.s32 %v5222, %v5224
    %v5226 = vrot.slane %v5198, %v5225
    %v5227 = vcombine.low %v5205, %v5212
    %v5228 = vcombine.low %v5219, %v5226
    %v5230 = vunpack.c.l.s4 1966171168
    %v5231 = vunpack.c.0.s8 %v5230
    %v5232 = vlaneseq
    %v5233 = vshrl.u32 %v5232, 7
    %v5234 = vsub.s32 %v5231, %v5233
    %v5235 = vrot.slane %v5227, %v5234
    %v5237 = vunpack.c.l.s4 1966171168
    %v5238 = vunpack.c.0.s8 %v5237
    %v5239 = vlaneseq
    %v5240 = vshrl.u32 %v5239, 7
    %v5241 = vsub.s32 %v5238, %v5240
    %v5242 = vrot.slane %v5228, %v5241
    %v5243 = vcombine.low %v5235, %v5242
    %v5244 = vcombine.low %v4121, %v4125
    %v5245 = vcombine.low %v4129, %v4133
    %v5246 = vcombine.low %v4137, %v4141
    %v5247 = vcombine.low %v4145, %v4149
    %v5249 = vunpack.c.l.s4 1966171168
    %v5250 = vunpack.c.0.s8 %v5249
    %v5251 = vlaneseq
    %v5252 = vshrl.u32 %v5251, 7
    %v5253 = vsub.s32 %v5250, %v5252
    %v5254 = vrot.slane %v5244, %v5253
    %v5256 = vunpack.c.l.s4 1966171168
    %v5257 = vunpack.c.0.s8 %v5256
    %v5258 = vlaneseq
    %v5259 = vshrl.u32 %v5258, 7
    %v5260 = vsub.s32 %v5257, %v5259
    %v5261 = vrot.slane %v5245, %v5260
    %v5263 = vunpack.c.l.s4 1966171168
    %v5264 = vunpack.c.0.s8 %v5263
    %v5265 = vlaneseq
    %v5266 = vshrl.u32 %v5265, 7
    %v5267 = vsub.s32 %v5264, %v5266
    %v5268 = vrot.slane %v5246, %v5267
    %v5270 = vunpack.c.l.s4 1966171168
    %v5271 = vunpack.c.0.s8 %v5270
    %v5272 = vlaneseq
    %v5273 = vshrl.u32 %v5272, 7
    %v5274 = vsub.s32 %v5271, %v5273
    %v5275 = vrot.slane %v5247, %v5274
    %v5276 = vcombine.low %v5254, %v5261
    %v5277 = vcombine.low %v5268, %v5275
    %v5279 = vunpack.c.l.s4 1966171168
    %v5280 = vunpack.c.0.s8 %v5279
    %v5281 = vlaneseq
    %v5282 = vshrl.u32 %v5281, 7
    %v5283 = vsub.s32 %v5280, %v5282
    %v5284 = vrot.slane %v5276, %v5283
    %v5286 = vunpack.c.l.s4 1966171168
    %v5287 = vunpack.c.0.s8 %v5286
    %v5288 = vlaneseq
    %v5289 = vshrl.u32 %v5288, 7
    %v5290 = vsub.s32 %v5287, %v5289
    %v5291 = vrot.slane %v5277, %v5290
    %v5292 = vcombine.low %v5284, %v5291
    %v5293 = vcombine.low %v4153, %v4157
    %v5294 = vcombine.low %v4161, %v4165
    %v5295 = vcombine.low %v4169, %v4173
    %v5296 = vcombine.low %v4177, %v4181
    %v5298 = vunpack.c.l.s4 1966171168
    %v5299 = vunpack.c.0.s8 %v5298
    %v5300 = vlaneseq
    %v5301 = vshrl.u32 %v5300, 7
    %v5302 = vsub.s32 %v5299, %v5301
    %v5303 = vrot.slane %v5293, %v5302
    %v5305 = vunpack.c.l.s4 1966171168
    %v5306 = vunpack.c.0.s8 %v5305
    %v5307 = vlaneseq
    %v5308 = vshrl.u32 %v5307, 7
    %v5309 = vsub.s32 %v5306, %v5308
    %v5310 = vrot.slane %v5294, %v5309
    %v5312 = vunpack.c.l.s4 1966171168
    %v5313 = vunpack.c.0.s8 %v5312
    %v5314 = vlaneseq
    %v5315 = vshrl.u32 %v5314, 7
    %v5316 = vsub.s32 %v5313, %v5315
    %v5317 = vrot.slane %v5295, %v5316
    %v5319 = vunpack.c.l.s4 1966171168
    %v5320 = vunpack.c.0.s8 %v5319
    %v5321 = vlaneseq
    %v5322 = vshrl.u32 %v5321, 7
    %v5323 = vsub.s32 %v5320, %v5322
    %v5324 = vrot.slane %v5296, %v5323
    %v5325 = vcombine.low %v5303, %v5310
    %v5326 = vcombine.low %v5317, %v5324
    %v5328 = vunpack.c.l.s4 1966171168
    %v5329 = vunpack.c.0.s8 %v5328
    %v5330 = vlaneseq
    %v5331 = vshrl.u32 %v5330, 7
    %v5332 = vsub.s32 %v5329, %v5331
    %v5333 = vrot.slane %v5325, %v5332
    %v5335 = vunpack.c.l.s4 1966171168
    %v5336 = vunpack.c.0.s8 %v5335
    %v5337 = vlaneseq
    %v5338 = vshrl.u32 %v5337, 7
    %v5339 = vsub.s32 %v5336, %v5338
    %v5340 = vrot.slane %v5326, %v5339
    %v5341 = vcombine.low %v5333, %v5340
    %v5342 = vcombine.low %v4185, %v4189
    %v5343 = vcombine.low %v4193, %v4197
    %v5344 = vcombine.low %v4201, %v4205
    %v5345 = vcombine.low %v4209, %v4213
    %v5347 = vunpack.c.l.s4 1966171168
    %v5348 = vunpack.c.0.s8 %v5347
    %v5349 = vlaneseq
    %v5350 = vshrl.u32 %v5349, 7
    %v5351 = vsub.s32 %v5348, %v5350
    %v5352 = vrot.slane %v5342, %v5351
    %v5354 = vunpack.c.l.s4 1966171168
    %v5355 = vunpack.c.0.s8 %v5354
    %v5356 = vlaneseq
    %v5357 = vshrl.u32 %v5356, 7
    %v5358 = vsub.s32 %v5355, %v5357
    %v5359 = vrot.slane %v5343, %v5358
    %v5361 = vunpack.c.l.s4 1966171168
    %v5362 = vunpack.c.0.s8 %v5361
    %v5363 = vlaneseq
    %v5364 = vshrl.u32 %v5363, 7
    %v5365 = vsub.s32 %v5362, %v5364
    %v5366 = vrot.slane %v5344, %v5365
    %v5368 = vunpack.c.l.s4 1966171168
    %v5369 = vunpack.c.0.s8 %v5368
    %v5370 = vlaneseq
    %v5371 = vshrl.u32 %v5370, 7
    %v5372 = vsub.s32 %v5369, %v5371
    %v5373 = vrot.slane %v5345, %v5372
    %v5374 = vcombine.low %v5352, %v5359
    %v5375 = vcombine.low %v5366, %v5373
    %v5377 = vunpack.c.l.s4 1966171168
    %v5378 = vunpack.c.0.s8 %v5377
    %v5379 = vlaneseq
    %v5380 = vshrl.u32 %v5379, 7
    %v5381 = vsub.s32 %v5378, %v5380
    %v5382 = vrot.slane %v5374, %v5381
    %v5384 = vunpack.c.l.s4 1966171168
    %v5385 = vunpack.c.0.s8 %v5384
    %v5386 = vlaneseq
    %v5387 = vshrl.u32 %v5386, 7
    %v5388 = vsub.s32 %v5385, %v5387
    %v5389 = vrot.slane %v5375, %v5388
    %v5390 = vcombine.low %v5382, %v5389
    %v5391 = vcombine.low %v4217, %v4221
    %v5392 = vcombine.low %v4225, %v4229
    %v5393 = vcombine.low %v4233, %v4237
    %v5394 = vcombine.low %v4241, %v4245
    %v5396 = vunpack.c.l.s4 1966171168
    %v5397 = vunpack.c.0.s8 %v5396
    %v5398 = vlaneseq
    %v5399 = vshrl.u32 %v5398, 7
    %v5400 = vsub.s32 %v5397, %v5399
    %v5401 = vrot.slane %v5391, %v5400
    %v5403 = vunpack.c.l.s4 1966171168
    %v5404 = vunpack.c.0.s8 %v5403
    %v5405 = vlaneseq
    %v5406 = vshrl.u32 %v5405, 7
    %v5407 = vsub.s32 %v5404, %v5406
    %v5408 = vrot.slane %v5392, %v5407
    %v5410 = vunpack.c.l.s4 1966171168
    %v5411 = vunpack.c.0.s8 %v5410
    %v5412 = vlaneseq
    %v5413 = vshrl.u32 %v5412, 7
    %v5414 = vsub.s32 %v5411, %v5413
    %v5415 = vrot.slane %v5393, %v5414
    %v5417 = vunpack.c.l.s4 1966171168
    %v5418 = vunpack.c.0.s8 %v5417
    %v5419 = vlaneseq
    %v5420 = vshrl.u32 %v5419, 7
    %v5421 = vsub.s32 %v5418, %v5420
    %v5422 = vrot.slane %v5394, %v5421
    %v5423 = vcombine.low %v5401, %v5408
    %v5424 = vcombine.low %v5415, %v5422
    %v5426 = vunpack.c.l.s4 1966171168
    %v5427 = vunpack.c.0.s8 %v5426
    %v5428 = vlaneseq
    %v5429 = vshrl.u32 %v5428, 7
    %v5430 = vsub.s32 %v5427, %v5429
    %v5431 = vrot.slane %v5423, %v5430
    %v5433 = vunpack.c.l.s4 1966171168
    %v5434 = vunpack.c.0.s8 %v5433
    %v5435 = vlaneseq
    %v5436 = vshrl.u32 %v5435, 7
    %v5437 = vsub.s32 %v5434, %v5436
    %v5438 = vrot.slane %v5424, %v5437
    %v5439 = vcombine.low %v5431, %v5438
    %v5440 = vcombine.low %v4249, %v4253
    %v5441 = vcombine.low %v4257, %v4261
    %v5442 = vcombine.low %v4265, %v4269
    %v5443 = vcombine.low %v4273, %v4277
    %v5445 = vunpack.c.l.s4 1966171168
    %v5446 = vunpack.c.0.s8 %v5445
    %v5447 = vlaneseq
    %v5448 = vshrl.u32 %v5447, 7
    %v5449 = vsub.s32 %v5446, %v5448
    %v5450 = vrot.slane %v5440, %v5449
    %v5452 = vunpack.c.l.s4 1966171168
    %v5453 = vunpack.c.0.s8 %v5452
    %v5454 = vlaneseq
    %v5455 = vshrl.u32 %v5454, 7
    %v5456 = vsub.s32 %v5453, %v5455
    %v5457 = vrot.slane %v5441, %v5456
    %v5459 = vunpack.c.l.s4 1966171168
    %v5460 = vunpack.c.0.s8 %v5459
    %v5461 = vlaneseq
    %v5462 = vshrl.u32 %v5461, 7
    %v5463 = vsub.s32 %v5460, %v5462
    %v5464 = vrot.slane %v5442, %v5463
    %v5466 = vunpack.c.l.s4 1966171168
    %v5467 = vunpack.c.0.s8 %v5466
    %v5468 = vlaneseq
    %v5469 = vshrl.u32 %v5468, 7
    %v5470 = vsub.s32 %v5467, %v5469
    %v5471 = vrot.slane %v5443, %v5470
    %v5472 = vcombine.low %v5450, %v5457
    %v5473 = vcombine.low %v5464, %v5471
    %v5475 = vunpack.c.l.s4 1966171168
    %v5476 = vunpack.c.0.s8 %v5475
    %v5477 = vlaneseq
    %v5478 = vshrl.u32 %v5477, 7
    %v5479 = vsub.s32 %v5476, %v5478
    %v5480 = vrot.slane %v5472, %v5479
    %v5482 = vunpack.c.l.s4 1966171168
    %v5483 = vunpack.c.0.s8 %v5482
    %v5484 = vlaneseq
    %v5485 = vshrl.u32 %v5484, 7
    %v5486 = vsub.s32 %v5483, %v5485
    %v5487 = vrot.slane %v5473, %v5486
    %v5488 = vcombine.low %v5480, %v5487
    %v5489 = vcombine.low %v4281, %v4285
    %v5490 = vcombine.low %v4289, %v4293
    %v5491 = vcombine.low %v4297, %v4301
    %v5492 = vcombine.low %v4305, %v4309
    %v5494 = vunpack.c.l.s4 1966171168
    %v5495 = vunpack.c.0.s8 %v5494
    %v5496 = vlaneseq
    %v5497 = vshrl.u32 %v5496, 7
    %v5498 = vsub.s32 %v5495, %v5497
    %v5499 = vrot.slane %v5489, %v5498
    %v5501 = vunpack.c.l.s4 1966171168
    %v5502 = vunpack.c.0.s8 %v5501
    %v5503 = vlaneseq
    %v5504 = vshrl.u32 %v5503, 7
    %v5505 = vsub.s32 %v5502, %v5504
    %v5506 = vrot.slane %v5490, %v5505
    %v5508 = vunpack.c.l.s4 1966171168
    %v5509 = vunpack.c.0.s8 %v5508
    %v5510 = vlaneseq
    %v5511 = vshrl.u32 %v5510, 7
    %v5512 = vsub.s32 %v5509, %v5511
    %v5513 = vrot.slane %v5491, %v5512
    %v5515 = vunpack.c.l.s4 1966171168
    %v5516 = vunpack.c.0.s8 %v5515
    %v5517 = vlaneseq
    %v5518 = vshrl.u32 %v5517, 7
    %v5519 = vsub.s32 %v5516, %v5518
    %v5520 = vrot.slane %v5492, %v5519
    %v5521 = vcombine.low %v5499, %v5506
    %v5522 = vcombine.low %v5513, %v5520
    %v5524 = vunpack.c.l.s4 1966171168
    %v5525 = vunpack.c.0.s8 %v5524
    %v5526 = vlaneseq
    %v5527 = vshrl.u32 %v5526, 7
    %v5528 = vsub.s32 %v5525, %v5527
    %v5529 = vrot.slane %v5521, %v5528
    %v5531 = vunpack.c.l.s4 1966171168
    %v5532 = vunpack.c.0.s8 %v5531
    %v5533 = vlaneseq
    %v5534 = vshrl.u32 %v5533, 7
    %v5535 = vsub.s32 %v5532, %v5534
    %v5536 = vrot.slane %v5522, %v5535
    %v5537 = vcombine.low %v5529, %v5536
    %v5538 = vcombine.low %v4313, %v4317
    %v5539 = vcombine.low %v4321, %v4325
    %v5540 = vcombine.low %v4329, %v4333
    %v5541 = vcombine.low %v4337, %v4341
    %v5543 = vunpack.c.l.s4 1966171168
    %v5544 = vunpack.c.0.s8 %v5543
    %v5545 = vlaneseq
    %v5546 = vshrl.u32 %v5545, 7
    %v5547 = vsub.s32 %v5544, %v5546
    %v5548 = vrot.slane %v5538, %v5547
    %v5550 = vunpack.c.l.s4 1966171168
    %v5551 = vunpack.c.0.s8 %v5550
    %v5552 = vlaneseq
    %v5553 = vshrl.u32 %v5552, 7
    %v5554 = vsub.s32 %v5551, %v5553
    %v5555 = vrot.slane %v5539, %v5554
    %v5557 = vunpack.c.l.s4 1966171168
    %v5558 = vunpack.c.0.s8 %v5557
    %v5559 = vlaneseq
    %v5560 = vshrl.u32 %v5559, 7
    %v5561 = vsub.s32 %v5558, %v5560
    %v5562 = vrot.slane %v5540, %v5561
    %v5564 = vunpack.c.l.s4 1966171168
    %v5565 = vunpack.c.0.s8 %v5564
    %v5566 = vlaneseq
    %v5567 = vshrl.u32 %v5566, 7
    %v5568 = vsub.s32 %v5565, %v5567
    %v5569 = vrot.slane %v5541, %v5568
    %v5570 = vcombine.low %v5548, %v5555
    %v5571 = vcombine.low %v5562, %v5569
    %v5573 = vunpack.c.l.s4 1966171168
    %v5574 = vunpack.c.0.s8 %v5573
    %v5575 = vlaneseq
    %v5576 = vshrl.u32 %v5575, 7
    %v5577 = vsub.s32 %v5574, %v5576
    %v5578 = vrot.slane %v5570, %v5577
    %v5580 = vunpack.c.l.s4 1966171168
    %v5581 = vunpack.c.0.s8 %v5580
    %v5582 = vlaneseq
    %v5583 = vshrl.u32 %v5582, 7
    %v5584 = vsub.s32 %v5581, %v5583
    %v5585 = vrot.slane %v5571, %v5584
    %v5586 = vcombine.low %v5578, %v5585
    %v5587 = vcombine.low %v4345, %v4349
    %v5588 = vcombine.low %v4353, %v4357
    %v5589 = vcombine.low %v4361, %v4365
    %v5590 = vcombine.low %v4369, %v4373
    %v5592 = vunpack.c.l.s4 1966171168
    %v5593 = vunpack.c.0.s8 %v5592
    %v5594 = vlaneseq
    %v5595 = vshrl.u32 %v5594, 7
    %v5596 = vsub.s32 %v5593, %v5595
    %v5597 = vrot.slane %v5587, %v5596
    %v5599 = vunpack.c.l.s4 1966171168
    %v5600 = vunpack.c.0.s8 %v5599
    %v5601 = vlaneseq
    %v5602 = vshrl.u32 %v5601, 7
    %v5603 = vsub.s32 %v5600, %v5602
    %v5604 = vrot.slane %v5588, %v5603
    %v5606 = vunpack.c.l.s4 1966171168
    %v5607 = vunpack.c.0.s8 %v5606
    %v5608 = vlaneseq
    %v5609 = vshrl.u32 %v5608, 7
    %v5610 = vsub.s32 %v5607, %v5609
    %v5611 = vrot.slane %v5589, %v5610
    %v5613 = vunpack.c.l.s4 1966171168
    %v5614 = vunpack.c.0.s8 %v5613
    %v5615 = vlaneseq
    %v5616 = vshrl.u32 %v5615, 7
    %v5617 = vsub.s32 %v5614, %v5616
    %v5618 = vrot.slane %v5590, %v5617
    %v5619 = vcombine.low %v5597, %v5604
    %v5620 = vcombine.low %v5611, %v5618
    %v5622 = vunpack.c.l.s4 1966171168
    %v5623 = vunpack.c.0.s8 %v5622
    %v5624 = vlaneseq
    %v5625 = vshrl.u32 %v5624, 7
    %v5626 = vsub.s32 %v5623, %v5625
    %v5627 = vrot.slane %v5619, %v5626
    %v5629 = vunpack.c.l.s4 1966171168
    %v5630 = vunpack.c.0.s8 %v5629
    %v5631 = vlaneseq
    %v5632 = vshrl.u32 %v5631, 7
    %v5633 = vsub.s32 %v5630, %v5632
    %v5634 = vrot.slane %v5620, %v5633
    %v5635 = vcombine.low %v5627, %v5634
    %v5636 = vcombine.low %v4377, %v4381
    %v5637 = vcombine.low %v4385, %v4389
    %v5638 = vcombine.low %v4393, %v4397
    %v5639 = vcombine.low %v4401, %v4405
    %v5641 = vunpack.c.l.s4 1966171168
    %v5642 = vunpack.c.0.s8 %v5641
    %v5643 = vlaneseq
    %v5644 = vshrl.u32 %v5643, 7
    %v5645 = vsub.s32 %v5642, %v5644
    %v5646 = vrot.slane %v5636, %v5645
    %v5648 = vunpack.c.l.s4 1966171168
    %v5649 = vunpack.c.0.s8 %v5648
    %v5650 = vlaneseq
    %v5651 = vshrl.u32 %v5650, 7
    %v5652 = vsub.s32 %v5649, %v5651
    %v5653 = vrot.slane %v5637, %v5652
    %v5655 = vunpack.c.l.s4 1966171168
    %v5656 = vunpack.c.0.s8 %v5655
    %v5657 = vlaneseq
    %v5658 = vshrl.u32 %v5657, 7
    %v5659 = vsub.s32 %v5656, %v5658
    %v5660 = vrot.slane %v5638, %v5659
    %v5662 = vunpack.c.l.s4 1966171168
    %v5663 = vunpack.c.0.s8 %v5662
    %v5664 = vlaneseq
    %v5665 = vshrl.u32 %v5664, 7
    %v5666 = vsub.s32 %v5663, %v5665
    %v5667 = vrot.slane %v5639, %v5666
    %v5668 = vcombine.low %v5646, %v5653
    %v5669 = vcombine.low %v5660, %v5667
    %v5671 = vunpack.c.l.s4 1966171168
    %v5672 = vunpack.c.0.s8 %v5671
    %v5673 = vlaneseq
    %v5674 = vshrl.u32 %v5673, 7
    %v5675 = vsub.s32 %v5672, %v5674
    %v5676 = vrot.slane %v5668, %v5675
    %v5678 = vunpack.c.l.s4 1966171168
    %v5679 = vunpack.c.0.s8 %v5678
    %v5680 = vlaneseq
    %v5681 = vshrl.u32 %v5680, 7
    %v5682 = vsub.s32 %v5679, %v5681
    %v5683 = vrot.slane %v5669, %v5682
    %v5684 = vcombine.low %v5676, %v5683
    %v5685 = vcombine.low %v4409, %v4413
    %v5686 = vcombine.low %v4417, %v4421
    %v5687 = vcombine.low %v4425, %v4429
    %v5688 = vcombine.low %v4433, %v4437
    %v5690 = vunpack.c.l.s4 1966171168
    %v5691 = vunpack.c.0.s8 %v5690
    %v5692 = vlaneseq
    %v5693 = vshrl.u32 %v5692, 7
    %v5694 = vsub.s32 %v5691, %v5693
    %v5695 = vrot.slane %v5685, %v5694
    %v5697 = vunpack.c.l.s4 1966171168
    %v5698 = vunpack.c.0.s8 %v5697
    %v5699 = vlaneseq
    %v5700 = vshrl.u32 %v5699, 7
    %v5701 = vsub.s32 %v5698, %v5700
    %v5702 = vrot.slane %v5686, %v5701
    %v5704 = vunpack.c.l.s4 1966171168
    %v5705 = vunpack.c.0.s8 %v5704
    %v5706 = vlaneseq
    %v5707 = vshrl.u32 %v5706, 7
    %v5708 = vsub.s32 %v5705, %v5707
    %v5709 = vrot.slane %v5687, %v5708
    %v5711 = vunpack.c.l.s4 1966171168
    %v5712 = vunpack.c.0.s8 %v5711
    %v5713 = vlaneseq
    %v5714 = vshrl.u32 %v5713, 7
    %v5715 = vsub.s32 %v5712, %v5714
    %v5716 = vrot.slane %v5688, %v5715
    %v5717 = vcombine.low %v5695, %v5702
    %v5718 = vcombine.low %v5709, %v5716
    %v5720 = vunpack.c.l.s4 1966171168
    %v5721 = vunpack.c.0.s8 %v5720
    %v5722 = vlaneseq
    %v5723 = vshrl.u32 %v5722, 7
    %v5724 = vsub.s32 %v5721, %v5723
    %v5725 = vrot.slane %v5717, %v5724
    %v5727 = vunpack.c.l.s4 1966171168
    %v5728 = vunpack.c.0.s8 %v5727
    %v5729 = vlaneseq
    %v5730 = vshrl.u32 %v5729, 7
    %v5731 = vsub.s32 %v5728, %v5730
    %v5732 = vrot.slane %v5718, %v5731
    %v5733 = vcombine.low %v5725, %v5732
    %v5734 = vcombine.low %v4441, %v4445
    %v5735 = vcombine.low %v4449, %v4453
    %v5736 = vcombine.low %v4457, %v4461
    %v5737 = vcombine.low %v4465, %v4469
    %v5739 = vunpack.c.l.s4 1966171168
    %v5740 = vunpack.c.0.s8 %v5739
    %v5741 = vlaneseq
    %v5742 = vshrl.u32 %v5741, 7
    %v5743 = vsub.s32 %v5740, %v5742
    %v5744 = vrot.slane %v5734, %v5743
    %v5746 = vunpack.c.l.s4 1966171168
    %v5747 = vunpack.c.0.s8 %v5746
    %v5748 = vlaneseq
    %v5749 = vshrl.u32 %v5748, 7
    %v5750 = vsub.s32 %v5747, %v5749
    %v5751 = vrot.slane %v5735, %v5750
    %v5753 = vunpack.c.l.s4 1966171168
    %v5754 = vunpack.c.0.s8 %v5753
    %v5755 = vlaneseq
    %v5756 = vshrl.u32 %v5755, 7
    %v5757 = vsub.s32 %v5754, %v5756
    %v5758 = vrot.slane %v5736, %v5757
    %v5760 = vunpack.c.l.s4 1966171168
    %v5761 = vunpack.c.0.s8 %v5760
    %v5762 = vlaneseq
    %v5763 = vshrl.u32 %v5762, 7
    %v5764 = vsub.s32 %v5761, %v5763
    %v5765 = vrot.slane %v5737, %v5764
    %v5766 = vcombine.low %v5744, %v5751
    %v5767 = vcombine.low %v5758, %v5765
    %v5769 = vunpack.c.l.s4 1966171168
    %v5770 = vunpack.c.0.s8 %v5769
    %v5771 = vlaneseq
    %v5772 = vshrl.u32 %v5771, 7
    %v5773 = vsub.s32 %v5770, %v5772
    %v5774 = vrot.slane %v5766, %v5773
    %v5776 = vunpack.c.l.s4 1966171168
    %v5777 = vunpack.c.0.s8 %v5776
    %v5778 = vlaneseq
    %v5779 = vshrl.u32 %v5778, 7
    %v5780 = vsub.s32 %v5777, %v5779
    %v5781 = vrot.slane %v5767, %v5780
    %v5782 = vcombine.low %v5774, %v5781
    %v5783 = vcombine.low %v4473, %v4477
    %v5784 = vcombine.low %v4481, %v4485
    %v5785 = vcombine.low %v4489, %v4493
    %v5786 = vcombine.low %v4497, %v4501
    %v5788 = vunpack.c.l.s4 1966171168
    %v5789 = vunpack.c.0.s8 %v5788
    %v5790 = vlaneseq
    %v5791 = vshrl.u32 %v5790, 7
    %v5792 = vsub.s32 %v5789, %v5791
    %v5793 = vrot.slane %v5783, %v5792
    %v5795 = vunpack.c.l.s4 1966171168
    %v5796 = vunpack.c.0.s8 %v5795
    %v5797 = vlaneseq
    %v5798 = vshrl.u32 %v5797, 7
    %v5799 = vsub.s32 %v5796, %v5798
    %v5800 = vrot.slane %v5784, %v5799
    %v5802 = vunpack.c.l.s4 1966171168
    %v5803 = vunpack.c.0.s8 %v5802
    %v5804 = vlaneseq
    %v5805 = vshrl.u32 %v5804, 7
    %v5806 = vsub.s32 %v5803, %v5805
    %v5807 = vrot.slane %v5785, %v5806
    %v5809 = vunpack.c.l.s4 1966171168
    %v5810 = vunpack.c.0.s8 %v5809
    %v5811 = vlaneseq
    %v5812 = vshrl.u32 %v5811, 7
    %v5813 = vsub.s32 %v5810, %v5812
    %v5814 = vrot.slane %v5786, %v5813
    %v5815 = vcombine.low %v5793, %v5800
    %v5816 = vcombine.low %v5807, %v5814
    %v5818 = vunpack.c.l.s4 1966171168
    %v5819 = vunpack.c.0.s8 %v5818
    %v5820 = vlaneseq
    %v5821 = vshrl.u32 %v5820, 7
    %v5822 = vsub.s32 %v5819, %v5821
    %v5823 = vrot.slane %v5815, %v5822
    %v5825 = vunpack.c.l.s4 1966171168
    %v5826 = vunpack.c.0.s8 %v5825
    %v5827 = vlaneseq
    %v5828 = vshrl.u32 %v5827, 7
    %v5829 = vsub.s32 %v5826, %v5828
    %v5830 = vrot.slane %v5816, %v5829
    %v5831 = vcombine.low %v5823, %v5830
    %v5832 = vcombine.low %v4505, %v4509
    %v5833 = vcombine.low %v4513, %v4517
    %v5834 = vcombine.low %v4521, %v4525
    %v5835 = vcombine.low %v4529, %v4533
    %v5837 = vunpack.c.l.s4 1966171168
    %v5838 = vunpack.c.0.s8 %v5837
    %v5839 = vlaneseq
    %v5840 = vshrl.u32 %v5839, 7
    %v5841 = vsub.s32 %v5838, %v5840
    %v5842 = vrot.slane %v5832, %v5841
    %v5844 = vunpack.c.l.s4 1966171168
    %v5845 = vunpack.c.0.s8 %v5844
    %v5846 = vlaneseq
    %v5847 = vshrl.u32 %v5846, 7
    %v5848 = vsub.s32 %v5845, %v5847
    %v5849 = vrot.slane %v5833, %v5848
    %v5851 = vunpack.c.l.s4 1966171168
    %v5852 = vunpack.c.0.s8 %v5851
    %v5853 = vlaneseq
    %v5854 = vshrl.u32 %v5853, 7
    %v5855 = vsub.s32 %v5852, %v5854
    %v5856 = vrot.slane %v5834, %v5855
    %v5858 = vunpack.c.l.s4 1966171168
    %v5859 = vunpack.c.0.s8 %v5858
    %v5860 = vlaneseq
    %v5861 = vshrl.u32 %v5860, 7
    %v5862 = vsub.s32 %v5859, %v5861
    %v5863 = vrot.slane %v5835, %v5862
    %v5864 = vcombine.low %v5842, %v5849
    %v5865 = vcombine.low %v5856, %v5863
    %v5867 = vunpack.c.l.s4 1966171168
    %v5868 = vunpack.c.0.s8 %v5867
    %v5869 = vlaneseq
    %v5870 = vshrl.u32 %v5869, 7
    %v5871 = vsub.s32 %v5868, %v5870
    %v5872 = vrot.slane %v5864, %v5871
    %v5874 = vunpack.c.l.s4 1966171168
    %v5875 = vunpack.c.0.s8 %v5874
    %v5876 = vlaneseq
    %v5877 = vshrl.u32 %v5876, 7
    %v5878 = vsub.s32 %v5875, %v5877
    %v5879 = vrot.slane %v5865, %v5878
    %v5880 = vcombine.low %v5872, %v5879
    %v5881 = vcombine.low %v4537, %v4541
    %v5882 = vcombine.low %v4545, %v4549
    %v5883 = vcombine.low %v4553, %v4557
    %v5884 = vcombine.low %v4561, %v4565
    %v5886 = vunpack.c.l.s4 1966171168
    %v5887 = vunpack.c.0.s8 %v5886
    %v5888 = vlaneseq
    %v5889 = vshrl.u32 %v5888, 7
    %v5890 = vsub.s32 %v5887, %v5889
    %v5891 = vrot.slane %v5881, %v5890
    %v5893 = vunpack.c.l.s4 1966171168
    %v5894 = vunpack.c.0.s8 %v5893
    %v5895 = vlaneseq
    %v5896 = vshrl.u32 %v5895, 7
    %v5897 = vsub.s32 %v5894, %v5896
    %v5898 = vrot.slane %v5882, %v5897
    %v5900 = vunpack.c.l.s4 1966171168
    %v5901 = vunpack.c.0.s8 %v5900
    %v5902 = vlaneseq
    %v5903 = vshrl.u32 %v5902, 7
    %v5904 = vsub.s32 %v5901, %v5903
    %v5905 = vrot.slane %v5883, %v5904
    %v5907 = vunpack.c.l.s4 1966171168
    %v5908 = vunpack.c.0.s8 %v5907
    %v5909 = vlaneseq
    %v5910 = vshrl.u32 %v5909, 7
    %v5911 = vsub.s32 %v5908, %v5910
    %v5912 = vrot.slane %v5884, %v5911
    %v5913 = vcombine.low %v5891, %v5898
    %v5914 = vcombine.low %v5905, %v5912
    %v5916 = vunpack.c.l.s4 1966171168
    %v5917 = vunpack.c.0.s8 %v5916
    %v5918 = vlaneseq
    %v5919 = vshrl.u32 %v5918, 7
    %v5920 = vsub.s32 %v5917, %v5919
    %v5921 = vrot.slane %v5913, %v5920
    %v5923 = vunpack.c.l.s4 1966171168
    %v5924 = vunpack.c.0.s8 %v5923
    %v5925 = vlaneseq
    %v5926 = vshrl.u32 %v5925, 7
    %v5927 = vsub.s32 %v5924, %v5926
    %v5928 = vrot.slane %v5914, %v5927
    %v5929 = vcombine.low %v5921, %v5928
    %v5930 = vcombine.low %v4569, %v4573
    %v5931 = vcombine.low %v4577, %v4581
    %v5932 = vcombine.low %v4585, %v4589
    %v5933 = vcombine.low %v4593, %v4597
    %v5935 = vunpack.c.l.s4 1966171168
    %v5936 = vunpack.c.0.s8 %v5935
    %v5937 = vlaneseq
    %v5938 = vshrl.u32 %v5937, 7
    %v5939 = vsub.s32 %v5936, %v5938
    %v5940 = vrot.slane %v5930, %v5939
    %v5942 = vunpack.c.l.s4 1966171168
    %v5943 = vunpack.c.0.s8 %v5942
    %v5944 = vlaneseq
    %v5945 = vshrl.u32 %v5944, 7
    %v5946 = vsub.s32 %v5943, %v5945
    %v5947 = vrot.slane %v5931, %v5946
    %v5949 = vunpack.c.l.s4 1966171168
    %v5950 = vunpack.c.0.s8 %v5949
    %v5951 = vlaneseq
    %v5952 = vshrl.u32 %v5951, 7
    %v5953 = vsub.s32 %v5950, %v5952
    %v5954 = vrot.slane %v5932, %v5953
    %v5956 = vunpack.c.l.s4 1966171168
    %v5957 = vunpack.c.0.s8 %v5956
    %v5958 = vlaneseq
    %v5959 = vshrl.u32 %v5958, 7
    %v5960 = vsub.s32 %v5957, %v5959
    %v5961 = vrot.slane %v5933, %v5960
    %v5962 = vcombine.low %v5940, %v5947
    %v5963 = vcombine.low %v5954, %v5961
    %v5965 = vunpack.c.l.s4 1966171168
    %v5966 = vunpack.c.0.s8 %v5965
    %v5967 = vlaneseq
    %v5968 = vshrl.u32 %v5967, 7
    %v5969 = vsub.s32 %v5966, %v5968
    %v5970 = vrot.slane %v5962, %v5969
    %v5972 = vunpack.c.l.s4 1966171168
    %v5973 = vunpack.c.0.s8 %v5972
    %v5974 = vlaneseq
    %v5975 = vshrl.u32 %v5974, 7
    %v5976 = vsub.s32 %v5973, %v5975
    %v5977 = vrot.slane %v5963, %v5976
    %v5978 = vcombine.low %v5970, %v5977
    %v5979 = vcombine.low %v4601, %v4605
    %v5980 = vcombine.low %v4609, %v4613
    %v5981 = vcombine.low %v4617, %v4621
    %v5982 = vcombine.low %v4625, %v4629
    %v5984 = vunpack.c.l.s4 1966171168
    %v5985 = vunpack.c.0.s8 %v5984
    %v5986 = vlaneseq
    %v5987 = vshrl.u32 %v5986, 7
    %v5988 = vsub.s32 %v5985, %v5987
    %v5989 = vrot.slane %v5979, %v5988
    %v5991 = vunpack.c.l.s4 1966171168
    %v5992 = vunpack.c.0.s8 %v5991
    %v5993 = vlaneseq
    %v5994 = vshrl.u32 %v5993, 7
    %v5995 = vsub.s32 %v5992, %v5994
    %v5996 = vrot.slane %v5980, %v5995
    %v5998 = vunpack.c.l.s4 1966171168
    %v5999 = vunpack.c.0.s8 %v5998
    %v6000 = vlaneseq
    %v6001 = vshrl.u32 %v6000, 7
    %v6002 = vsub.s32 %v5999, %v6001
    %v6003 = vrot.slane %v5981, %v6002
    %v6005 = vunpack.c.l.s4 1966171168
    %v6006 = vunpack.c.0.s8 %v6005
    %v6007 = vlaneseq
    %v6008 = vshrl.u32 %v6007, 7
    %v6009 = vsub.s32 %v6006, %v6008
    %v6010 = vrot.slane %v5982, %v6009
    %v6011 = vcombine.low %v5989, %v5996
    %v6012 = vcombine.low %v6003, %v6010
    %v6014 = vunpack.c.l.s4 1966171168
    %v6015 = vunpack.c.0.s8 %v6014
    %v6016 = vlaneseq
    %v6017 = vshrl.u32 %v6016, 7
    %v6018 = vsub.s32 %v6015, %v6017
    %v6019 = vrot.slane %v6011, %v6018
    %v6021 = vunpack.c.l.s4 1966171168
    %v6022 = vunpack.c.0.s8 %v6021
    %v6023 = vlaneseq
    %v6024 = vshrl.u32 %v6023, 7
    %v6025 = vsub.s32 %v6022, %v6024
    %v6026 = vrot.slane %v6012, %v6025
    %v6027 = vcombine.low %v6019, %v6026
    %v6028 = vcombine.low %v4633, %v4637
    %v6029 = vcombine.low %v4641, %v4645
    %v6030 = vcombine.low %v4649, %v4653
    %v6031 = vcombine.low %v4657, %v4661
    %v6033 = vunpack.c.l.s4 1966171168
    %v6034 = vunpack.c.0.s8 %v6033
    %v6035 = vlaneseq
    %v6036 = vshrl.u32 %v6035, 7
    %v6037 = vsub.s32 %v6034, %v6036
    %v6038 = vrot.slane %v6028, %v6037
    %v6040 = vunpack.c.l.s4 1966171168
    %v6041 = vunpack.c.0.s8 %v6040
    %v6042 = vlaneseq
    %v6043 = vshrl.u32 %v6042, 7
    %v6044 = vsub.s32 %v6041, %v6043
    %v6045 = vrot.slane %v6029, %v6044
    %v6047 = vunpack.c.l.s4 1966171168
    %v6048 = vunpack.c.0.s8 %v6047
    %v6049 = vlaneseq
    %v6050 = vshrl.u32 %v6049, 7
    %v6051 = vsub.s32 %v6048, %v6050
    %v6052 = vrot.slane %v6030, %v6051
    %v6054 = vunpack.c.l.s4 1966171168
    %v6055 = vunpack.c.0.s8 %v6054
    %v6056 = vlaneseq
    %v6057 = vshrl.u32 %v6056, 7
    %v6058 = vsub.s32 %v6055, %v6057
    %v6059 = vrot.slane %v6031, %v6058
    %v6060 = vcombine.low %v6038, %v6045
    %v6061 = vcombine.low %v6052, %v6059
    %v6063 = vunpack.c.l.s4 1966171168
    %v6064 = vunpack.c.0.s8 %v6063
    %v6065 = vlaneseq
    %v6066 = vshrl.u32 %v6065, 7
    %v6067 = vsub.s32 %v6064, %v6066
    %v6068 = vrot.slane %v6060, %v6067
    %v6070 = vunpack.c.l.s4 1966171168
    %v6071 = vunpack.c.0.s8 %v6070
    %v6072 = vlaneseq
    %v6073 = vshrl.u32 %v6072, 7
    %v6074 = vsub.s32 %v6071, %v6073
    %v6075 = vrot.slane %v6061, %v6074
    %v6076 = vcombine.low %v6068, %v6075
    %v6077 = vcombine.low %v4665, %v4669
    %v6078 = vcombine.low %v4673, %v4677
    %v6079 = vcombine.low %v4681, %v4685
    %v6080 = vcombine.low %v4689, %v4693
    %v6082 = vunpack.c.l.s4 1966171168
    %v6083 = vunpack.c.0.s8 %v6082
    %v6084 = vlaneseq
    %v6085 = vshrl.u32 %v6084, 7
    %v6086 = vsub.s32 %v6083, %v6085
    %v6087 = vrot.slane %v6077, %v6086
    %v6089 = vunpack.c.l.s4 1966171168
    %v6090 = vunpack.c.0.s8 %v6089
    %v6091 = vlaneseq
    %v6092 = vshrl.u32 %v6091, 7
    %v6093 = vsub.s32 %v6090, %v6092
    %v6094 = vrot.slane %v6078, %v6093
    %v6096 = vunpack.c.l.s4 1966171168
    %v6097 = vunpack.c.0.s8 %v6096
    %v6098 = vlaneseq
    %v6099 = vshrl.u32 %v6098, 7
    %v6100 = vsub.s32 %v6097, %v6099
    %v6101 = vrot.slane %v6079, %v6100
    %v6103 = vunpack.c.l.s4 1966171168
    %v6104 = vunpack.c.0.s8 %v6103
    %v6105 = vlaneseq
    %v6106 = vshrl.u32 %v6105, 7
    %v6107 = vsub.s32 %v6104, %v6106
    %v6108 = vrot.slane %v6080, %v6107
    %v6109 = vcombine.low %v6087, %v6094
    %v6110 = vcombine.low %v6101, %v6108
    %v6112 = vunpack.c.l.s4 1966171168
    %v6113 = vunpack.c.0.s8 %v6112
    %v6114 = vlaneseq
    %v6115 = vshrl.u32 %v6114, 7
    %v6116 = vsub.s32 %v6113, %v6115
    %v6117 = vrot.slane %v6109, %v6116
    %v6119 = vunpack.c.l.s4 1966171168
    %v6120 = vunpack.c.0.s8 %v6119
    %v6121 = vlaneseq
    %v6122 = vshrl.u32 %v6121, 7
    %v6123 = vsub.s32 %v6120, %v6122
    %v6124 = vrot.slane %v6110, %v6123
    %v6125 = vcombine.low %v6117, %v6124
    %v6126 = vcombine.low %v4697, %v4701
    %v6127 = vcombine.low %v4705, %v4709
    %v6128 = vcombine.low %v4713, %v4717
    %v6129 = vcombine.low %v4721, %v4725
    %v6131 = vunpack.c.l.s4 1966171168
    %v6132 = vunpack.c.0.s8 %v6131
    %v6133 = vlaneseq
    %v6134 = vshrl.u32 %v6133, 7
    %v6135 = vsub.s32 %v6132, %v6134
    %v6136 = vrot.slane %v6126, %v6135
    %v6138 = vunpack.c.l.s4 1966171168
    %v6139 = vunpack.c.0.s8 %v6138
    %v6140 = vlaneseq
    %v6141 = vshrl.u32 %v6140, 7
    %v6142 = vsub.s32 %v6139, %v6141
    %v6143 = vrot.slane %v6127, %v6142
    %v6145 = vunpack.c.l.s4 1966171168
    %v6146 = vunpack.c.0.s8 %v6145
    %v6147 = vlaneseq
    %v6148 = vshrl.u32 %v6147, 7
    %v6149 = vsub.s32 %v6146, %v6148
    %v6150 = vrot.slane %v6128, %v6149
    %v6152 = vunpack.c.l.s4 1966171168
    %v6153 = vunpack.c.0.s8 %v6152
    %v6154 = vlaneseq
    %v6155 = vshrl.u32 %v6154, 7
    %v6156 = vsub.s32 %v6153, %v6155
    %v6157 = vrot.slane %v6129, %v6156
    %v6158 = vcombine.low %v6136, %v6143
    %v6159 = vcombine.low %v6150, %v6157
    %v6161 = vunpack.c.l.s4 1966171168
    %v6162 = vunpack.c.0.s8 %v6161
    %v6163 = vlaneseq
    %v6164 = vshrl.u32 %v6163, 7
    %v6165 = vsub.s32 %v6162, %v6164
    %v6166 = vrot.slane %v6158, %v6165
    %v6168 = vunpack.c.l.s4 1966171168
    %v6169 = vunpack.c.0.s8 %v6168
    %v6170 = vlaneseq
    %v6171 = vshrl.u32 %v6170, 7
    %v6172 = vsub.s32 %v6169, %v6171
    %v6173 = vrot.slane %v6159, %v6172
    %v6174 = vcombine.low %v6166, %v6173
    %v6175 = vcombine.low %v4729, %v4733
    %v6176 = vcombine.low %v4737, %v4741
    %v6177 = vcombine.low %v4745, %v4749
    %v6178 = vcombine.low %v4753, %v4757
    %v6180 = vunpack.c.l.s4 1966171168
    %v6181 = vunpack.c.0.s8 %v6180
    %v6182 = vlaneseq
    %v6183 = vshrl.u32 %v6182, 7
    %v6184 = vsub.s32 %v6181, %v6183
    %v6185 = vrot.slane %v6175, %v6184
    %v6187 = vunpack.c.l.s4 1966171168
    %v6188 = vunpack.c.0.s8 %v6187
    %v6189 = vlaneseq
    %v6190 = vshrl.u32 %v6189, 7
    %v6191 = vsub.s32 %v6188, %v6190
    %v6192 = vrot.slane %v6176, %v6191
    %v6194 = vunpack.c.l.s4 1966171168
    %v6195 = vunpack.c.0.s8 %v6194
    %v6196 = vlaneseq
    %v6197 = vshrl.u32 %v6196, 7
    %v6198 = vsub.s32 %v6195, %v6197
    %v6199 = vrot.slane %v6177, %v6198
    %v6201 = vunpack.c.l.s4 1966171168
    %v6202 = vunpack.c.0.s8 %v6201
    %v6203 = vlaneseq
    %v6204 = vshrl.u32 %v6203, 7
    %v6205 = vsub.s32 %v6202, %v6204
    %v6206 = vrot.slane %v6178, %v6205
    %v6207 = vcombine.low %v6185, %v6192
    %v6208 = vcombine.low %v6199, %v6206
    %v6210 = vunpack.c.l.s4 1966171168
    %v6211 = vunpack.c.0.s8 %v6210
    %v6212 = vlaneseq
    %v6213 = vshrl.u32 %v6212, 7
    %v6214 = vsub.s32 %v6211, %v6213
    %v6215 = vrot.slane %v6207, %v6214
    %v6217 = vunpack.c.l.s4 1966171168
    %v6218 = vunpack.c.0.s8 %v6217
    %v6219 = vlaneseq
    %v6220 = vshrl.u32 %v6219, 7
    %v6221 = vsub.s32 %v6218, %v6220
    %v6222 = vrot.slane %v6208, %v6221
    %v6223 = vcombine.low %v6215, %v6222
    %v6224 = vcombine.low %v4761, %v4765
    %v6225 = vcombine.low %v4769, %v4773
    %v6226 = vcombine.low %v4777, %v4781
    %v6227 = vcombine.low %v4785, %v4789
    %v6229 = vunpack.c.l.s4 1966171168
    %v6230 = vunpack.c.0.s8 %v6229
    %v6231 = vlaneseq
    %v6232 = vshrl.u32 %v6231, 7
    %v6233 = vsub.s32 %v6230, %v6232
    %v6234 = vrot.slane %v6224, %v6233
    %v6236 = vunpack.c.l.s4 1966171168
    %v6237 = vunpack.c.0.s8 %v6236
    %v6238 = vlaneseq
    %v6239 = vshrl.u32 %v6238, 7
    %v6240 = vsub.s32 %v6237, %v6239
    %v6241 = vrot.slane %v6225, %v6240
    %v6243 = vunpack.c.l.s4 1966171168
    %v6244 = vunpack.c.0.s8 %v6243
    %v6245 = vlaneseq
    %v6246 = vshrl.u32 %v6245, 7
    %v6247 = vsub.s32 %v6244, %v6246
    %v6248 = vrot.slane %v6226, %v6247
    %v6250 = vunpack.c.l.s4 1966171168
    %v6251 = vunpack.c.0.s8 %v6250
    %v6252 = vlaneseq
    %v6253 = vshrl.u32 %v6252, 7
    %v6254 = vsub.s32 %v6251, %v6253
    %v6255 = vrot.slane %v6227, %v6254
    %v6256 = vcombine.low %v6234, %v6241
    %v6257 = vcombine.low %v6248, %v6255
    %v6259 = vunpack.c.l.s4 1966171168
    %v6260 = vunpack.c.0.s8 %v6259
    %v6261 = vlaneseq
    %v6262 = vshrl.u32 %v6261, 7
    %v6263 = vsub.s32 %v6260, %v6262
    %v6264 = vrot.slane %v6256, %v6263
    %v6266 = vunpack.c.l.s4 1966171168
    %v6267 = vunpack.c.0.s8 %v6266
    %v6268 = vlaneseq
    %v6269 = vshrl.u32 %v6268, 7
    %v6270 = vsub.s32 %v6267, %v6269
    %v6271 = vrot.slane %v6257, %v6270
    %v6272 = vcombine.low %v6264, %v6271
    %v6273 = vcombine.low %v4793, %v4797
    %v6274 = vcombine.low %v4801, %v4805
    %v6275 = vcombine.low %v4809, %v4813
    %v6276 = vcombine.low %v4817, %v4821
    %v6278 = vunpack.c.l.s4 1966171168
    %v6279 = vunpack.c.0.s8 %v6278
    %v6280 = vlaneseq
    %v6281 = vshrl.u32 %v6280, 7
    %v6282 = vsub.s32 %v6279, %v6281
    %v6283 = vrot.slane %v6273, %v6282
    %v6285 = vunpack.c.l.s4 1966171168
    %v6286 = vunpack.c.0.s8 %v6285
    %v6287 = vlaneseq
    %v6288 = vshrl.u32 %v6287, 7
    %v6289 = vsub.s32 %v6286, %v6288
    %v6290 = vrot.slane %v6274, %v6289
    %v6292 = vunpack.c.l.s4 1966171168
    %v6293 = vunpack.c.0.s8 %v6292
    %v6294 = vlaneseq
    %v6295 = vshrl.u32 %v6294, 7
    %v6296 = vsub.s32 %v6293, %v6295
    %v6297 = vrot.slane %v6275, %v6296
    %v6299 = vunpack.c.l.s4 1966171168
    %v6300 = vunpack.c.0.s8 %v6299
    %v6301 = vlaneseq
    %v6302 = vshrl.u32 %v6301, 7
    %v6303 = vsub.s32 %v6300, %v6302
    %v6304 = vrot.slane %v6276, %v6303
    %v6305 = vcombine.low %v6283, %v6290
    %v6306 = vcombine.low %v6297, %v6304
    %v6308 = vunpack.c.l.s4 1966171168
    %v6309 = vunpack.c.0.s8 %v6308
    %v6310 = vlaneseq
    %v6311 = vshrl.u32 %v6310, 7
    %v6312 = vsub.s32 %v6309, %v6311
    %v6313 = vrot.slane %v6305, %v6312
    %v6315 = vunpack.c.l.s4 1966171168
    %v6316 = vunpack.c.0.s8 %v6315
    %v6317 = vlaneseq
    %v6318 = vshrl.u32 %v6317, 7
    %v6319 = vsub.s32 %v6316, %v6318
    %v6320 = vrot.slane %v6306, %v6319
    %v6321 = vcombine.low %v6313, %v6320
    %v6322 = vcombine.low %v4825, %v4829
    %v6323 = vcombine.low %v4833, %v4837
    %v6324 = vcombine.low %v4841, %v4845
    %v6325 = vcombine.low %v4849, %v4853
    %v6327 = vunpack.c.l.s4 1966171168
    %v6328 = vunpack.c.0.s8 %v6327
    %v6329 = vlaneseq
    %v6330 = vshrl.u32 %v6329, 7
    %v6331 = vsub.s32 %v6328, %v6330
    %v6332 = vrot.slane %v6322, %v6331
    %v6334 = vunpack.c.l.s4 1966171168
    %v6335 = vunpack.c.0.s8 %v6334
    %v6336 = vlaneseq
    %v6337 = vshrl.u32 %v6336, 7
    %v6338 = vsub.s32 %v6335, %v6337
    %v6339 = vrot.slane %v6323, %v6338
    %v6341 = vunpack.c.l.s4 1966171168
    %v6342 = vunpack.c.0.s8 %v6341
    %v6343 = vlaneseq
    %v6344 = vshrl.u32 %v6343, 7
    %v6345 = vsub.s32 %v6342, %v6344
    %v6346 = vrot.slane %v6324, %v6345
    %v6348 = vunpack.c.l.s4 1966171168
    %v6349 = vunpack.c.0.s8 %v6348
    %v6350 = vlaneseq
    %v6351 = vshrl.u32 %v6350, 7
    %v6352 = vsub.s32 %v6349, %v6351
    %v6353 = vrot.slane %v6325, %v6352
    %v6354 = vcombine.low %v6332, %v6339
    %v6355 = vcombine.low %v6346, %v6353
    %v6357 = vunpack.c.l.s4 1966171168
    %v6358 = vunpack.c.0.s8 %v6357
    %v6359 = vlaneseq
    %v6360 = vshrl.u32 %v6359, 7
    %v6361 = vsub.s32 %v6358, %v6360
    %v6362 = vrot.slane %v6354, %v6361
    %v6364 = vunpack.c.l.s4 1966171168
    %v6365 = vunpack.c.0.s8 %v6364
    %v6366 = vlaneseq
    %v6367 = vshrl.u32 %v6366, 7
    %v6368 = vsub.s32 %v6365, %v6367
    %v6369 = vrot.slane %v6355, %v6368
    %v6370 = vcombine.low %v6362, %v6369
    %v6371 = vcombine.low %v4857, %v4861
    %v6372 = vcombine.low %v4865, %v4869
    %v6373 = vcombine.low %v4873, %v4877
    %v6374 = vcombine.low %v4881, %v4885
    %v6376 = vunpack.c.l.s4 1966171168
    %v6377 = vunpack.c.0.s8 %v6376
    %v6378 = vlaneseq
    %v6379 = vshrl.u32 %v6378, 7
    %v6380 = vsub.s32 %v6377, %v6379
    %v6381 = vrot.slane %v6371, %v6380
    %v6383 = vunpack.c.l.s4 1966171168
    %v6384 = vunpack.c.0.s8 %v6383
    %v6385 = vlaneseq
    %v6386 = vshrl.u32 %v6385, 7
    %v6387 = vsub.s32 %v6384, %v6386
    %v6388 = vrot.slane %v6372, %v6387
    %v6390 = vunpack.c.l.s4 1966171168
    %v6391 = vunpack.c.0.s8 %v6390
    %v6392 = vlaneseq
    %v6393 = vshrl.u32 %v6392, 7
    %v6394 = vsub.s32 %v6391, %v6393
    %v6395 = vrot.slane %v6373, %v6394
    %v6397 = vunpack.c.l.s4 1966171168
    %v6398 = vunpack.c.0.s8 %v6397
    %v6399 = vlaneseq
    %v6400 = vshrl.u32 %v6399, 7
    %v6401 = vsub.s32 %v6398, %v6400
    %v6402 = vrot.slane %v6374, %v6401
    %v6403 = vcombine.low %v6381, %v6388
    %v6404 = vcombine.low %v6395, %v6402
    %v6406 = vunpack.c.l.s4 1966171168
    %v6407 = vunpack.c.0.s8 %v6406
    %v6408 = vlaneseq
    %v6409 = vshrl.u32 %v6408, 7
    %v6410 = vsub.s32 %v6407, %v6409
    %v6411 = vrot.slane %v6403, %v6410
    %v6413 = vunpack.c.l.s4 1966171168
    %v6414 = vunpack.c.0.s8 %v6413
    %v6415 = vlaneseq
    %v6416 = vshrl.u32 %v6415, 7
    %v6417 = vsub.s32 %v6414, %v6416
    %v6418 = vrot.slane %v6404, %v6417
    %v6419 = vcombine.low %v6411, %v6418
    %v6420 = vcombine.low %v4889, %v4893
    %v6421 = vcombine.low %v4897, %v4901
    %v6422 = vcombine.low %v4905, %v4909
    %v6423 = vcombine.low %v4913, %v4917
    %v6425 = vunpack.c.l.s4 1966171168
    %v6426 = vunpack.c.0.s8 %v6425
    %v6427 = vlaneseq
    %v6428 = vshrl.u32 %v6427, 7
    %v6429 = vsub.s32 %v6426, %v6428
    %v6430 = vrot.slane %v6420, %v6429
    %v6432 = vunpack.c.l.s4 1966171168
    %v6433 = vunpack.c.0.s8 %v6432
    %v6434 = vlaneseq
    %v6435 = vshrl.u32 %v6434, 7
    %v6436 = vsub.s32 %v6433, %v6435
    %v6437 = vrot.slane %v6421, %v6436
    %v6439 = vunpack.c.l.s4 1966171168
    %v6440 = vunpack.c.0.s8 %v6439
    %v6441 = vlaneseq
    %v6442 = vshrl.u32 %v6441, 7
    %v6443 = vsub.s32 %v6440, %v6442
    %v6444 = vrot.slane %v6422, %v6443
    %v6446 = vunpack.c.l.s4 1966171168
    %v6447 = vunpack.c.0.s8 %v6446
    %v6448 = vlaneseq
    %v6449 = vshrl.u32 %v6448, 7
    %v6450 = vsub.s32 %v6447, %v6449
    %v6451 = vrot.slane %v6423, %v6450
    %v6452 = vcombine.low %v6430, %v6437
    %v6453 = vcombine.low %v6444, %v6451
    %v6455 = vunpack.c.l.s4 1966171168
    %v6456 = vunpack.c.0.s8 %v6455
    %v6457 = vlaneseq
    %v6458 = vshrl.u32 %v6457, 7
    %v6459 = vsub.s32 %v6456, %v6458
    %v6460 = vrot.slane %v6452, %v6459
    %v6462 = vunpack.c.l.s4 1966171168
    %v6463 = vunpack.c.0.s8 %v6462
    %v6464 = vlaneseq
    %v6465 = vshrl.u32 %v6464, 7
    %v6466 = vsub.s32 %v6463, %v6465
    %v6467 = vrot.slane %v6453, %v6466
    %v6468 = vcombine.low %v6460, %v6467
    %v6469 = vcombine.low %v4921, %v4925
    %v6470 = vcombine.low %v4929, %v4933
    %v6471 = vcombine.low %v4937, %v4941
    %v6472 = vcombine.low %v4945, %v4949
    %v6474 = vunpack.c.l.s4 1966171168
    %v6475 = vunpack.c.0.s8 %v6474
    %v6476 = vlaneseq
    %v6477 = vshrl.u32 %v6476, 7
    %v6478 = vsub.s32 %v6475, %v6477
    %v6479 = vrot.slane %v6469, %v6478
    %v6481 = vunpack.c.l.s4 1966171168
    %v6482 = vunpack.c.0.s8 %v6481
    %v6483 = vlaneseq
    %v6484 = vshrl.u32 %v6483, 7
    %v6485 = vsub.s32 %v6482, %v6484
    %v6486 = vrot.slane %v6470, %v6485
    %v6488 = vunpack.c.l.s4 1966171168
    %v6489 = vunpack.c.0.s8 %v6488
    %v6490 = vlaneseq
    %v6491 = vshrl.u32 %v6490, 7
    %v6492 = vsub.s32 %v6489, %v6491
    %v6493 = vrot.slane %v6471, %v6492
    %v6495 = vunpack.c.l.s4 1966171168
    %v6496 = vunpack.c.0.s8 %v6495
    %v6497 = vlaneseq
    %v6498 = vshrl.u32 %v6497, 7
    %v6499 = vsub.s32 %v6496, %v6498
    %v6500 = vrot.slane %v6472, %v6499
    %v6501 = vcombine.low %v6479, %v6486
    %v6502 = vcombine.low %v6493, %v6500
    %v6504 = vunpack.c.l.s4 1966171168
    %v6505 = vunpack.c.0.s8 %v6504
    %v6506 = vlaneseq
    %v6507 = vshrl.u32 %v6506, 7
    %v6508 = vsub.s32 %v6505, %v6507
    %v6509 = vrot.slane %v6501, %v6508
    %v6511 = vunpack.c.l.s4 1966171168
    %v6512 = vunpack.c.0.s8 %v6511
    %v6513 = vlaneseq
    %v6514 = vshrl.u32 %v6513, 7
    %v6515 = vsub.s32 %v6512, %v6514
    %v6516 = vrot.slane %v6502, %v6515
    %v6517 = vcombine.low %v6509, %v6516
    %6518 = vset.pattern.permute.xlu0 0
    %6519 = vperm.xlu0 %6518, %v4998
    %v6520 = vpop.permute.xlu0 %6519
    %6521 = vset.pattern.permute.xlu0 0
    %6522 = vperm.xlu0 %6521, %v5047
    %v6523 = vpop.permute.xlu0 %6522
    %6524 = vset.pattern.permute.xlu0 0
    %6525 = vperm.xlu0 %6524, %v5096
    %v6526 = vpop.permute.xlu0 %6525
    %6527 = vset.pattern.permute.xlu0 0
    %6528 = vperm.xlu0 %6527, %v5145
    %v6529 = vpop.permute.xlu0 %6528
    %6530 = vset.pattern.permute.xlu0 0
    %6531 = vperm.xlu0 %6530, %v5194
    %v6532 = vpop.permute.xlu0 %6531
    %6533 = vset.pattern.permute.xlu0 0
    %6534 = vperm.xlu0 %6533, %v5243
    %v6535 = vpop.permute.xlu0 %6534
    %6536 = vset.pattern.permute.xlu0 0
    %6537 = vperm.xlu0 %6536, %v5292
    %v6538 = vpop.permute.xlu0 %6537
    %6539 = vset.pattern.permute.xlu0 0
    %6540 = vperm.xlu0 %6539, %v5341
    %v6541 = vpop.permute.xlu0 %6540
    %6542 = vset.pattern.permute.xlu0 0
    %6543 = vperm.xlu0 %6542, %v5390
    %v6544 = vpop.permute.xlu0 %6543
    %6545 = vset.pattern.permute.xlu0 0
    %6546 = vperm.xlu0 %6545, %v5439
    %v6547 = vpop.permute.xlu0 %6546
    %6548 = vset.pattern.permute.xlu0 0
    %6549 = vperm.xlu0 %6548, %v5488
    %v6550 = vpop.permute.xlu0 %6549
    %6551 = vset.pattern.permute.xlu0 0
    %6552 = vperm.xlu0 %6551, %v5537
    %v6553 = vpop.permute.xlu0 %6552
    %6554 = vset.pattern.permute.xlu0 0
    %6555 = vperm.xlu0 %6554, %v5586
    %v6556 = vpop.permute.xlu0 %6555
    %6557 = vset.pattern.permute.xlu0 0
    %6558 = vperm.xlu0 %6557, %v5635
    %v6559 = vpop.permute.xlu0 %6558
    %6560 = vset.pattern.permute.xlu0 0
    %6561 = vperm.xlu0 %6560, %v5684
    %v6562 = vpop.permute.xlu0 %6561
    %6563 = vset.pattern.permute.xlu0 0
    %6564 = vperm.xlu0 %6563, %v5733
    %v6565 = vpop.permute.xlu0 %6564
    %6566 = vset.pattern.permute.xlu0 0
    %6567 = vperm.xlu0 %6566, %v5782
    %v6568 = vpop.permute.xlu0 %6567
    %6569 = vset.pattern.permute.xlu0 0
    %6570 = vperm.xlu0 %6569, %v5831
    %v6571 = vpop.permute.xlu0 %6570
    %6572 = vset.pattern.permute.xlu0 0
    %6573 = vperm.xlu0 %6572, %v5880
    %v6574 = vpop.permute.xlu0 %6573
    %6575 = vset.pattern.permute.xlu0 0
    %6576 = vperm.xlu0 %6575, %v5929
    %v6577 = vpop.permute.xlu0 %6576
    %6578 = vset.pattern.permute.xlu0 0
    %6579 = vperm.xlu0 %6578, %v5978
    %v6580 = vpop.permute.xlu0 %6579
    %6581 = vset.pattern.permute.xlu0 0
    %6582 = vperm.xlu0 %6581, %v6027
    %v6583 = vpop.permute.xlu0 %6582
    %6584 = vset.pattern.permute.xlu0 0
    %6585 = vperm.xlu0 %6584, %v6076
    %v6586 = vpop.permute.xlu0 %6585
    %6587 = vset.pattern.permute.xlu0 0
    %6588 = vperm.xlu0 %6587, %v6125
    %v6589 = vpop.permute.xlu0 %6588
    %6590 = vset.pattern.permute.xlu0 0
    %6591 = vperm.xlu0 %6590, %v6174
    %v6592 = vpop.permute.xlu0 %6591
    %6593 = vset.pattern.permute.xlu0 0
    %6594 = vperm.xlu0 %6593, %v6223
    %v6595 = vpop.permute.xlu0 %6594
    %6596 = vset.pattern.permute.xlu0 0
    %6597 = vperm.xlu0 %6596, %v6272
    %v6598 = vpop.permute.xlu0 %6597
    %6599 = vset.pattern.permute.xlu0 0
    %6600 = vperm.xlu0 %6599, %v6321
    %v6601 = vpop.permute.xlu0 %6600
    %6602 = vset.pattern.permute.xlu0 0
    %6603 = vperm.xlu0 %6602, %v6370
    %v6604 = vpop.permute.xlu0 %6603
    %6605 = vset.pattern.permute.xlu0 0
    %6606 = vperm.xlu0 %6605, %v6419
    %v6607 = vpop.permute.xlu0 %6606
    %6608 = vset.pattern.permute.xlu0 0
    %6609 = vperm.xlu0 %6608, %v6468
    %v6610 = vpop.permute.xlu0 %6609
    %6611 = vset.pattern.permute.xlu0 0
    %6612 = vperm.xlu0 %6611, %v6517
    %v6613 = vpop.permute.xlu0 %6612
    %v6614 = vlaneseq
    %v6615 = vshrl.u32 %v6614, 7
    %v6616 = vsub.s32 %v3295, %v6615
    %v6617 = vrot.slane %v6520, %v6616
    %v6618 = vlaneseq
    %v6619 = vshrl.u32 %v6618, 7
    %v6620 = vsub.s32 %v3300, %v6619
    %v6621 = vrot.slane %v6523, %v6620
    %v6622 = vsel %vm3305, %v6621, %v6617
    %v6623 = vlaneseq
    %v6624 = vshrl.u32 %v6623, 7
    %v6625 = vsub.s32 %v3307, %v6624
    %v6626 = vrot.slane %v6526, %v6625
    %v6627 = vsel %vm3312, %v6626, %v6622
    %v6628 = vlaneseq
    %v6629 = vshrl.u32 %v6628, 7
    %v6630 = vsub.s32 %v3314, %v6629
    %v6631 = vrot.slane %v6529, %v6630
    %v6632 = vsel %vm3319, %v6631, %v6627
    %v6633 = vlaneseq
    %v6634 = vshrl.u32 %v6633, 7
    %v6635 = vsub.s32 %v3321, %v6634
    %v6636 = vrot.slane %v6532, %v6635
    %v6637 = vsel %vm3326, %v6636, %v6632
    %v6638 = vlaneseq
    %v6639 = vshrl.u32 %v6638, 7
    %v6640 = vsub.s32 %v3328, %v6639
    %v6641 = vrot.slane %v6535, %v6640
    %v6642 = vsel %vm3333, %v6641, %v6637
    %v6643 = vlaneseq
    %v6644 = vshrl.u32 %v6643, 7
    %v6645 = vsub.s32 %v3335, %v6644
    %v6646 = vrot.slane %v6538, %v6645
    %v6647 = vsel %vm3340, %v6646, %v6642
    %v6648 = vlaneseq
    %v6649 = vshrl.u32 %v6648, 7
    %v6650 = vsub.s32 %v3342, %v6649
    %v6651 = vrot.slane %v6541, %v6650
    %v6652 = vsel %vm3347, %v6651, %v6647
    %v6653 = vlaneseq
    %v6654 = vshrl.u32 %v6653, 7
    %v6655 = vsub.s32 %v3349, %v6654
    %v6656 = vrot.slane %v6544, %v6655
    %v6657 = vsel %vm3354, %v6656, %v6652
    %v6658 = vlaneseq
    %v6659 = vshrl.u32 %v6658, 7
    %v6660 = vsub.s32 %v3356, %v6659
    %v6661 = vrot.slane %v6547, %v6660
    %v6662 = vsel %vm3361, %v6661, %v6657
    %v6663 = vlaneseq
    %v6664 = vshrl.u32 %v6663, 7
    %v6665 = vsub.s32 %v3363, %v6664
    %v6666 = vrot.slane %v6550, %v6665
    %v6667 = vsel %vm3368, %v6666, %v6662
    %v6668 = vlaneseq
    %v6669 = vshrl.u32 %v6668, 7
    %v6670 = vsub.s32 %v3370, %v6669
    %v6671 = vrot.slane %v6553, %v6670
    %v6672 = vsel %vm3375, %v6671, %v6667
    %v6673 = vlaneseq
    %v6674 = vshrl.u32 %v6673, 7
    %v6675 = vsub.s32 %v3377, %v6674
    %v6676 = vrot.slane %v6556, %v6675
    %v6677 = vsel %vm3382, %v6676, %v6672
    %v6678 = vlaneseq
    %v6679 = vshrl.u32 %v6678, 7
    %v6680 = vsub.s32 %v3384, %v6679
    %v6681 = vrot.slane %v6559, %v6680
    %v6682 = vsel %vm3389, %v6681, %v6677
    %v6683 = vlaneseq
    %v6684 = vshrl.u32 %v6683, 7
    %v6685 = vsub.s32 %v3391, %v6684
    %v6686 = vrot.slane %v6562, %v6685
    %v6687 = vsel %vm3396, %v6686, %v6682
    %v6688 = vlaneseq
    %v6689 = vshrl.u32 %v6688, 7
    %v6690 = vsub.s32 %v3398, %v6689
    %v6691 = vrot.slane %v6565, %v6690
    %v6692 = vsel %vm3403, %v6691, %v6687
    %v6693 = vlaneseq
    %v6694 = vshrl.u32 %v6693, 7
    %v6695 = vsub.s32 %v3295, %v6694
    %v6696 = vrot.slane %v6568, %v6695
    %v6697 = vlaneseq
    %v6698 = vshrl.u32 %v6697, 7
    %v6699 = vsub.s32 %v3300, %v6698
    %v6700 = vrot.slane %v6571, %v6699
    %v6701 = vsel %vm3305, %v6700, %v6696
    %v6702 = vlaneseq
    %v6703 = vshrl.u32 %v6702, 7
    %v6704 = vsub.s32 %v3307, %v6703
    %v6705 = vrot.slane %v6574, %v6704
    %v6706 = vsel %vm3312, %v6705, %v6701
    %v6707 = vlaneseq
    %v6708 = vshrl.u32 %v6707, 7
    %v6709 = vsub.s32 %v3314, %v6708
    %v6710 = vrot.slane %v6577, %v6709
    %v6711 = vsel %vm3319, %v6710, %v6706
    %v6712 = vlaneseq
    %v6713 = vshrl.u32 %v6712, 7
    %v6714 = vsub.s32 %v3321, %v6713
    %v6715 = vrot.slane %v6580, %v6714
    %v6716 = vsel %vm3326, %v6715, %v6711
    %v6717 = vlaneseq
    %v6718 = vshrl.u32 %v6717, 7
    %v6719 = vsub.s32 %v3328, %v6718
    %v6720 = vrot.slane %v6583, %v6719
    %v6721 = vsel %vm3333, %v6720, %v6716
    %v6722 = vlaneseq
    %v6723 = vshrl.u32 %v6722, 7
    %v6724 = vsub.s32 %v3335, %v6723
    %v6725 = vrot.slane %v6586, %v6724
    %v6726 = vsel %vm3340, %v6725, %v6721
    %v6727 = vlaneseq
    %v6728 = vshrl.u32 %v6727, 7
    %v6729 = vsub.s32 %v3342, %v6728
    %v6730 = vrot.slane %v6589, %v6729
    %v6731 = vsel %vm3347, %v6730, %v6726
    %v6732 = vlaneseq
    %v6733 = vshrl.u32 %v6732, 7
    %v6734 = vsub.s32 %v3349, %v6733
    %v6735 = vrot.slane %v6592, %v6734
    %v6736 = vsel %vm3354, %v6735, %v6731
    %v6737 = vlaneseq
    %v6738 = vshrl.u32 %v6737, 7
    %v6739 = vsub.s32 %v3356, %v6738
    %v6740 = vrot.slane %v6595, %v6739
    %v6741 = vsel %vm3361, %v6740, %v6736
    %v6742 = vlaneseq
    %v6743 = vshrl.u32 %v6742, 7
    %v6744 = vsub.s32 %v3363, %v6743
    %v6745 = vrot.slane %v6598, %v6744
    %v6746 = vsel %vm3368, %v6745, %v6741
    %v6747 = vlaneseq
    %v6748 = vshrl.u32 %v6747, 7
    %v6749 = vsub.s32 %v3370, %v6748
    %v6750 = vrot.slane %v6601, %v6749
    %v6751 = vsel %vm3375, %v6750, %v6746
    %v6752 = vlaneseq
    %v6753 = vshrl.u32 %v6752, 7
    %v6754 = vsub.s32 %v3377, %v6753
    %v6755 = vrot.slane %v6604, %v6754
    %v6756 = vsel %vm3382, %v6755, %v6751
    %v6757 = vlaneseq
    %v6758 = vshrl.u32 %v6757, 7
    %v6759 = vsub.s32 %v3384, %v6758
    %v6760 = vrot.slane %v6607, %v6759
    %v6761 = vsel %vm3389, %v6760, %v6756
    %v6762 = vlaneseq
    %v6763 = vshrl.u32 %v6762, 7
    %v6764 = vsub.s32 %v3391, %v6763
    %v6765 = vrot.slane %v6610, %v6764
    %v6766 = vsel %vm3396, %v6765, %v6761
    %v6767 = vlaneseq
    %v6768 = vshrl.u32 %v6767, 7
    %v6769 = vsub.s32 %v3398, %v6768
    %v6770 = vrot.slane %v6613, %v6769
    %v6771 = vsel %vm3403, %v6770, %v6766
    %v6772 = vcombine.low %v6692, %v6771
    %v6774 = vunpack.c.l.s4 1966171168
    %v6775 = vunpack.c.0.s8 %v6774
    %v6776 = vlaneseq
    %v6777 = vshrl.u32 %v6776, 7
    %v6778 = vsub.s32 %v6775, %v6777
    %v6779 = vrot.slane %v6772, %v6778
    %v6781 = vunpack.c.l.s4 1966171168
    %v6782 = vunpack.c.0.s8 %v6781
    %v6783 = vlaneseq
    %v6784 = vshrl.u32 %v6783, 7
    %v6785 = vsub.s32 %v6782, %v6784
    %v6786 = vrot.slane %v6779, %v6785
    %s6788 = scalar_lea.vmem [#allocation3], 1
    %6789 = vst.msk [vmem:[%s6788] ss:$4 sm:$0x3] %vm3503, %v6786
    %v6790 = vmul.f32 %v223, %v3634
    %v6791 = vmul.f32 %v228, %v3541
    %v6792 = vmul.f32 %v233, %v3543
    %v6793 = vmul.f32 %v238, %v3545
    %v6794 = vmul.f32 %v243, %v3547
    %v6795 = vmul.f32 %v248, %v3549
    %v6796 = vmul.f32 %v253, %v3551
    %v6797 = vmul.f32 %v258, %v3553
    %v6798 = vmul.f32 %v263, %v3555
    %v6799 = vmul.f32 %v268, %v3557
    %v6800 = vmul.f32 %v273, %v3559
    %v6801 = vmul.f32 %v278, %v3561
    %v6802 = vmul.f32 %v283, %v3563
    %v6803 = vmul.f32 %v288, %v3565
    %v6804 = vmul.f32 %v293, %v3567
    %v6805 = vmul.f32 %v298, %v3569
    %v6806 = vmul.f32 %v303, %v3571
    %v6807 = vmul.f32 %v308, %v3573
    %v6808 = vmul.f32 %v313, %v3575
    %v6809 = vmul.f32 %v318, %v3577
    %v6810 = vmul.f32 %v323, %v3579
    %v6811 = vmul.f32 %v328, %v3581
    %v6812 = vmul.f32 %v333, %v3583
    %v6813 = vmul.f32 %v338, %v3585
    %v6814 = vmul.f32 %v343, %v3587
    %v6815 = vmul.f32 %v348, %v3589
    %v6816 = vmul.f32 %v353, %v3591
    %v6817 = vmul.f32 %v358, %v3593
    %v6818 = vmul.f32 %v363, %v3595
    %v6819 = vmul.f32 %v368, %v3597
    %v6820 = vmul.f32 %v373, %v3599
    %v6821 = vmul.f32 %v378, %v3601
    %v6822 = vsel %vm59, %v6790, 0.0
    %6823 = vadd.xlane.f32.xlu0 %v6822
    %v6824 = vpop.xlane.xlu0 %6823
    %v6825 = vsel %vm59, %v6791, 0.0
    %6826 = vadd.xlane.f32.xlu0 %v6825
    %v6827 = vpop.xlane.xlu0 %6826
    %v6828 = vsel %vm59, %v6792, 0.0
    %6829 = vadd.xlane.f32.xlu0 %v6828
    %v6830 = vpop.xlane.xlu0 %6829
    %v6831 = vsel %vm59, %v6793, 0.0
    %6832 = vadd.xlane.f32.xlu0 %v6831
    %v6833 = vpop.xlane.xlu0 %6832
    %v6834 = vsel %vm59, %v6794, 0.0
    %6835 = vadd.xlane.f32.xlu0 %v6834
    %v6836 = vpop.xlane.xlu0 %6835
    %v6837 = vsel %vm59, %v6795, 0.0
    %6838 = vadd.xlane.f32.xlu0 %v6837
    %v6839 = vpop.xlane.xlu0 %6838
    %v6840 = vsel %vm59, %v6796, 0.0
    %6841 = vadd.xlane.f32.xlu0 %v6840
    %v6842 = vpop.xlane.xlu0 %6841
    %v6843 = vsel %vm59, %v6797, 0.0
    %6844 = vadd.xlane.f32.xlu0 %v6843
    %v6845 = vpop.xlane.xlu0 %6844
    %v6846 = vsel %vm59, %v6798, 0.0
    %6847 = vadd.xlane.f32.xlu0 %v6846
    %v6848 = vpop.xlane.xlu0 %6847
    %v6849 = vsel %vm59, %v6799, 0.0
    %6850 = vadd.xlane.f32.xlu0 %v6849
    %v6851 = vpop.xlane.xlu0 %6850
    %v6852 = vsel %vm59, %v6800, 0.0
    %6853 = vadd.xlane.f32.xlu0 %v6852
    %v6854 = vpop.xlane.xlu0 %6853
    %v6855 = vsel %vm59, %v6801, 0.0
    %6856 = vadd.xlane.f32.xlu0 %v6855
    %v6857 = vpop.xlane.xlu0 %6856
    %v6858 = vsel %vm59, %v6802, 0.0
    %6859 = vadd.xlane.f32.xlu0 %v6858
    %v6860 = vpop.xlane.xlu0 %6859
    %v6861 = vsel %vm59, %v6803, 0.0
    %6862 = vadd.xlane.f32.xlu0 %v6861
    %v6863 = vpop.xlane.xlu0 %6862
    %v6864 = vsel %vm59, %v6804, 0.0
    %6865 = vadd.xlane.f32.xlu0 %v6864
    %v6866 = vpop.xlane.xlu0 %6865
    %v6867 = vsel %vm59, %v6805, 0.0
    %6868 = vadd.xlane.f32.xlu0 %v6867
    %v6869 = vpop.xlane.xlu0 %6868
    %v6870 = vsel %vm59, %v6806, 0.0
    %6871 = vadd.xlane.f32.xlu0 %v6870
    %v6872 = vpop.xlane.xlu0 %6871
    %v6873 = vsel %vm59, %v6807, 0.0
    %6874 = vadd.xlane.f32.xlu0 %v6873
    %v6875 = vpop.xlane.xlu0 %6874
    %v6876 = vsel %vm59, %v6808, 0.0
    %6877 = vadd.xlane.f32.xlu0 %v6876
    %v6878 = vpop.xlane.xlu0 %6877
    %v6879 = vsel %vm59, %v6809, 0.0
    %6880 = vadd.xlane.f32.xlu0 %v6879
    %v6881 = vpop.xlane.xlu0 %6880
    %v6882 = vsel %vm59, %v6810, 0.0
    %6883 = vadd.xlane.f32.xlu0 %v6882
    %v6884 = vpop.xlane.xlu0 %6883
    %v6885 = vsel %vm59, %v6811, 0.0
    %6886 = vadd.xlane.f32.xlu0 %v6885
    %v6887 = vpop.xlane.xlu0 %6886
    %v6888 = vsel %vm59, %v6812, 0.0
    %6889 = vadd.xlane.f32.xlu0 %v6888
    %v6890 = vpop.xlane.xlu0 %6889
    %v6891 = vsel %vm59, %v6813, 0.0
    %6892 = vadd.xlane.f32.xlu0 %v6891
    %v6893 = vpop.xlane.xlu0 %6892
    %v6894 = vsel %vm59, %v6814, 0.0
    %6895 = vadd.xlane.f32.xlu0 %v6894
    %v6896 = vpop.xlane.xlu0 %6895
    %v6897 = vsel %vm59, %v6815, 0.0
    %6898 = vadd.xlane.f32.xlu0 %v6897
    %v6899 = vpop.xlane.xlu0 %6898
    %v6900 = vsel %vm59, %v6816, 0.0
    %6901 = vadd.xlane.f32.xlu0 %v6900
    %v6902 = vpop.xlane.xlu0 %6901
    %v6903 = vsel %vm59, %v6817, 0.0
    %6904 = vadd.xlane.f32.xlu0 %v6903
    %v6905 = vpop.xlane.xlu0 %6904
    %v6906 = vsel %vm59, %v6818, 0.0
    %6907 = vadd.xlane.f32.xlu0 %v6906
    %v6908 = vpop.xlane.xlu0 %6907
    %v6909 = vsel %vm59, %v6819, 0.0
    %6910 = vadd.xlane.f32.xlu0 %v6909
    %v6911 = vpop.xlane.xlu0 %6910
    %v6912 = vsel %vm59, %v6820, 0.0
    %6913 = vadd.xlane.f32.xlu0 %v6912
    %v6914 = vpop.xlane.xlu0 %6913
    %v6915 = vsel %vm59, %v6821, 0.0
    %6916 = vadd.xlane.f32.xlu0 %v6915
    %v6917 = vpop.xlane.xlu0 %6916
    %v6918 = vadd.f32 %v6824, %v541
    %v6919 = vadd.f32 %v6827, %v541
    %v6920 = vadd.f32 %v6830, %v541
    %v6921 = vadd.f32 %v6833, %v541
    %v6922 = vadd.f32 %v6836, %v541
    %v6923 = vadd.f32 %v6839, %v541
    %v6924 = vadd.f32 %v6842, %v541
    %v6925 = vadd.f32 %v6845, %v541
    %v6926 = vadd.f32 %v6848, %v541
    %v6927 = vadd.f32 %v6851, %v541
    %v6928 = vadd.f32 %v6854, %v541
    %v6929 = vadd.f32 %v6857, %v541
    %v6930 = vadd.f32 %v6860, %v541
    %v6931 = vadd.f32 %v6863, %v541
    %v6932 = vadd.f32 %v6866, %v541
    %v6933 = vadd.f32 %v6869, %v541
    %v6934 = vadd.f32 %v6872, %v541
    %v6935 = vadd.f32 %v6875, %v541
    %v6936 = vadd.f32 %v6878, %v541
    %v6937 = vadd.f32 %v6881, %v541
    %v6938 = vadd.f32 %v6884, %v541
    %v6939 = vadd.f32 %v6887, %v541
    %v6940 = vadd.f32 %v6890, %v541
    %v6941 = vadd.f32 %v6893, %v541
    %v6942 = vadd.f32 %v6896, %v541
    %v6943 = vadd.f32 %v6899, %v541
    %v6944 = vadd.f32 %v6902, %v541
    %v6945 = vadd.f32 %v6905, %v541
    %v6946 = vadd.f32 %v6908, %v541
    %v6947 = vadd.f32 %v6911, %v541
    %v6948 = vadd.f32 %v6914, %v541
    %v6949 = vadd.f32 %v6917, %v541
    %v6982 = vlaneseq
    %v6983 = vshrl.u32 %v6982, 7
    %v6984 = vsub.s32 0, %v6983
    %v6985 = vrot.slane %v6918, %v6984
    %v6986 = vlaneseq
    %v6987 = vshrl.u32 %v6986, 7
    %v6988 = vsub.s32 1, %v6987
    %v6989 = vrot.slane %v6918, %v6988
    %v6990 = vlaneseq
    %v6991 = vshrl.u32 %v6990, 7
    %v6992 = vsub.s32 2, %v6991
    %v6993 = vrot.slane %v6918, %v6992
    %v6994 = vlaneseq
    %v6995 = vshrl.u32 %v6994, 7
    %v6996 = vsub.s32 3, %v6995
    %v6997 = vrot.slane %v6918, %v6996
    %v6998 = vlaneseq
    %v6999 = vshrl.u32 %v6998, 7
    %v7000 = vsub.s32 4, %v6999
    %v7001 = vrot.slane %v6918, %v7000
    %v7002 = vlaneseq
    %v7003 = vshrl.u32 %v7002, 7
    %v7004 = vsub.s32 5, %v7003
    %v7005 = vrot.slane %v6918, %v7004
    %v7006 = vlaneseq
    %v7007 = vshrl.u32 %v7006, 7
    %v7008 = vsub.s32 6, %v7007
    %v7009 = vrot.slane %v6918, %v7008
    %v7010 = vlaneseq
    %v7011 = vshrl.u32 %v7010, 7
    %v7012 = vsub.s32 7, %v7011
    %v7013 = vrot.slane %v6918, %v7012
    %v7014 = vlaneseq
    %v7015 = vshrl.u32 %v7014, 7
    %v7016 = vsub.s32 0, %v7015
    %v7017 = vrot.slane %v6919, %v7016
    %v7018 = vlaneseq
    %v7019 = vshrl.u32 %v7018, 7
    %v7020 = vsub.s32 1, %v7019
    %v7021 = vrot.slane %v6919, %v7020
    %v7022 = vlaneseq
    %v7023 = vshrl.u32 %v7022, 7
    %v7024 = vsub.s32 2, %v7023
    %v7025 = vrot.slane %v6919, %v7024
    %v7026 = vlaneseq
    %v7027 = vshrl.u32 %v7026, 7
    %v7028 = vsub.s32 3, %v7027
    %v7029 = vrot.slane %v6919, %v7028
    %v7030 = vlaneseq
    %v7031 = vshrl.u32 %v7030, 7
    %v7032 = vsub.s32 4, %v7031
    %v7033 = vrot.slane %v6919, %v7032
    %v7034 = vlaneseq
    %v7035 = vshrl.u32 %v7034, 7
    %v7036 = vsub.s32 5, %v7035
    %v7037 = vrot.slane %v6919, %v7036
    %v7038 = vlaneseq
    %v7039 = vshrl.u32 %v7038, 7
    %v7040 = vsub.s32 6, %v7039
    %v7041 = vrot.slane %v6919, %v7040
    %v7042 = vlaneseq
    %v7043 = vshrl.u32 %v7042, 7
    %v7044 = vsub.s32 7, %v7043
    %v7045 = vrot.slane %v6919, %v7044
    %v7046 = vlaneseq
    %v7047 = vshrl.u32 %v7046, 7
    %v7048 = vsub.s32 0, %v7047
    %v7049 = vrot.slane %v6920, %v7048
    %v7050 = vlaneseq
    %v7051 = vshrl.u32 %v7050, 7
    %v7052 = vsub.s32 1, %v7051
    %v7053 = vrot.slane %v6920, %v7052
    %v7054 = vlaneseq
    %v7055 = vshrl.u32 %v7054, 7
    %v7056 = vsub.s32 2, %v7055
    %v7057 = vrot.slane %v6920, %v7056
    %v7058 = vlaneseq
    %v7059 = vshrl.u32 %v7058, 7
    %v7060 = vsub.s32 3, %v7059
    %v7061 = vrot.slane %v6920, %v7060
    %v7062 = vlaneseq
    %v7063 = vshrl.u32 %v7062, 7
    %v7064 = vsub.s32 4, %v7063
    %v7065 = vrot.slane %v6920, %v7064
    %v7066 = vlaneseq
    %v7067 = vshrl.u32 %v7066, 7
    %v7068 = vsub.s32 5, %v7067
    %v7069 = vrot.slane %v6920, %v7068
    %v7070 = vlaneseq
    %v7071 = vshrl.u32 %v7070, 7
    %v7072 = vsub.s32 6, %v7071
    %v7073 = vrot.slane %v6920, %v7072
    %v7074 = vlaneseq
    %v7075 = vshrl.u32 %v7074, 7
    %v7076 = vsub.s32 7, %v7075
    %v7077 = vrot.slane %v6920, %v7076
    %v7078 = vlaneseq
    %v7079 = vshrl.u32 %v7078, 7
    %v7080 = vsub.s32 0, %v7079
    %v7081 = vrot.slane %v6921, %v7080
    %v7082 = vlaneseq
    %v7083 = vshrl.u32 %v7082, 7
    %v7084 = vsub.s32 1, %v7083
    %v7085 = vrot.slane %v6921, %v7084
    %v7086 = vlaneseq
    %v7087 = vshrl.u32 %v7086, 7
    %v7088 = vsub.s32 2, %v7087
    %v7089 = vrot.slane %v6921, %v7088
    %v7090 = vlaneseq
    %v7091 = vshrl.u32 %v7090, 7
    %v7092 = vsub.s32 3, %v7091
    %v7093 = vrot.slane %v6921, %v7092
    %v7094 = vlaneseq
    %v7095 = vshrl.u32 %v7094, 7
    %v7096 = vsub.s32 4, %v7095
    %v7097 = vrot.slane %v6921, %v7096
    %v7098 = vlaneseq
    %v7099 = vshrl.u32 %v7098, 7
    %v7100 = vsub.s32 5, %v7099
    %v7101 = vrot.slane %v6921, %v7100
    %v7102 = vlaneseq
    %v7103 = vshrl.u32 %v7102, 7
    %v7104 = vsub.s32 6, %v7103
    %v7105 = vrot.slane %v6921, %v7104
    %v7106 = vlaneseq
    %v7107 = vshrl.u32 %v7106, 7
    %v7108 = vsub.s32 7, %v7107
    %v7109 = vrot.slane %v6921, %v7108
    %v7110 = vlaneseq
    %v7111 = vshrl.u32 %v7110, 7
    %v7112 = vsub.s32 0, %v7111
    %v7113 = vrot.slane %v6922, %v7112
    %v7114 = vlaneseq
    %v7115 = vshrl.u32 %v7114, 7
    %v7116 = vsub.s32 1, %v7115
    %v7117 = vrot.slane %v6922, %v7116
    %v7118 = vlaneseq
    %v7119 = vshrl.u32 %v7118, 7
    %v7120 = vsub.s32 2, %v7119
    %v7121 = vrot.slane %v6922, %v7120
    %v7122 = vlaneseq
    %v7123 = vshrl.u32 %v7122, 7
    %v7124 = vsub.s32 3, %v7123
    %v7125 = vrot.slane %v6922, %v7124
    %v7126 = vlaneseq
    %v7127 = vshrl.u32 %v7126, 7
    %v7128 = vsub.s32 4, %v7127
    %v7129 = vrot.slane %v6922, %v7128
    %v7130 = vlaneseq
    %v7131 = vshrl.u32 %v7130, 7
    %v7132 = vsub.s32 5, %v7131
    %v7133 = vrot.slane %v6922, %v7132
    %v7134 = vlaneseq
    %v7135 = vshrl.u32 %v7134, 7
    %v7136 = vsub.s32 6, %v7135
    %v7137 = vrot.slane %v6922, %v7136
    %v7138 = vlaneseq
    %v7139 = vshrl.u32 %v7138, 7
    %v7140 = vsub.s32 7, %v7139
    %v7141 = vrot.slane %v6922, %v7140
    %v7142 = vlaneseq
    %v7143 = vshrl.u32 %v7142, 7
    %v7144 = vsub.s32 0, %v7143
    %v7145 = vrot.slane %v6923, %v7144
    %v7146 = vlaneseq
    %v7147 = vshrl.u32 %v7146, 7
    %v7148 = vsub.s32 1, %v7147
    %v7149 = vrot.slane %v6923, %v7148
    %v7150 = vlaneseq
    %v7151 = vshrl.u32 %v7150, 7
    %v7152 = vsub.s32 2, %v7151
    %v7153 = vrot.slane %v6923, %v7152
    %v7154 = vlaneseq
    %v7155 = vshrl.u32 %v7154, 7
    %v7156 = vsub.s32 3, %v7155
    %v7157 = vrot.slane %v6923, %v7156
    %v7158 = vlaneseq
    %v7159 = vshrl.u32 %v7158, 7
    %v7160 = vsub.s32 4, %v7159
    %v7161 = vrot.slane %v6923, %v7160
    %v7162 = vlaneseq
    %v7163 = vshrl.u32 %v7162, 7
    %v7164 = vsub.s32 5, %v7163
    %v7165 = vrot.slane %v6923, %v7164
    %v7166 = vlaneseq
    %v7167 = vshrl.u32 %v7166, 7
    %v7168 = vsub.s32 6, %v7167
    %v7169 = vrot.slane %v6923, %v7168
    %v7170 = vlaneseq
    %v7171 = vshrl.u32 %v7170, 7
    %v7172 = vsub.s32 7, %v7171
    %v7173 = vrot.slane %v6923, %v7172
    %v7174 = vlaneseq
    %v7175 = vshrl.u32 %v7174, 7
    %v7176 = vsub.s32 0, %v7175
    %v7177 = vrot.slane %v6924, %v7176
    %v7178 = vlaneseq
    %v7179 = vshrl.u32 %v7178, 7
    %v7180 = vsub.s32 1, %v7179
    %v7181 = vrot.slane %v6924, %v7180
    %v7182 = vlaneseq
    %v7183 = vshrl.u32 %v7182, 7
    %v7184 = vsub.s32 2, %v7183
    %v7185 = vrot.slane %v6924, %v7184
    %v7186 = vlaneseq
    %v7187 = vshrl.u32 %v7186, 7
    %v7188 = vsub.s32 3, %v7187
    %v7189 = vrot.slane %v6924, %v7188
    %v7190 = vlaneseq
    %v7191 = vshrl.u32 %v7190, 7
    %v7192 = vsub.s32 4, %v7191
    %v7193 = vrot.slane %v6924, %v7192
    %v7194 = vlaneseq
    %v7195 = vshrl.u32 %v7194, 7
    %v7196 = vsub.s32 5, %v7195
    %v7197 = vrot.slane %v6924, %v7196
    %v7198 = vlaneseq
    %v7199 = vshrl.u32 %v7198, 7
    %v7200 = vsub.s32 6, %v7199
    %v7201 = vrot.slane %v6924, %v7200
    %v7202 = vlaneseq
    %v7203 = vshrl.u32 %v7202, 7
    %v7204 = vsub.s32 7, %v7203
    %v7205 = vrot.slane %v6924, %v7204
    %v7206 = vlaneseq
    %v7207 = vshrl.u32 %v7206, 7
    %v7208 = vsub.s32 0, %v7207
    %v7209 = vrot.slane %v6925, %v7208
    %v7210 = vlaneseq
    %v7211 = vshrl.u32 %v7210, 7
    %v7212 = vsub.s32 1, %v7211
    %v7213 = vrot.slane %v6925, %v7212
    %v7214 = vlaneseq
    %v7215 = vshrl.u32 %v7214, 7
    %v7216 = vsub.s32 2, %v7215
    %v7217 = vrot.slane %v6925, %v7216
    %v7218 = vlaneseq
    %v7219 = vshrl.u32 %v7218, 7
    %v7220 = vsub.s32 3, %v7219
    %v7221 = vrot.slane %v6925, %v7220
    %v7222 = vlaneseq
    %v7223 = vshrl.u32 %v7222, 7
    %v7224 = vsub.s32 4, %v7223
    %v7225 = vrot.slane %v6925, %v7224
    %v7226 = vlaneseq
    %v7227 = vshrl.u32 %v7226, 7
    %v7228 = vsub.s32 5, %v7227
    %v7229 = vrot.slane %v6925, %v7228
    %v7230 = vlaneseq
    %v7231 = vshrl.u32 %v7230, 7
    %v7232 = vsub.s32 6, %v7231
    %v7233 = vrot.slane %v6925, %v7232
    %v7234 = vlaneseq
    %v7235 = vshrl.u32 %v7234, 7
    %v7236 = vsub.s32 7, %v7235
    %v7237 = vrot.slane %v6925, %v7236
    %v7238 = vlaneseq
    %v7239 = vshrl.u32 %v7238, 7
    %v7240 = vsub.s32 0, %v7239
    %v7241 = vrot.slane %v6926, %v7240
    %v7242 = vlaneseq
    %v7243 = vshrl.u32 %v7242, 7
    %v7244 = vsub.s32 1, %v7243
    %v7245 = vrot.slane %v6926, %v7244
    %v7246 = vlaneseq
    %v7247 = vshrl.u32 %v7246, 7
    %v7248 = vsub.s32 2, %v7247
    %v7249 = vrot.slane %v6926, %v7248
    %v7250 = vlaneseq
    %v7251 = vshrl.u32 %v7250, 7
    %v7252 = vsub.s32 3, %v7251
    %v7253 = vrot.slane %v6926, %v7252
    %v7254 = vlaneseq
    %v7255 = vshrl.u32 %v7254, 7
    %v7256 = vsub.s32 4, %v7255
    %v7257 = vrot.slane %v6926, %v7256
    %v7258 = vlaneseq
    %v7259 = vshrl.u32 %v7258, 7
    %v7260 = vsub.s32 5, %v7259
    %v7261 = vrot.slane %v6926, %v7260
    %v7262 = vlaneseq
    %v7263 = vshrl.u32 %v7262, 7
    %v7264 = vsub.s32 6, %v7263
    %v7265 = vrot.slane %v6926, %v7264
    %v7266 = vlaneseq
    %v7267 = vshrl.u32 %v7266, 7
    %v7268 = vsub.s32 7, %v7267
    %v7269 = vrot.slane %v6926, %v7268
    %v7270 = vlaneseq
    %v7271 = vshrl.u32 %v7270, 7
    %v7272 = vsub.s32 0, %v7271
    %v7273 = vrot.slane %v6927, %v7272
    %v7274 = vlaneseq
    %v7275 = vshrl.u32 %v7274, 7
    %v7276 = vsub.s32 1, %v7275
    %v7277 = vrot.slane %v6927, %v7276
    %v7278 = vlaneseq
    %v7279 = vshrl.u32 %v7278, 7
    %v7280 = vsub.s32 2, %v7279
    %v7281 = vrot.slane %v6927, %v7280
    %v7282 = vlaneseq
    %v7283 = vshrl.u32 %v7282, 7
    %v7284 = vsub.s32 3, %v7283
    %v7285 = vrot.slane %v6927, %v7284
    %v7286 = vlaneseq
    %v7287 = vshrl.u32 %v7286, 7
    %v7288 = vsub.s32 4, %v7287
    %v7289 = vrot.slane %v6927, %v7288
    %v7290 = vlaneseq
    %v7291 = vshrl.u32 %v7290, 7
    %v7292 = vsub.s32 5, %v7291
    %v7293 = vrot.slane %v6927, %v7292
    %v7294 = vlaneseq
    %v7295 = vshrl.u32 %v7294, 7
    %v7296 = vsub.s32 6, %v7295
    %v7297 = vrot.slane %v6927, %v7296
    %v7298 = vlaneseq
    %v7299 = vshrl.u32 %v7298, 7
    %v7300 = vsub.s32 7, %v7299
    %v7301 = vrot.slane %v6927, %v7300
    %v7302 = vlaneseq
    %v7303 = vshrl.u32 %v7302, 7
    %v7304 = vsub.s32 0, %v7303
    %v7305 = vrot.slane %v6928, %v7304
    %v7306 = vlaneseq
    %v7307 = vshrl.u32 %v7306, 7
    %v7308 = vsub.s32 1, %v7307
    %v7309 = vrot.slane %v6928, %v7308
    %v7310 = vlaneseq
    %v7311 = vshrl.u32 %v7310, 7
    %v7312 = vsub.s32 2, %v7311
    %v7313 = vrot.slane %v6928, %v7312
    %v7314 = vlaneseq
    %v7315 = vshrl.u32 %v7314, 7
    %v7316 = vsub.s32 3, %v7315
    %v7317 = vrot.slane %v6928, %v7316
    %v7318 = vlaneseq
    %v7319 = vshrl.u32 %v7318, 7
    %v7320 = vsub.s32 4, %v7319
    %v7321 = vrot.slane %v6928, %v7320
    %v7322 = vlaneseq
    %v7323 = vshrl.u32 %v7322, 7
    %v7324 = vsub.s32 5, %v7323
    %v7325 = vrot.slane %v6928, %v7324
    %v7326 = vlaneseq
    %v7327 = vshrl.u32 %v7326, 7
    %v7328 = vsub.s32 6, %v7327
    %v7329 = vrot.slane %v6928, %v7328
    %v7330 = vlaneseq
    %v7331 = vshrl.u32 %v7330, 7
    %v7332 = vsub.s32 7, %v7331
    %v7333 = vrot.slane %v6928, %v7332
    %v7334 = vlaneseq
    %v7335 = vshrl.u32 %v7334, 7
    %v7336 = vsub.s32 0, %v7335
    %v7337 = vrot.slane %v6929, %v7336
    %v7338 = vlaneseq
    %v7339 = vshrl.u32 %v7338, 7
    %v7340 = vsub.s32 1, %v7339
    %v7341 = vrot.slane %v6929, %v7340
    %v7342 = vlaneseq
    %v7343 = vshrl.u32 %v7342, 7
    %v7344 = vsub.s32 2, %v7343
    %v7345 = vrot.slane %v6929, %v7344
    %v7346 = vlaneseq
    %v7347 = vshrl.u32 %v7346, 7
    %v7348 = vsub.s32 3, %v7347
    %v7349 = vrot.slane %v6929, %v7348
    %v7350 = vlaneseq
    %v7351 = vshrl.u32 %v7350, 7
    %v7352 = vsub.s32 4, %v7351
    %v7353 = vrot.slane %v6929, %v7352
    %v7354 = vlaneseq
    %v7355 = vshrl.u32 %v7354, 7
    %v7356 = vsub.s32 5, %v7355
    %v7357 = vrot.slane %v6929, %v7356
    %v7358 = vlaneseq
    %v7359 = vshrl.u32 %v7358, 7
    %v7360 = vsub.s32 6, %v7359
    %v7361 = vrot.slane %v6929, %v7360
    %v7362 = vlaneseq
    %v7363 = vshrl.u32 %v7362, 7
    %v7364 = vsub.s32 7, %v7363
    %v7365 = vrot.slane %v6929, %v7364
    %v7366 = vlaneseq
    %v7367 = vshrl.u32 %v7366, 7
    %v7368 = vsub.s32 0, %v7367
    %v7369 = vrot.slane %v6930, %v7368
    %v7370 = vlaneseq
    %v7371 = vshrl.u32 %v7370, 7
    %v7372 = vsub.s32 1, %v7371
    %v7373 = vrot.slane %v6930, %v7372
    %v7374 = vlaneseq
    %v7375 = vshrl.u32 %v7374, 7
    %v7376 = vsub.s32 2, %v7375
    %v7377 = vrot.slane %v6930, %v7376
    %v7378 = vlaneseq
    %v7379 = vshrl.u32 %v7378, 7
    %v7380 = vsub.s32 3, %v7379
    %v7381 = vrot.slane %v6930, %v7380
    %v7382 = vlaneseq
    %v7383 = vshrl.u32 %v7382, 7
    %v7384 = vsub.s32 4, %v7383
    %v7385 = vrot.slane %v6930, %v7384
    %v7386 = vlaneseq
    %v7387 = vshrl.u32 %v7386, 7
    %v7388 = vsub.s32 5, %v7387
    %v7389 = vrot.slane %v6930, %v7388
    %v7390 = vlaneseq
    %v7391 = vshrl.u32 %v7390, 7
    %v7392 = vsub.s32 6, %v7391
    %v7393 = vrot.slane %v6930, %v7392
    %v7394 = vlaneseq
    %v7395 = vshrl.u32 %v7394, 7
    %v7396 = vsub.s32 7, %v7395
    %v7397 = vrot.slane %v6930, %v7396
    %v7398 = vlaneseq
    %v7399 = vshrl.u32 %v7398, 7
    %v7400 = vsub.s32 0, %v7399
    %v7401 = vrot.slane %v6931, %v7400
    %v7402 = vlaneseq
    %v7403 = vshrl.u32 %v7402, 7
    %v7404 = vsub.s32 1, %v7403
    %v7405 = vrot.slane %v6931, %v7404
    %v7406 = vlaneseq
    %v7407 = vshrl.u32 %v7406, 7
    %v7408 = vsub.s32 2, %v7407
    %v7409 = vrot.slane %v6931, %v7408
    %v7410 = vlaneseq
    %v7411 = vshrl.u32 %v7410, 7
    %v7412 = vsub.s32 3, %v7411
    %v7413 = vrot.slane %v6931, %v7412
    %v7414 = vlaneseq
    %v7415 = vshrl.u32 %v7414, 7
    %v7416 = vsub.s32 4, %v7415
    %v7417 = vrot.slane %v6931, %v7416
    %v7418 = vlaneseq
    %v7419 = vshrl.u32 %v7418, 7
    %v7420 = vsub.s32 5, %v7419
    %v7421 = vrot.slane %v6931, %v7420
    %v7422 = vlaneseq
    %v7423 = vshrl.u32 %v7422, 7
    %v7424 = vsub.s32 6, %v7423
    %v7425 = vrot.slane %v6931, %v7424
    %v7426 = vlaneseq
    %v7427 = vshrl.u32 %v7426, 7
    %v7428 = vsub.s32 7, %v7427
    %v7429 = vrot.slane %v6931, %v7428
    %v7430 = vlaneseq
    %v7431 = vshrl.u32 %v7430, 7
    %v7432 = vsub.s32 0, %v7431
    %v7433 = vrot.slane %v6932, %v7432
    %v7434 = vlaneseq
    %v7435 = vshrl.u32 %v7434, 7
    %v7436 = vsub.s32 1, %v7435
    %v7437 = vrot.slane %v6932, %v7436
    %v7438 = vlaneseq
    %v7439 = vshrl.u32 %v7438, 7
    %v7440 = vsub.s32 2, %v7439
    %v7441 = vrot.slane %v6932, %v7440
    %v7442 = vlaneseq
    %v7443 = vshrl.u32 %v7442, 7
    %v7444 = vsub.s32 3, %v7443
    %v7445 = vrot.slane %v6932, %v7444
    %v7446 = vlaneseq
    %v7447 = vshrl.u32 %v7446, 7
    %v7448 = vsub.s32 4, %v7447
    %v7449 = vrot.slane %v6932, %v7448
    %v7450 = vlaneseq
    %v7451 = vshrl.u32 %v7450, 7
    %v7452 = vsub.s32 5, %v7451
    %v7453 = vrot.slane %v6932, %v7452
    %v7454 = vlaneseq
    %v7455 = vshrl.u32 %v7454, 7
    %v7456 = vsub.s32 6, %v7455
    %v7457 = vrot.slane %v6932, %v7456
    %v7458 = vlaneseq
    %v7459 = vshrl.u32 %v7458, 7
    %v7460 = vsub.s32 7, %v7459
    %v7461 = vrot.slane %v6932, %v7460
    %v7462 = vlaneseq
    %v7463 = vshrl.u32 %v7462, 7
    %v7464 = vsub.s32 0, %v7463
    %v7465 = vrot.slane %v6933, %v7464
    %v7466 = vlaneseq
    %v7467 = vshrl.u32 %v7466, 7
    %v7468 = vsub.s32 1, %v7467
    %v7469 = vrot.slane %v6933, %v7468
    %v7470 = vlaneseq
    %v7471 = vshrl.u32 %v7470, 7
    %v7472 = vsub.s32 2, %v7471
    %v7473 = vrot.slane %v6933, %v7472
    %v7474 = vlaneseq
    %v7475 = vshrl.u32 %v7474, 7
    %v7476 = vsub.s32 3, %v7475
    %v7477 = vrot.slane %v6933, %v7476
    %v7478 = vlaneseq
    %v7479 = vshrl.u32 %v7478, 7
    %v7480 = vsub.s32 4, %v7479
    %v7481 = vrot.slane %v6933, %v7480
    %v7482 = vlaneseq
    %v7483 = vshrl.u32 %v7482, 7
    %v7484 = vsub.s32 5, %v7483
    %v7485 = vrot.slane %v6933, %v7484
    %v7486 = vlaneseq
    %v7487 = vshrl.u32 %v7486, 7
    %v7488 = vsub.s32 6, %v7487
    %v7489 = vrot.slane %v6933, %v7488
    %v7490 = vlaneseq
    %v7491 = vshrl.u32 %v7490, 7
    %v7492 = vsub.s32 7, %v7491
    %v7493 = vrot.slane %v6933, %v7492
    %v7494 = vlaneseq
    %v7495 = vshrl.u32 %v7494, 7
    %v7496 = vsub.s32 0, %v7495
    %v7497 = vrot.slane %v6934, %v7496
    %v7498 = vlaneseq
    %v7499 = vshrl.u32 %v7498, 7
    %v7500 = vsub.s32 1, %v7499
    %v7501 = vrot.slane %v6934, %v7500
    %v7502 = vlaneseq
    %v7503 = vshrl.u32 %v7502, 7
    %v7504 = vsub.s32 2, %v7503
    %v7505 = vrot.slane %v6934, %v7504
    %v7506 = vlaneseq
    %v7507 = vshrl.u32 %v7506, 7
    %v7508 = vsub.s32 3, %v7507
    %v7509 = vrot.slane %v6934, %v7508
    %v7510 = vlaneseq
    %v7511 = vshrl.u32 %v7510, 7
    %v7512 = vsub.s32 4, %v7511
    %v7513 = vrot.slane %v6934, %v7512
    %v7514 = vlaneseq
    %v7515 = vshrl.u32 %v7514, 7
    %v7516 = vsub.s32 5, %v7515
    %v7517 = vrot.slane %v6934, %v7516
    %v7518 = vlaneseq
    %v7519 = vshrl.u32 %v7518, 7
    %v7520 = vsub.s32 6, %v7519
    %v7521 = vrot.slane %v6934, %v7520
    %v7522 = vlaneseq
    %v7523 = vshrl.u32 %v7522, 7
    %v7524 = vsub.s32 7, %v7523
    %v7525 = vrot.slane %v6934, %v7524
    %v7526 = vlaneseq
    %v7527 = vshrl.u32 %v7526, 7
    %v7528 = vsub.s32 0, %v7527
    %v7529 = vrot.slane %v6935, %v7528
    %v7530 = vlaneseq
    %v7531 = vshrl.u32 %v7530, 7
    %v7532 = vsub.s32 1, %v7531
    %v7533 = vrot.slane %v6935, %v7532
    %v7534 = vlaneseq
    %v7535 = vshrl.u32 %v7534, 7
    %v7536 = vsub.s32 2, %v7535
    %v7537 = vrot.slane %v6935, %v7536
    %v7538 = vlaneseq
    %v7539 = vshrl.u32 %v7538, 7
    %v7540 = vsub.s32 3, %v7539
    %v7541 = vrot.slane %v6935, %v7540
    %v7542 = vlaneseq
    %v7543 = vshrl.u32 %v7542, 7
    %v7544 = vsub.s32 4, %v7543
    %v7545 = vrot.slane %v6935, %v7544
    %v7546 = vlaneseq
    %v7547 = vshrl.u32 %v7546, 7
    %v7548 = vsub.s32 5, %v7547
    %v7549 = vrot.slane %v6935, %v7548
    %v7550 = vlaneseq
    %v7551 = vshrl.u32 %v7550, 7
    %v7552 = vsub.s32 6, %v7551
    %v7553 = vrot.slane %v6935, %v7552
    %v7554 = vlaneseq
    %v7555 = vshrl.u32 %v7554, 7
    %v7556 = vsub.s32 7, %v7555
    %v7557 = vrot.slane %v6935, %v7556
    %v7558 = vlaneseq
    %v7559 = vshrl.u32 %v7558, 7
    %v7560 = vsub.s32 0, %v7559
    %v7561 = vrot.slane %v6936, %v7560
    %v7562 = vlaneseq
    %v7563 = vshrl.u32 %v7562, 7
    %v7564 = vsub.s32 1, %v7563
    %v7565 = vrot.slane %v6936, %v7564
    %v7566 = vlaneseq
    %v7567 = vshrl.u32 %v7566, 7
    %v7568 = vsub.s32 2, %v7567
    %v7569 = vrot.slane %v6936, %v7568
    %v7570 = vlaneseq
    %v7571 = vshrl.u32 %v7570, 7
    %v7572 = vsub.s32 3, %v7571
    %v7573 = vrot.slane %v6936, %v7572
    %v7574 = vlaneseq
    %v7575 = vshrl.u32 %v7574, 7
    %v7576 = vsub.s32 4, %v7575
    %v7577 = vrot.slane %v6936, %v7576
    %v7578 = vlaneseq
    %v7579 = vshrl.u32 %v7578, 7
    %v7580 = vsub.s32 5, %v7579
    %v7581 = vrot.slane %v6936, %v7580
    %v7582 = vlaneseq
    %v7583 = vshrl.u32 %v7582, 7
    %v7584 = vsub.s32 6, %v7583
    %v7585 = vrot.slane %v6936, %v7584
    %v7586 = vlaneseq
    %v7587 = vshrl.u32 %v7586, 7
    %v7588 = vsub.s32 7, %v7587
    %v7589 = vrot.slane %v6936, %v7588
    %v7590 = vlaneseq
    %v7591 = vshrl.u32 %v7590, 7
    %v7592 = vsub.s32 0, %v7591
    %v7593 = vrot.slane %v6937, %v7592
    %v7594 = vlaneseq
    %v7595 = vshrl.u32 %v7594, 7
    %v7596 = vsub.s32 1, %v7595
    %v7597 = vrot.slane %v6937, %v7596
    %v7598 = vlaneseq
    %v7599 = vshrl.u32 %v7598, 7
    %v7600 = vsub.s32 2, %v7599
    %v7601 = vrot.slane %v6937, %v7600
    %v7602 = vlaneseq
    %v7603 = vshrl.u32 %v7602, 7
    %v7604 = vsub.s32 3, %v7603
    %v7605 = vrot.slane %v6937, %v7604
    %v7606 = vlaneseq
    %v7607 = vshrl.u32 %v7606, 7
    %v7608 = vsub.s32 4, %v7607
    %v7609 = vrot.slane %v6937, %v7608
    %v7610 = vlaneseq
    %v7611 = vshrl.u32 %v7610, 7
    %v7612 = vsub.s32 5, %v7611
    %v7613 = vrot.slane %v6937, %v7612
    %v7614 = vlaneseq
    %v7615 = vshrl.u32 %v7614, 7
    %v7616 = vsub.s32 6, %v7615
    %v7617 = vrot.slane %v6937, %v7616
    %v7618 = vlaneseq
    %v7619 = vshrl.u32 %v7618, 7
    %v7620 = vsub.s32 7, %v7619
    %v7621 = vrot.slane %v6937, %v7620
    %v7622 = vlaneseq
    %v7623 = vshrl.u32 %v7622, 7
    %v7624 = vsub.s32 0, %v7623
    %v7625 = vrot.slane %v6938, %v7624
    %v7626 = vlaneseq
    %v7627 = vshrl.u32 %v7626, 7
    %v7628 = vsub.s32 1, %v7627
    %v7629 = vrot.slane %v6938, %v7628
    %v7630 = vlaneseq
    %v7631 = vshrl.u32 %v7630, 7
    %v7632 = vsub.s32 2, %v7631
    %v7633 = vrot.slane %v6938, %v7632
    %v7634 = vlaneseq
    %v7635 = vshrl.u32 %v7634, 7
    %v7636 = vsub.s32 3, %v7635
    %v7637 = vrot.slane %v6938, %v7636
    %v7638 = vlaneseq
    %v7639 = vshrl.u32 %v7638, 7
    %v7640 = vsub.s32 4, %v7639
    %v7641 = vrot.slane %v6938, %v7640
    %v7642 = vlaneseq
    %v7643 = vshrl.u32 %v7642, 7
    %v7644 = vsub.s32 5, %v7643
    %v7645 = vrot.slane %v6938, %v7644
    %v7646 = vlaneseq
    %v7647 = vshrl.u32 %v7646, 7
    %v7648 = vsub.s32 6, %v7647
    %v7649 = vrot.slane %v6938, %v7648
    %v7650 = vlaneseq
    %v7651 = vshrl.u32 %v7650, 7
    %v7652 = vsub.s32 7, %v7651
    %v7653 = vrot.slane %v6938, %v7652
    %v7654 = vlaneseq
    %v7655 = vshrl.u32 %v7654, 7
    %v7656 = vsub.s32 0, %v7655
    %v7657 = vrot.slane %v6939, %v7656
    %v7658 = vlaneseq
    %v7659 = vshrl.u32 %v7658, 7
    %v7660 = vsub.s32 1, %v7659
    %v7661 = vrot.slane %v6939, %v7660
    %v7662 = vlaneseq
    %v7663 = vshrl.u32 %v7662, 7
    %v7664 = vsub.s32 2, %v7663
    %v7665 = vrot.slane %v6939, %v7664
    %v7666 = vlaneseq
    %v7667 = vshrl.u32 %v7666, 7
    %v7668 = vsub.s32 3, %v7667
    %v7669 = vrot.slane %v6939, %v7668
    %v7670 = vlaneseq
    %v7671 = vshrl.u32 %v7670, 7
    %v7672 = vsub.s32 4, %v7671
    %v7673 = vrot.slane %v6939, %v7672
    %v7674 = vlaneseq
    %v7675 = vshrl.u32 %v7674, 7
    %v7676 = vsub.s32 5, %v7675
    %v7677 = vrot.slane %v6939, %v7676
    %v7678 = vlaneseq
    %v7679 = vshrl.u32 %v7678, 7
    %v7680 = vsub.s32 6, %v7679
    %v7681 = vrot.slane %v6939, %v7680
    %v7682 = vlaneseq
    %v7683 = vshrl.u32 %v7682, 7
    %v7684 = vsub.s32 7, %v7683
    %v7685 = vrot.slane %v6939, %v7684
    %v7686 = vlaneseq
    %v7687 = vshrl.u32 %v7686, 7
    %v7688 = vsub.s32 0, %v7687
    %v7689 = vrot.slane %v6940, %v7688
    %v7690 = vlaneseq
    %v7691 = vshrl.u32 %v7690, 7
    %v7692 = vsub.s32 1, %v7691
    %v7693 = vrot.slane %v6940, %v7692
    %v7694 = vlaneseq
    %v7695 = vshrl.u32 %v7694, 7
    %v7696 = vsub.s32 2, %v7695
    %v7697 = vrot.slane %v6940, %v7696
    %v7698 = vlaneseq
    %v7699 = vshrl.u32 %v7698, 7
    %v7700 = vsub.s32 3, %v7699
    %v7701 = vrot.slane %v6940, %v7700
    %v7702 = vlaneseq
    %v7703 = vshrl.u32 %v7702, 7
    %v7704 = vsub.s32 4, %v7703
    %v7705 = vrot.slane %v6940, %v7704
    %v7706 = vlaneseq
    %v7707 = vshrl.u32 %v7706, 7
    %v7708 = vsub.s32 5, %v7707
    %v7709 = vrot.slane %v6940, %v7708
    %v7710 = vlaneseq
    %v7711 = vshrl.u32 %v7710, 7
    %v7712 = vsub.s32 6, %v7711
    %v7713 = vrot.slane %v6940, %v7712
    %v7714 = vlaneseq
    %v7715 = vshrl.u32 %v7714, 7
    %v7716 = vsub.s32 7, %v7715
    %v7717 = vrot.slane %v6940, %v7716
    %v7718 = vlaneseq
    %v7719 = vshrl.u32 %v7718, 7
    %v7720 = vsub.s32 0, %v7719
    %v7721 = vrot.slane %v6941, %v7720
    %v7722 = vlaneseq
    %v7723 = vshrl.u32 %v7722, 7
    %v7724 = vsub.s32 1, %v7723
    %v7725 = vrot.slane %v6941, %v7724
    %v7726 = vlaneseq
    %v7727 = vshrl.u32 %v7726, 7
    %v7728 = vsub.s32 2, %v7727
    %v7729 = vrot.slane %v6941, %v7728
    %v7730 = vlaneseq
    %v7731 = vshrl.u32 %v7730, 7
    %v7732 = vsub.s32 3, %v7731
    %v7733 = vrot.slane %v6941, %v7732
    %v7734 = vlaneseq
    %v7735 = vshrl.u32 %v7734, 7
    %v7736 = vsub.s32 4, %v7735
    %v7737 = vrot.slane %v6941, %v7736
    %v7738 = vlaneseq
    %v7739 = vshrl.u32 %v7738, 7
    %v7740 = vsub.s32 5, %v7739
    %v7741 = vrot.slane %v6941, %v7740
    %v7742 = vlaneseq
    %v7743 = vshrl.u32 %v7742, 7
    %v7744 = vsub.s32 6, %v7743
    %v7745 = vrot.slane %v6941, %v7744
    %v7746 = vlaneseq
    %v7747 = vshrl.u32 %v7746, 7
    %v7748 = vsub.s32 7, %v7747
    %v7749 = vrot.slane %v6941, %v7748
    %v7750 = vlaneseq
    %v7751 = vshrl.u32 %v7750, 7
    %v7752 = vsub.s32 0, %v7751
    %v7753 = vrot.slane %v6942, %v7752
    %v7754 = vlaneseq
    %v7755 = vshrl.u32 %v7754, 7
    %v7756 = vsub.s32 1, %v7755
    %v7757 = vrot.slane %v6942, %v7756
    %v7758 = vlaneseq
    %v7759 = vshrl.u32 %v7758, 7
    %v7760 = vsub.s32 2, %v7759
    %v7761 = vrot.slane %v6942, %v7760
    %v7762 = vlaneseq
    %v7763 = vshrl.u32 %v7762, 7
    %v7764 = vsub.s32 3, %v7763
    %v7765 = vrot.slane %v6942, %v7764
    %v7766 = vlaneseq
    %v7767 = vshrl.u32 %v7766, 7
    %v7768 = vsub.s32 4, %v7767
    %v7769 = vrot.slane %v6942, %v7768
    %v7770 = vlaneseq
    %v7771 = vshrl.u32 %v7770, 7
    %v7772 = vsub.s32 5, %v7771
    %v7773 = vrot.slane %v6942, %v7772
    %v7774 = vlaneseq
    %v7775 = vshrl.u32 %v7774, 7
    %v7776 = vsub.s32 6, %v7775
    %v7777 = vrot.slane %v6942, %v7776
    %v7778 = vlaneseq
    %v7779 = vshrl.u32 %v7778, 7
    %v7780 = vsub.s32 7, %v7779
    %v7781 = vrot.slane %v6942, %v7780
    %v7782 = vlaneseq
    %v7783 = vshrl.u32 %v7782, 7
    %v7784 = vsub.s32 0, %v7783
    %v7785 = vrot.slane %v6943, %v7784
    %v7786 = vlaneseq
    %v7787 = vshrl.u32 %v7786, 7
    %v7788 = vsub.s32 1, %v7787
    %v7789 = vrot.slane %v6943, %v7788
    %v7790 = vlaneseq
    %v7791 = vshrl.u32 %v7790, 7
    %v7792 = vsub.s32 2, %v7791
    %v7793 = vrot.slane %v6943, %v7792
    %v7794 = vlaneseq
    %v7795 = vshrl.u32 %v7794, 7
    %v7796 = vsub.s32 3, %v7795
    %v7797 = vrot.slane %v6943, %v7796
    %v7798 = vlaneseq
    %v7799 = vshrl.u32 %v7798, 7
    %v7800 = vsub.s32 4, %v7799
    %v7801 = vrot.slane %v6943, %v7800
    %v7802 = vlaneseq
    %v7803 = vshrl.u32 %v7802, 7
    %v7804 = vsub.s32 5, %v7803
    %v7805 = vrot.slane %v6943, %v7804
    %v7806 = vlaneseq
    %v7807 = vshrl.u32 %v7806, 7
    %v7808 = vsub.s32 6, %v7807
    %v7809 = vrot.slane %v6943, %v7808
    %v7810 = vlaneseq
    %v7811 = vshrl.u32 %v7810, 7
    %v7812 = vsub.s32 7, %v7811
    %v7813 = vrot.slane %v6943, %v7812
    %v7814 = vlaneseq
    %v7815 = vshrl.u32 %v7814, 7
    %v7816 = vsub.s32 0, %v7815
    %v7817 = vrot.slane %v6944, %v7816
    %v7818 = vlaneseq
    %v7819 = vshrl.u32 %v7818, 7
    %v7820 = vsub.s32 1, %v7819
    %v7821 = vrot.slane %v6944, %v7820
    %v7822 = vlaneseq
    %v7823 = vshrl.u32 %v7822, 7
    %v7824 = vsub.s32 2, %v7823
    %v7825 = vrot.slane %v6944, %v7824
    %v7826 = vlaneseq
    %v7827 = vshrl.u32 %v7826, 7
    %v7828 = vsub.s32 3, %v7827
    %v7829 = vrot.slane %v6944, %v7828
    %v7830 = vlaneseq
    %v7831 = vshrl.u32 %v7830, 7
    %v7832 = vsub.s32 4, %v7831
    %v7833 = vrot.slane %v6944, %v7832
    %v7834 = vlaneseq
    %v7835 = vshrl.u32 %v7834, 7
    %v7836 = vsub.s32 5, %v7835
    %v7837 = vrot.slane %v6944, %v7836
    %v7838 = vlaneseq
    %v7839 = vshrl.u32 %v7838, 7
    %v7840 = vsub.s32 6, %v7839
    %v7841 = vrot.slane %v6944, %v7840
    %v7842 = vlaneseq
    %v7843 = vshrl.u32 %v7842, 7
    %v7844 = vsub.s32 7, %v7843
    %v7845 = vrot.slane %v6944, %v7844
    %v7846 = vlaneseq
    %v7847 = vshrl.u32 %v7846, 7
    %v7848 = vsub.s32 0, %v7847
    %v7849 = vrot.slane %v6945, %v7848
    %v7850 = vlaneseq
    %v7851 = vshrl.u32 %v7850, 7
    %v7852 = vsub.s32 1, %v7851
    %v7853 = vrot.slane %v6945, %v7852
    %v7854 = vlaneseq
    %v7855 = vshrl.u32 %v7854, 7
    %v7856 = vsub.s32 2, %v7855
    %v7857 = vrot.slane %v6945, %v7856
    %v7858 = vlaneseq
    %v7859 = vshrl.u32 %v7858, 7
    %v7860 = vsub.s32 3, %v7859
    %v7861 = vrot.slane %v6945, %v7860
    %v7862 = vlaneseq
    %v7863 = vshrl.u32 %v7862, 7
    %v7864 = vsub.s32 4, %v7863
    %v7865 = vrot.slane %v6945, %v7864
    %v7866 = vlaneseq
    %v7867 = vshrl.u32 %v7866, 7
    %v7868 = vsub.s32 5, %v7867
    %v7869 = vrot.slane %v6945, %v7868
    %v7870 = vlaneseq
    %v7871 = vshrl.u32 %v7870, 7
    %v7872 = vsub.s32 6, %v7871
    %v7873 = vrot.slane %v6945, %v7872
    %v7874 = vlaneseq
    %v7875 = vshrl.u32 %v7874, 7
    %v7876 = vsub.s32 7, %v7875
    %v7877 = vrot.slane %v6945, %v7876
    %v7878 = vlaneseq
    %v7879 = vshrl.u32 %v7878, 7
    %v7880 = vsub.s32 0, %v7879
    %v7881 = vrot.slane %v6946, %v7880
    %v7882 = vlaneseq
    %v7883 = vshrl.u32 %v7882, 7
    %v7884 = vsub.s32 1, %v7883
    %v7885 = vrot.slane %v6946, %v7884
    %v7886 = vlaneseq
    %v7887 = vshrl.u32 %v7886, 7
    %v7888 = vsub.s32 2, %v7887
    %v7889 = vrot.slane %v6946, %v7888
    %v7890 = vlaneseq
    %v7891 = vshrl.u32 %v7890, 7
    %v7892 = vsub.s32 3, %v7891
    %v7893 = vrot.slane %v6946, %v7892
    %v7894 = vlaneseq
    %v7895 = vshrl.u32 %v7894, 7
    %v7896 = vsub.s32 4, %v7895
    %v7897 = vrot.slane %v6946, %v7896
    %v7898 = vlaneseq
    %v7899 = vshrl.u32 %v7898, 7
    %v7900 = vsub.s32 5, %v7899
    %v7901 = vrot.slane %v6946, %v7900
    %v7902 = vlaneseq
    %v7903 = vshrl.u32 %v7902, 7
    %v7904 = vsub.s32 6, %v7903
    %v7905 = vrot.slane %v6946, %v7904
    %v7906 = vlaneseq
    %v7907 = vshrl.u32 %v7906, 7
    %v7908 = vsub.s32 7, %v7907
    %v7909 = vrot.slane %v6946, %v7908
    %v7910 = vlaneseq
    %v7911 = vshrl.u32 %v7910, 7
    %v7912 = vsub.s32 0, %v7911
    %v7913 = vrot.slane %v6947, %v7912
    %v7914 = vlaneseq
    %v7915 = vshrl.u32 %v7914, 7
    %v7916 = vsub.s32 1, %v7915
    %v7917 = vrot.slane %v6947, %v7916
    %v7918 = vlaneseq
    %v7919 = vshrl.u32 %v7918, 7
    %v7920 = vsub.s32 2, %v7919
    %v7921 = vrot.slane %v6947, %v7920
    %v7922 = vlaneseq
    %v7923 = vshrl.u32 %v7922, 7
    %v7924 = vsub.s32 3, %v7923
    %v7925 = vrot.slane %v6947, %v7924
    %v7926 = vlaneseq
    %v7927 = vshrl.u32 %v7926, 7
    %v7928 = vsub.s32 4, %v7927
    %v7929 = vrot.slane %v6947, %v7928
    %v7930 = vlaneseq
    %v7931 = vshrl.u32 %v7930, 7
    %v7932 = vsub.s32 5, %v7931
    %v7933 = vrot.slane %v6947, %v7932
    %v7934 = vlaneseq
    %v7935 = vshrl.u32 %v7934, 7
    %v7936 = vsub.s32 6, %v7935
    %v7937 = vrot.slane %v6947, %v7936
    %v7938 = vlaneseq
    %v7939 = vshrl.u32 %v7938, 7
    %v7940 = vsub.s32 7, %v7939
    %v7941 = vrot.slane %v6947, %v7940
    %v7942 = vlaneseq
    %v7943 = vshrl.u32 %v7942, 7
    %v7944 = vsub.s32 0, %v7943
    %v7945 = vrot.slane %v6948, %v7944
    %v7946 = vlaneseq
    %v7947 = vshrl.u32 %v7946, 7
    %v7948 = vsub.s32 1, %v7947
    %v7949 = vrot.slane %v6948, %v7948
    %v7950 = vlaneseq
    %v7951 = vshrl.u32 %v7950, 7
    %v7952 = vsub.s32 2, %v7951
    %v7953 = vrot.slane %v6948, %v7952
    %v7954 = vlaneseq
    %v7955 = vshrl.u32 %v7954, 7
    %v7956 = vsub.s32 3, %v7955
    %v7957 = vrot.slane %v6948, %v7956
    %v7958 = vlaneseq
    %v7959 = vshrl.u32 %v7958, 7
    %v7960 = vsub.s32 4, %v7959
    %v7961 = vrot.slane %v6948, %v7960
    %v7962 = vlaneseq
    %v7963 = vshrl.u32 %v7962, 7
    %v7964 = vsub.s32 5, %v7963
    %v7965 = vrot.slane %v6948, %v7964
    %v7966 = vlaneseq
    %v7967 = vshrl.u32 %v7966, 7
    %v7968 = vsub.s32 6, %v7967
    %v7969 = vrot.slane %v6948, %v7968
    %v7970 = vlaneseq
    %v7971 = vshrl.u32 %v7970, 7
    %v7972 = vsub.s32 7, %v7971
    %v7973 = vrot.slane %v6948, %v7972
    %v7974 = vlaneseq
    %v7975 = vshrl.u32 %v7974, 7
    %v7976 = vsub.s32 0, %v7975
    %v7977 = vrot.slane %v6949, %v7976
    %v7978 = vlaneseq
    %v7979 = vshrl.u32 %v7978, 7
    %v7980 = vsub.s32 1, %v7979
    %v7981 = vrot.slane %v6949, %v7980
    %v7982 = vlaneseq
    %v7983 = vshrl.u32 %v7982, 7
    %v7984 = vsub.s32 2, %v7983
    %v7985 = vrot.slane %v6949, %v7984
    %v7986 = vlaneseq
    %v7987 = vshrl.u32 %v7986, 7
    %v7988 = vsub.s32 3, %v7987
    %v7989 = vrot.slane %v6949, %v7988
    %v7990 = vlaneseq
    %v7991 = vshrl.u32 %v7990, 7
    %v7992 = vsub.s32 4, %v7991
    %v7993 = vrot.slane %v6949, %v7992
    %v7994 = vlaneseq
    %v7995 = vshrl.u32 %v7994, 7
    %v7996 = vsub.s32 5, %v7995
    %v7997 = vrot.slane %v6949, %v7996
    %v7998 = vlaneseq
    %v7999 = vshrl.u32 %v7998, 7
    %v8000 = vsub.s32 6, %v7999
    %v8001 = vrot.slane %v6949, %v8000
    %v8002 = vlaneseq
    %v8003 = vshrl.u32 %v8002, 7
    %v8004 = vsub.s32 7, %v8003
    %v8005 = vrot.slane %v6949, %v8004
    %v8006 = vcombine.low %v6985, %v6989
    %v8007 = vcombine.low %v6993, %v6997
    %v8008 = vcombine.low %v7001, %v7005
    %v8009 = vcombine.low %v7009, %v7013
    %v8011 = vunpack.c.l.s4 1966171168
    %v8012 = vunpack.c.0.s8 %v8011
    %v8013 = vlaneseq
    %v8014 = vshrl.u32 %v8013, 7
    %v8015 = vsub.s32 %v8012, %v8014
    %v8016 = vrot.slane %v8006, %v8015
    %v8018 = vunpack.c.l.s4 1966171168
    %v8019 = vunpack.c.0.s8 %v8018
    %v8020 = vlaneseq
    %v8021 = vshrl.u32 %v8020, 7
    %v8022 = vsub.s32 %v8019, %v8021
    %v8023 = vrot.slane %v8007, %v8022
    %v8025 = vunpack.c.l.s4 1966171168
    %v8026 = vunpack.c.0.s8 %v8025
    %v8027 = vlaneseq
    %v8028 = vshrl.u32 %v8027, 7
    %v8029 = vsub.s32 %v8026, %v8028
    %v8030 = vrot.slane %v8008, %v8029
    %v8032 = vunpack.c.l.s4 1966171168
    %v8033 = vunpack.c.0.s8 %v8032
    %v8034 = vlaneseq
    %v8035 = vshrl.u32 %v8034, 7
    %v8036 = vsub.s32 %v8033, %v8035
    %v8037 = vrot.slane %v8009, %v8036
    %v8038 = vcombine.low %v8016, %v8023
    %v8039 = vcombine.low %v8030, %v8037
    %v8041 = vunpack.c.l.s4 1966171168
    %v8042 = vunpack.c.0.s8 %v8041
    %v8043 = vlaneseq
    %v8044 = vshrl.u32 %v8043, 7
    %v8045 = vsub.s32 %v8042, %v8044
    %v8046 = vrot.slane %v8038, %v8045
    %v8048 = vunpack.c.l.s4 1966171168
    %v8049 = vunpack.c.0.s8 %v8048
    %v8050 = vlaneseq
    %v8051 = vshrl.u32 %v8050, 7
    %v8052 = vsub.s32 %v8049, %v8051
    %v8053 = vrot.slane %v8039, %v8052
    %v8054 = vcombine.low %v8046, %v8053
    %v8055 = vcombine.low %v7017, %v7021
    %v8056 = vcombine.low %v7025, %v7029
    %v8057 = vcombine.low %v7033, %v7037
    %v8058 = vcombine.low %v7041, %v7045
    %v8060 = vunpack.c.l.s4 1966171168
    %v8061 = vunpack.c.0.s8 %v8060
    %v8062 = vlaneseq
    %v8063 = vshrl.u32 %v8062, 7
    %v8064 = vsub.s32 %v8061, %v8063
    %v8065 = vrot.slane %v8055, %v8064
    %v8067 = vunpack.c.l.s4 1966171168
    %v8068 = vunpack.c.0.s8 %v8067
    %v8069 = vlaneseq
    %v8070 = vshrl.u32 %v8069, 7
    %v8071 = vsub.s32 %v8068, %v8070
    %v8072 = vrot.slane %v8056, %v8071
    %v8074 = vunpack.c.l.s4 1966171168
    %v8075 = vunpack.c.0.s8 %v8074
    %v8076 = vlaneseq
    %v8077 = vshrl.u32 %v8076, 7
    %v8078 = vsub.s32 %v8075, %v8077
    %v8079 = vrot.slane %v8057, %v8078
    %v8081 = vunpack.c.l.s4 1966171168
    %v8082 = vunpack.c.0.s8 %v8081
    %v8083 = vlaneseq
    %v8084 = vshrl.u32 %v8083, 7
    %v8085 = vsub.s32 %v8082, %v8084
    %v8086 = vrot.slane %v8058, %v8085
    %v8087 = vcombine.low %v8065, %v8072
    %v8088 = vcombine.low %v8079, %v8086
    %v8090 = vunpack.c.l.s4 1966171168
    %v8091 = vunpack.c.0.s8 %v8090
    %v8092 = vlaneseq
    %v8093 = vshrl.u32 %v8092, 7
    %v8094 = vsub.s32 %v8091, %v8093
    %v8095 = vrot.slane %v8087, %v8094
    %v8097 = vunpack.c.l.s4 1966171168
    %v8098 = vunpack.c.0.s8 %v8097
    %v8099 = vlaneseq
    %v8100 = vshrl.u32 %v8099, 7
    %v8101 = vsub.s32 %v8098, %v8100
    %v8102 = vrot.slane %v8088, %v8101
    %v8103 = vcombine.low %v8095, %v8102
    %v8104 = vcombine.low %v7049, %v7053
    %v8105 = vcombine.low %v7057, %v7061
    %v8106 = vcombine.low %v7065, %v7069
    %v8107 = vcombine.low %v7073, %v7077
    %v8109 = vunpack.c.l.s4 1966171168
    %v8110 = vunpack.c.0.s8 %v8109
    %v8111 = vlaneseq
    %v8112 = vshrl.u32 %v8111, 7
    %v8113 = vsub.s32 %v8110, %v8112
    %v8114 = vrot.slane %v8104, %v8113
    %v8116 = vunpack.c.l.s4 1966171168
    %v8117 = vunpack.c.0.s8 %v8116
    %v8118 = vlaneseq
    %v8119 = vshrl.u32 %v8118, 7
    %v8120 = vsub.s32 %v8117, %v8119
    %v8121 = vrot.slane %v8105, %v8120
    %v8123 = vunpack.c.l.s4 1966171168
    %v8124 = vunpack.c.0.s8 %v8123
    %v8125 = vlaneseq
    %v8126 = vshrl.u32 %v8125, 7
    %v8127 = vsub.s32 %v8124, %v8126
    %v8128 = vrot.slane %v8106, %v8127
    %v8130 = vunpack.c.l.s4 1966171168
    %v8131 = vunpack.c.0.s8 %v8130
    %v8132 = vlaneseq
    %v8133 = vshrl.u32 %v8132, 7
    %v8134 = vsub.s32 %v8131, %v8133
    %v8135 = vrot.slane %v8107, %v8134
    %v8136 = vcombine.low %v8114, %v8121
    %v8137 = vcombine.low %v8128, %v8135
    %v8139 = vunpack.c.l.s4 1966171168
    %v8140 = vunpack.c.0.s8 %v8139
    %v8141 = vlaneseq
    %v8142 = vshrl.u32 %v8141, 7
    %v8143 = vsub.s32 %v8140, %v8142
    %v8144 = vrot.slane %v8136, %v8143
    %v8146 = vunpack.c.l.s4 1966171168
    %v8147 = vunpack.c.0.s8 %v8146
    %v8148 = vlaneseq
    %v8149 = vshrl.u32 %v8148, 7
    %v8150 = vsub.s32 %v8147, %v8149
    %v8151 = vrot.slane %v8137, %v8150
    %v8152 = vcombine.low %v8144, %v8151
    %v8153 = vcombine.low %v7081, %v7085
    %v8154 = vcombine.low %v7089, %v7093
    %v8155 = vcombine.low %v7097, %v7101
    %v8156 = vcombine.low %v7105, %v7109
    %v8158 = vunpack.c.l.s4 1966171168
    %v8159 = vunpack.c.0.s8 %v8158
    %v8160 = vlaneseq
    %v8161 = vshrl.u32 %v8160, 7
    %v8162 = vsub.s32 %v8159, %v8161
    %v8163 = vrot.slane %v8153, %v8162
    %v8165 = vunpack.c.l.s4 1966171168
    %v8166 = vunpack.c.0.s8 %v8165
    %v8167 = vlaneseq
    %v8168 = vshrl.u32 %v8167, 7
    %v8169 = vsub.s32 %v8166, %v8168
    %v8170 = vrot.slane %v8154, %v8169
    %v8172 = vunpack.c.l.s4 1966171168
    %v8173 = vunpack.c.0.s8 %v8172
    %v8174 = vlaneseq
    %v8175 = vshrl.u32 %v8174, 7
    %v8176 = vsub.s32 %v8173, %v8175
    %v8177 = vrot.slane %v8155, %v8176
    %v8179 = vunpack.c.l.s4 1966171168
    %v8180 = vunpack.c.0.s8 %v8179
    %v8181 = vlaneseq
    %v8182 = vshrl.u32 %v8181, 7
    %v8183 = vsub.s32 %v8180, %v8182
    %v8184 = vrot.slane %v8156, %v8183
    %v8185 = vcombine.low %v8163, %v8170
    %v8186 = vcombine.low %v8177, %v8184
    %v8188 = vunpack.c.l.s4 1966171168
    %v8189 = vunpack.c.0.s8 %v8188
    %v8190 = vlaneseq
    %v8191 = vshrl.u32 %v8190, 7
    %v8192 = vsub.s32 %v8189, %v8191
    %v8193 = vrot.slane %v8185, %v8192
    %v8195 = vunpack.c.l.s4 1966171168
    %v8196 = vunpack.c.0.s8 %v8195
    %v8197 = vlaneseq
    %v8198 = vshrl.u32 %v8197, 7
    %v8199 = vsub.s32 %v8196, %v8198
    %v8200 = vrot.slane %v8186, %v8199
    %v8201 = vcombine.low %v8193, %v8200
    %v8202 = vcombine.low %v7113, %v7117
    %v8203 = vcombine.low %v7121, %v7125
    %v8204 = vcombine.low %v7129, %v7133
    %v8205 = vcombine.low %v7137, %v7141
    %v8207 = vunpack.c.l.s4 1966171168
    %v8208 = vunpack.c.0.s8 %v8207
    %v8209 = vlaneseq
    %v8210 = vshrl.u32 %v8209, 7
    %v8211 = vsub.s32 %v8208, %v8210
    %v8212 = vrot.slane %v8202, %v8211
    %v8214 = vunpack.c.l.s4 1966171168
    %v8215 = vunpack.c.0.s8 %v8214
    %v8216 = vlaneseq
    %v8217 = vshrl.u32 %v8216, 7
    %v8218 = vsub.s32 %v8215, %v8217
    %v8219 = vrot.slane %v8203, %v8218
    %v8221 = vunpack.c.l.s4 1966171168
    %v8222 = vunpack.c.0.s8 %v8221
    %v8223 = vlaneseq
    %v8224 = vshrl.u32 %v8223, 7
    %v8225 = vsub.s32 %v8222, %v8224
    %v8226 = vrot.slane %v8204, %v8225
    %v8228 = vunpack.c.l.s4 1966171168
    %v8229 = vunpack.c.0.s8 %v8228
    %v8230 = vlaneseq
    %v8231 = vshrl.u32 %v8230, 7
    %v8232 = vsub.s32 %v8229, %v8231
    %v8233 = vrot.slane %v8205, %v8232
    %v8234 = vcombine.low %v8212, %v8219
    %v8235 = vcombine.low %v8226, %v8233
    %v8237 = vunpack.c.l.s4 1966171168
    %v8238 = vunpack.c.0.s8 %v8237
    %v8239 = vlaneseq
    %v8240 = vshrl.u32 %v8239, 7
    %v8241 = vsub.s32 %v8238, %v8240
    %v8242 = vrot.slane %v8234, %v8241
    %v8244 = vunpack.c.l.s4 1966171168
    %v8245 = vunpack.c.0.s8 %v8244
    %v8246 = vlaneseq
    %v8247 = vshrl.u32 %v8246, 7
    %v8248 = vsub.s32 %v8245, %v8247
    %v8249 = vrot.slane %v8235, %v8248
    %v8250 = vcombine.low %v8242, %v8249
    %v8251 = vcombine.low %v7145, %v7149
    %v8252 = vcombine.low %v7153, %v7157
    %v8253 = vcombine.low %v7161, %v7165
    %v8254 = vcombine.low %v7169, %v7173
    %v8256 = vunpack.c.l.s4 1966171168
    %v8257 = vunpack.c.0.s8 %v8256
    %v8258 = vlaneseq
    %v8259 = vshrl.u32 %v8258, 7
    %v8260 = vsub.s32 %v8257, %v8259
    %v8261 = vrot.slane %v8251, %v8260
    %v8263 = vunpack.c.l.s4 1966171168
    %v8264 = vunpack.c.0.s8 %v8263
    %v8265 = vlaneseq
    %v8266 = vshrl.u32 %v8265, 7
    %v8267 = vsub.s32 %v8264, %v8266
    %v8268 = vrot.slane %v8252, %v8267
    %v8270 = vunpack.c.l.s4 1966171168
    %v8271 = vunpack.c.0.s8 %v8270
    %v8272 = vlaneseq
    %v8273 = vshrl.u32 %v8272, 7
    %v8274 = vsub.s32 %v8271, %v8273
    %v8275 = vrot.slane %v8253, %v8274
    %v8277 = vunpack.c.l.s4 1966171168
    %v8278 = vunpack.c.0.s8 %v8277
    %v8279 = vlaneseq
    %v8280 = vshrl.u32 %v8279, 7
    %v8281 = vsub.s32 %v8278, %v8280
    %v8282 = vrot.slane %v8254, %v8281
    %v8283 = vcombine.low %v8261, %v8268
    %v8284 = vcombine.low %v8275, %v8282
    %v8286 = vunpack.c.l.s4 1966171168
    %v8287 = vunpack.c.0.s8 %v8286
    %v8288 = vlaneseq
    %v8289 = vshrl.u32 %v8288, 7
    %v8290 = vsub.s32 %v8287, %v8289
    %v8291 = vrot.slane %v8283, %v8290
    %v8293 = vunpack.c.l.s4 1966171168
    %v8294 = vunpack.c.0.s8 %v8293
    %v8295 = vlaneseq
    %v8296 = vshrl.u32 %v8295, 7
    %v8297 = vsub.s32 %v8294, %v8296
    %v8298 = vrot.slane %v8284, %v8297
    %v8299 = vcombine.low %v8291, %v8298
    %v8300 = vcombine.low %v7177, %v7181
    %v8301 = vcombine.low %v7185, %v7189
    %v8302 = vcombine.low %v7193, %v7197
    %v8303 = vcombine.low %v7201, %v7205
    %v8305 = vunpack.c.l.s4 1966171168
    %v8306 = vunpack.c.0.s8 %v8305
    %v8307 = vlaneseq
    %v8308 = vshrl.u32 %v8307, 7
    %v8309 = vsub.s32 %v8306, %v8308
    %v8310 = vrot.slane %v8300, %v8309
    %v8312 = vunpack.c.l.s4 1966171168
    %v8313 = vunpack.c.0.s8 %v8312
    %v8314 = vlaneseq
    %v8315 = vshrl.u32 %v8314, 7
    %v8316 = vsub.s32 %v8313, %v8315
    %v8317 = vrot.slane %v8301, %v8316
    %v8319 = vunpack.c.l.s4 1966171168
    %v8320 = vunpack.c.0.s8 %v8319
    %v8321 = vlaneseq
    %v8322 = vshrl.u32 %v8321, 7
    %v8323 = vsub.s32 %v8320, %v8322
    %v8324 = vrot.slane %v8302, %v8323
    %v8326 = vunpack.c.l.s4 1966171168
    %v8327 = vunpack.c.0.s8 %v8326
    %v8328 = vlaneseq
    %v8329 = vshrl.u32 %v8328, 7
    %v8330 = vsub.s32 %v8327, %v8329
    %v8331 = vrot.slane %v8303, %v8330
    %v8332 = vcombine.low %v8310, %v8317
    %v8333 = vcombine.low %v8324, %v8331
    %v8335 = vunpack.c.l.s4 1966171168
    %v8336 = vunpack.c.0.s8 %v8335
    %v8337 = vlaneseq
    %v8338 = vshrl.u32 %v8337, 7
    %v8339 = vsub.s32 %v8336, %v8338
    %v8340 = vrot.slane %v8332, %v8339
    %v8342 = vunpack.c.l.s4 1966171168
    %v8343 = vunpack.c.0.s8 %v8342
    %v8344 = vlaneseq
    %v8345 = vshrl.u32 %v8344, 7
    %v8346 = vsub.s32 %v8343, %v8345
    %v8347 = vrot.slane %v8333, %v8346
    %v8348 = vcombine.low %v8340, %v8347
    %v8349 = vcombine.low %v7209, %v7213
    %v8350 = vcombine.low %v7217, %v7221
    %v8351 = vcombine.low %v7225, %v7229
    %v8352 = vcombine.low %v7233, %v7237
    %v8354 = vunpack.c.l.s4 1966171168
    %v8355 = vunpack.c.0.s8 %v8354
    %v8356 = vlaneseq
    %v8357 = vshrl.u32 %v8356, 7
    %v8358 = vsub.s32 %v8355, %v8357
    %v8359 = vrot.slane %v8349, %v8358
    %v8361 = vunpack.c.l.s4 1966171168
    %v8362 = vunpack.c.0.s8 %v8361
    %v8363 = vlaneseq
    %v8364 = vshrl.u32 %v8363, 7
    %v8365 = vsub.s32 %v8362, %v8364
    %v8366 = vrot.slane %v8350, %v8365
    %v8368 = vunpack.c.l.s4 1966171168
    %v8369 = vunpack.c.0.s8 %v8368
    %v8370 = vlaneseq
    %v8371 = vshrl.u32 %v8370, 7
    %v8372 = vsub.s32 %v8369, %v8371
    %v8373 = vrot.slane %v8351, %v8372
    %v8375 = vunpack.c.l.s4 1966171168
    %v8376 = vunpack.c.0.s8 %v8375
    %v8377 = vlaneseq
    %v8378 = vshrl.u32 %v8377, 7
    %v8379 = vsub.s32 %v8376, %v8378
    %v8380 = vrot.slane %v8352, %v8379
    %v8381 = vcombine.low %v8359, %v8366
    %v8382 = vcombine.low %v8373, %v8380
    %v8384 = vunpack.c.l.s4 1966171168
    %v8385 = vunpack.c.0.s8 %v8384
    %v8386 = vlaneseq
    %v8387 = vshrl.u32 %v8386, 7
    %v8388 = vsub.s32 %v8385, %v8387
    %v8389 = vrot.slane %v8381, %v8388
    %v8391 = vunpack.c.l.s4 1966171168
    %v8392 = vunpack.c.0.s8 %v8391
    %v8393 = vlaneseq
    %v8394 = vshrl.u32 %v8393, 7
    %v8395 = vsub.s32 %v8392, %v8394
    %v8396 = vrot.slane %v8382, %v8395
    %v8397 = vcombine.low %v8389, %v8396
    %v8398 = vcombine.low %v7241, %v7245
    %v8399 = vcombine.low %v7249, %v7253
    %v8400 = vcombine.low %v7257, %v7261
    %v8401 = vcombine.low %v7265, %v7269
    %v8403 = vunpack.c.l.s4 1966171168
    %v8404 = vunpack.c.0.s8 %v8403
    %v8405 = vlaneseq
    %v8406 = vshrl.u32 %v8405, 7
    %v8407 = vsub.s32 %v8404, %v8406
    %v8408 = vrot.slane %v8398, %v8407
    %v8410 = vunpack.c.l.s4 1966171168
    %v8411 = vunpack.c.0.s8 %v8410
    %v8412 = vlaneseq
    %v8413 = vshrl.u32 %v8412, 7
    %v8414 = vsub.s32 %v8411, %v8413
    %v8415 = vrot.slane %v8399, %v8414
    %v8417 = vunpack.c.l.s4 1966171168
    %v8418 = vunpack.c.0.s8 %v8417
    %v8419 = vlaneseq
    %v8420 = vshrl.u32 %v8419, 7
    %v8421 = vsub.s32 %v8418, %v8420
    %v8422 = vrot.slane %v8400, %v8421
    %v8424 = vunpack.c.l.s4 1966171168
    %v8425 = vunpack.c.0.s8 %v8424
    %v8426 = vlaneseq
    %v8427 = vshrl.u32 %v8426, 7
    %v8428 = vsub.s32 %v8425, %v8427
    %v8429 = vrot.slane %v8401, %v8428
    %v8430 = vcombine.low %v8408, %v8415
    %v8431 = vcombine.low %v8422, %v8429
    %v8433 = vunpack.c.l.s4 1966171168
    %v8434 = vunpack.c.0.s8 %v8433
    %v8435 = vlaneseq
    %v8436 = vshrl.u32 %v8435, 7
    %v8437 = vsub.s32 %v8434, %v8436
    %v8438 = vrot.slane %v8430, %v8437
    %v8440 = vunpack.c.l.s4 1966171168
    %v8441 = vunpack.c.0.s8 %v8440
    %v8442 = vlaneseq
    %v8443 = vshrl.u32 %v8442, 7
    %v8444 = vsub.s32 %v8441, %v8443
    %v8445 = vrot.slane %v8431, %v8444
    %v8446 = vcombine.low %v8438, %v8445
    %v8447 = vcombine.low %v7273, %v7277
    %v8448 = vcombine.low %v7281, %v7285
    %v8449 = vcombine.low %v7289, %v7293
    %v8450 = vcombine.low %v7297, %v7301
    %v8452 = vunpack.c.l.s4 1966171168
    %v8453 = vunpack.c.0.s8 %v8452
    %v8454 = vlaneseq
    %v8455 = vshrl.u32 %v8454, 7
    %v8456 = vsub.s32 %v8453, %v8455
    %v8457 = vrot.slane %v8447, %v8456
    %v8459 = vunpack.c.l.s4 1966171168
    %v8460 = vunpack.c.0.s8 %v8459
    %v8461 = vlaneseq
    %v8462 = vshrl.u32 %v8461, 7
    %v8463 = vsub.s32 %v8460, %v8462
    %v8464 = vrot.slane %v8448, %v8463
    %v8466 = vunpack.c.l.s4 1966171168
    %v8467 = vunpack.c.0.s8 %v8466
    %v8468 = vlaneseq
    %v8469 = vshrl.u32 %v8468, 7
    %v8470 = vsub.s32 %v8467, %v8469
    %v8471 = vrot.slane %v8449, %v8470
    %v8473 = vunpack.c.l.s4 1966171168
    %v8474 = vunpack.c.0.s8 %v8473
    %v8475 = vlaneseq
    %v8476 = vshrl.u32 %v8475, 7
    %v8477 = vsub.s32 %v8474, %v8476
    %v8478 = vrot.slane %v8450, %v8477
    %v8479 = vcombine.low %v8457, %v8464
    %v8480 = vcombine.low %v8471, %v8478
    %v8482 = vunpack.c.l.s4 1966171168
    %v8483 = vunpack.c.0.s8 %v8482
    %v8484 = vlaneseq
    %v8485 = vshrl.u32 %v8484, 7
    %v8486 = vsub.s32 %v8483, %v8485
    %v8487 = vrot.slane %v8479, %v8486
    %v8489 = vunpack.c.l.s4 1966171168
    %v8490 = vunpack.c.0.s8 %v8489
    %v8491 = vlaneseq
    %v8492 = vshrl.u32 %v8491, 7
    %v8493 = vsub.s32 %v8490, %v8492
    %v8494 = vrot.slane %v8480, %v8493
    %v8495 = vcombine.low %v8487, %v8494
    %v8496 = vcombine.low %v7305, %v7309
    %v8497 = vcombine.low %v7313, %v7317
    %v8498 = vcombine.low %v7321, %v7325
    %v8499 = vcombine.low %v7329, %v7333
    %v8501 = vunpack.c.l.s4 1966171168
    %v8502 = vunpack.c.0.s8 %v8501
    %v8503 = vlaneseq
    %v8504 = vshrl.u32 %v8503, 7
    %v8505 = vsub.s32 %v8502, %v8504
    %v8506 = vrot.slane %v8496, %v8505
    %v8508 = vunpack.c.l.s4 1966171168
    %v8509 = vunpack.c.0.s8 %v8508
    %v8510 = vlaneseq
    %v8511 = vshrl.u32 %v8510, 7
    %v8512 = vsub.s32 %v8509, %v8511
    %v8513 = vrot.slane %v8497, %v8512
    %v8515 = vunpack.c.l.s4 1966171168
    %v8516 = vunpack.c.0.s8 %v8515
    %v8517 = vlaneseq
    %v8518 = vshrl.u32 %v8517, 7
    %v8519 = vsub.s32 %v8516, %v8518
    %v8520 = vrot.slane %v8498, %v8519
    %v8522 = vunpack.c.l.s4 1966171168
    %v8523 = vunpack.c.0.s8 %v8522
    %v8524 = vlaneseq
    %v8525 = vshrl.u32 %v8524, 7
    %v8526 = vsub.s32 %v8523, %v8525
    %v8527 = vrot.slane %v8499, %v8526
    %v8528 = vcombine.low %v8506, %v8513
    %v8529 = vcombine.low %v8520, %v8527
    %v8531 = vunpack.c.l.s4 1966171168
    %v8532 = vunpack.c.0.s8 %v8531
    %v8533 = vlaneseq
    %v8534 = vshrl.u32 %v8533, 7
    %v8535 = vsub.s32 %v8532, %v8534
    %v8536 = vrot.slane %v8528, %v8535
    %v8538 = vunpack.c.l.s4 1966171168
    %v8539 = vunpack.c.0.s8 %v8538
    %v8540 = vlaneseq
    %v8541 = vshrl.u32 %v8540, 7
    %v8542 = vsub.s32 %v8539, %v8541
    %v8543 = vrot.slane %v8529, %v8542
    %v8544 = vcombine.low %v8536, %v8543
    %v8545 = vcombine.low %v7337, %v7341
    %v8546 = vcombine.low %v7345, %v7349
    %v8547 = vcombine.low %v7353, %v7357
    %v8548 = vcombine.low %v7361, %v7365
    %v8550 = vunpack.c.l.s4 1966171168
    %v8551 = vunpack.c.0.s8 %v8550
    %v8552 = vlaneseq
    %v8553 = vshrl.u32 %v8552, 7
    %v8554 = vsub.s32 %v8551, %v8553
    %v8555 = vrot.slane %v8545, %v8554
    %v8557 = vunpack.c.l.s4 1966171168
    %v8558 = vunpack.c.0.s8 %v8557
    %v8559 = vlaneseq
    %v8560 = vshrl.u32 %v8559, 7
    %v8561 = vsub.s32 %v8558, %v8560
    %v8562 = vrot.slane %v8546, %v8561
    %v8564 = vunpack.c.l.s4 1966171168
    %v8565 = vunpack.c.0.s8 %v8564
    %v8566 = vlaneseq
    %v8567 = vshrl.u32 %v8566, 7
    %v8568 = vsub.s32 %v8565, %v8567
    %v8569 = vrot.slane %v8547, %v8568
    %v8571 = vunpack.c.l.s4 1966171168
    %v8572 = vunpack.c.0.s8 %v8571
    %v8573 = vlaneseq
    %v8574 = vshrl.u32 %v8573, 7
    %v8575 = vsub.s32 %v8572, %v8574
    %v8576 = vrot.slane %v8548, %v8575
    %v8577 = vcombine.low %v8555, %v8562
    %v8578 = vcombine.low %v8569, %v8576
    %v8580 = vunpack.c.l.s4 1966171168
    %v8581 = vunpack.c.0.s8 %v8580
    %v8582 = vlaneseq
    %v8583 = vshrl.u32 %v8582, 7
    %v8584 = vsub.s32 %v8581, %v8583
    %v8585 = vrot.slane %v8577, %v8584
    %v8587 = vunpack.c.l.s4 1966171168
    %v8588 = vunpack.c.0.s8 %v8587
    %v8589 = vlaneseq
    %v8590 = vshrl.u32 %v8589, 7
    %v8591 = vsub.s32 %v8588, %v8590
    %v8592 = vrot.slane %v8578, %v8591
    %v8593 = vcombine.low %v8585, %v8592
    %v8594 = vcombine.low %v7369, %v7373
    %v8595 = vcombine.low %v7377, %v7381
    %v8596 = vcombine.low %v7385, %v7389
    %v8597 = vcombine.low %v7393, %v7397
    %v8599 = vunpack.c.l.s4 1966171168
    %v8600 = vunpack.c.0.s8 %v8599
    %v8601 = vlaneseq
    %v8602 = vshrl.u32 %v8601, 7
    %v8603 = vsub.s32 %v8600, %v8602
    %v8604 = vrot.slane %v8594, %v8603
    %v8606 = vunpack.c.l.s4 1966171168
    %v8607 = vunpack.c.0.s8 %v8606
    %v8608 = vlaneseq
    %v8609 = vshrl.u32 %v8608, 7
    %v8610 = vsub.s32 %v8607, %v8609
    %v8611 = vrot.slane %v8595, %v8610
    %v8613 = vunpack.c.l.s4 1966171168
    %v8614 = vunpack.c.0.s8 %v8613
    %v8615 = vlaneseq
    %v8616 = vshrl.u32 %v8615, 7
    %v8617 = vsub.s32 %v8614, %v8616
    %v8618 = vrot.slane %v8596, %v8617
    %v8620 = vunpack.c.l.s4 1966171168
    %v8621 = vunpack.c.0.s8 %v8620
    %v8622 = vlaneseq
    %v8623 = vshrl.u32 %v8622, 7
    %v8624 = vsub.s32 %v8621, %v8623
    %v8625 = vrot.slane %v8597, %v8624
    %v8626 = vcombine.low %v8604, %v8611
    %v8627 = vcombine.low %v8618, %v8625
    %v8629 = vunpack.c.l.s4 1966171168
    %v8630 = vunpack.c.0.s8 %v8629
    %v8631 = vlaneseq
    %v8632 = vshrl.u32 %v8631, 7
    %v8633 = vsub.s32 %v8630, %v8632
    %v8634 = vrot.slane %v8626, %v8633
    %v8636 = vunpack.c.l.s4 1966171168
    %v8637 = vunpack.c.0.s8 %v8636
    %v8638 = vlaneseq
    %v8639 = vshrl.u32 %v8638, 7
    %v8640 = vsub.s32 %v8637, %v8639
    %v8641 = vrot.slane %v8627, %v8640
    %v8642 = vcombine.low %v8634, %v8641
    %v8643 = vcombine.low %v7401, %v7405
    %v8644 = vcombine.low %v7409, %v7413
    %v8645 = vcombine.low %v7417, %v7421
    %v8646 = vcombine.low %v7425, %v7429
    %v8648 = vunpack.c.l.s4 1966171168
    %v8649 = vunpack.c.0.s8 %v8648
    %v8650 = vlaneseq
    %v8651 = vshrl.u32 %v8650, 7
    %v8652 = vsub.s32 %v8649, %v8651
    %v8653 = vrot.slane %v8643, %v8652
    %v8655 = vunpack.c.l.s4 1966171168
    %v8656 = vunpack.c.0.s8 %v8655
    %v8657 = vlaneseq
    %v8658 = vshrl.u32 %v8657, 7
    %v8659 = vsub.s32 %v8656, %v8658
    %v8660 = vrot.slane %v8644, %v8659
    %v8662 = vunpack.c.l.s4 1966171168
    %v8663 = vunpack.c.0.s8 %v8662
    %v8664 = vlaneseq
    %v8665 = vshrl.u32 %v8664, 7
    %v8666 = vsub.s32 %v8663, %v8665
    %v8667 = vrot.slane %v8645, %v8666
    %v8669 = vunpack.c.l.s4 1966171168
    %v8670 = vunpack.c.0.s8 %v8669
    %v8671 = vlaneseq
    %v8672 = vshrl.u32 %v8671, 7
    %v8673 = vsub.s32 %v8670, %v8672
    %v8674 = vrot.slane %v8646, %v8673
    %v8675 = vcombine.low %v8653, %v8660
    %v8676 = vcombine.low %v8667, %v8674
    %v8678 = vunpack.c.l.s4 1966171168
    %v8679 = vunpack.c.0.s8 %v8678
    %v8680 = vlaneseq
    %v8681 = vshrl.u32 %v8680, 7
    %v8682 = vsub.s32 %v8679, %v8681
    %v8683 = vrot.slane %v8675, %v8682
    %v8685 = vunpack.c.l.s4 1966171168
    %v8686 = vunpack.c.0.s8 %v8685
    %v8687 = vlaneseq
    %v8688 = vshrl.u32 %v8687, 7
    %v8689 = vsub.s32 %v8686, %v8688
    %v8690 = vrot.slane %v8676, %v8689
    %v8691 = vcombine.low %v8683, %v8690
    %v8692 = vcombine.low %v7433, %v7437
    %v8693 = vcombine.low %v7441, %v7445
    %v8694 = vcombine.low %v7449, %v7453
    %v8695 = vcombine.low %v7457, %v7461
    %v8697 = vunpack.c.l.s4 1966171168
    %v8698 = vunpack.c.0.s8 %v8697
    %v8699 = vlaneseq
    %v8700 = vshrl.u32 %v8699, 7
    %v8701 = vsub.s32 %v8698, %v8700
    %v8702 = vrot.slane %v8692, %v8701
    %v8704 = vunpack.c.l.s4 1966171168
    %v8705 = vunpack.c.0.s8 %v8704
    %v8706 = vlaneseq
    %v8707 = vshrl.u32 %v8706, 7
    %v8708 = vsub.s32 %v8705, %v8707
    %v8709 = vrot.slane %v8693, %v8708
    %v8711 = vunpack.c.l.s4 1966171168
    %v8712 = vunpack.c.0.s8 %v8711
    %v8713 = vlaneseq
    %v8714 = vshrl.u32 %v8713, 7
    %v8715 = vsub.s32 %v8712, %v8714
    %v8716 = vrot.slane %v8694, %v8715
    %v8718 = vunpack.c.l.s4 1966171168
    %v8719 = vunpack.c.0.s8 %v8718
    %v8720 = vlaneseq
    %v8721 = vshrl.u32 %v8720, 7
    %v8722 = vsub.s32 %v8719, %v8721
    %v8723 = vrot.slane %v8695, %v8722
    %v8724 = vcombine.low %v8702, %v8709
    %v8725 = vcombine.low %v8716, %v8723
    %v8727 = vunpack.c.l.s4 1966171168
    %v8728 = vunpack.c.0.s8 %v8727
    %v8729 = vlaneseq
    %v8730 = vshrl.u32 %v8729, 7
    %v8731 = vsub.s32 %v8728, %v8730
    %v8732 = vrot.slane %v8724, %v8731
    %v8734 = vunpack.c.l.s4 1966171168
    %v8735 = vunpack.c.0.s8 %v8734
    %v8736 = vlaneseq
    %v8737 = vshrl.u32 %v8736, 7
    %v8738 = vsub.s32 %v8735, %v8737
    %v8739 = vrot.slane %v8725, %v8738
    %v8740 = vcombine.low %v8732, %v8739
    %v8741 = vcombine.low %v7465, %v7469
    %v8742 = vcombine.low %v7473, %v7477
    %v8743 = vcombine.low %v7481, %v7485
    %v8744 = vcombine.low %v7489, %v7493
    %v8746 = vunpack.c.l.s4 1966171168
    %v8747 = vunpack.c.0.s8 %v8746
    %v8748 = vlaneseq
    %v8749 = vshrl.u32 %v8748, 7
    %v8750 = vsub.s32 %v8747, %v8749
    %v8751 = vrot.slane %v8741, %v8750
    %v8753 = vunpack.c.l.s4 1966171168
    %v8754 = vunpack.c.0.s8 %v8753
    %v8755 = vlaneseq
    %v8756 = vshrl.u32 %v8755, 7
    %v8757 = vsub.s32 %v8754, %v8756
    %v8758 = vrot.slane %v8742, %v8757
    %v8760 = vunpack.c.l.s4 1966171168
    %v8761 = vunpack.c.0.s8 %v8760
    %v8762 = vlaneseq
    %v8763 = vshrl.u32 %v8762, 7
    %v8764 = vsub.s32 %v8761, %v8763
    %v8765 = vrot.slane %v8743, %v8764
    %v8767 = vunpack.c.l.s4 1966171168
    %v8768 = vunpack.c.0.s8 %v8767
    %v8769 = vlaneseq
    %v8770 = vshrl.u32 %v8769, 7
    %v8771 = vsub.s32 %v8768, %v8770
    %v8772 = vrot.slane %v8744, %v8771
    %v8773 = vcombine.low %v8751, %v8758
    %v8774 = vcombine.low %v8765, %v8772
    %v8776 = vunpack.c.l.s4 1966171168
    %v8777 = vunpack.c.0.s8 %v8776
    %v8778 = vlaneseq
    %v8779 = vshrl.u32 %v8778, 7
    %v8780 = vsub.s32 %v8777, %v8779
    %v8781 = vrot.slane %v8773, %v8780
    %v8783 = vunpack.c.l.s4 1966171168
    %v8784 = vunpack.c.0.s8 %v8783
    %v8785 = vlaneseq
    %v8786 = vshrl.u32 %v8785, 7
    %v8787 = vsub.s32 %v8784, %v8786
    %v8788 = vrot.slane %v8774, %v8787
    %v8789 = vcombine.low %v8781, %v8788
    %v8790 = vcombine.low %v7497, %v7501
    %v8791 = vcombine.low %v7505, %v7509
    %v8792 = vcombine.low %v7513, %v7517
    %v8793 = vcombine.low %v7521, %v7525
    %v8795 = vunpack.c.l.s4 1966171168
    %v8796 = vunpack.c.0.s8 %v8795
    %v8797 = vlaneseq
    %v8798 = vshrl.u32 %v8797, 7
    %v8799 = vsub.s32 %v8796, %v8798
    %v8800 = vrot.slane %v8790, %v8799
    %v8802 = vunpack.c.l.s4 1966171168
    %v8803 = vunpack.c.0.s8 %v8802
    %v8804 = vlaneseq
    %v8805 = vshrl.u32 %v8804, 7
    %v8806 = vsub.s32 %v8803, %v8805
    %v8807 = vrot.slane %v8791, %v8806
    %v8809 = vunpack.c.l.s4 1966171168
    %v8810 = vunpack.c.0.s8 %v8809
    %v8811 = vlaneseq
    %v8812 = vshrl.u32 %v8811, 7
    %v8813 = vsub.s32 %v8810, %v8812
    %v8814 = vrot.slane %v8792, %v8813
    %v8816 = vunpack.c.l.s4 1966171168
    %v8817 = vunpack.c.0.s8 %v8816
    %v8818 = vlaneseq
    %v8819 = vshrl.u32 %v8818, 7
    %v8820 = vsub.s32 %v8817, %v8819
    %v8821 = vrot.slane %v8793, %v8820
    %v8822 = vcombine.low %v8800, %v8807
    %v8823 = vcombine.low %v8814, %v8821
    %v8825 = vunpack.c.l.s4 1966171168
    %v8826 = vunpack.c.0.s8 %v8825
    %v8827 = vlaneseq
    %v8828 = vshrl.u32 %v8827, 7
    %v8829 = vsub.s32 %v8826, %v8828
    %v8830 = vrot.slane %v8822, %v8829
    %v8832 = vunpack.c.l.s4 1966171168
    %v8833 = vunpack.c.0.s8 %v8832
    %v8834 = vlaneseq
    %v8835 = vshrl.u32 %v8834, 7
    %v8836 = vsub.s32 %v8833, %v8835
    %v8837 = vrot.slane %v8823, %v8836
    %v8838 = vcombine.low %v8830, %v8837
    %v8839 = vcombine.low %v7529, %v7533
    %v8840 = vcombine.low %v7537, %v7541
    %v8841 = vcombine.low %v7545, %v7549
    %v8842 = vcombine.low %v7553, %v7557
    %v8844 = vunpack.c.l.s4 1966171168
    %v8845 = vunpack.c.0.s8 %v8844
    %v8846 = vlaneseq
    %v8847 = vshrl.u32 %v8846, 7
    %v8848 = vsub.s32 %v8845, %v8847
    %v8849 = vrot.slane %v8839, %v8848
    %v8851 = vunpack.c.l.s4 1966171168
    %v8852 = vunpack.c.0.s8 %v8851
    %v8853 = vlaneseq
    %v8854 = vshrl.u32 %v8853, 7
    %v8855 = vsub.s32 %v8852, %v8854
    %v8856 = vrot.slane %v8840, %v8855
    %v8858 = vunpack.c.l.s4 1966171168
    %v8859 = vunpack.c.0.s8 %v8858
    %v8860 = vlaneseq
    %v8861 = vshrl.u32 %v8860, 7
    %v8862 = vsub.s32 %v8859, %v8861
    %v8863 = vrot.slane %v8841, %v8862
    %v8865 = vunpack.c.l.s4 1966171168
    %v8866 = vunpack.c.0.s8 %v8865
    %v8867 = vlaneseq
    %v8868 = vshrl.u32 %v8867, 7
    %v8869 = vsub.s32 %v8866, %v8868
    %v8870 = vrot.slane %v8842, %v8869
    %v8871 = vcombine.low %v8849, %v8856
    %v8872 = vcombine.low %v8863, %v8870
    %v8874 = vunpack.c.l.s4 1966171168
    %v8875 = vunpack.c.0.s8 %v8874
    %v8876 = vlaneseq
    %v8877 = vshrl.u32 %v8876, 7
    %v8878 = vsub.s32 %v8875, %v8877
    %v8879 = vrot.slane %v8871, %v8878
    %v8881 = vunpack.c.l.s4 1966171168
    %v8882 = vunpack.c.0.s8 %v8881
    %v8883 = vlaneseq
    %v8884 = vshrl.u32 %v8883, 7
    %v8885 = vsub.s32 %v8882, %v8884
    %v8886 = vrot.slane %v8872, %v8885
    %v8887 = vcombine.low %v8879, %v8886
    %v8888 = vcombine.low %v7561, %v7565
    %v8889 = vcombine.low %v7569, %v7573
    %v8890 = vcombine.low %v7577, %v7581
    %v8891 = vcombine.low %v7585, %v7589
    %v8893 = vunpack.c.l.s4 1966171168
    %v8894 = vunpack.c.0.s8 %v8893
    %v8895 = vlaneseq
    %v8896 = vshrl.u32 %v8895, 7
    %v8897 = vsub.s32 %v8894, %v8896
    %v8898 = vrot.slane %v8888, %v8897
    %v8900 = vunpack.c.l.s4 1966171168
    %v8901 = vunpack.c.0.s8 %v8900
    %v8902 = vlaneseq
    %v8903 = vshrl.u32 %v8902, 7
    %v8904 = vsub.s32 %v8901, %v8903
    %v8905 = vrot.slane %v8889, %v8904
    %v8907 = vunpack.c.l.s4 1966171168
    %v8908 = vunpack.c.0.s8 %v8907
    %v8909 = vlaneseq
    %v8910 = vshrl.u32 %v8909, 7
    %v8911 = vsub.s32 %v8908, %v8910
    %v8912 = vrot.slane %v8890, %v8911
    %v8914 = vunpack.c.l.s4 1966171168
    %v8915 = vunpack.c.0.s8 %v8914
    %v8916 = vlaneseq
    %v8917 = vshrl.u32 %v8916, 7
    %v8918 = vsub.s32 %v8915, %v8917
    %v8919 = vrot.slane %v8891, %v8918
    %v8920 = vcombine.low %v8898, %v8905
    %v8921 = vcombine.low %v8912, %v8919
    %v8923 = vunpack.c.l.s4 1966171168
    %v8924 = vunpack.c.0.s8 %v8923
    %v8925 = vlaneseq
    %v8926 = vshrl.u32 %v8925, 7
    %v8927 = vsub.s32 %v8924, %v8926
    %v8928 = vrot.slane %v8920, %v8927
    %v8930 = vunpack.c.l.s4 1966171168
    %v8931 = vunpack.c.0.s8 %v8930
    %v8932 = vlaneseq
    %v8933 = vshrl.u32 %v8932, 7
    %v8934 = vsub.s32 %v8931, %v8933
    %v8935 = vrot.slane %v8921, %v8934
    %v8936 = vcombine.low %v8928, %v8935
    %v8937 = vcombine.low %v7593, %v7597
    %v8938 = vcombine.low %v7601, %v7605
    %v8939 = vcombine.low %v7609, %v7613
    %v8940 = vcombine.low %v7617, %v7621
    %v8942 = vunpack.c.l.s4 1966171168
    %v8943 = vunpack.c.0.s8 %v8942
    %v8944 = vlaneseq
    %v8945 = vshrl.u32 %v8944, 7
    %v8946 = vsub.s32 %v8943, %v8945
    %v8947 = vrot.slane %v8937, %v8946
    %v8949 = vunpack.c.l.s4 1966171168
    %v8950 = vunpack.c.0.s8 %v8949
    %v8951 = vlaneseq
    %v8952 = vshrl.u32 %v8951, 7
    %v8953 = vsub.s32 %v8950, %v8952
    %v8954 = vrot.slane %v8938, %v8953
    %v8956 = vunpack.c.l.s4 1966171168
    %v8957 = vunpack.c.0.s8 %v8956
    %v8958 = vlaneseq
    %v8959 = vshrl.u32 %v8958, 7
    %v8960 = vsub.s32 %v8957, %v8959
    %v8961 = vrot.slane %v8939, %v8960
    %v8963 = vunpack.c.l.s4 1966171168
    %v8964 = vunpack.c.0.s8 %v8963
    %v8965 = vlaneseq
    %v8966 = vshrl.u32 %v8965, 7
    %v8967 = vsub.s32 %v8964, %v8966
    %v8968 = vrot.slane %v8940, %v8967
    %v8969 = vcombine.low %v8947, %v8954
    %v8970 = vcombine.low %v8961, %v8968
    %v8972 = vunpack.c.l.s4 1966171168
    %v8973 = vunpack.c.0.s8 %v8972
    %v8974 = vlaneseq
    %v8975 = vshrl.u32 %v8974, 7
    %v8976 = vsub.s32 %v8973, %v8975
    %v8977 = vrot.slane %v8969, %v8976
    %v8979 = vunpack.c.l.s4 1966171168
    %v8980 = vunpack.c.0.s8 %v8979
    %v8981 = vlaneseq
    %v8982 = vshrl.u32 %v8981, 7
    %v8983 = vsub.s32 %v8980, %v8982
    %v8984 = vrot.slane %v8970, %v8983
    %v8985 = vcombine.low %v8977, %v8984
    %v8986 = vcombine.low %v7625, %v7629
    %v8987 = vcombine.low %v7633, %v7637
    %v8988 = vcombine.low %v7641, %v7645
    %v8989 = vcombine.low %v7649, %v7653
    %v8991 = vunpack.c.l.s4 1966171168
    %v8992 = vunpack.c.0.s8 %v8991
    %v8993 = vlaneseq
    %v8994 = vshrl.u32 %v8993, 7
    %v8995 = vsub.s32 %v8992, %v8994
    %v8996 = vrot.slane %v8986, %v8995
    %v8998 = vunpack.c.l.s4 1966171168
    %v8999 = vunpack.c.0.s8 %v8998
    %v9000 = vlaneseq
    %v9001 = vshrl.u32 %v9000, 7
    %v9002 = vsub.s32 %v8999, %v9001
    %v9003 = vrot.slane %v8987, %v9002
    %v9005 = vunpack.c.l.s4 1966171168
    %v9006 = vunpack.c.0.s8 %v9005
    %v9007 = vlaneseq
    %v9008 = vshrl.u32 %v9007, 7
    %v9009 = vsub.s32 %v9006, %v9008
    %v9010 = vrot.slane %v8988, %v9009
    %v9012 = vunpack.c.l.s4 1966171168
    %v9013 = vunpack.c.0.s8 %v9012
    %v9014 = vlaneseq
    %v9015 = vshrl.u32 %v9014, 7
    %v9016 = vsub.s32 %v9013, %v9015
    %v9017 = vrot.slane %v8989, %v9016
    %v9018 = vcombine.low %v8996, %v9003
    %v9019 = vcombine.low %v9010, %v9017
    %v9021 = vunpack.c.l.s4 1966171168
    %v9022 = vunpack.c.0.s8 %v9021
    %v9023 = vlaneseq
    %v9024 = vshrl.u32 %v9023, 7
    %v9025 = vsub.s32 %v9022, %v9024
    %v9026 = vrot.slane %v9018, %v9025
    %v9028 = vunpack.c.l.s4 1966171168
    %v9029 = vunpack.c.0.s8 %v9028
    %v9030 = vlaneseq
    %v9031 = vshrl.u32 %v9030, 7
    %v9032 = vsub.s32 %v9029, %v9031
    %v9033 = vrot.slane %v9019, %v9032
    %v9034 = vcombine.low %v9026, %v9033
    %v9035 = vcombine.low %v7657, %v7661
    %v9036 = vcombine.low %v7665, %v7669
    %v9037 = vcombine.low %v7673, %v7677
    %v9038 = vcombine.low %v7681, %v7685
    %v9040 = vunpack.c.l.s4 1966171168
    %v9041 = vunpack.c.0.s8 %v9040
    %v9042 = vlaneseq
    %v9043 = vshrl.u32 %v9042, 7
    %v9044 = vsub.s32 %v9041, %v9043
    %v9045 = vrot.slane %v9035, %v9044
    %v9047 = vunpack.c.l.s4 1966171168
    %v9048 = vunpack.c.0.s8 %v9047
    %v9049 = vlaneseq
    %v9050 = vshrl.u32 %v9049, 7
    %v9051 = vsub.s32 %v9048, %v9050
    %v9052 = vrot.slane %v9036, %v9051
    %v9054 = vunpack.c.l.s4 1966171168
    %v9055 = vunpack.c.0.s8 %v9054
    %v9056 = vlaneseq
    %v9057 = vshrl.u32 %v9056, 7
    %v9058 = vsub.s32 %v9055, %v9057
    %v9059 = vrot.slane %v9037, %v9058
    %v9061 = vunpack.c.l.s4 1966171168
    %v9062 = vunpack.c.0.s8 %v9061
    %v9063 = vlaneseq
    %v9064 = vshrl.u32 %v9063, 7
    %v9065 = vsub.s32 %v9062, %v9064
    %v9066 = vrot.slane %v9038, %v9065
    %v9067 = vcombine.low %v9045, %v9052
    %v9068 = vcombine.low %v9059, %v9066
    %v9070 = vunpack.c.l.s4 1966171168
    %v9071 = vunpack.c.0.s8 %v9070
    %v9072 = vlaneseq
    %v9073 = vshrl.u32 %v9072, 7
    %v9074 = vsub.s32 %v9071, %v9073
    %v9075 = vrot.slane %v9067, %v9074
    %v9077 = vunpack.c.l.s4 1966171168
    %v9078 = vunpack.c.0.s8 %v9077
    %v9079 = vlaneseq
    %v9080 = vshrl.u32 %v9079, 7
    %v9081 = vsub.s32 %v9078, %v9080
    %v9082 = vrot.slane %v9068, %v9081
    %v9083 = vcombine.low %v9075, %v9082
    %v9084 = vcombine.low %v7689, %v7693
    %v9085 = vcombine.low %v7697, %v7701
    %v9086 = vcombine.low %v7705, %v7709
    %v9087 = vcombine.low %v7713, %v7717
    %v9089 = vunpack.c.l.s4 1966171168
    %v9090 = vunpack.c.0.s8 %v9089
    %v9091 = vlaneseq
    %v9092 = vshrl.u32 %v9091, 7
    %v9093 = vsub.s32 %v9090, %v9092
    %v9094 = vrot.slane %v9084, %v9093
    %v9096 = vunpack.c.l.s4 1966171168
    %v9097 = vunpack.c.0.s8 %v9096
    %v9098 = vlaneseq
    %v9099 = vshrl.u32 %v9098, 7
    %v9100 = vsub.s32 %v9097, %v9099
    %v9101 = vrot.slane %v9085, %v9100
    %v9103 = vunpack.c.l.s4 1966171168
    %v9104 = vunpack.c.0.s8 %v9103
    %v9105 = vlaneseq
    %v9106 = vshrl.u32 %v9105, 7
    %v9107 = vsub.s32 %v9104, %v9106
    %v9108 = vrot.slane %v9086, %v9107
    %v9110 = vunpack.c.l.s4 1966171168
    %v9111 = vunpack.c.0.s8 %v9110
    %v9112 = vlaneseq
    %v9113 = vshrl.u32 %v9112, 7
    %v9114 = vsub.s32 %v9111, %v9113
    %v9115 = vrot.slane %v9087, %v9114
    %v9116 = vcombine.low %v9094, %v9101
    %v9117 = vcombine.low %v9108, %v9115
    %v9119 = vunpack.c.l.s4 1966171168
    %v9120 = vunpack.c.0.s8 %v9119
    %v9121 = vlaneseq
    %v9122 = vshrl.u32 %v9121, 7
    %v9123 = vsub.s32 %v9120, %v9122
    %v9124 = vrot.slane %v9116, %v9123
    %v9126 = vunpack.c.l.s4 1966171168
    %v9127 = vunpack.c.0.s8 %v9126
    %v9128 = vlaneseq
    %v9129 = vshrl.u32 %v9128, 7
    %v9130 = vsub.s32 %v9127, %v9129
    %v9131 = vrot.slane %v9117, %v9130
    %v9132 = vcombine.low %v9124, %v9131
    %v9133 = vcombine.low %v7721, %v7725
    %v9134 = vcombine.low %v7729, %v7733
    %v9135 = vcombine.low %v7737, %v7741
    %v9136 = vcombine.low %v7745, %v7749
    %v9138 = vunpack.c.l.s4 1966171168
    %v9139 = vunpack.c.0.s8 %v9138
    %v9140 = vlaneseq
    %v9141 = vshrl.u32 %v9140, 7
    %v9142 = vsub.s32 %v9139, %v9141
    %v9143 = vrot.slane %v9133, %v9142
    %v9145 = vunpack.c.l.s4 1966171168
    %v9146 = vunpack.c.0.s8 %v9145
    %v9147 = vlaneseq
    %v9148 = vshrl.u32 %v9147, 7
    %v9149 = vsub.s32 %v9146, %v9148
    %v9150 = vrot.slane %v9134, %v9149
    %v9152 = vunpack.c.l.s4 1966171168
    %v9153 = vunpack.c.0.s8 %v9152
    %v9154 = vlaneseq
    %v9155 = vshrl.u32 %v9154, 7
    %v9156 = vsub.s32 %v9153, %v9155
    %v9157 = vrot.slane %v9135, %v9156
    %v9159 = vunpack.c.l.s4 1966171168
    %v9160 = vunpack.c.0.s8 %v9159
    %v9161 = vlaneseq
    %v9162 = vshrl.u32 %v9161, 7
    %v9163 = vsub.s32 %v9160, %v9162
    %v9164 = vrot.slane %v9136, %v9163
    %v9165 = vcombine.low %v9143, %v9150
    %v9166 = vcombine.low %v9157, %v9164
    %v9168 = vunpack.c.l.s4 1966171168
    %v9169 = vunpack.c.0.s8 %v9168
    %v9170 = vlaneseq
    %v9171 = vshrl.u32 %v9170, 7
    %v9172 = vsub.s32 %v9169, %v9171
    %v9173 = vrot.slane %v9165, %v9172
    %v9175 = vunpack.c.l.s4 1966171168
    %v9176 = vunpack.c.0.s8 %v9175
    %v9177 = vlaneseq
    %v9178 = vshrl.u32 %v9177, 7
    %v9179 = vsub.s32 %v9176, %v9178
    %v9180 = vrot.slane %v9166, %v9179
    %v9181 = vcombine.low %v9173, %v9180
    %v9182 = vcombine.low %v7753, %v7757
    %v9183 = vcombine.low %v7761, %v7765
    %v9184 = vcombine.low %v7769, %v7773
    %v9185 = vcombine.low %v7777, %v7781
    %v9187 = vunpack.c.l.s4 1966171168
    %v9188 = vunpack.c.0.s8 %v9187
    %v9189 = vlaneseq
    %v9190 = vshrl.u32 %v9189, 7
    %v9191 = vsub.s32 %v9188, %v9190
    %v9192 = vrot.slane %v9182, %v9191
    %v9194 = vunpack.c.l.s4 1966171168
    %v9195 = vunpack.c.0.s8 %v9194
    %v9196 = vlaneseq
    %v9197 = vshrl.u32 %v9196, 7
    %v9198 = vsub.s32 %v9195, %v9197
    %v9199 = vrot.slane %v9183, %v9198
    %v9201 = vunpack.c.l.s4 1966171168
    %v9202 = vunpack.c.0.s8 %v9201
    %v9203 = vlaneseq
    %v9204 = vshrl.u32 %v9203, 7
    %v9205 = vsub.s32 %v9202, %v9204
    %v9206 = vrot.slane %v9184, %v9205
    %v9208 = vunpack.c.l.s4 1966171168
    %v9209 = vunpack.c.0.s8 %v9208
    %v9210 = vlaneseq
    %v9211 = vshrl.u32 %v9210, 7
    %v9212 = vsub.s32 %v9209, %v9211
    %v9213 = vrot.slane %v9185, %v9212
    %v9214 = vcombine.low %v9192, %v9199
    %v9215 = vcombine.low %v9206, %v9213
    %v9217 = vunpack.c.l.s4 1966171168
    %v9218 = vunpack.c.0.s8 %v9217
    %v9219 = vlaneseq
    %v9220 = vshrl.u32 %v9219, 7
    %v9221 = vsub.s32 %v9218, %v9220
    %v9222 = vrot.slane %v9214, %v9221
    %v9224 = vunpack.c.l.s4 1966171168
    %v9225 = vunpack.c.0.s8 %v9224
    %v9226 = vlaneseq
    %v9227 = vshrl.u32 %v9226, 7
    %v9228 = vsub.s32 %v9225, %v9227
    %v9229 = vrot.slane %v9215, %v9228
    %v9230 = vcombine.low %v9222, %v9229
    %v9231 = vcombine.low %v7785, %v7789
    %v9232 = vcombine.low %v7793, %v7797
    %v9233 = vcombine.low %v7801, %v7805
    %v9234 = vcombine.low %v7809, %v7813
    %v9236 = vunpack.c.l.s4 1966171168
    %v9237 = vunpack.c.0.s8 %v9236
    %v9238 = vlaneseq
    %v9239 = vshrl.u32 %v9238, 7
    %v9240 = vsub.s32 %v9237, %v9239
    %v9241 = vrot.slane %v9231, %v9240
    %v9243 = vunpack.c.l.s4 1966171168
    %v9244 = vunpack.c.0.s8 %v9243
    %v9245 = vlaneseq
    %v9246 = vshrl.u32 %v9245, 7
    %v9247 = vsub.s32 %v9244, %v9246
    %v9248 = vrot.slane %v9232, %v9247
    %v9250 = vunpack.c.l.s4 1966171168
    %v9251 = vunpack.c.0.s8 %v9250
    %v9252 = vlaneseq
    %v9253 = vshrl.u32 %v9252, 7
    %v9254 = vsub.s32 %v9251, %v9253
    %v9255 = vrot.slane %v9233, %v9254
    %v9257 = vunpack.c.l.s4 1966171168
    %v9258 = vunpack.c.0.s8 %v9257
    %v9259 = vlaneseq
    %v9260 = vshrl.u32 %v9259, 7
    %v9261 = vsub.s32 %v9258, %v9260
    %v9262 = vrot.slane %v9234, %v9261
    %v9263 = vcombine.low %v9241, %v9248
    %v9264 = vcombine.low %v9255, %v9262
    %v9266 = vunpack.c.l.s4 1966171168
    %v9267 = vunpack.c.0.s8 %v9266
    %v9268 = vlaneseq
    %v9269 = vshrl.u32 %v9268, 7
    %v9270 = vsub.s32 %v9267, %v9269
    %v9271 = vrot.slane %v9263, %v9270
    %v9273 = vunpack.c.l.s4 1966171168
    %v9274 = vunpack.c.0.s8 %v9273
    %v9275 = vlaneseq
    %v9276 = vshrl.u32 %v9275, 7
    %v9277 = vsub.s32 %v9274, %v9276
    %v9278 = vrot.slane %v9264, %v9277
    %v9279 = vcombine.low %v9271, %v9278
    %v9280 = vcombine.low %v7817, %v7821
    %v9281 = vcombine.low %v7825, %v7829
    %v9282 = vcombine.low %v7833, %v7837
    %v9283 = vcombine.low %v7841, %v7845
    %v9285 = vunpack.c.l.s4 1966171168
    %v9286 = vunpack.c.0.s8 %v9285
    %v9287 = vlaneseq
    %v9288 = vshrl.u32 %v9287, 7
    %v9289 = vsub.s32 %v9286, %v9288
    %v9290 = vrot.slane %v9280, %v9289
    %v9292 = vunpack.c.l.s4 1966171168
    %v9293 = vunpack.c.0.s8 %v9292
    %v9294 = vlaneseq
    %v9295 = vshrl.u32 %v9294, 7
    %v9296 = vsub.s32 %v9293, %v9295
    %v9297 = vrot.slane %v9281, %v9296
    %v9299 = vunpack.c.l.s4 1966171168
    %v9300 = vunpack.c.0.s8 %v9299
    %v9301 = vlaneseq
    %v9302 = vshrl.u32 %v9301, 7
    %v9303 = vsub.s32 %v9300, %v9302
    %v9304 = vrot.slane %v9282, %v9303
    %v9306 = vunpack.c.l.s4 1966171168
    %v9307 = vunpack.c.0.s8 %v9306
    %v9308 = vlaneseq
    %v9309 = vshrl.u32 %v9308, 7
    %v9310 = vsub.s32 %v9307, %v9309
    %v9311 = vrot.slane %v9283, %v9310
    %v9312 = vcombine.low %v9290, %v9297
    %v9313 = vcombine.low %v9304, %v9311
    %v9315 = vunpack.c.l.s4 1966171168
    %v9316 = vunpack.c.0.s8 %v9315
    %v9317 = vlaneseq
    %v9318 = vshrl.u32 %v9317, 7
    %v9319 = vsub.s32 %v9316, %v9318
    %v9320 = vrot.slane %v9312, %v9319
    %v9322 = vunpack.c.l.s4 1966171168
    %v9323 = vunpack.c.0.s8 %v9322
    %v9324 = vlaneseq
    %v9325 = vshrl.u32 %v9324, 7
    %v9326 = vsub.s32 %v9323, %v9325
    %v9327 = vrot.slane %v9313, %v9326
    %v9328 = vcombine.low %v9320, %v9327
    %v9329 = vcombine.low %v7849, %v7853
    %v9330 = vcombine.low %v7857, %v7861
    %v9331 = vcombine.low %v7865, %v7869
    %v9332 = vcombine.low %v7873, %v7877
    %v9334 = vunpack.c.l.s4 1966171168
    %v9335 = vunpack.c.0.s8 %v9334
    %v9336 = vlaneseq
    %v9337 = vshrl.u32 %v9336, 7
    %v9338 = vsub.s32 %v9335, %v9337
    %v9339 = vrot.slane %v9329, %v9338
    %v9341 = vunpack.c.l.s4 1966171168
    %v9342 = vunpack.c.0.s8 %v9341
    %v9343 = vlaneseq
    %v9344 = vshrl.u32 %v9343, 7
    %v9345 = vsub.s32 %v9342, %v9344
    %v9346 = vrot.slane %v9330, %v9345
    %v9348 = vunpack.c.l.s4 1966171168
    %v9349 = vunpack.c.0.s8 %v9348
    %v9350 = vlaneseq
    %v9351 = vshrl.u32 %v9350, 7
    %v9352 = vsub.s32 %v9349, %v9351
    %v9353 = vrot.slane %v9331, %v9352
    %v9355 = vunpack.c.l.s4 1966171168
    %v9356 = vunpack.c.0.s8 %v9355
    %v9357 = vlaneseq
    %v9358 = vshrl.u32 %v9357, 7
    %v9359 = vsub.s32 %v9356, %v9358
    %v9360 = vrot.slane %v9332, %v9359
    %v9361 = vcombine.low %v9339, %v9346
    %v9362 = vcombine.low %v9353, %v9360
    %v9364 = vunpack.c.l.s4 1966171168
    %v9365 = vunpack.c.0.s8 %v9364
    %v9366 = vlaneseq
    %v9367 = vshrl.u32 %v9366, 7
    %v9368 = vsub.s32 %v9365, %v9367
    %v9369 = vrot.slane %v9361, %v9368
    %v9371 = vunpack.c.l.s4 1966171168
    %v9372 = vunpack.c.0.s8 %v9371
    %v9373 = vlaneseq
    %v9374 = vshrl.u32 %v9373, 7
    %v9375 = vsub.s32 %v9372, %v9374
    %v9376 = vrot.slane %v9362, %v9375
    %v9377 = vcombine.low %v9369, %v9376
    %v9378 = vcombine.low %v7881, %v7885
    %v9379 = vcombine.low %v7889, %v7893
    %v9380 = vcombine.low %v7897, %v7901
    %v9381 = vcombine.low %v7905, %v7909
    %v9383 = vunpack.c.l.s4 1966171168
    %v9384 = vunpack.c.0.s8 %v9383
    %v9385 = vlaneseq
    %v9386 = vshrl.u32 %v9385, 7
    %v9387 = vsub.s32 %v9384, %v9386
    %v9388 = vrot.slane %v9378, %v9387
    %v9390 = vunpack.c.l.s4 1966171168
    %v9391 = vunpack.c.0.s8 %v9390
    %v9392 = vlaneseq
    %v9393 = vshrl.u32 %v9392, 7
    %v9394 = vsub.s32 %v9391, %v9393
    %v9395 = vrot.slane %v9379, %v9394
    %v9397 = vunpack.c.l.s4 1966171168
    %v9398 = vunpack.c.0.s8 %v9397
    %v9399 = vlaneseq
    %v9400 = vshrl.u32 %v9399, 7
    %v9401 = vsub.s32 %v9398, %v9400
    %v9402 = vrot.slane %v9380, %v9401
    %v9404 = vunpack.c.l.s4 1966171168
    %v9405 = vunpack.c.0.s8 %v9404
    %v9406 = vlaneseq
    %v9407 = vshrl.u32 %v9406, 7
    %v9408 = vsub.s32 %v9405, %v9407
    %v9409 = vrot.slane %v9381, %v9408
    %v9410 = vcombine.low %v9388, %v9395
    %v9411 = vcombine.low %v9402, %v9409
    %v9413 = vunpack.c.l.s4 1966171168
    %v9414 = vunpack.c.0.s8 %v9413
    %v9415 = vlaneseq
    %v9416 = vshrl.u32 %v9415, 7
    %v9417 = vsub.s32 %v9414, %v9416
    %v9418 = vrot.slane %v9410, %v9417
    %v9420 = vunpack.c.l.s4 1966171168
    %v9421 = vunpack.c.0.s8 %v9420
    %v9422 = vlaneseq
    %v9423 = vshrl.u32 %v9422, 7
    %v9424 = vsub.s32 %v9421, %v9423
    %v9425 = vrot.slane %v9411, %v9424
    %v9426 = vcombine.low %v9418, %v9425
    %v9427 = vcombine.low %v7913, %v7917
    %v9428 = vcombine.low %v7921, %v7925
    %v9429 = vcombine.low %v7929, %v7933
    %v9430 = vcombine.low %v7937, %v7941
    %v9432 = vunpack.c.l.s4 1966171168
    %v9433 = vunpack.c.0.s8 %v9432
    %v9434 = vlaneseq
    %v9435 = vshrl.u32 %v9434, 7
    %v9436 = vsub.s32 %v9433, %v9435
    %v9437 = vrot.slane %v9427, %v9436
    %v9439 = vunpack.c.l.s4 1966171168
    %v9440 = vunpack.c.0.s8 %v9439
    %v9441 = vlaneseq
    %v9442 = vshrl.u32 %v9441, 7
    %v9443 = vsub.s32 %v9440, %v9442
    %v9444 = vrot.slane %v9428, %v9443
    %v9446 = vunpack.c.l.s4 1966171168
    %v9447 = vunpack.c.0.s8 %v9446
    %v9448 = vlaneseq
    %v9449 = vshrl.u32 %v9448, 7
    %v9450 = vsub.s32 %v9447, %v9449
    %v9451 = vrot.slane %v9429, %v9450
    %v9453 = vunpack.c.l.s4 1966171168
    %v9454 = vunpack.c.0.s8 %v9453
    %v9455 = vlaneseq
    %v9456 = vshrl.u32 %v9455, 7
    %v9457 = vsub.s32 %v9454, %v9456
    %v9458 = vrot.slane %v9430, %v9457
    %v9459 = vcombine.low %v9437, %v9444
    %v9460 = vcombine.low %v9451, %v9458
    %v9462 = vunpack.c.l.s4 1966171168
    %v9463 = vunpack.c.0.s8 %v9462
    %v9464 = vlaneseq
    %v9465 = vshrl.u32 %v9464, 7
    %v9466 = vsub.s32 %v9463, %v9465
    %v9467 = vrot.slane %v9459, %v9466
    %v9469 = vunpack.c.l.s4 1966171168
    %v9470 = vunpack.c.0.s8 %v9469
    %v9471 = vlaneseq
    %v9472 = vshrl.u32 %v9471, 7
    %v9473 = vsub.s32 %v9470, %v9472
    %v9474 = vrot.slane %v9460, %v9473
    %v9475 = vcombine.low %v9467, %v9474
    %v9476 = vcombine.low %v7945, %v7949
    %v9477 = vcombine.low %v7953, %v7957
    %v9478 = vcombine.low %v7961, %v7965
    %v9479 = vcombine.low %v7969, %v7973
    %v9481 = vunpack.c.l.s4 1966171168
    %v9482 = vunpack.c.0.s8 %v9481
    %v9483 = vlaneseq
    %v9484 = vshrl.u32 %v9483, 7
    %v9485 = vsub.s32 %v9482, %v9484
    %v9486 = vrot.slane %v9476, %v9485
    %v9488 = vunpack.c.l.s4 1966171168
    %v9489 = vunpack.c.0.s8 %v9488
    %v9490 = vlaneseq
    %v9491 = vshrl.u32 %v9490, 7
    %v9492 = vsub.s32 %v9489, %v9491
    %v9493 = vrot.slane %v9477, %v9492
    %v9495 = vunpack.c.l.s4 1966171168
    %v9496 = vunpack.c.0.s8 %v9495
    %v9497 = vlaneseq
    %v9498 = vshrl.u32 %v9497, 7
    %v9499 = vsub.s32 %v9496, %v9498
    %v9500 = vrot.slane %v9478, %v9499
    %v9502 = vunpack.c.l.s4 1966171168
    %v9503 = vunpack.c.0.s8 %v9502
    %v9504 = vlaneseq
    %v9505 = vshrl.u32 %v9504, 7
    %v9506 = vsub.s32 %v9503, %v9505
    %v9507 = vrot.slane %v9479, %v9506
    %v9508 = vcombine.low %v9486, %v9493
    %v9509 = vcombine.low %v9500, %v9507
    %v9511 = vunpack.c.l.s4 1966171168
    %v9512 = vunpack.c.0.s8 %v9511
    %v9513 = vlaneseq
    %v9514 = vshrl.u32 %v9513, 7
    %v9515 = vsub.s32 %v9512, %v9514
    %v9516 = vrot.slane %v9508, %v9515
    %v9518 = vunpack.c.l.s4 1966171168
    %v9519 = vunpack.c.0.s8 %v9518
    %v9520 = vlaneseq
    %v9521 = vshrl.u32 %v9520, 7
    %v9522 = vsub.s32 %v9519, %v9521
    %v9523 = vrot.slane %v9509, %v9522
    %v9524 = vcombine.low %v9516, %v9523
    %v9525 = vcombine.low %v7977, %v7981
    %v9526 = vcombine.low %v7985, %v7989
    %v9527 = vcombine.low %v7993, %v7997
    %v9528 = vcombine.low %v8001, %v8005
    %v9530 = vunpack.c.l.s4 1966171168
    %v9531 = vunpack.c.0.s8 %v9530
    %v9532 = vlaneseq
    %v9533 = vshrl.u32 %v9532, 7
    %v9534 = vsub.s32 %v9531, %v9533
    %v9535 = vrot.slane %v9525, %v9534
    %v9537 = vunpack.c.l.s4 1966171168
    %v9538 = vunpack.c.0.s8 %v9537
    %v9539 = vlaneseq
    %v9540 = vshrl.u32 %v9539, 7
    %v9541 = vsub.s32 %v9538, %v9540
    %v9542 = vrot.slane %v9526, %v9541
    %v9544 = vunpack.c.l.s4 1966171168
    %v9545 = vunpack.c.0.s8 %v9544
    %v9546 = vlaneseq
    %v9547 = vshrl.u32 %v9546, 7
    %v9548 = vsub.s32 %v9545, %v9547
    %v9549 = vrot.slane %v9527, %v9548
    %v9551 = vunpack.c.l.s4 1966171168
    %v9552 = vunpack.c.0.s8 %v9551
    %v9553 = vlaneseq
    %v9554 = vshrl.u32 %v9553, 7
    %v9555 = vsub.s32 %v9552, %v9554
    %v9556 = vrot.slane %v9528, %v9555
    %v9557 = vcombine.low %v9535, %v9542
    %v9558 = vcombine.low %v9549, %v9556
    %v9560 = vunpack.c.l.s4 1966171168
    %v9561 = vunpack.c.0.s8 %v9560
    %v9562 = vlaneseq
    %v9563 = vshrl.u32 %v9562, 7
    %v9564 = vsub.s32 %v9561, %v9563
    %v9565 = vrot.slane %v9557, %v9564
    %v9567 = vunpack.c.l.s4 1966171168
    %v9568 = vunpack.c.0.s8 %v9567
    %v9569 = vlaneseq
    %v9570 = vshrl.u32 %v9569, 7
    %v9571 = vsub.s32 %v9568, %v9570
    %v9572 = vrot.slane %v9558, %v9571
    %v9573 = vcombine.low %v9565, %v9572
    %9574 = vset.pattern.permute.xlu0 0
    %9575 = vperm.xlu0 %9574, %v8054
    %v9576 = vpop.permute.xlu0 %9575
    %9577 = vset.pattern.permute.xlu0 0
    %9578 = vperm.xlu0 %9577, %v8103
    %v9579 = vpop.permute.xlu0 %9578
    %9580 = vset.pattern.permute.xlu0 0
    %9581 = vperm.xlu0 %9580, %v8152
    %v9582 = vpop.permute.xlu0 %9581
    %9583 = vset.pattern.permute.xlu0 0
    %9584 = vperm.xlu0 %9583, %v8201
    %v9585 = vpop.permute.xlu0 %9584
    %9586 = vset.pattern.permute.xlu0 0
    %9587 = vperm.xlu0 %9586, %v8250
    %v9588 = vpop.permute.xlu0 %9587
    %9589 = vset.pattern.permute.xlu0 0
    %9590 = vperm.xlu0 %9589, %v8299
    %v9591 = vpop.permute.xlu0 %9590
    %9592 = vset.pattern.permute.xlu0 0
    %9593 = vperm.xlu0 %9592, %v8348
    %v9594 = vpop.permute.xlu0 %9593
    %9595 = vset.pattern.permute.xlu0 0
    %9596 = vperm.xlu0 %9595, %v8397
    %v9597 = vpop.permute.xlu0 %9596
    %9598 = vset.pattern.permute.xlu0 0
    %9599 = vperm.xlu0 %9598, %v8446
    %v9600 = vpop.permute.xlu0 %9599
    %9601 = vset.pattern.permute.xlu0 0
    %9602 = vperm.xlu0 %9601, %v8495
    %v9603 = vpop.permute.xlu0 %9602
    %9604 = vset.pattern.permute.xlu0 0
    %9605 = vperm.xlu0 %9604, %v8544
    %v9606 = vpop.permute.xlu0 %9605
    %9607 = vset.pattern.permute.xlu0 0
    %9608 = vperm.xlu0 %9607, %v8593
    %v9609 = vpop.permute.xlu0 %9608
    %9610 = vset.pattern.permute.xlu0 0
    %9611 = vperm.xlu0 %9610, %v8642
    %v9612 = vpop.permute.xlu0 %9611
    %9613 = vset.pattern.permute.xlu0 0
    %9614 = vperm.xlu0 %9613, %v8691
    %v9615 = vpop.permute.xlu0 %9614
    %9616 = vset.pattern.permute.xlu0 0
    %9617 = vperm.xlu0 %9616, %v8740
    %v9618 = vpop.permute.xlu0 %9617
    %9619 = vset.pattern.permute.xlu0 0
    %9620 = vperm.xlu0 %9619, %v8789
    %v9621 = vpop.permute.xlu0 %9620
    %9622 = vset.pattern.permute.xlu0 0
    %9623 = vperm.xlu0 %9622, %v8838
    %v9624 = vpop.permute.xlu0 %9623
    %9625 = vset.pattern.permute.xlu0 0
    %9626 = vperm.xlu0 %9625, %v8887
    %v9627 = vpop.permute.xlu0 %9626
    %9628 = vset.pattern.permute.xlu0 0
    %9629 = vperm.xlu0 %9628, %v8936
    %v9630 = vpop.permute.xlu0 %9629
    %9631 = vset.pattern.permute.xlu0 0
    %9632 = vperm.xlu0 %9631, %v8985
    %v9633 = vpop.permute.xlu0 %9632
    %9634 = vset.pattern.permute.xlu0 0
    %9635 = vperm.xlu0 %9634, %v9034
    %v9636 = vpop.permute.xlu0 %9635
    %9637 = vset.pattern.permute.xlu0 0
    %9638 = vperm.xlu0 %9637, %v9083
    %v9639 = vpop.permute.xlu0 %9638
    %9640 = vset.pattern.permute.xlu0 0
    %9641 = vperm.xlu0 %9640, %v9132
    %v9642 = vpop.permute.xlu0 %9641
    %9643 = vset.pattern.permute.xlu0 0
    %9644 = vperm.xlu0 %9643, %v9181
    %v9645 = vpop.permute.xlu0 %9644
    %9646 = vset.pattern.permute.xlu0 0
    %9647 = vperm.xlu0 %9646, %v9230
    %v9648 = vpop.permute.xlu0 %9647
    %9649 = vset.pattern.permute.xlu0 0
    %9650 = vperm.xlu0 %9649, %v9279
    %v9651 = vpop.permute.xlu0 %9650
    %9652 = vset.pattern.permute.xlu0 0
    %9653 = vperm.xlu0 %9652, %v9328
    %v9654 = vpop.permute.xlu0 %9653
    %9655 = vset.pattern.permute.xlu0 0
    %9656 = vperm.xlu0 %9655, %v9377
    %v9657 = vpop.permute.xlu0 %9656
    %9658 = vset.pattern.permute.xlu0 0
    %9659 = vperm.xlu0 %9658, %v9426
    %v9660 = vpop.permute.xlu0 %9659
    %9661 = vset.pattern.permute.xlu0 0
    %9662 = vperm.xlu0 %9661, %v9475
    %v9663 = vpop.permute.xlu0 %9662
    %9664 = vset.pattern.permute.xlu0 0
    %9665 = vperm.xlu0 %9664, %v9524
    %v9666 = vpop.permute.xlu0 %9665
    %9667 = vset.pattern.permute.xlu0 0
    %9668 = vperm.xlu0 %9667, %v9573
    %v9669 = vpop.permute.xlu0 %9668
    %v9670 = vlaneseq
    %v9671 = vshrl.u32 %v9670, 7
    %v9672 = vsub.s32 %v3295, %v9671
    %v9673 = vrot.slane %v9576, %v9672
    %v9674 = vlaneseq
    %v9675 = vshrl.u32 %v9674, 7
    %v9676 = vsub.s32 %v3300, %v9675
    %v9677 = vrot.slane %v9579, %v9676
    %v9678 = vsel %vm3305, %v9677, %v9673
    %v9679 = vlaneseq
    %v9680 = vshrl.u32 %v9679, 7
    %v9681 = vsub.s32 %v3307, %v9680
    %v9682 = vrot.slane %v9582, %v9681
    %v9683 = vsel %vm3312, %v9682, %v9678
    %v9684 = vlaneseq
    %v9685 = vshrl.u32 %v9684, 7
    %v9686 = vsub.s32 %v3314, %v9685
    %v9687 = vrot.slane %v9585, %v9686
    %v9688 = vsel %vm3319, %v9687, %v9683
    %v9689 = vlaneseq
    %v9690 = vshrl.u32 %v9689, 7
    %v9691 = vsub.s32 %v3321, %v9690
    %v9692 = vrot.slane %v9588, %v9691
    %v9693 = vsel %vm3326, %v9692, %v9688
    %v9694 = vlaneseq
    %v9695 = vshrl.u32 %v9694, 7
    %v9696 = vsub.s32 %v3328, %v9695
    %v9697 = vrot.slane %v9591, %v9696
    %v9698 = vsel %vm3333, %v9697, %v9693
    %v9699 = vlaneseq
    %v9700 = vshrl.u32 %v9699, 7
    %v9701 = vsub.s32 %v3335, %v9700
    %v9702 = vrot.slane %v9594, %v9701
    %v9703 = vsel %vm3340, %v9702, %v9698
    %v9704 = vlaneseq
    %v9705 = vshrl.u32 %v9704, 7
    %v9706 = vsub.s32 %v3342, %v9705
    %v9707 = vrot.slane %v9597, %v9706
    %v9708 = vsel %vm3347, %v9707, %v9703
    %v9709 = vlaneseq
    %v9710 = vshrl.u32 %v9709, 7
    %v9711 = vsub.s32 %v3349, %v9710
    %v9712 = vrot.slane %v9600, %v9711
    %v9713 = vsel %vm3354, %v9712, %v9708
    %v9714 = vlaneseq
    %v9715 = vshrl.u32 %v9714, 7
    %v9716 = vsub.s32 %v3356, %v9715
    %v9717 = vrot.slane %v9603, %v9716
    %v9718 = vsel %vm3361, %v9717, %v9713
    %v9719 = vlaneseq
    %v9720 = vshrl.u32 %v9719, 7
    %v9721 = vsub.s32 %v3363, %v9720
    %v9722 = vrot.slane %v9606, %v9721
    %v9723 = vsel %vm3368, %v9722, %v9718
    %v9724 = vlaneseq
    %v9725 = vshrl.u32 %v9724, 7
    %v9726 = vsub.s32 %v3370, %v9725
    %v9727 = vrot.slane %v9609, %v9726
    %v9728 = vsel %vm3375, %v9727, %v9723
    %v9729 = vlaneseq
    %v9730 = vshrl.u32 %v9729, 7
    %v9731 = vsub.s32 %v3377, %v9730
    %v9732 = vrot.slane %v9612, %v9731
    %v9733 = vsel %vm3382, %v9732, %v9728
    %v9734 = vlaneseq
    %v9735 = vshrl.u32 %v9734, 7
    %v9736 = vsub.s32 %v3384, %v9735
    %v9737 = vrot.slane %v9615, %v9736
    %v9738 = vsel %vm3389, %v9737, %v9733
    %v9739 = vlaneseq
    %v9740 = vshrl.u32 %v9739, 7
    %v9741 = vsub.s32 %v3391, %v9740
    %v9742 = vrot.slane %v9618, %v9741
    %v9743 = vsel %vm3396, %v9742, %v9738
    %v9744 = vlaneseq
    %v9745 = vshrl.u32 %v9744, 7
    %v9746 = vsub.s32 %v3398, %v9745
    %v9747 = vrot.slane %v9621, %v9746
    %v9748 = vsel %vm3403, %v9747, %v9743
    %v9749 = vlaneseq
    %v9750 = vshrl.u32 %v9749, 7
    %v9751 = vsub.s32 %v3295, %v9750
    %v9752 = vrot.slane %v9624, %v9751
    %v9753 = vlaneseq
    %v9754 = vshrl.u32 %v9753, 7
    %v9755 = vsub.s32 %v3300, %v9754
    %v9756 = vrot.slane %v9627, %v9755
    %v9757 = vsel %vm3305, %v9756, %v9752
    %v9758 = vlaneseq
    %v9759 = vshrl.u32 %v9758, 7
    %v9760 = vsub.s32 %v3307, %v9759
    %v9761 = vrot.slane %v9630, %v9760
    %v9762 = vsel %vm3312, %v9761, %v9757
    %v9763 = vlaneseq
    %v9764 = vshrl.u32 %v9763, 7
    %v9765 = vsub.s32 %v3314, %v9764
    %v9766 = vrot.slane %v9633, %v9765
    %v9767 = vsel %vm3319, %v9766, %v9762
    %v9768 = vlaneseq
    %v9769 = vshrl.u32 %v9768, 7
    %v9770 = vsub.s32 %v3321, %v9769
    %v9771 = vrot.slane %v9636, %v9770
    %v9772 = vsel %vm3326, %v9771, %v9767
    %v9773 = vlaneseq
    %v9774 = vshrl.u32 %v9773, 7
    %v9775 = vsub.s32 %v3328, %v9774
    %v9776 = vrot.slane %v9639, %v9775
    %v9777 = vsel %vm3333, %v9776, %v9772
    %v9778 = vlaneseq
    %v9779 = vshrl.u32 %v9778, 7
    %v9780 = vsub.s32 %v3335, %v9779
    %v9781 = vrot.slane %v9642, %v9780
    %v9782 = vsel %vm3340, %v9781, %v9777
    %v9783 = vlaneseq
    %v9784 = vshrl.u32 %v9783, 7
    %v9785 = vsub.s32 %v3342, %v9784
    %v9786 = vrot.slane %v9645, %v9785
    %v9787 = vsel %vm3347, %v9786, %v9782
    %v9788 = vlaneseq
    %v9789 = vshrl.u32 %v9788, 7
    %v9790 = vsub.s32 %v3349, %v9789
    %v9791 = vrot.slane %v9648, %v9790
    %v9792 = vsel %vm3354, %v9791, %v9787
    %v9793 = vlaneseq
    %v9794 = vshrl.u32 %v9793, 7
    %v9795 = vsub.s32 %v3356, %v9794
    %v9796 = vrot.slane %v9651, %v9795
    %v9797 = vsel %vm3361, %v9796, %v9792
    %v9798 = vlaneseq
    %v9799 = vshrl.u32 %v9798, 7
    %v9800 = vsub.s32 %v3363, %v9799
    %v9801 = vrot.slane %v9654, %v9800
    %v9802 = vsel %vm3368, %v9801, %v9797
    %v9803 = vlaneseq
    %v9804 = vshrl.u32 %v9803, 7
    %v9805 = vsub.s32 %v3370, %v9804
    %v9806 = vrot.slane %v9657, %v9805
    %v9807 = vsel %vm3375, %v9806, %v9802
    %v9808 = vlaneseq
    %v9809 = vshrl.u32 %v9808, 7
    %v9810 = vsub.s32 %v3377, %v9809
    %v9811 = vrot.slane %v9660, %v9810
    %v9812 = vsel %vm3382, %v9811, %v9807
    %v9813 = vlaneseq
    %v9814 = vshrl.u32 %v9813, 7
    %v9815 = vsub.s32 %v3384, %v9814
    %v9816 = vrot.slane %v9663, %v9815
    %v9817 = vsel %vm3389, %v9816, %v9812
    %v9818 = vlaneseq
    %v9819 = vshrl.u32 %v9818, 7
    %v9820 = vsub.s32 %v3391, %v9819
    %v9821 = vrot.slane %v9666, %v9820
    %v9822 = vsel %vm3396, %v9821, %v9817
    %v9823 = vlaneseq
    %v9824 = vshrl.u32 %v9823, 7
    %v9825 = vsub.s32 %v3398, %v9824
    %v9826 = vrot.slane %v9669, %v9825
    %v9827 = vsel %vm3403, %v9826, %v9822
    %v9828 = vcombine.low %v9748, %v9827
    %v9830 = vunpack.c.l.s4 1966171168
    %v9831 = vunpack.c.0.s8 %v9830
    %v9832 = vlaneseq
    %v9833 = vshrl.u32 %v9832, 7
    %v9834 = vsub.s32 %v9831, %v9833
    %v9835 = vrot.slane %v9828, %v9834
    %v9837 = vunpack.c.l.s4 1966171168
    %v9838 = vunpack.c.0.s8 %v9837
    %v9839 = vlaneseq
    %v9840 = vshrl.u32 %v9839, 7
    %v9841 = vsub.s32 %v9838, %v9840
    %v9842 = vrot.slane %v9835, %v9841
    %s9844 = scalar_lea.vmem [#allocation3], 2
    %9845 = vst.msk [vmem:[%s9844] ss:$4 sm:$0x3] %vm3503, %v9842
    // Predicated region
    $region22: #{tpu_custom_call.1} parent=1 // pred_check
      _
    $region23: #{tpu_custom_call.1} parent=1 // pred_check_branch
      %9847 = sbr.rel (0) target = $region25
    $region24: #{tpu_custom_call.1} parent=1 // pred_region
      %s9849 = ssub.s32 128, 128
      %9850 = vsyncadd [#allocation4], %s9849
      %s9852 = sshll.u32 [#allocation3], 4
      %s9853 = int_to_ptr.vmem [resolvable:$true] %s9852
      %9855 = dma.vmem_to_hbm [thread:$0]  %s9853, 128, %s5, [#allocation4]
    $region25: #{tpu_custom_call.1} parent=1 // pred_fallthru
      _
    // Predicated region
    $region26: #{tpu_custom_call.1} parent=1 // pred_check
      _
    $region27: #{tpu_custom_call.1} parent=1 // pred_check_branch
      %9857 = sbr.rel (0) target = $region29
    $region28: #{tpu_custom_call.1} parent=1 // pred_region
      %9858 = dma.done [#allocation4], 128
    $region29: #{tpu_custom_call.1} parent=1 // pred_fallthru
      _
    %9859 = vsyncpa [#allocation4], 1

</llo_original>
